<compile_context>
chip_gen: v5e
topology: v5e:2x2
jax: 0.10.0
libtpu: 0.0.40
codegen_flags: <defaults>
</compile_context>

<pallas_src>
import functools

import numpy as np
import jax
import jax.numpy as jnp
from jax.experimental import pallas as pl
from jax.experimental.pallas import tpu as pltpu


# ----------------------------------------------------------------------------
# Kernels
# ----------------------------------------------------------------------------

def _conv_pair_pool_kernel(x_ref, wa_ref, ba_ref, wb_ref, bb_ref, m_ref, s_ref,
                           o_ref, bpad_ref, y_ref, *, wp):
    """Two fused 3x3 convs (bias+ReLU, HAT gate pre-folded) + 2x2 maxpool, one image.

    Activations are 2-D: rows = flattened padded (h, w) raster with row pitch
    `wp` = W + 2, lanes = channels.  A 3x3 tap is then a contiguous
    sublane-offset window, so each conv is 9 unrolled matmul-accumulates.

    x_ref   : (Mpad, Cin)  f32  padded+flattened input (zeros at pad rows/cols)
    wa_ref  : (9, Cin, Ca) bf16 conv-A taps (HAT gate folded in)
    ba_ref  : (1, Ca)      f32  conv-A bias (gate folded in)
    wb_ref  : (9, Ca, Cb)  bf16 conv-B taps
    bb_ref  : (1, Cb)      f32  conv-B bias
    m_ref   : (M1, 1)      f32  validity mask (0 on the raster's pad columns)
    s_ref   : (Mout, L)    f32  constant 0/1 selection matrix: gathers the
                                stride-2 pooled rows and scatters them into the
                                next stage's padded layout (row gather on MXU)
    o_ref   : (Mout, Cb)   f32  output = next stage's padded input / flat features
    bpad_ref: (Mpad, Ca)   f32  scratch: re-padded conv-A activations
    y_ref   : (M1, Cb)     f32  scratch: conv-B activations
    """
    m1 = y_ref.shape[0]
    L = s_ref.shape[1]

    # ---- conv A: 9 unrolled tap matmuls (bf16 MXU, f32 accumulation) --------
    acc = jnp.zeros((m1, wa_ref.shape[2]), jnp.float32)
    for t in range(9):
        dy, dx = divmod(t, 3)
        lhs = x_ref[pl.ds(dy * wp + dx, m1), :].astype(jnp.bfloat16)
        acc = acc + jnp.dot(lhs, wa_ref[t], preferred_element_type=jnp.float32)
    ha = jnp.maximum(acc + ba_ref[...], 0.0) * m_ref[...]   # zero the pad columns

    # Re-pad for conv B entirely in VMEM (zeros everywhere except valid rows).
    bpad_ref[...] = jnp.zeros_like(bpad_ref)
    bpad_ref[pl.ds(wp + 1, m1), :] = ha

    # ---- conv B --------------------------------------------------------------
    accb = jnp.zeros((m1, wb_ref.shape[2]), jnp.float32)
    for t in range(9):
        dy, dx = divmod(t, 3)
        lhs = bpad_ref[pl.ds(dy * wp + dx, m1), :].astype(jnp.bfloat16)
        accb = accb + jnp.dot(lhs, wb_ref[t], preferred_element_type=jnp.float32)
    y_ref[...] = jnp.maximum(accb + bb_ref[...], 0.0)

    # ---- 2x2 max pool: elementwise max of 4 shifted windows ------------------
    pooled = jnp.maximum(
        jnp.maximum(y_ref[pl.ds(0, L), :], y_ref[pl.ds(1, L), :]),
        jnp.maximum(y_ref[pl.ds(wp, L), :], y_ref[pl.ds(wp + 1, L), :]))

    # ---- stride-2 row gather + scatter into next-stage padded layout ---------
    o_ref[...] = jnp.dot(s_ref[...], pooled, preferred_element_type=jnp.float32)


def _fc_heads_kernel(x_ref, w1_ref, b1_ref, w2_ref, b2_ref, o_ref):
    """fc1 + bias + ReLU + all task heads fused (both matmuls bf16 on the MXU).

    The fc1 HAT gate is pre-folded into w2 rows; drop1/drop2 are identity (eval).
    """
    h = jnp.dot(x_ref[...], w1_ref[...], preferred_element_type=jnp.float32)
    h = jnp.maximum(h + b1_ref[...], 0.0)
    y = jnp.dot(h.astype(jnp.bfloat16), w2_ref[...],
                preferred_element_type=jnp.float32)
    o_ref[...] = (y + b2_ref[...]).astype(o_ref.dtype)


# ----------------------------------------------------------------------------
# Wrappers
# ----------------------------------------------------------------------------

def _conv_pair_pool(x_flat, wa, ba, ga, wb, bb, gb, mask, sel, *, wp):
    """x_flat: (N, Mpad, Cin) f32 padded raster.  Returns (N, Mout, Cb) f32."""
    N, mpad, cin = x_flat.shape
    ca = wa.shape[-1]
    cb = wb.shape[-1]
    m1 = mask.shape[0]
    mout = sel.shape[0]

    # Fold the (non-negative) per-channel HAT gates into weights + bias:
    #   relu(z + b) * g == relu(z*g + b*g)   since g = sigmoid(.) >= 0
    wa_eff = (wa * ga).reshape(9, cin, ca).astype(jnp.bfloat16)
    ba_eff = (ba * ga).reshape(1, ca).astype(jnp.float32)
    wb_eff = (wb * gb).reshape(9, ca, cb).astype(jnp.bfloat16)
    bb_eff = (bb * gb).reshape(1, cb).astype(jnp.float32)

    return pl.pallas_call(
        functools.partial(_conv_pair_pool_kernel, wp=wp),
        out_shape=jax.ShapeDtypeStruct((N, mout, cb), jnp.float32),
        grid=(N,),
        in_specs=[
            pl.BlockSpec((None, mpad, cin), lambda n: (n, 0, 0)),
            pl.BlockSpec((9, cin, ca), lambda n: (0, 0, 0)),
            pl.BlockSpec((1, ca), lambda n: (0, 0)),
            pl.BlockSpec((9, ca, cb), lambda n: (0, 0, 0)),
            pl.BlockSpec((1, cb), lambda n: (0, 0)),
            pl.BlockSpec((m1, 1), lambda n: (0, 0)),
            pl.BlockSpec((mout, sel.shape[1]), lambda n: (0, 0)),
        ],
        out_specs=pl.BlockSpec((None, mout, cb), lambda n: (n, 0, 0)),
        scratch_shapes=[
            pltpu.VMEM((mpad, ca), jnp.float32),
            pltpu.VMEM((m1, cb), jnp.float32),
        ],
        compiler_params=pltpu.CompilerParams(
            dimension_semantics=("parallel",)),
    )(x_flat, wa_eff, ba_eff, wb_eff, bb_eff, mask, sel)


def _fc1_and_heads(h_flat, w1, b1, gfc1, w2_cat, b2_cat):
    N = h_flat.shape[0]
    P = w2_cat.shape[1]
    # Fold the fc1 HAT gate into the head weights: (h*g) @ W2 == h @ (g[:,None]*W2)
    w2_eff = (gfc1[:, None] * w2_cat).astype(jnp.bfloat16)
    return pl.pallas_call(
        _fc_heads_kernel,
        out_shape=jax.ShapeDtypeStruct((N, P), jnp.float32),
    )(h_flat.astype(jnp.bfloat16),
      w1.astype(jnp.bfloat16),
      b1.reshape(1, -1).astype(jnp.float32),
      w2_eff,
      b2_cat.reshape(1, -1).astype(jnp.float32))


# ----------------------------------------------------------------------------
# Shape-dependent constants (built once, with numpy, at build time)
# ----------------------------------------------------------------------------

def _make_stage_consts(h, w, *, pad_next):
    wp = w + 2
    m1 = h * wp
    L = m1 - wp - 1
    # Validity mask of the (h, wp) raster columns (junk columns j >= w -> 0).
    mask = (np.arange(m1) % wp < w).astype(np.float32).reshape(m1, 1)
    h2, w2 = h // 2, w // 2
    if pad_next:
        wp2 = w2 + 2
        mout = (h2 + 2) * wp2 + 2              # next stage's padded raster size

        def dst(oi, oj):
            return (oi + 1) * wp2 + (oj + 1)
    else:
        mout = h2 * w2                          # flat NHWC features for fc1

        def dst(oi, oj):
            return oi * w2 + oj
    sel = np.zeros((mout, L), np.float32)
    for oi in range(h2):
        for oj in range(w2):
            sel[dst(oi, oj), 2 * oi * wp + 2 * oj] = 1.0
    return {"wp": wp, "mask": jnp.asarray(mask), "sel": jnp.asarray(sel)}


# ----------------------------------------------------------------------------
# Model: parameters + forward
# ----------------------------------------------------------------------------

def init_params(key, ncha, size, taskcla):
    ntasks = len(taskcla)
    keys = iter(jax.random.split(key, 64))

    def conv_w(cin, cout):
        return jax.random.normal(next(keys), (3, 3, cin, cout),
                                 jnp.float32) * (2.0 / (9 * cin)) ** 0.5

    def lin_w(din, dout):
        return jax.random.normal(next(keys), (din, dout),
                                 jnp.float32) * (2.0 / din) ** 0.5

    def bias(n):
        return 0.1 * jax.random.normal(next(keys), (n,), jnp.float32)

    def emb(dim):
        return jax.random.normal(next(keys), (ntasks, dim), jnp.float32)

    smid = ((size // 2) // 2) // 2
    fc1_in = smid * smid * 128                 # rows in NHWC-flatten order

    head_sizes = [n for (_, n) in taskcla]
    sum_n = sum(head_sizes)
    p_out = max(128, ((sum_n + 127) // 128) * 128)   # lane-dense head width
    last_w = jnp.concatenate([lin_w(256, n) for n in head_sizes], axis=1)
    last_b = jnp.concatenate([bias(n) for n in head_sizes], axis=0)
    last_w = jnp.pad(last_w, ((0, 0), (0, p_out - sum_n)))
    last_b = jnp.pad(last_b, ((0, p_out - sum_n),))

    params = {
        "c1_w": conv_w(ncha, 32), "c1_b": bias(32),
        "c2_w": conv_w(32, 32),   "c2_b": bias(32),
        "c3_w": conv_w(32, 64),   "c3_b": bias(64),
        "c4_w": conv_w(64, 64),   "c4_b": bias(64),
        "c5_w": conv_w(64, 128),  "c5_b": bias(128),
        "c6_w": conv_w(128, 128), "c6_b": bias(128),
        "fc1_w": lin_w(fc1_in, 256), "fc1_b": bias(256),
        "ec1": emb(32), "ec2": emb(32), "ec3": emb(64), "ec4": emb(64),
        "ec5": emb(128), "ec6": emb(128), "efc1": emb(256),
        "last_w_cat": last_w, "last_b_cat": last_b,
    }
    cfg = {"ncha": ncha, "size": size, "smid": smid,
           "head_sizes": tuple(head_sizes)}
    return params, cfg


def build_forward(cfg):
    ncha, size, smid = cfg["ncha"], cfg["size"], cfg["smid"]
    head_sizes = cfg["head_sizes"]

    st1 = _make_stage_consts(size, size, pad_next=True)
    st2 = _make_stage_consts(size // 2, size // 2, pad_next=True)
    st3 = _make_stage_consts(size // 4, size // 4, pad_next=False)

    @jax.jit
    def forward(params, t, x_nchw, s):
        g = jax.nn.sigmoid
        gc1 = g(s * params["ec1"][t]); gc2 = g(s * params["ec2"][t])
        gc3 = g(s * params["ec3"][t]); gc4 = g(s * params["ec4"][t])
        gc5 = g(s * params["ec5"][t]); gc6 = g(s * params["ec6"][t])
        gfc1 = g(s * params["efc1"][t])
        masks = [gc1, gc2, gc3, gc4, gc5, gc6, gfc1]

        N = x_nchw.shape[0]
        # NCHW -> NHWC, pad H/W by 1, flatten the padded raster, add 2 slop rows.
        x = jnp.transpose(x_nchw, (0, 2, 3, 1))
        x = jnp.pad(x, ((0, 0), (1, 1), (1, 1), (0, 0)))
        x = x.reshape(N, (size + 2) * (size + 2), ncha)
        x = jnp.pad(x, ((0, 0), (0, 2), (0, 0))).astype(jnp.float32)

        h = _conv_pair_pool(x, params["c1_w"], params["c1_b"], gc1,
                            params["c2_w"], params["c2_b"], gc2,
                            st1["mask"], st1["sel"], wp=st1["wp"])   # drop1: id
        h = _conv_pair_pool(h, params["c3_w"], params["c3_b"], gc3,
                            params["c4_w"], params["c4_b"], gc4,
                            st2["mask"], st2["sel"], wp=st2["wp"])   # drop1: id
        h = _conv_pair_pool(h, params["c5_w"], params["c5_b"], gc5,
                            params["c6_w"], params["c6_b"], gc6,
                            st3["mask"], st3["sel"], wp=st3["wp"])   # drop1: id

        h = h.reshape(N, smid * smid * 128)          # NHWC-flatten feature order
        logits = _fc1_and_heads(h, params["fc1_w"], params["fc1_b"], gfc1,
                                params["last_w_cat"], params["last_b_cat"])
        y, off = [], 0
        for n in head_sizes:
            y.append(logits[:, off:off + n])
            off += n
        return y, masks

    return forward


# ----------------------------------------------------------------------------
# Pure-JAX f32 reference (for a loose numerical sanity check)
# ----------------------------------------------------------------------------

def reference_forward(params, cfg, t, x_nchw, s):
    g = jax.nn.sigmoid
    gc = [g(s * params[f"ec{i}"][t]) for i in range(1, 7)]
    gfc1 = g(s * params["efc1"][t])
    N = x_nchw.shape[0]

    def conv(x, w, b):
        return jax.lax.conv_general_dilated(
            x, w, window_strides=(1, 1), padding="SAME",
            dimension_numbers=("NHWC", "HWIO", "NHWC")) + b

    def pool2(x):
        n, hh, ww, c = x.shape
        return x.reshape(n, hh // 2, 2, ww // 2, 2, c).max(axis=(2, 4))

    h = jnp.transpose(x_nchw, (0, 2, 3, 1))
    h = jax.nn.relu(conv(h, params["c1_w"], params["c1_b"])) * gc[0]
    h = jax.nn.relu(conv(h, params["c2_w"], params["c2_b"])) * gc[1]
    h = pool2(h)
    h = jax.nn.relu(conv(h, params["c3_w"], params["c3_b"])) * gc[2]
    h = jax.nn.relu(conv(h, params["c4_w"], params["c4_b"])) * gc[3]
    h = pool2(h)
    h = jax.nn.relu(conv(h, params["c5_w"], params["c5_b"])) * gc[4]
    h = jax.nn.relu(conv(h, params["c6_w"], params["c6_b"])) * gc[5]
    h = pool2(h)
    h = h.reshape(N, -1)
    h = jax.nn.relu(h @ params["fc1_w"] + params["fc1_b"]) * gfc1
    logits = h @ params["last_w_cat"] + params["last_b_cat"]
    y, off = [], 0
    for n in cfg["head_sizes"]:
        y.append(logits[:, off:off + n])
        off += n
    return y


# ----------------------------------------------------------------------------
# Main
# ----------------------------------------------------------------------------

if __name__ == "__main__":
    key = jax.random.PRNGKey(0)

    ncha, size, batch = 4, 16, 2
    taskcla = [(0, 10), (1, 5)]

    params, cfg = init_params(key, ncha, size, taskcla)
    forward = build_forward(cfg)

    x = jax.random.normal(jax.random.fold_in(key, 1234),
                          (batch, ncha, size, size), jnp.float32)

    y, masks = forward(params, jnp.int32(0), x, jnp.float32(1.0))
    jax.block_until_ready((y, masks))

    assert len(y) == len(taskcla)
    for (_, n), yi in zip(taskcla, y):
        assert yi.shape == (batch, n), yi.shape
    assert len(masks) == 7

    # Loose check vs the pure-JAX f32 reference (kernel path uses bf16 MXU).
    y_expect = reference_forward(params, cfg, 0, x, 1.0)
    for yi, ri in zip(y, y_expect):
        err = float(jnp.max(jnp.abs(yi.astype(jnp.float32) - ri)))
        scale = float(jnp.max(jnp.abs(ri))) + 1e-3
        assert err <= 0.12 * scale + 0.05, (err, scale)

    print("KERNEL_OK")
</pallas_src>

<mosaic_0001>
module attributes {stable_mosaic.version = 11 : i64} {
  func.func @_conv_pair_pool_kernel(%arg0: i32, %arg1: memref<1x102x32xf32, #tpu.memory_space<vmem>>, %arg2: memref<9x32x64xbf16, #tpu.memory_space<vmem>>, %arg3: memref<1x64xf32, #tpu.memory_space<vmem>>, %arg4: memref<9x64x64xbf16, #tpu.memory_space<vmem>>, %arg5: memref<1x64xf32, #tpu.memory_space<vmem>>, %arg6: memref<80x1xf32, #tpu.memory_space<vmem>>, %arg7: memref<38x69xf32, #tpu.memory_space<vmem>>, %arg8: memref<1x38x64xf32, #tpu.memory_space<vmem>>, %arg9: memref<102x64xf32, #tpu.memory_space<vmem>>, %arg10: memref<80x64xf32, #tpu.memory_space<vmem>>) attributes {dimension_semantics = [#tpu.dimension_semantics<parallel>], iteration_bounds = array<i64: 2>, scalar_prefetch = 0 : i64, scratch_operands = 2 : i64, tpu.core_type = #tpu.core_type<tc>, window_params = [{transform_indices = @transform_0, window_bounds = array<i64: 1, 102, 32>}, {pipeline_mode = #tpu.pipeline_mode<synchronous>, transform_indices = @transform_1, window_bounds = array<i64: 9, 32, 64>}, {pipeline_mode = #tpu.pipeline_mode<synchronous>, transform_indices = @transform_2, window_bounds = array<i64: 1, 64>}, {pipeline_mode = #tpu.pipeline_mode<synchronous>, transform_indices = @transform_3, window_bounds = array<i64: 9, 64, 64>}, {pipeline_mode = #tpu.pipeline_mode<synchronous>, transform_indices = @transform_4, window_bounds = array<i64: 1, 64>}, {pipeline_mode = #tpu.pipeline_mode<synchronous>, transform_indices = @transform_5, window_bounds = array<i64: 80, 1>}, {pipeline_mode = #tpu.pipeline_mode<synchronous>, transform_indices = @transform_6, window_bounds = array<i64: 38, 69>}, {transform_indices = @transform_7, window_bounds = array<i64: 1, 38, 64>}]} {
    %cst = arith.constant 0.000000e+00 : f32
    %0 = vector.broadcast %cst : f32 to vector<80x64xf32>
    %c0 = arith.constant 0 : index
    %c0_0 = arith.constant 0 : index
    %c0_1 = arith.constant 0 : index
    %1 = vector.load %arg1[%c0, %c0_0, %c0_1] : memref<1x102x32xf32, #tpu.memory_space<vmem>>, vector<1x80x32xf32>
    %2 = vector.shape_cast %1 : vector<1x80x32xf32> to vector<80x32xf32>
    %3 = arith.truncf %2 : vector<80x32xf32> to vector<80x32xbf16>
    %c0_2 = arith.constant 0 : index
    %c0_3 = arith.constant 0 : index
    %c0_4 = arith.constant 0 : index
    %4 = vector.load %arg2[%c0_2, %c0_3, %c0_4] : memref<9x32x64xbf16, #tpu.memory_space<vmem>>, vector<1x32x64xbf16>
    %5 = vector.shape_cast %4 : vector<1x32x64xbf16> to vector<32x64xbf16>
    %cst_5 = arith.constant dense<0.000000e+00> : vector<80x64xf32>
    %6 = tpu.matmul %3, %5, %cst_5 {dimension_numbers = #tpu.dot_dimension_numbers<[1], [0], [0], [1], [0, 0, 1, 1], [], []>} : vector<80x32xbf16>, vector<32x64xbf16>, vector<80x64xf32> -> vector<80x64xf32>
    %7 = arith.addf %0, %6 : vector<80x64xf32>
    %c0_6 = arith.constant 0 : index
    %c1 = arith.constant 1 : index
    %c0_7 = arith.constant 0 : index
    %8 = vector.load %arg1[%c0_6, %c1, %c0_7] : memref<1x102x32xf32, #tpu.memory_space<vmem>>, vector<1x80x32xf32>
    %9 = vector.shape_cast %8 : vector<1x80x32xf32> to vector<80x32xf32>
    %10 = arith.truncf %9 : vector<80x32xf32> to vector<80x32xbf16>
    %c1_8 = arith.constant 1 : index
    %c0_9 = arith.constant 0 : index
    %c0_10 = arith.constant 0 : index
    %11 = vector.load %arg2[%c1_8, %c0_9, %c0_10] : memref<9x32x64xbf16, #tpu.memory_space<vmem>>, vector<1x32x64xbf16>
    %12 = vector.shape_cast %11 : vector<1x32x64xbf16> to vector<32x64xbf16>
    %cst_11 = arith.constant dense<0.000000e+00> : vector<80x64xf32>
    %13 = tpu.matmul %10, %12, %cst_11 {dimension_numbers = #tpu.dot_dimension_numbers<[1], [0], [0], [1], [0, 0, 1, 1], [], []>} : vector<80x32xbf16>, vector<32x64xbf16>, vector<80x64xf32> -> vector<80x64xf32>
    %14 = arith.addf %7, %13 : vector<80x64xf32>
    %c0_12 = arith.constant 0 : index
    %c2 = arith.constant 2 : index
    %c0_13 = arith.constant 0 : index
    %15 = vector.load %arg1[%c0_12, %c2, %c0_13] : memref<1x102x32xf32, #tpu.memory_space<vmem>>, vector<1x80x32xf32>
    %16 = vector.shape_cast %15 : vector<1x80x32xf32> to vector<80x32xf32>
    %17 = arith.truncf %16 : vector<80x32xf32> to vector<80x32xbf16>
    %c2_14 = arith.constant 2 : index
    %c0_15 = arith.constant 0 : index
    %c0_16 = arith.constant 0 : index
    %18 = vector.load %arg2[%c2_14, %c0_15, %c0_16] : memref<9x32x64xbf16, #tpu.memory_space<vmem>>, vector<1x32x64xbf16>
    %19 = vector.shape_cast %18 : vector<1x32x64xbf16> to vector<32x64xbf16>
    %cst_17 = arith.constant dense<0.000000e+00> : vector<80x64xf32>
    %20 = tpu.matmul %17, %19, %cst_17 {dimension_numbers = #tpu.dot_dimension_numbers<[1], [0], [0], [1], [0, 0, 1, 1], [], []>} : vector<80x32xbf16>, vector<32x64xbf16>, vector<80x64xf32> -> vector<80x64xf32>
    %21 = arith.addf %14, %20 : vector<80x64xf32>
    %c0_18 = arith.constant 0 : index
    %c10 = arith.constant 10 : index
    %c0_19 = arith.constant 0 : index
    %22 = vector.load %arg1[%c0_18, %c10, %c0_19] : memref<1x102x32xf32, #tpu.memory_space<vmem>>, vector<1x80x32xf32>
    %23 = vector.shape_cast %22 : vector<1x80x32xf32> to vector<80x32xf32>
    %24 = arith.truncf %23 : vector<80x32xf32> to vector<80x32xbf16>
    %c3 = arith.constant 3 : index
    %c0_20 = arith.constant 0 : index
    %c0_21 = arith.constant 0 : index
    %25 = vector.load %arg2[%c3, %c0_20, %c0_21] : memref<9x32x64xbf16, #tpu.memory_space<vmem>>, vector<1x32x64xbf16>
    %26 = vector.shape_cast %25 : vector<1x32x64xbf16> to vector<32x64xbf16>
    %cst_22 = arith.constant dense<0.000000e+00> : vector<80x64xf32>
    %27 = tpu.matmul %24, %26, %cst_22 {dimension_numbers = #tpu.dot_dimension_numbers<[1], [0], [0], [1], [0, 0, 1, 1], [], []>} : vector<80x32xbf16>, vector<32x64xbf16>, vector<80x64xf32> -> vector<80x64xf32>
    %28 = arith.addf %21, %27 : vector<80x64xf32>
    %c0_23 = arith.constant 0 : index
    %c11 = arith.constant 11 : index
    %c0_24 = arith.constant 0 : index
    %29 = vector.load %arg1[%c0_23, %c11, %c0_24] : memref<1x102x32xf32, #tpu.memory_space<vmem>>, vector<1x80x32xf32>
    %30 = vector.shape_cast %29 : vector<1x80x32xf32> to vector<80x32xf32>
    %31 = arith.truncf %30 : vector<80x32xf32> to vector<80x32xbf16>
    %c4 = arith.constant 4 : index
    %c0_25 = arith.constant 0 : index
    %c0_26 = arith.constant 0 : index
    %32 = vector.load %arg2[%c4, %c0_25, %c0_26] : memref<9x32x64xbf16, #tpu.memory_space<vmem>>, vector<1x32x64xbf16>
    %33 = vector.shape_cast %32 : vector<1x32x64xbf16> to vector<32x64xbf16>
    %cst_27 = arith.constant dense<0.000000e+00> : vector<80x64xf32>
    %34 = tpu.matmul %31, %33, %cst_27 {dimension_numbers = #tpu.dot_dimension_numbers<[1], [0], [0], [1], [0, 0, 1, 1], [], []>} : vector<80x32xbf16>, vector<32x64xbf16>, vector<80x64xf32> -> vector<80x64xf32>
    %35 = arith.addf %28, %34 : vector<80x64xf32>
    %c0_28 = arith.constant 0 : index
    %c12 = arith.constant 12 : index
    %c0_29 = arith.constant 0 : index
    %36 = vector.load %arg1[%c0_28, %c12, %c0_29] : memref<1x102x32xf32, #tpu.memory_space<vmem>>, vector<1x80x32xf32>
    %37 = vector.shape_cast %36 : vector<1x80x32xf32> to vector<80x32xf32>
    %38 = arith.truncf %37 : vector<80x32xf32> to vector<80x32xbf16>
    %c5 = arith.constant 5 : index
    %c0_30 = arith.constant 0 : index
    %c0_31 = arith.constant 0 : index
    %39 = vector.load %arg2[%c5, %c0_30, %c0_31] : memref<9x32x64xbf16, #tpu.memory_space<vmem>>, vector<1x32x64xbf16>
    %40 = vector.shape_cast %39 : vector<1x32x64xbf16> to vector<32x64xbf16>
    %cst_32 = arith.constant dense<0.000000e+00> : vector<80x64xf32>
    %41 = tpu.matmul %38, %40, %cst_32 {dimension_numbers = #tpu.dot_dimension_numbers<[1], [0], [0], [1], [0, 0, 1, 1], [], []>} : vector<80x32xbf16>, vector<32x64xbf16>, vector<80x64xf32> -> vector<80x64xf32>
    %42 = arith.addf %35, %41 : vector<80x64xf32>
    %c0_33 = arith.constant 0 : index
    %c20 = arith.constant 20 : index
    %c0_34 = arith.constant 0 : index
    %43 = vector.load %arg1[%c0_33, %c20, %c0_34] : memref<1x102x32xf32, #tpu.memory_space<vmem>>, vector<1x80x32xf32>
    %44 = vector.shape_cast %43 : vector<1x80x32xf32> to vector<80x32xf32>
    %45 = arith.truncf %44 : vector<80x32xf32> to vector<80x32xbf16>
    %c6 = arith.constant 6 : index
    %c0_35 = arith.constant 0 : index
    %c0_36 = arith.constant 0 : index
    %46 = vector.load %arg2[%c6, %c0_35, %c0_36] : memref<9x32x64xbf16, #tpu.memory_space<vmem>>, vector<1x32x64xbf16>
    %47 = vector.shape_cast %46 : vector<1x32x64xbf16> to vector<32x64xbf16>
    %cst_37 = arith.constant dense<0.000000e+00> : vector<80x64xf32>
    %48 = tpu.matmul %45, %47, %cst_37 {dimension_numbers = #tpu.dot_dimension_numbers<[1], [0], [0], [1], [0, 0, 1, 1], [], []>} : vector<80x32xbf16>, vector<32x64xbf16>, vector<80x64xf32> -> vector<80x64xf32>
    %49 = arith.addf %42, %48 : vector<80x64xf32>
    %c0_38 = arith.constant 0 : index
    %c21 = arith.constant 21 : index
    %c0_39 = arith.constant 0 : index
    %50 = vector.load %arg1[%c0_38, %c21, %c0_39] : memref<1x102x32xf32, #tpu.memory_space<vmem>>, vector<1x80x32xf32>
    %51 = vector.shape_cast %50 : vector<1x80x32xf32> to vector<80x32xf32>
    %52 = arith.truncf %51 : vector<80x32xf32> to vector<80x32xbf16>
    %c7 = arith.constant 7 : index
    %c0_40 = arith.constant 0 : index
    %c0_41 = arith.constant 0 : index
    %53 = vector.load %arg2[%c7, %c0_40, %c0_41] : memref<9x32x64xbf16, #tpu.memory_space<vmem>>, vector<1x32x64xbf16>
    %54 = vector.shape_cast %53 : vector<1x32x64xbf16> to vector<32x64xbf16>
    %cst_42 = arith.constant dense<0.000000e+00> : vector<80x64xf32>
    %55 = tpu.matmul %52, %54, %cst_42 {dimension_numbers = #tpu.dot_dimension_numbers<[1], [0], [0], [1], [0, 0, 1, 1], [], []>} : vector<80x32xbf16>, vector<32x64xbf16>, vector<80x64xf32> -> vector<80x64xf32>
    %56 = arith.addf %49, %55 : vector<80x64xf32>
    %c0_43 = arith.constant 0 : index
    %c22 = arith.constant 22 : index
    %c0_44 = arith.constant 0 : index
    %57 = vector.load %arg1[%c0_43, %c22, %c0_44] : memref<1x102x32xf32, #tpu.memory_space<vmem>>, vector<1x80x32xf32>
    %58 = vector.shape_cast %57 : vector<1x80x32xf32> to vector<80x32xf32>
    %59 = arith.truncf %58 : vector<80x32xf32> to vector<80x32xbf16>
    %c8 = arith.constant 8 : index
    %c0_45 = arith.constant 0 : index
    %c0_46 = arith.constant 0 : index
    %60 = vector.load %arg2[%c8, %c0_45, %c0_46] : memref<9x32x64xbf16, #tpu.memory_space<vmem>>, vector<1x32x64xbf16>
    %61 = vector.shape_cast %60 : vector<1x32x64xbf16> to vector<32x64xbf16>
    %cst_47 = arith.constant dense<0.000000e+00> : vector<80x64xf32>
    %62 = tpu.matmul %59, %61, %cst_47 {dimension_numbers = #tpu.dot_dimension_numbers<[1], [0], [0], [1], [0, 0, 1, 1], [], []>} : vector<80x32xbf16>, vector<32x64xbf16>, vector<80x64xf32> -> vector<80x64xf32>
    %63 = arith.addf %56, %62 : vector<80x64xf32>
    %c0_48 = arith.constant 0 : index
    %c0_49 = arith.constant 0 : index
    %64 = vector.load %arg3[%c0_48, %c0_49] : memref<1x64xf32, #tpu.memory_space<vmem>>, vector<1x64xf32>
    %65 = vector.broadcast %64 : vector<1x64xf32> to vector<80x64xf32>
    %66 = arith.addf %63, %65 : vector<80x64xf32>
    %cst_50 = arith.constant 0.000000e+00 : f32
    %67 = vector.broadcast %cst_50 : f32 to vector<80x64xf32>
    %68 = arith.maximumf %66, %67 : vector<80x64xf32>
    %c0_51 = arith.constant 0 : index
    %c0_52 = arith.constant 0 : index
    %69 = vector.load %arg6[%c0_51, %c0_52] : memref<80x1xf32, #tpu.memory_space<vmem>>, vector<80x1xf32>
    %70 = vector.broadcast %69 : vector<80x1xf32> to vector<80x64xf32>
    %71 = arith.mulf %68, %70 : vector<80x64xf32>
    %cst_53 = arith.constant 0.000000e+00 : f32
    %72 = vector.broadcast %cst_53 : f32 to vector<102x64xf32>
    %c0_54 = arith.constant 0 : index
    %c0_55 = arith.constant 0 : index
    %73 = vector.load %arg9[%c0_54, %c0_55] : memref<102x64xf32, #tpu.memory_space<vmem>>, vector<102x64xf32>
    tpu.vector_store %arg9[%c0_54, %c0_55], %72 {strides = array<i32>} : memref<102x64xf32, #tpu.memory_space<vmem>>, vector<102x64xf32>,
    %c11_56 = arith.constant 11 : index
    %c0_57 = arith.constant 0 : index
    %74 = vector.load %arg9[%c11_56, %c0_57] : memref<102x64xf32, #tpu.memory_space<vmem>>, vector<80x64xf32>
    tpu.vector_store %arg9[%c11_56, %c0_57], %71 {strides = array<i32>} : memref<102x64xf32, #tpu.memory_space<vmem>>, vector<80x64xf32>,
    %cst_58 = arith.constant 0.000000e+00 : f32
    %75 = vector.broadcast %cst_58 : f32 to vector<80x64xf32>
    %c0_59 = arith.constant 0 : index
    %c0_60 = arith.constant 0 : index
    %76 = vector.load %arg9[%c0_59, %c0_60] : memref<102x64xf32, #tpu.memory_space<vmem>>, vector<80x64xf32>
    %77 = arith.truncf %76 : vector<80x64xf32> to vector<80x64xbf16>
    %c0_61 = arith.constant 0 : index
    %c0_62 = arith.constant 0 : index
    %c0_63 = arith.constant 0 : index
    %78 = vector.load %arg4[%c0_61, %c0_62, %c0_63] : memref<9x64x64xbf16, #tpu.memory_space<vmem>>, vector<1x64x64xbf16>
    %79 = vector.shape_cast %78 : vector<1x64x64xbf16> to vector<64x64xbf16>
    %cst_64 = arith.constant dense<0.000000e+00> : vector<80x64xf32>
    %80 = tpu.matmul %77, %79, %cst_64 {dimension_numbers = #tpu.dot_dimension_numbers<[1], [0], [0], [1], [0, 0, 1, 1], [], []>} : vector<80x64xbf16>, vector<64x64xbf16>, vector<80x64xf32> -> vector<80x64xf32>
    %81 = arith.addf %75, %80 : vector<80x64xf32>
    %c1_65 = arith.constant 1 : index
    %c0_66 = arith.constant 0 : index
    %82 = vector.load %arg9[%c1_65, %c0_66] : memref<102x64xf32, #tpu.memory_space<vmem>>, vector<80x64xf32>
    %83 = arith.truncf %82 : vector<80x64xf32> to vector<80x64xbf16>
    %c1_67 = arith.constant 1 : index
    %c0_68 = arith.constant 0 : index
    %c0_69 = arith.constant 0 : index
    %84 = vector.load %arg4[%c1_67, %c0_68, %c0_69] : memref<9x64x64xbf16, #tpu.memory_space<vmem>>, vector<1x64x64xbf16>
    %85 = vector.shape_cast %84 : vector<1x64x64xbf16> to vector<64x64xbf16>
    %cst_70 = arith.constant dense<0.000000e+00> : vector<80x64xf32>
    %86 = tpu.matmul %83, %85, %cst_70 {dimension_numbers = #tpu.dot_dimension_numbers<[1], [0], [0], [1], [0, 0, 1, 1], [], []>} : vector<80x64xbf16>, vector<64x64xbf16>, vector<80x64xf32> -> vector<80x64xf32>
    %87 = arith.addf %81, %86 : vector<80x64xf32>
    %c2_71 = arith.constant 2 : index
    %c0_72 = arith.constant 0 : index
    %88 = vector.load %arg9[%c2_71, %c0_72] : memref<102x64xf32, #tpu.memory_space<vmem>>, vector<80x64xf32>
    %89 = arith.truncf %88 : vector<80x64xf32> to vector<80x64xbf16>
    %c2_73 = arith.constant 2 : index
    %c0_74 = arith.constant 0 : index
    %c0_75 = arith.constant 0 : index
    %90 = vector.load %arg4[%c2_73, %c0_74, %c0_75] : memref<9x64x64xbf16, #tpu.memory_space<vmem>>, vector<1x64x64xbf16>
    %91 = vector.shape_cast %90 : vector<1x64x64xbf16> to vector<64x64xbf16>
    %cst_76 = arith.constant dense<0.000000e+00> : vector<80x64xf32>
    %92 = tpu.matmul %89, %91, %cst_76 {dimension_numbers = #tpu.dot_dimension_numbers<[1], [0], [0], [1], [0, 0, 1, 1], [], []>} : vector<80x64xbf16>, vector<64x64xbf16>, vector<80x64xf32> -> vector<80x64xf32>
    %93 = arith.addf %87, %92 : vector<80x64xf32>
    %c10_77 = arith.constant 10 : index
    %c0_78 = arith.constant 0 : index
    %94 = vector.load %arg9[%c10_77, %c0_78] : memref<102x64xf32, #tpu.memory_space<vmem>>, vector<80x64xf32>
    %95 = arith.truncf %94 : vector<80x64xf32> to vector<80x64xbf16>
    %c3_79 = arith.constant 3 : index
    %c0_80 = arith.constant 0 : index
    %c0_81 = arith.constant 0 : index
    %96 = vector.load %arg4[%c3_79, %c0_80, %c0_81] : memref<9x64x64xbf16, #tpu.memory_space<vmem>>, vector<1x64x64xbf16>
    %97 = vector.shape_cast %96 : vector<1x64x64xbf16> to vector<64x64xbf16>
    %cst_82 = arith.constant dense<0.000000e+00> : vector<80x64xf32>
    %98 = tpu.matmul %95, %97, %cst_82 {dimension_numbers = #tpu.dot_dimension_numbers<[1], [0], [0], [1], [0, 0, 1, 1], [], []>} : vector<80x64xbf16>, vector<64x64xbf16>, vector<80x64xf32> -> vector<80x64xf32>
    %99 = arith.addf %93, %98 : vector<80x64xf32>
    %c11_83 = arith.constant 11 : index
    %c0_84 = arith.constant 0 : index
    %100 = vector.load %arg9[%c11_83, %c0_84] : memref<102x64xf32, #tpu.memory_space<vmem>>, vector<80x64xf32>
    %101 = arith.truncf %100 : vector<80x64xf32> to vector<80x64xbf16>
    %c4_85 = arith.constant 4 : index
    %c0_86 = arith.constant 0 : index
    %c0_87 = arith.constant 0 : index
    %102 = vector.load %arg4[%c4_85, %c0_86, %c0_87] : memref<9x64x64xbf16, #tpu.memory_space<vmem>>, vector<1x64x64xbf16>
    %103 = vector.shape_cast %102 : vector<1x64x64xbf16> to vector<64x64xbf16>
    %cst_88 = arith.constant dense<0.000000e+00> : vector<80x64xf32>
    %104 = tpu.matmul %101, %103, %cst_88 {dimension_numbers = #tpu.dot_dimension_numbers<[1], [0], [0], [1], [0, 0, 1, 1], [], []>} : vector<80x64xbf16>, vector<64x64xbf16>, vector<80x64xf32> -> vector<80x64xf32>
    %105 = arith.addf %99, %104 : vector<80x64xf32>
    %c12_89 = arith.constant 12 : index
    %c0_90 = arith.constant 0 : index
    %106 = vector.load %arg9[%c12_89, %c0_90] : memref<102x64xf32, #tpu.memory_space<vmem>>, vector<80x64xf32>
    %107 = arith.truncf %106 : vector<80x64xf32> to vector<80x64xbf16>
    %c5_91 = arith.constant 5 : index
    %c0_92 = arith.constant 0 : index
    %c0_93 = arith.constant 0 : index
    %108 = vector.load %arg4[%c5_91, %c0_92, %c0_93] : memref<9x64x64xbf16, #tpu.memory_space<vmem>>, vector<1x64x64xbf16>
    %109 = vector.shape_cast %108 : vector<1x64x64xbf16> to vector<64x64xbf16>
    %cst_94 = arith.constant dense<0.000000e+00> : vector<80x64xf32>
    %110 = tpu.matmul %107, %109, %cst_94 {dimension_numbers = #tpu.dot_dimension_numbers<[1], [0], [0], [1], [0, 0, 1, 1], [], []>} : vector<80x64xbf16>, vector<64x64xbf16>, vector<80x64xf32> -> vector<80x64xf32>
    %111 = arith.addf %105, %110 : vector<80x64xf32>
    %c20_95 = arith.constant 20 : index
    %c0_96 = arith.constant 0 : index
    %112 = vector.load %arg9[%c20_95, %c0_96] : memref<102x64xf32, #tpu.memory_space<vmem>>, vector<80x64xf32>
    %113 = arith.truncf %112 : vector<80x64xf32> to vector<80x64xbf16>
    %c6_97 = arith.constant 6 : index
    %c0_98 = arith.constant 0 : index
    %c0_99 = arith.constant 0 : index
    %114 = vector.load %arg4[%c6_97, %c0_98, %c0_99] : memref<9x64x64xbf16, #tpu.memory_space<vmem>>, vector<1x64x64xbf16>
    %115 = vector.shape_cast %114 : vector<1x64x64xbf16> to vector<64x64xbf16>
    %cst_100 = arith.constant dense<0.000000e+00> : vector<80x64xf32>
    %116 = tpu.matmul %113, %115, %cst_100 {dimension_numbers = #tpu.dot_dimension_numbers<[1], [0], [0], [1], [0, 0, 1, 1], [], []>} : vector<80x64xbf16>, vector<64x64xbf16>, vector<80x64xf32> -> vector<80x64xf32>
    %117 = arith.addf %111, %116 : vector<80x64xf32>
    %c21_101 = arith.constant 21 : index
    %c0_102 = arith.constant 0 : index
    %118 = vector.load %arg9[%c21_101, %c0_102] : memref<102x64xf32, #tpu.memory_space<vmem>>, vector<80x64xf32>
    %119 = arith.truncf %118 : vector<80x64xf32> to vector<80x64xbf16>
    %c7_103 = arith.constant 7 : index
    %c0_104 = arith.constant 0 : index
    %c0_105 = arith.constant 0 : index
    %120 = vector.load %arg4[%c7_103, %c0_104, %c0_105] : memref<9x64x64xbf16, #tpu.memory_space<vmem>>, vector<1x64x64xbf16>
    %121 = vector.shape_cast %120 : vector<1x64x64xbf16> to vector<64x64xbf16>
    %cst_106 = arith.constant dense<0.000000e+00> : vector<80x64xf32>
    %122 = tpu.matmul %119, %121, %cst_106 {dimension_numbers = #tpu.dot_dimension_numbers<[1], [0], [0], [1], [0, 0, 1, 1], [], []>} : vector<80x64xbf16>, vector<64x64xbf16>, vector<80x64xf32> -> vector<80x64xf32>
    %123 = arith.addf %117, %122 : vector<80x64xf32>
    %c22_107 = arith.constant 22 : index
    %c0_108 = arith.constant 0 : index
    %124 = vector.load %arg9[%c22_107, %c0_108] : memref<102x64xf32, #tpu.memory_space<vmem>>, vector<80x64xf32>
    %125 = arith.truncf %124 : vector<80x64xf32> to vector<80x64xbf16>
    %c8_109 = arith.constant 8 : index
    %c0_110 = arith.constant 0 : index
    %c0_111 = arith.constant 0 : index
    %126 = vector.load %arg4[%c8_109, %c0_110, %c0_111] : memref<9x64x64xbf16, #tpu.memory_space<vmem>>, vector<1x64x64xbf16>
    %127 = vector.shape_cast %126 : vector<1x64x64xbf16> to vector<64x64xbf16>
    %cst_112 = arith.constant dense<0.000000e+00> : vector<80x64xf32>
    %128 = tpu.matmul %125, %127, %cst_112 {dimension_numbers = #tpu.dot_dimension_numbers<[1], [0], [0], [1], [0, 0, 1, 1], [], []>} : vector<80x64xbf16>, vector<64x64xbf16>, vector<80x64xf32> -> vector<80x64xf32>
    %129 = arith.addf %123, %128 : vector<80x64xf32>
    %c0_113 = arith.constant 0 : index
    %c0_114 = arith.constant 0 : index
    %130 = vector.load %arg5[%c0_113, %c0_114] : memref<1x64xf32, #tpu.memory_space<vmem>>, vector<1x64xf32>
    %131 = vector.broadcast %130 : vector<1x64xf32> to vector<80x64xf32>
    %132 = arith.addf %129, %131 : vector<80x64xf32>
    %cst_115 = arith.constant 0.000000e+00 : f32
    %133 = vector.broadcast %cst_115 : f32 to vector<80x64xf32>
    %134 = arith.maximumf %132, %133 : vector<80x64xf32>
    %c0_116 = arith.constant 0 : index
    %c0_117 = arith.constant 0 : index
    %135 = vector.load %arg10[%c0_116, %c0_117] : memref<80x64xf32, #tpu.memory_space<vmem>>, vector<80x64xf32>
    tpu.vector_store %arg10[%c0_116, %c0_117], %134 {strides = array<i32>} : memref<80x64xf32, #tpu.memory_space<vmem>>, vector<80x64xf32>,
    %c0_118 = arith.constant 0 : index
    %c0_119 = arith.constant 0 : index
    %136 = vector.load %arg10[%c0_118, %c0_119] : memref<80x64xf32, #tpu.memory_space<vmem>>, vector<69x64xf32>
    %c1_120 = arith.constant 1 : index
    %c0_121 = arith.constant 0 : index
    %137 = vector.load %arg10[%c1_120, %c0_121] : memref<80x64xf32, #tpu.memory_space<vmem>>, vector<69x64xf32>
    %138 = arith.maximumf %136, %137 : vector<69x64xf32>
    %c10_122 = arith.constant 10 : index
    %c0_123 = arith.constant 0 : index
    %139 = vector.load %arg10[%c10_122, %c0_123] : memref<80x64xf32, #tpu.memory_space<vmem>>, vector<69x64xf32>
    %c11_124 = arith.constant 11 : index
    %c0_125 = arith.constant 0 : index
    %140 = vector.load %arg10[%c11_124, %c0_125] : memref<80x64xf32, #tpu.memory_space<vmem>>, vector<69x64xf32>
    %141 = arith.maximumf %139, %140 : vector<69x64xf32>
    %142 = arith.maximumf %138, %141 : vector<69x64xf32>
    %c0_126 = arith.constant 0 : index
    %c0_127 = arith.constant 0 : index
    %143 = vector.load %arg7[%c0_126, %c0_127] : memref<38x69xf32, #tpu.memory_space<vmem>>, vector<38x69xf32>
    %cst_128 = arith.constant dense<0.000000e+00> : vector<38x64xf32>
    %144 = tpu.matmul %143, %142, %cst_128 {dimension_numbers = #tpu.dot_dimension_numbers<[1], [0], [0], [1], [0, 0, 1, 1], [], []>} : vector<38x69xf32>, vector<69x64xf32>, vector<38x64xf32> -> vector<38x64xf32>
    %c0_129 = arith.constant 0 : index
    %c0_130 = arith.constant 0 : index
    %c0_131 = arith.constant 0 : index
    %145 = vector.load %arg8[%c0_129, %c0_130, %c0_131] : memref<1x38x64xf32, #tpu.memory_space<vmem>>, vector<1x38x64xf32>
    %146 = vector.shape_cast %145 : vector<1x38x64xf32> to vector<38x64xf32>
    %147 = vector.shape_cast %144 : vector<38x64xf32> to vector<1x38x64xf32>
    tpu.vector_store %arg8[%c0_129, %c0_130, %c0_131], %147 {strides = array<i32>} : memref<1x38x64xf32, #tpu.memory_space<vmem>>, vector<1x38x64xf32>,
    return
  }
  func.func @transform_0(%arg0: i32) -> (i32, i32, i32) {
    %c0_i32 = arith.constant 0 : i32
    %c0_i32_0 = arith.constant 0 : i32
    %c0_i32_1 = arith.constant 0 : i32
    return %arg0, %c0_i32, %c0_i32_0 : i32, i32, i32
  }
  func.func @transform_1(%arg0: i32) -> (i32, i32, i32) {
    %c0_i32 = arith.constant 0 : i32
    %c0_i32_0 = arith.constant 0 : i32
    %c0_i32_1 = arith.constant 0 : i32
    %c0_i32_2 = arith.constant 0 : i32
    return %c0_i32, %c0_i32_0, %c0_i32_1 : i32, i32, i32
  }
  func.func @transform_2(%arg0: i32) -> (i32, i32) {
    %c0_i32 = arith.constant 0 : i32
    %c0_i32_0 = arith.constant 0 : i32
    %c0_i32_1 = arith.constant 0 : i32
    return %c0_i32, %c0_i32_0 : i32, i32
  }
  func.func @transform_3(%arg0: i32) -> (i32, i32, i32) {
    %c0_i32 = arith.constant 0 : i32
    %c0_i32_0 = arith.constant 0 : i32
    %c0_i32_1 = arith.constant 0 : i32
    %c0_i32_2 = arith.constant 0 : i32
    return %c0_i32, %c0_i32_0, %c0_i32_1 : i32, i32, i32
  }
  func.func @transform_4(%arg0: i32) -> (i32, i32) {
    %c0_i32 = arith.constant 0 : i32
    %c0_i32_0 = arith.constant 0 : i32
    %c0_i32_1 = arith.constant 0 : i32
    return %c0_i32, %c0_i32_0 : i32, i32
  }
  func.func @transform_5(%arg0: i32) -> (i32, i32) {
    %c0_i32 = arith.constant 0 : i32
    %c0_i32_0 = arith.constant 0 : i32
    %c0_i32_1 = arith.constant 0 : i32
    return %c0_i32, %c0_i32_0 : i32, i32
  }
  func.func @transform_6(%arg0: i32) -> (i32, i32) {
    %c0_i32 = arith.constant 0 : i32
    %c0_i32_0 = arith.constant 0 : i32
    %c0_i32_1 = arith.constant 0 : i32
    return %c0_i32, %c0_i32_0 : i32, i32
  }
  func.func @transform_7(%arg0: i32) -> (i32, i32, i32) {
    %c0_i32 = arith.constant 0 : i32
    %c0_i32_0 = arith.constant 0 : i32
    %c0_i32_1 = arith.constant 0 : i32
    return %arg0, %c0_i32, %c0_i32_0 : i32, i32, i32
  }
}

module attributes {stable_mosaic.version = 11 : i64} {
  func.func @_conv_pair_pool_kernel(%arg0: i32, %arg1: memref<1x326x4xf32, #tpu.memory_space<vmem>>, %arg2: memref<9x4x32xbf16, #tpu.memory_space<vmem>>, %arg3: memref<1x32xf32, #tpu.memory_space<vmem>>, %arg4: memref<9x32x32xbf16, #tpu.memory_space<vmem>>, %arg5: memref<1x32xf32, #tpu.memory_space<vmem>>, %arg6: memref<288x1xf32, #tpu.memory_space<vmem>>, %arg7: memref<102x269xf32, #tpu.memory_space<vmem>>, %arg8: memref<1x102x32xf32, #tpu.memory_space<vmem>>, %arg9: memref<326x32xf32, #tpu.memory_space<vmem>>, %arg10: memref<288x32xf32, #tpu.memory_space<vmem>>) attributes {dimension_semantics = [#tpu.dimension_semantics<parallel>], iteration_bounds = array<i64: 2>, scalar_prefetch = 0 : i64, scratch_operands = 2 : i64, tpu.core_type = #tpu.core_type<tc>, window_params = [{transform_indices = @transform_0, window_bounds = array<i64: 1, 326, 4>}, {pipeline_mode = #tpu.pipeline_mode<synchronous>, transform_indices = @transform_1, window_bounds = array<i64: 9, 4, 32>}, {pipeline_mode = #tpu.pipeline_mode<synchronous>, transform_indices = @transform_2, window_bounds = array<i64: 1, 32>}, {pipeline_mode = #tpu.pipeline_mode<synchronous>, transform_indices = @transform_3, window_bounds = array<i64: 9, 32, 32>}, {pipeline_mode = #tpu.pipeline_mode<synchronous>, transform_indices = @transform_4, window_bounds = array<i64: 1, 32>}, {pipeline_mode = #tpu.pipeline_mode<synchronous>, transform_indices = @transform_5, window_bounds = array<i64: 288, 1>}, {pipeline_mode = #tpu.pipeline_mode<synchronous>, transform_indices = @transform_6, window_bounds = array<i64: 102, 269>}, {transform_indices = @transform_7, window_bounds = array<i64: 1, 102, 32>}]} {
    %cst = arith.constant 0.000000e+00 : f32
    %0 = vector.broadcast %cst : f32 to vector<288x32xf32>
    %c0 = arith.constant 0 : index
    %c0_0 = arith.constant 0 : index
    %c0_1 = arith.constant 0 : index
    %1 = vector.load %arg1[%c0, %c0_0, %c0_1] : memref<1x326x4xf32, #tpu.memory_space<vmem>>, vector<1x288x4xf32>
    %2 = vector.shape_cast %1 : vector<1x288x4xf32> to vector<288x4xf32>
    %3 = arith.truncf %2 : vector<288x4xf32> to vector<288x4xbf16>
    %c0_2 = arith.constant 0 : index
    %c0_3 = arith.constant 0 : index
    %c0_4 = arith.constant 0 : index
    %4 = vector.load %arg2[%c0_2, %c0_3, %c0_4] : memref<9x4x32xbf16, #tpu.memory_space<vmem>>, vector<1x4x32xbf16>
    %5 = vector.shape_cast %4 : vector<1x4x32xbf16> to vector<4x32xbf16>
    %cst_5 = arith.constant dense<0.000000e+00> : vector<288x32xf32>
    %6 = tpu.matmul %3, %5, %cst_5 {dimension_numbers = #tpu.dot_dimension_numbers<[1], [0], [0], [1], [0, 0, 1, 1], [], []>} : vector<288x4xbf16>, vector<4x32xbf16>, vector<288x32xf32> -> vector<288x32xf32>
    %7 = arith.addf %0, %6 : vector<288x32xf32>
    %c0_6 = arith.constant 0 : index
    %c1 = arith.constant 1 : index
    %c0_7 = arith.constant 0 : index
    %8 = vector.load %arg1[%c0_6, %c1, %c0_7] : memref<1x326x4xf32, #tpu.memory_space<vmem>>, vector<1x288x4xf32>
    %9 = vector.shape_cast %8 : vector<1x288x4xf32> to vector<288x4xf32>
    %10 = arith.truncf %9 : vector<288x4xf32> to vector<288x4xbf16>
    %c1_8 = arith.constant 1 : index
    %c0_9 = arith.constant 0 : index
    %c0_10 = arith.constant 0 : index
    %11 = vector.load %arg2[%c1_8, %c0_9, %c0_10] : memref<9x4x32xbf16, #tpu.memory_space<vmem>>, vector<1x4x32xbf16>
    %12 = vector.shape_cast %11 : vector<1x4x32xbf16> to vector<4x32xbf16>
    %cst_11 = arith.constant dense<0.000000e+00> : vector<288x32xf32>
    %13 = tpu.matmul %10, %12, %cst_11 {dimension_numbers = #tpu.dot_dimension_numbers<[1], [0], [0], [1], [0, 0, 1, 1], [], []>} : vector<288x4xbf16>, vector<4x32xbf16>, vector<288x32xf32> -> vector<288x32xf32>
    %14 = arith.addf %7, %13 : vector<288x32xf32>
    %c0_12 = arith.constant 0 : index
    %c2 = arith.constant 2 : index
    %c0_13 = arith.constant 0 : index
    %15 = vector.load %arg1[%c0_12, %c2, %c0_13] : memref<1x326x4xf32, #tpu.memory_space<vmem>>, vector<1x288x4xf32>
    %16 = vector.shape_cast %15 : vector<1x288x4xf32> to vector<288x4xf32>
    %17 = arith.truncf %16 : vector<288x4xf32> to vector<288x4xbf16>
    %c2_14 = arith.constant 2 : index
    %c0_15 = arith.constant 0 : index
    %c0_16 = arith.constant 0 : index
    %18 = vector.load %arg2[%c2_14, %c0_15, %c0_16] : memref<9x4x32xbf16, #tpu.memory_space<vmem>>, vector<1x4x32xbf16>
    %19 = vector.shape_cast %18 : vector<1x4x32xbf16> to vector<4x32xbf16>
    %cst_17 = arith.constant dense<0.000000e+00> : vector<288x32xf32>
    %20 = tpu.matmul %17, %19, %cst_17 {dimension_numbers = #tpu.dot_dimension_numbers<[1], [0], [0], [1], [0, 0, 1, 1], [], []>} : vector<288x4xbf16>, vector<4x32xbf16>, vector<288x32xf32> -> vector<288x32xf32>
    %21 = arith.addf %14, %20 : vector<288x32xf32>
    %c0_18 = arith.constant 0 : index
    %c18 = arith.constant 18 : index
    %c0_19 = arith.constant 0 : index
    %22 = vector.load %arg1[%c0_18, %c18, %c0_19] : memref<1x326x4xf32, #tpu.memory_space<vmem>>, vector<1x288x4xf32>
    %23 = vector.shape_cast %22 : vector<1x288x4xf32> to vector<288x4xf32>
    %24 = arith.truncf %23 : vector<288x4xf32> to vector<288x4xbf16>
    %c3 = arith.constant 3 : index
    %c0_20 = arith.constant 0 : index
    %c0_21 = arith.constant 0 : index
    %25 = vector.load %arg2[%c3, %c0_20, %c0_21] : memref<9x4x32xbf16, #tpu.memory_space<vmem>>, vector<1x4x32xbf16>
    %26 = vector.shape_cast %25 : vector<1x4x32xbf16> to vector<4x32xbf16>
    %cst_22 = arith.constant dense<0.000000e+00> : vector<288x32xf32>
    %27 = tpu.matmul %24, %26, %cst_22 {dimension_numbers = #tpu.dot_dimension_numbers<[1], [0], [0], [1], [0, 0, 1, 1], [], []>} : vector<288x4xbf16>, vector<4x32xbf16>, vector<288x32xf32> -> vector<288x32xf32>
    %28 = arith.addf %21, %27 : vector<288x32xf32>
    %c0_23 = arith.constant 0 : index
    %c19 = arith.constant 19 : index
    %c0_24 = arith.constant 0 : index
    %29 = vector.load %arg1[%c0_23, %c19, %c0_24] : memref<1x326x4xf32, #tpu.memory_space<vmem>>, vector<1x288x4xf32>
    %30 = vector.shape_cast %29 : vector<1x288x4xf32> to vector<288x4xf32>
    %31 = arith.truncf %30 : vector<288x4xf32> to vector<288x4xbf16>
    %c4 = arith.constant 4 : index
    %c0_25 = arith.constant 0 : index
    %c0_26 = arith.constant 0 : index
    %32 = vector.load %arg2[%c4, %c0_25, %c0_26] : memref<9x4x32xbf16, #tpu.memory_space<vmem>>, vector<1x4x32xbf16>
    %33 = vector.shape_cast %32 : vector<1x4x32xbf16> to vector<4x32xbf16>
    %cst_27 = arith.constant dense<0.000000e+00> : vector<288x32xf32>
    %34 = tpu.matmul %31, %33, %cst_27 {dimension_numbers = #tpu.dot_dimension_numbers<[1], [0], [0], [1], [0, 0, 1, 1], [], []>} : vector<288x4xbf16>, vector<4x32xbf16>, vector<288x32xf32> -> vector<288x32xf32>
    %35 = arith.addf %28, %34 : vector<288x32xf32>
    %c0_28 = arith.constant 0 : index
    %c20 = arith.constant 20 : index
    %c0_29 = arith.constant 0 : index
    %36 = vector.load %arg1[%c0_28, %c20, %c0_29] : memref<1x326x4xf32, #tpu.memory_space<vmem>>, vector<1x288x4xf32>
    %37 = vector.shape_cast %36 : vector<1x288x4xf32> to vector<288x4xf32>
    %38 = arith.truncf %37 : vector<288x4xf32> to vector<288x4xbf16>
    %c5 = arith.constant 5 : index
    %c0_30 = arith.constant 0 : index
    %c0_31 = arith.constant 0 : index
    %39 = vector.load %arg2[%c5, %c0_30, %c0_31] : memref<9x4x32xbf16, #tpu.memory_space<vmem>>, vector<1x4x32xbf16>
    %40 = vector.shape_cast %39 : vector<1x4x32xbf16> to vector<4x32xbf16>
    %cst_32 = arith.constant dense<0.000000e+00> : vector<288x32xf32>
    %41 = tpu.matmul %38, %40, %cst_32 {dimension_numbers = #tpu.dot_dimension_numbers<[1], [0], [0], [1], [0, 0, 1, 1], [], []>} : vector<288x4xbf16>, vector<4x32xbf16>, vector<288x32xf32> -> vector<288x32xf32>
    %42 = arith.addf %35, %41 : vector<288x32xf32>
    %c0_33 = arith.constant 0 : index
    %c36 = arith.constant 36 : index
    %c0_34 = arith.constant 0 : index
    %43 = vector.load %arg1[%c0_33, %c36, %c0_34] : memref<1x326x4xf32, #tpu.memory_space<vmem>>, vector<1x288x4xf32>
    %44 = vector.shape_cast %43 : vector<1x288x4xf32> to vector<288x4xf32>
    %45 = arith.truncf %44 : vector<288x4xf32> to vector<288x4xbf16>
    %c6 = arith.constant 6 : index
    %c0_35 = arith.constant 0 : index
    %c0_36 = arith.constant 0 : index
    %46 = vector.load %arg2[%c6, %c0_35, %c0_36] : memref<9x4x32xbf16, #tpu.memory_space<vmem>>, vector<1x4x32xbf16>
    %47 = vector.shape_cast %46 : vector<1x4x32xbf16> to vector<4x32xbf16>
    %cst_37 = arith.constant dense<0.000000e+00> : vector<288x32xf32>
    %48 = tpu.matmul %45, %47, %cst_37 {dimension_numbers = #tpu.dot_dimension_numbers<[1], [0], [0], [1], [0, 0, 1, 1], [], []>} : vector<288x4xbf16>, vector<4x32xbf16>, vector<288x32xf32> -> vector<288x32xf32>
    %49 = arith.addf %42, %48 : vector<288x32xf32>
    %c0_38 = arith.constant 0 : index
    %c37 = arith.constant 37 : index
    %c0_39 = arith.constant 0 : index
    %50 = vector.load %arg1[%c0_38, %c37, %c0_39] : memref<1x326x4xf32, #tpu.memory_space<vmem>>, vector<1x288x4xf32>
    %51 = vector.shape_cast %50 : vector<1x288x4xf32> to vector<288x4xf32>
    %52 = arith.truncf %51 : vector<288x4xf32> to vector<288x4xbf16>
    %c7 = arith.constant 7 : index
    %c0_40 = arith.constant 0 : index
    %c0_41 = arith.constant 0 : index
    %53 = vector.load %arg2[%c7, %c0_40, %c0_41] : memref<9x4x32xbf16, #tpu.memory_space<vmem>>, vector<1x4x32xbf16>
    %54 = vector.shape_cast %53 : vector<1x4x32xbf16> to vector<4x32xbf16>
    %cst_42 = arith.constant dense<0.000000e+00> : vector<288x32xf32>
    %55 = tpu.matmul %52, %54, %cst_42 {dimension_numbers = #tpu.dot_dimension_numbers<[1], [0], [0], [1], [0, 0, 1, 1], [], []>} : vector<288x4xbf16>, vector<4x32xbf16>, vector<288x32xf32> -> vector<288x32xf32>
    %56 = arith.addf %49, %55 : vector<288x32xf32>
    %c0_43 = arith.constant 0 : index
    %c38 = arith.constant 38 : index
    %c0_44 = arith.constant 0 : index
    %57 = vector.load %arg1[%c0_43, %c38, %c0_44] : memref<1x326x4xf32, #tpu.memory_space<vmem>>, vector<1x288x4xf32>
    %58 = vector.shape_cast %57 : vector<1x288x4xf32> to vector<288x4xf32>
    %59 = arith.truncf %58 : vector<288x4xf32> to vector<288x4xbf16>
    %c8 = arith.constant 8 : index
    %c0_45 = arith.constant 0 : index
    %c0_46 = arith.constant 0 : index
    %60 = vector.load %arg2[%c8, %c0_45, %c0_46] : memref<9x4x32xbf16, #tpu.memory_space<vmem>>, vector<1x4x32xbf16>
    %61 = vector.shape_cast %60 : vector<1x4x32xbf16> to vector<4x32xbf16>
    %cst_47 = arith.constant dense<0.000000e+00> : vector<288x32xf32>
    %62 = tpu.matmul %59, %61, %cst_47 {dimension_numbers = #tpu.dot_dimension_numbers<[1], [0], [0], [1], [0, 0, 1, 1], [], []>} : vector<288x4xbf16>, vector<4x32xbf16>, vector<288x32xf32> -> vector<288x32xf32>
    %63 = arith.addf %56, %62 : vector<288x32xf32>
    %c0_48 = arith.constant 0 : index
    %c0_49 = arith.constant 0 : index
    %64 = vector.load %arg3[%c0_48, %c0_49] : memref<1x32xf32, #tpu.memory_space<vmem>>, vector<1x32xf32>
    %65 = vector.broadcast %64 : vector<1x32xf32> to vector<288x32xf32>
    %66 = arith.addf %63, %65 : vector<288x32xf32>
    %cst_50 = arith.constant 0.000000e+00 : f32
    %67 = vector.broadcast %cst_50 : f32 to vector<288x32xf32>
    %68 = arith.maximumf %66, %67 : vector<288x32xf32>
    %c0_51 = arith.constant 0 : index
    %c0_52 = arith.constant 0 : index
    %69 = vector.load %arg6[%c0_51, %c0_52] : memref<288x1xf32, #tpu.memory_space<vmem>>, vector<288x1xf32>
    %70 = vector.broadcast %69 : vector<288x1xf32> to vector<288x32xf32>
    %71 = arith.mulf %68, %70 : vector<288x32xf32>
    %cst_53 = arith.constant 0.000000e+00 : f32
    %72 = vector.broadcast %cst_53 : f32 to vector<326x32xf32>
    %c0_54 = arith.constant 0 : index
    %c0_55 = arith.constant 0 : index
    %73 = vector.load %arg9[%c0_54, %c0_55] : memref<326x32xf32, #tpu.memory_space<vmem>>, vector<326x32xf32>
    tpu.vector_store %arg9[%c0_54, %c0_55], %72 {strides = array<i32>} : memref<326x32xf32, #tpu.memory_space<vmem>>, vector<326x32xf32>,
    %c19_56 = arith.constant 19 : index
    %c0_57 = arith.constant 0 : index
    %74 = vector.load %arg9[%c19_56, %c0_57] : memref<326x32xf32, #tpu.memory_space<vmem>>, vector<288x32xf32>
    tpu.vector_store %arg9[%c19_56, %c0_57], %71 {strides = array<i32>} : memref<326x32xf32, #tpu.memory_space<vmem>>, vector<288x32xf32>,
    %cst_58 = arith.constant 0.000000e+00 : f32
    %75 = vector.broadcast %cst_58 : f32 to vector<288x32xf32>
    %c0_59 = arith.constant 0 : index
    %c0_60 = arith.constant 0 : index
    %76 = vector.load %arg9[%c0_59, %c0_60] : memref<326x32xf32, #tpu.memory_space<vmem>>, vector<288x32xf32>
    %77 = arith.truncf %76 : vector<288x32xf32> to vector<288x32xbf16>
    %c0_61 = arith.constant 0 : index
    %c0_62 = arith.constant 0 : index
    %c0_63 = arith.constant 0 : index
    %78 = vector.load %arg4[%c0_61, %c0_62, %c0_63] : memref<9x32x32xbf16, #tpu.memory_space<vmem>>, vector<1x32x32xbf16>
    %79 = vector.shape_cast %78 : vector<1x32x32xbf16> to vector<32x32xbf16>
    %cst_64 = arith.constant dense<0.000000e+00> : vector<288x32xf32>
    %80 = tpu.matmul %77, %79, %cst_64 {dimension_numbers = #tpu.dot_dimension_numbers<[1], [0], [0], [1], [0, 0, 1, 1], [], []>} : vector<288x32xbf16>, vector<32x32xbf16>, vector<288x32xf32> -> vector<288x32xf32>
    %81 = arith.addf %75, %80 : vector<288x32xf32>
    %c1_65 = arith.constant 1 : index
    %c0_66 = arith.constant 0 : index
    %82 = vector.load %arg9[%c1_65, %c0_66] : memref<326x32xf32, #tpu.memory_space<vmem>>, vector<288x32xf32>
    %83 = arith.truncf %82 : vector<288x32xf32> to vector<288x32xbf16>
    %c1_67 = arith.constant 1 : index
    %c0_68 = arith.constant 0 : index
    %c0_69 = arith.constant 0 : index
    %84 = vector.load %arg4[%c1_67, %c0_68, %c0_69] : memref<9x32x32xbf16, #tpu.memory_space<vmem>>, vector<1x32x32xbf16>
    %85 = vector.shape_cast %84 : vector<1x32x32xbf16> to vector<32x32xbf16>
    %cst_70 = arith.constant dense<0.000000e+00> : vector<288x32xf32>
    %86 = tpu.matmul %83, %85, %cst_70 {dimension_numbers = #tpu.dot_dimension_numbers<[1], [0], [0], [1], [0, 0, 1, 1], [], []>} : vector<288x32xbf16>, vector<32x32xbf16>, vector<288x32xf32> -> vector<288x32xf32>
    %87 = arith.addf %81, %86 : vector<288x32xf32>
    %c2_71 = arith.constant 2 : index
    %c0_72 = arith.constant 0 : index
    %88 = vector.load %arg9[%c2_71, %c0_72] : memref<326x32xf32, #tpu.memory_space<vmem>>, vector<288x32xf32>
    %89 = arith.truncf %88 : vector<288x32xf32> to vector<288x32xbf16>
    %c2_73 = arith.constant 2 : index
    %c0_74 = arith.constant 0 : index
    %c0_75 = arith.constant 0 : index
    %90 = vector.load %arg4[%c2_73, %c0_74, %c0_75] : memref<9x32x32xbf16, #tpu.memory_space<vmem>>, vector<1x32x32xbf16>
    %91 = vector.shape_cast %90 : vector<1x32x32xbf16> to vector<32x32xbf16>
    %cst_76 = arith.constant dense<0.000000e+00> : vector<288x32xf32>
    %92 = tpu.matmul %89, %91, %cst_76 {dimension_numbers = #tpu.dot_dimension_numbers<[1], [0], [0], [1], [0, 0, 1, 1], [], []>} : vector<288x32xbf16>, vector<32x32xbf16>, vector<288x32xf32> -> vector<288x32xf32>
    %93 = arith.addf %87, %92 : vector<288x32xf32>
    %c18_77 = arith.constant 18 : index
    %c0_78 = arith.constant 0 : index
    %94 = vector.load %arg9[%c18_77, %c0_78] : memref<326x32xf32, #tpu.memory_space<vmem>>, vector<288x32xf32>
    %95 = arith.truncf %94 : vector<288x32xf32> to vector<288x32xbf16>
    %c3_79 = arith.constant 3 : index
    %c0_80 = arith.constant 0 : index
    %c0_81 = arith.constant 0 : index
    %96 = vector.load %arg4[%c3_79, %c0_80, %c0_81] : memref<9x32x32xbf16, #tpu.memory_space<vmem>>, vector<1x32x32xbf16>
    %97 = vector.shape_cast %96 : vector<1x32x32xbf16> to vector<32x32xbf16>
    %cst_82 = arith.constant dense<0.000000e+00> : vector<288x32xf32>
    %98 = tpu.matmul %95, %97, %cst_82 {dimension_numbers = #tpu.dot_dimension_numbers<[1], [0], [0], [1], [0, 0, 1, 1], [], []>} : vector<288x32xbf16>, vector<32x32xbf16>, vector<288x32xf32> -> vector<288x32xf32>
    %99 = arith.addf %93, %98 : vector<288x32xf32>
    %c19_83 = arith.constant 19 : index
    %c0_84 = arith.constant 0 : index
    %100 = vector.load %arg9[%c19_83, %c0_84] : memref<326x32xf32, #tpu.memory_space<vmem>>, vector<288x32xf32>
    %101 = arith.truncf %100 : vector<288x32xf32> to vector<288x32xbf16>
    %c4_85 = arith.constant 4 : index
    %c0_86 = arith.constant 0 : index
    %c0_87 = arith.constant 0 : index
    %102 = vector.load %arg4[%c4_85, %c0_86, %c0_87] : memref<9x32x32xbf16, #tpu.memory_space<vmem>>, vector<1x32x32xbf16>
    %103 = vector.shape_cast %102 : vector<1x32x32xbf16> to vector<32x32xbf16>
    %cst_88 = arith.constant dense<0.000000e+00> : vector<288x32xf32>
    %104 = tpu.matmul %101, %103, %cst_88 {dimension_numbers = #tpu.dot_dimension_numbers<[1], [0], [0], [1], [0, 0, 1, 1], [], []>} : vector<288x32xbf16>, vector<32x32xbf16>, vector<288x32xf32> -> vector<288x32xf32>
    %105 = arith.addf %99, %104 : vector<288x32xf32>
    %c20_89 = arith.constant 20 : index
    %c0_90 = arith.constant 0 : index
    %106 = vector.load %arg9[%c20_89, %c0_90] : memref<326x32xf32, #tpu.memory_space<vmem>>, vector<288x32xf32>
    %107 = arith.truncf %106 : vector<288x32xf32> to vector<288x32xbf16>
    %c5_91 = arith.constant 5 : index
    %c0_92 = arith.constant 0 : index
    %c0_93 = arith.constant 0 : index
    %108 = vector.load %arg4[%c5_91, %c0_92, %c0_93] : memref<9x32x32xbf16, #tpu.memory_space<vmem>>, vector<1x32x32xbf16>
    %109 = vector.shape_cast %108 : vector<1x32x32xbf16> to vector<32x32xbf16>
    %cst_94 = arith.constant dense<0.000000e+00> : vector<288x32xf32>
    %110 = tpu.matmul %107, %109, %cst_94 {dimension_numbers = #tpu.dot_dimension_numbers<[1], [0], [0], [1], [0, 0, 1, 1], [], []>} : vector<288x32xbf16>, vector<32x32xbf16>, vector<288x32xf32> -> vector<288x32xf32>
    %111 = arith.addf %105, %110 : vector<288x32xf32>
    %c36_95 = arith.constant 36 : index
    %c0_96 = arith.constant 0 : index
    %112 = vector.load %arg9[%c36_95, %c0_96] : memref<326x32xf32, #tpu.memory_space<vmem>>, vector<288x32xf32>
    %113 = arith.truncf %112 : vector<288x32xf32> to vector<288x32xbf16>
    %c6_97 = arith.constant 6 : index
    %c0_98 = arith.constant 0 : index
    %c0_99 = arith.constant 0 : index
    %114 = vector.load %arg4[%c6_97, %c0_98, %c0_99] : memref<9x32x32xbf16, #tpu.memory_space<vmem>>, vector<1x32x32xbf16>
    %115 = vector.shape_cast %114 : vector<1x32x32xbf16> to vector<32x32xbf16>
    %cst_100 = arith.constant dense<0.000000e+00> : vector<288x32xf32>
    %116 = tpu.matmul %113, %115, %cst_100 {dimension_numbers = #tpu.dot_dimension_numbers<[1], [0], [0], [1], [0, 0, 1, 1], [], []>} : vector<288x32xbf16>, vector<32x32xbf16>, vector<288x32xf32> -> vector<288x32xf32>
    %117 = arith.addf %111, %116 : vector<288x32xf32>
    %c37_101 = arith.constant 37 : index
    %c0_102 = arith.constant 0 : index
    %118 = vector.load %arg9[%c37_101, %c0_102] : memref<326x32xf32, #tpu.memory_space<vmem>>, vector<288x32xf32>
    %119 = arith.truncf %118 : vector<288x32xf32> to vector<288x32xbf16>
    %c7_103 = arith.constant 7 : index
    %c0_104 = arith.constant 0 : index
    %c0_105 = arith.constant 0 : index
    %120 = vector.load %arg4[%c7_103, %c0_104, %c0_105] : memref<9x32x32xbf16, #tpu.memory_space<vmem>>, vector<1x32x32xbf16>
    %121 = vector.shape_cast %120 : vector<1x32x32xbf16> to vector<32x32xbf16>
    %cst_106 = arith.constant dense<0.000000e+00> : vector<288x32xf32>
    %122 = tpu.matmul %119, %121, %cst_106 {dimension_numbers = #tpu.dot_dimension_numbers<[1], [0], [0], [1], [0, 0, 1, 1], [], []>} : vector<288x32xbf16>, vector<32x32xbf16>, vector<288x32xf32> -> vector<288x32xf32>
    %123 = arith.addf %117, %122 : vector<288x32xf32>
    %c38_107 = arith.constant 38 : index
    %c0_108 = arith.constant 0 : index
    %124 = vector.load %arg9[%c38_107, %c0_108] : memref<326x32xf32, #tpu.memory_space<vmem>>, vector<288x32xf32>
    %125 = arith.truncf %124 : vector<288x32xf32> to vector<288x32xbf16>
    %c8_109 = arith.constant 8 : index
    %c0_110 = arith.constant 0 : index
    %c0_111 = arith.constant 0 : index
    %126 = vector.load %arg4[%c8_109, %c0_110, %c0_111] : memref<9x32x32xbf16, #tpu.memory_space<vmem>>, vector<1x32x32xbf16>
    %127 = vector.shape_cast %126 : vector<1x32x32xbf16> to vector<32x32xbf16>
    %cst_112 = arith.constant dense<0.000000e+00> : vector<288x32xf32>
    %128 = tpu.matmul %125, %127, %cst_112 {dimension_numbers = #tpu.dot_dimension_numbers<[1], [0], [0], [1], [0, 0, 1, 1], [], []>} : vector<288x32xbf16>, vector<32x32xbf16>, vector<288x32xf32> -> vector<288x32xf32>
    %129 = arith.addf %123, %128 : vector<288x32xf32>
    %c0_113 = arith.constant 0 : index
    %c0_114 = arith.constant 0 : index
    %130 = vector.load %arg5[%c0_113, %c0_114] : memref<1x32xf32, #tpu.memory_space<vmem>>, vector<1x32xf32>
    %131 = vector.broadcast %130 : vector<1x32xf32> to vector<288x32xf32>
    %132 = arith.addf %129, %131 : vector<288x32xf32>
    %cst_115 = arith.constant 0.000000e+00 : f32
    %133 = vector.broadcast %cst_115 : f32 to vector<288x32xf32>
    %134 = arith.maximumf %132, %133 : vector<288x32xf32>
    %c0_116 = arith.constant 0 : index
    %c0_117 = arith.constant 0 : index
    %135 = vector.load %arg10[%c0_116, %c0_117] : memref<288x32xf32, #tpu.memory_space<vmem>>, vector<288x32xf32>
    tpu.vector_store %arg10[%c0_116, %c0_117], %134 {strides = array<i32>} : memref<288x32xf32, #tpu.memory_space<vmem>>, vector<288x32xf32>,
    %c0_118 = arith.constant 0 : index
    %c0_119 = arith.constant 0 : index
    %136 = vector.load %arg10[%c0_118, %c0_119] : memref<288x32xf32, #tpu.memory_space<vmem>>, vector<269x32xf32>
    %c1_120 = arith.constant 1 : index
    %c0_121 = arith.constant 0 : index
    %137 = vector.load %arg10[%c1_120, %c0_121] : memref<288x32xf32, #tpu.memory_space<vmem>>, vector<269x32xf32>
    %138 = arith.maximumf %136, %137 : vector<269x32xf32>
    %c18_122 = arith.constant 18 : index
    %c0_123 = arith.constant 0 : index
    %139 = vector.load %arg10[%c18_122, %c0_123] : memref<288x32xf32, #tpu.memory_space<vmem>>, vector<269x32xf32>
    %c19_124 = arith.constant 19 : index
    %c0_125 = arith.constant 0 : index
    %140 = vector.load %arg10[%c19_124, %c0_125] : memref<288x32xf32, #tpu.memory_space<vmem>>, vector<269x32xf32>
    %141 = arith.maximumf %139, %140 : vector<269x32xf32>
    %142 = arith.maximumf %138, %141 : vector<269x32xf32>
    %c0_126 = arith.constant 0 : index
    %c0_127 = arith.constant 0 : index
    %143 = vector.load %arg7[%c0_126, %c0_127] : memref<102x269xf32, #tpu.memory_space<vmem>>, vector<102x269xf32>
    %cst_128 = arith.constant dense<0.000000e+00> : vector<102x32xf32>
    %144 = tpu.matmul %143, %142, %cst_128 {dimension_numbers = #tpu.dot_dimension_numbers<[1], [0], [0], [1], [0, 0, 1, 1], [], []>} : vector<102x269xf32>, vector<269x32xf32>, vector<102x32xf32> -> vector<102x32xf32>
    %c0_129 = arith.constant 0 : index
    %c0_130 = arith.constant 0 : index
    %c0_131 = arith.constant 0 : index
    %145 = vector.load %arg8[%c0_129, %c0_130, %c0_131] : memref<1x102x32xf32, #tpu.memory_space<vmem>>, vector<1x102x32xf32>
    %146 = vector.shape_cast %145 : vector<1x102x32xf32> to vector<102x32xf32>
    %147 = vector.shape_cast %144 : vector<102x32xf32> to vector<1x102x32xf32>
    tpu.vector_store %arg8[%c0_129, %c0_130, %c0_131], %147 {strides = array<i32>} : memref<1x102x32xf32, #tpu.memory_space<vmem>>, vector<1x102x32xf32>,
    return
  }
  func.func @transform_0(%arg0: i32) -> (i32, i32, i32) {
    %c0_i32 = arith.constant 0 : i32
    %c0_i32_0 = arith.constant 0 : i32
    %c0_i32_1 = arith.constant 0 : i32
    return %arg0, %c0_i32, %c0_i32_0 : i32, i32, i32
  }
  func.func @transform_1(%arg0: i32) -> (i32, i32, i32) {
    %c0_i32 = arith.constant 0 : i32
    %c0_i32_0 = arith.constant 0 : i32
    %c0_i32_1 = arith.constant 0 : i32
    %c0_i32_2 = arith.constant 0 : i32
    return %c0_i32, %c0_i32_0, %c0_i32_1 : i32, i32, i32
  }
  func.func @transform_2(%arg0: i32) -> (i32, i32) {
    %c0_i32 = arith.constant 0 : i32
    %c0_i32_0 = arith.constant 0 : i32
    %c0_i32_1 = arith.constant 0 : i32
    return %c0_i32, %c0_i32_0 : i32, i32
  }
  func.func @transform_3(%arg0: i32) -> (i32, i32, i32) {
    %c0_i32 = arith.constant 0 : i32
    %c0_i32_0 = arith.constant 0 : i32
    %c0_i32_1 = arith.constant 0 : i32
    %c0_i32_2 = arith.constant 0 : i32
    return %c0_i32, %c0_i32_0, %c0_i32_1 : i32, i32, i32
  }
  func.func @transform_4(%arg0: i32) -> (i32, i32) {
    %c0_i32 = arith.constant 0 : i32
    %c0_i32_0 = arith.constant 0 : i32
    %c0_i32_1 = arith.constant 0 : i32
    return %c0_i32, %c0_i32_0 : i32, i32
  }
  func.func @transform_5(%arg0: i32) -> (i32, i32) {
    %c0_i32 = arith.constant 0 : i32
    %c0_i32_0 = arith.constant 0 : i32
    %c0_i32_1 = arith.constant 0 : i32
    return %c0_i32, %c0_i32_0 : i32, i32
  }
  func.func @transform_6(%arg0: i32) -> (i32, i32) {
    %c0_i32 = arith.constant 0 : i32
    %c0_i32_0 = arith.constant 0 : i32
    %c0_i32_1 = arith.constant 0 : i32
    return %c0_i32, %c0_i32_0 : i32, i32
  }
  func.func @transform_7(%arg0: i32) -> (i32, i32, i32) {
    %c0_i32 = arith.constant 0 : i32
    %c0_i32_0 = arith.constant 0 : i32
    %c0_i32_1 = arith.constant 0 : i32
    return %arg0, %c0_i32, %c0_i32_0 : i32, i32, i32
  }
}

module attributes {stable_mosaic.version = 11 : i64} {
  func.func @_conv_pair_pool_kernel(%arg0: i32, %arg1: memref<1x38x64xf32, #tpu.memory_space<vmem>>, %arg2: memref<9x64x128xbf16, #tpu.memory_space<vmem>>, %arg3: memref<1x128xf32, #tpu.memory_space<vmem>>, %arg4: memref<9x128x128xbf16, #tpu.memory_space<vmem>>, %arg5: memref<1x128xf32, #tpu.memory_space<vmem>>, %arg6: memref<24x1xf32, #tpu.memory_space<vmem>>, %arg7: memref<4x17xf32, #tpu.memory_space<vmem>>, %arg8: memref<1x4x128xf32, #tpu.memory_space<vmem>>, %arg9: memref<38x128xf32, #tpu.memory_space<vmem>>, %arg10: memref<24x128xf32, #tpu.memory_space<vmem>>) attributes {dimension_semantics = [#tpu.dimension_semantics<parallel>], iteration_bounds = array<i64: 2>, scalar_prefetch = 0 : i64, scratch_operands = 2 : i64, tpu.core_type = #tpu.core_type<tc>, window_params = [{transform_indices = @transform_0, window_bounds = array<i64: 1, 38, 64>}, {pipeline_mode = #tpu.pipeline_mode<synchronous>, transform_indices = @transform_1, window_bounds = array<i64: 9, 64, 128>}, {pipeline_mode = #tpu.pipeline_mode<synchronous>, transform_indices = @transform_2, window_bounds = array<i64: 1, 128>}, {pipeline_mode = #tpu.pipeline_mode<synchronous>, transform_indices = @transform_3, window_bounds = array<i64: 9, 128, 128>}, {pipeline_mode = #tpu.pipeline_mode<synchronous>, transform_indices = @transform_4, window_bounds = array<i64: 1, 128>}, {pipeline_mode = #tpu.pipeline_mode<synchronous>, transform_indices = @transform_5, window_bounds = array<i64: 24, 1>}, {pipeline_mode = #tpu.pipeline_mode<synchronous>, transform_indices = @transform_6, window_bounds = array<i64: 4, 17>}, {transform_indices = @transform_7, window_bounds = array<i64: 1, 4, 128>}]} {
    %cst = arith.constant 0.000000e+00 : f32
    %0 = vector.broadcast %cst : f32 to vector<24x128xf32>
    %c0 = arith.constant 0 : index
    %c0_0 = arith.constant 0 : index
    %c0_1 = arith.constant 0 : index
    %1 = vector.load %arg1[%c0, %c0_0, %c0_1] : memref<1x38x64xf32, #tpu.memory_space<vmem>>, vector<1x24x64xf32>
    %2 = vector.shape_cast %1 : vector<1x24x64xf32> to vector<24x64xf32>
    %3 = arith.truncf %2 : vector<24x64xf32> to vector<24x64xbf16>
    %c0_2 = arith.constant 0 : index
    %c0_3 = arith.constant 0 : index
    %c0_4 = arith.constant 0 : index
    %4 = vector.load %arg2[%c0_2, %c0_3, %c0_4] : memref<9x64x128xbf16, #tpu.memory_space<vmem>>, vector<1x64x128xbf16>
    %5 = vector.shape_cast %4 : vector<1x64x128xbf16> to vector<64x128xbf16>
    %cst_5 = arith.constant dense<0.000000e+00> : vector<24x128xf32>
    %6 = tpu.matmul %3, %5, %cst_5 {dimension_numbers = #tpu.dot_dimension_numbers<[1], [0], [0], [1], [0, 0, 1, 1], [], []>} : vector<24x64xbf16>, vector<64x128xbf16>, vector<24x128xf32> -> vector<24x128xf32>
    %7 = arith.addf %0, %6 : vector<24x128xf32>
    %c0_6 = arith.constant 0 : index
    %c1 = arith.constant 1 : index
    %c0_7 = arith.constant 0 : index
    %8 = vector.load %arg1[%c0_6, %c1, %c0_7] : memref<1x38x64xf32, #tpu.memory_space<vmem>>, vector<1x24x64xf32>
    %9 = vector.shape_cast %8 : vector<1x24x64xf32> to vector<24x64xf32>
    %10 = arith.truncf %9 : vector<24x64xf32> to vector<24x64xbf16>
    %c1_8 = arith.constant 1 : index
    %c0_9 = arith.constant 0 : index
    %c0_10 = arith.constant 0 : index
    %11 = vector.load %arg2[%c1_8, %c0_9, %c0_10] : memref<9x64x128xbf16, #tpu.memory_space<vmem>>, vector<1x64x128xbf16>
    %12 = vector.shape_cast %11 : vector<1x64x128xbf16> to vector<64x128xbf16>
    %cst_11 = arith.constant dense<0.000000e+00> : vector<24x128xf32>
    %13 = tpu.matmul %10, %12, %cst_11 {dimension_numbers = #tpu.dot_dimension_numbers<[1], [0], [0], [1], [0, 0, 1, 1], [], []>} : vector<24x64xbf16>, vector<64x128xbf16>, vector<24x128xf32> -> vector<24x128xf32>
    %14 = arith.addf %7, %13 : vector<24x128xf32>
    %c0_12 = arith.constant 0 : index
    %c2 = arith.constant 2 : index
    %c0_13 = arith.constant 0 : index
    %15 = vector.load %arg1[%c0_12, %c2, %c0_13] : memref<1x38x64xf32, #tpu.memory_space<vmem>>, vector<1x24x64xf32>
    %16 = vector.shape_cast %15 : vector<1x24x64xf32> to vector<24x64xf32>
    %17 = arith.truncf %16 : vector<24x64xf32> to vector<24x64xbf16>
    %c2_14 = arith.constant 2 : index
    %c0_15 = arith.constant 0 : index
    %c0_16 = arith.constant 0 : index
    %18 = vector.load %arg2[%c2_14, %c0_15, %c0_16] : memref<9x64x128xbf16, #tpu.memory_space<vmem>>, vector<1x64x128xbf16>
    %19 = vector.shape_cast %18 : vector<1x64x128xbf16> to vector<64x128xbf16>
    %cst_17 = arith.constant dense<0.000000e+00> : vector<24x128xf32>
    %20 = tpu.matmul %17, %19, %cst_17 {dimension_numbers = #tpu.dot_dimension_numbers<[1], [0], [0], [1], [0, 0, 1, 1], [], []>} : vector<24x64xbf16>, vector<64x128xbf16>, vector<24x128xf32> -> vector<24x128xf32>
    %21 = arith.addf %14, %20 : vector<24x128xf32>
    %c0_18 = arith.constant 0 : index
    %c6 = arith.constant 6 : index
    %c0_19 = arith.constant 0 : index
    %22 = vector.load %arg1[%c0_18, %c6, %c0_19] : memref<1x38x64xf32, #tpu.memory_space<vmem>>, vector<1x24x64xf32>
    %23 = vector.shape_cast %22 : vector<1x24x64xf32> to vector<24x64xf32>
    %24 = arith.truncf %23 : vector<24x64xf32> to vector<24x64xbf16>
    %c3 = arith.constant 3 : index
    %c0_20 = arith.constant 0 : index
    %c0_21 = arith.constant 0 : index
    %25 = vector.load %arg2[%c3, %c0_20, %c0_21] : memref<9x64x128xbf16, #tpu.memory_space<vmem>>, vector<1x64x128xbf16>
    %26 = vector.shape_cast %25 : vector<1x64x128xbf16> to vector<64x128xbf16>
    %cst_22 = arith.constant dense<0.000000e+00> : vector<24x128xf32>
    %27 = tpu.matmul %24, %26, %cst_22 {dimension_numbers = #tpu.dot_dimension_numbers<[1], [0], [0], [1], [0, 0, 1, 1], [], []>} : vector<24x64xbf16>, vector<64x128xbf16>, vector<24x128xf32> -> vector<24x128xf32>
    %28 = arith.addf %21, %27 : vector<24x128xf32>
    %c0_23 = arith.constant 0 : index
    %c7 = arith.constant 7 : index
    %c0_24 = arith.constant 0 : index
    %29 = vector.load %arg1[%c0_23, %c7, %c0_24] : memref<1x38x64xf32, #tpu.memory_space<vmem>>, vector<1x24x64xf32>
    %30 = vector.shape_cast %29 : vector<1x24x64xf32> to vector<24x64xf32>
    %31 = arith.truncf %30 : vector<24x64xf32> to vector<24x64xbf16>
    %c4 = arith.constant 4 : index
    %c0_25 = arith.constant 0 : index
    %c0_26 = arith.constant 0 : index
    %32 = vector.load %arg2[%c4, %c0_25, %c0_26] : memref<9x64x128xbf16, #tpu.memory_space<vmem>>, vector<1x64x128xbf16>
    %33 = vector.shape_cast %32 : vector<1x64x128xbf16> to vector<64x128xbf16>
    %cst_27 = arith.constant dense<0.000000e+00> : vector<24x128xf32>
    %34 = tpu.matmul %31, %33, %cst_27 {dimension_numbers = #tpu.dot_dimension_numbers<[1], [0], [0], [1], [0, 0, 1, 1], [], []>} : vector<24x64xbf16>, vector<64x128xbf16>, vector<24x128xf32> -> vector<24x128xf32>
    %35 = arith.addf %28, %34 : vector<24x128xf32>
    %c0_28 = arith.constant 0 : index
    %c8 = arith.constant 8 : index
    %c0_29 = arith.constant 0 : index
    %36 = vector.load %arg1[%c0_28, %c8, %c0_29] : memref<1x38x64xf32, #tpu.memory_space<vmem>>, vector<1x24x64xf32>
    %37 = vector.shape_cast %36 : vector<1x24x64xf32> to vector<24x64xf32>
    %38 = arith.truncf %37 : vector<24x64xf32> to vector<24x64xbf16>
    %c5 = arith.constant 5 : index
    %c0_30 = arith.constant 0 : index
    %c0_31 = arith.constant 0 : index
    %39 = vector.load %arg2[%c5, %c0_30, %c0_31] : memref<9x64x128xbf16, #tpu.memory_space<vmem>>, vector<1x64x128xbf16>
    %40 = vector.shape_cast %39 : vector<1x64x128xbf16> to vector<64x128xbf16>
    %cst_32 = arith.constant dense<0.000000e+00> : vector<24x128xf32>
    %41 = tpu.matmul %38, %40, %cst_32 {dimension_numbers = #tpu.dot_dimension_numbers<[1], [0], [0], [1], [0, 0, 1, 1], [], []>} : vector<24x64xbf16>, vector<64x128xbf16>, vector<24x128xf32> -> vector<24x128xf32>
    %42 = arith.addf %35, %41 : vector<24x128xf32>
    %c0_33 = arith.constant 0 : index
    %c12 = arith.constant 12 : index
    %c0_34 = arith.constant 0 : index
    %43 = vector.load %arg1[%c0_33, %c12, %c0_34] : memref<1x38x64xf32, #tpu.memory_space<vmem>>, vector<1x24x64xf32>
    %44 = vector.shape_cast %43 : vector<1x24x64xf32> to vector<24x64xf32>
    %45 = arith.truncf %44 : vector<24x64xf32> to vector<24x64xbf16>
    %c6_35 = arith.constant 6 : index
    %c0_36 = arith.constant 0 : index
    %c0_37 = arith.constant 0 : index
    %46 = vector.load %arg2[%c6_35, %c0_36, %c0_37] : memref<9x64x128xbf16, #tpu.memory_space<vmem>>, vector<1x64x128xbf16>
    %47 = vector.shape_cast %46 : vector<1x64x128xbf16> to vector<64x128xbf16>
    %cst_38 = arith.constant dense<0.000000e+00> : vector<24x128xf32>
    %48 = tpu.matmul %45, %47, %cst_38 {dimension_numbers = #tpu.dot_dimension_numbers<[1], [0], [0], [1], [0, 0, 1, 1], [], []>} : vector<24x64xbf16>, vector<64x128xbf16>, vector<24x128xf32> -> vector<24x128xf32>
    %49 = arith.addf %42, %48 : vector<24x128xf32>
    %c0_39 = arith.constant 0 : index
    %c13 = arith.constant 13 : index
    %c0_40 = arith.constant 0 : index
    %50 = vector.load %arg1[%c0_39, %c13, %c0_40] : memref<1x38x64xf32, #tpu.memory_space<vmem>>, vector<1x24x64xf32>
    %51 = vector.shape_cast %50 : vector<1x24x64xf32> to vector<24x64xf32>
    %52 = arith.truncf %51 : vector<24x64xf32> to vector<24x64xbf16>
    %c7_41 = arith.constant 7 : index
    %c0_42 = arith.constant 0 : index
    %c0_43 = arith.constant 0 : index
    %53 = vector.load %arg2[%c7_41, %c0_42, %c0_43] : memref<9x64x128xbf16, #tpu.memory_space<vmem>>, vector<1x64x128xbf16>
    %54 = vector.shape_cast %53 : vector<1x64x128xbf16> to vector<64x128xbf16>
    %cst_44 = arith.constant dense<0.000000e+00> : vector<24x128xf32>
    %55 = tpu.matmul %52, %54, %cst_44 {dimension_numbers = #tpu.dot_dimension_numbers<[1], [0], [0], [1], [0, 0, 1, 1], [], []>} : vector<24x64xbf16>, vector<64x128xbf16>, vector<24x128xf32> -> vector<24x128xf32>
    %56 = arith.addf %49, %55 : vector<24x128xf32>
    %c0_45 = arith.constant 0 : index
    %c14 = arith.constant 14 : index
    %c0_46 = arith.constant 0 : index
    %57 = vector.load %arg1[%c0_45, %c14, %c0_46] : memref<1x38x64xf32, #tpu.memory_space<vmem>>, vector<1x24x64xf32>
    %58 = vector.shape_cast %57 : vector<1x24x64xf32> to vector<24x64xf32>
    %59 = arith.truncf %58 : vector<24x64xf32> to vector<24x64xbf16>
    %c8_47 = arith.constant 8 : index
    %c0_48 = arith.constant 0 : index
    %c0_49 = arith.constant 0 : index
    %60 = vector.load %arg2[%c8_47, %c0_48, %c0_49] : memref<9x64x128xbf16, #tpu.memory_space<vmem>>, vector<1x64x128xbf16>
    %61 = vector.shape_cast %60 : vector<1x64x128xbf16> to vector<64x128xbf16>
    %cst_50 = arith.constant dense<0.000000e+00> : vector<24x128xf32>
    %62 = tpu.matmul %59, %61, %cst_50 {dimension_numbers = #tpu.dot_dimension_numbers<[1], [0], [0], [1], [0, 0, 1, 1], [], []>} : vector<24x64xbf16>, vector<64x128xbf16>, vector<24x128xf32> -> vector<24x128xf32>
    %63 = arith.addf %56, %62 : vector<24x128xf32>
    %c0_51 = arith.constant 0 : index
    %c0_52 = arith.constant 0 : index
    %64 = vector.load %arg3[%c0_51, %c0_52] : memref<1x128xf32, #tpu.memory_space<vmem>>, vector<1x128xf32>
    %65 = vector.broadcast %64 : vector<1x128xf32> to vector<24x128xf32>
    %66 = arith.addf %63, %65 : vector<24x128xf32>
    %cst_53 = arith.constant 0.000000e+00 : f32
    %67 = vector.broadcast %cst_53 : f32 to vector<24x128xf32>
    %68 = arith.maximumf %66, %67 : vector<24x128xf32>
    %c0_54 = arith.constant 0 : index
    %c0_55 = arith.constant 0 : index
    %69 = vector.load %arg6[%c0_54, %c0_55] : memref<24x1xf32, #tpu.memory_space<vmem>>, vector<24x1xf32>
    %70 = vector.broadcast %69 : vector<24x1xf32> to vector<24x128xf32>
    %71 = arith.mulf %68, %70 : vector<24x128xf32>
    %cst_56 = arith.constant 0.000000e+00 : f32
    %72 = vector.broadcast %cst_56 : f32 to vector<38x128xf32>
    %c0_57 = arith.constant 0 : index
    %c0_58 = arith.constant 0 : index
    %73 = vector.load %arg9[%c0_57, %c0_58] : memref<38x128xf32, #tpu.memory_space<vmem>>, vector<38x128xf32>
    tpu.vector_store %arg9[%c0_57, %c0_58], %72 {strides = array<i32>} : memref<38x128xf32, #tpu.memory_space<vmem>>, vector<38x128xf32>,
    %c7_59 = arith.constant 7 : index
    %c0_60 = arith.constant 0 : index
    %74 = vector.load %arg9[%c7_59, %c0_60] : memref<38x128xf32, #tpu.memory_space<vmem>>, vector<24x128xf32>
    tpu.vector_store %arg9[%c7_59, %c0_60], %71 {strides = array<i32>} : memref<38x128xf32, #tpu.memory_space<vmem>>, vector<24x128xf32>,
    %cst_61 = arith.constant 0.000000e+00 : f32
    %75 = vector.broadcast %cst_61 : f32 to vector<24x128xf32>
    %c0_62 = arith.constant 0 : index
    %c0_63 = arith.constant 0 : index
    %76 = vector.load %arg9[%c0_62, %c0_63] : memref<38x128xf32, #tpu.memory_space<vmem>>, vector<24x128xf32>
    %77 = arith.truncf %76 : vector<24x128xf32> to vector<24x128xbf16>
    %c0_64 = arith.constant 0 : index
    %c0_65 = arith.constant 0 : index
    %c0_66 = arith.constant 0 : index
    %78 = vector.load %arg4[%c0_64, %c0_65, %c0_66] : memref<9x128x128xbf16, #tpu.memory_space<vmem>>, vector<1x128x128xbf16>
    %79 = vector.shape_cast %78 : vector<1x128x128xbf16> to vector<128x128xbf16>
    %cst_67 = arith.constant dense<0.000000e+00> : vector<24x128xf32>
    %80 = tpu.matmul %77, %79, %cst_67 {dimension_numbers = #tpu.dot_dimension_numbers<[1], [0], [0], [1], [0, 0, 1, 1], [], []>} : vector<24x128xbf16>, vector<128x128xbf16>, vector<24x128xf32> -> vector<24x128xf32>
    %81 = arith.addf %75, %80 : vector<24x128xf32>
    %c1_68 = arith.constant 1 : index
    %c0_69 = arith.constant 0 : index
    %82 = vector.load %arg9[%c1_68, %c0_69] : memref<38x128xf32, #tpu.memory_space<vmem>>, vector<24x128xf32>
    %83 = arith.truncf %82 : vector<24x128xf32> to vector<24x128xbf16>
    %c1_70 = arith.constant 1 : index
    %c0_71 = arith.constant 0 : index
    %c0_72 = arith.constant 0 : index
    %84 = vector.load %arg4[%c1_70, %c0_71, %c0_72] : memref<9x128x128xbf16, #tpu.memory_space<vmem>>, vector<1x128x128xbf16>
    %85 = vector.shape_cast %84 : vector<1x128x128xbf16> to vector<128x128xbf16>
    %cst_73 = arith.constant dense<0.000000e+00> : vector<24x128xf32>
    %86 = tpu.matmul %83, %85, %cst_73 {dimension_numbers = #tpu.dot_dimension_numbers<[1], [0], [0], [1], [0, 0, 1, 1], [], []>} : vector<24x128xbf16>, vector<128x128xbf16>, vector<24x128xf32> -> vector<24x128xf32>
    %87 = arith.addf %81, %86 : vector<24x128xf32>
    %c2_74 = arith.constant 2 : index
    %c0_75 = arith.constant 0 : index
    %88 = vector.load %arg9[%c2_74, %c0_75] : memref<38x128xf32, #tpu.memory_space<vmem>>, vector<24x128xf32>
    %89 = arith.truncf %88 : vector<24x128xf32> to vector<24x128xbf16>
    %c2_76 = arith.constant 2 : index
    %c0_77 = arith.constant 0 : index
    %c0_78 = arith.constant 0 : index
    %90 = vector.load %arg4[%c2_76, %c0_77, %c0_78] : memref<9x128x128xbf16, #tpu.memory_space<vmem>>, vector<1x128x128xbf16>
    %91 = vector.shape_cast %90 : vector<1x128x128xbf16> to vector<128x128xbf16>
    %cst_79 = arith.constant dense<0.000000e+00> : vector<24x128xf32>
    %92 = tpu.matmul %89, %91, %cst_79 {dimension_numbers = #tpu.dot_dimension_numbers<[1], [0], [0], [1], [0, 0, 1, 1], [], []>} : vector<24x128xbf16>, vector<128x128xbf16>, vector<24x128xf32> -> vector<24x128xf32>
    %93 = arith.addf %87, %92 : vector<24x128xf32>
    %c6_80 = arith.constant 6 : index
    %c0_81 = arith.constant 0 : index
    %94 = vector.load %arg9[%c6_80, %c0_81] : memref<38x128xf32, #tpu.memory_space<vmem>>, vector<24x128xf32>
    %95 = arith.truncf %94 : vector<24x128xf32> to vector<24x128xbf16>
    %c3_82 = arith.constant 3 : index
    %c0_83 = arith.constant 0 : index
    %c0_84 = arith.constant 0 : index
    %96 = vector.load %arg4[%c3_82, %c0_83, %c0_84] : memref<9x128x128xbf16, #tpu.memory_space<vmem>>, vector<1x128x128xbf16>
    %97 = vector.shape_cast %96 : vector<1x128x128xbf16> to vector<128x128xbf16>
    %cst_85 = arith.constant dense<0.000000e+00> : vector<24x128xf32>
    %98 = tpu.matmul %95, %97, %cst_85 {dimension_numbers = #tpu.dot_dimension_numbers<[1], [0], [0], [1], [0, 0, 1, 1], [], []>} : vector<24x128xbf16>, vector<128x128xbf16>, vector<24x128xf32> -> vector<24x128xf32>
    %99 = arith.addf %93, %98 : vector<24x128xf32>
    %c7_86 = arith.constant 7 : index
    %c0_87 = arith.constant 0 : index
    %100 = vector.load %arg9[%c7_86, %c0_87] : memref<38x128xf32, #tpu.memory_space<vmem>>, vector<24x128xf32>
    %101 = arith.truncf %100 : vector<24x128xf32> to vector<24x128xbf16>
    %c4_88 = arith.constant 4 : index
    %c0_89 = arith.constant 0 : index
    %c0_90 = arith.constant 0 : index
    %102 = vector.load %arg4[%c4_88, %c0_89, %c0_90] : memref<9x128x128xbf16, #tpu.memory_space<vmem>>, vector<1x128x128xbf16>
    %103 = vector.shape_cast %102 : vector<1x128x128xbf16> to vector<128x128xbf16>
    %cst_91 = arith.constant dense<0.000000e+00> : vector<24x128xf32>
    %104 = tpu.matmul %101, %103, %cst_91 {dimension_numbers = #tpu.dot_dimension_numbers<[1], [0], [0], [1], [0, 0, 1, 1], [], []>} : vector<24x128xbf16>, vector<128x128xbf16>, vector<24x128xf32> -> vector<24x128xf32>
    %105 = arith.addf %99, %104 : vector<24x128xf32>
    %c8_92 = arith.constant 8 : index
    %c0_93 = arith.constant 0 : index
    %106 = vector.load %arg9[%c8_92, %c0_93] : memref<38x128xf32, #tpu.memory_space<vmem>>, vector<24x128xf32>
    %107 = arith.truncf %106 : vector<24x128xf32> to vector<24x128xbf16>
    %c5_94 = arith.constant 5 : index
    %c0_95 = arith.constant 0 : index
    %c0_96 = arith.constant 0 : index
    %108 = vector.load %arg4[%c5_94, %c0_95, %c0_96] : memref<9x128x128xbf16, #tpu.memory_space<vmem>>, vector<1x128x128xbf16>
    %109 = vector.shape_cast %108 : vector<1x128x128xbf16> to vector<128x128xbf16>
    %cst_97 = arith.constant dense<0.000000e+00> : vector<24x128xf32>
    %110 = tpu.matmul %107, %109, %cst_97 {dimension_numbers = #tpu.dot_dimension_numbers<[1], [0], [0], [1], [0, 0, 1, 1], [], []>} : vector<24x128xbf16>, vector<128x128xbf16>, vector<24x128xf32> -> vector<24x128xf32>
    %111 = arith.addf %105, %110 : vector<24x128xf32>
    %c12_98 = arith.constant 12 : index
    %c0_99 = arith.constant 0 : index
    %112 = vector.load %arg9[%c12_98, %c0_99] : memref<38x128xf32, #tpu.memory_space<vmem>>, vector<24x128xf32>
    %113 = arith.truncf %112 : vector<24x128xf32> to vector<24x128xbf16>
    %c6_100 = arith.constant 6 : index
    %c0_101 = arith.constant 0 : index
    %c0_102 = arith.constant 0 : index
    %114 = vector.load %arg4[%c6_100, %c0_101, %c0_102] : memref<9x128x128xbf16, #tpu.memory_space<vmem>>, vector<1x128x128xbf16>
    %115 = vector.shape_cast %114 : vector<1x128x128xbf16> to vector<128x128xbf16>
    %cst_103 = arith.constant dense<0.000000e+00> : vector<24x128xf32>
    %116 = tpu.matmul %113, %115, %cst_103 {dimension_numbers = #tpu.dot_dimension_numbers<[1], [0], [0], [1], [0, 0, 1, 1], [], []>} : vector<24x128xbf16>, vector<128x128xbf16>, vector<24x128xf32> -> vector<24x128xf32>
    %117 = arith.addf %111, %116 : vector<24x128xf32>
    %c13_104 = arith.constant 13 : index
    %c0_105 = arith.constant 0 : index
    %118 = vector.load %arg9[%c13_104, %c0_105] : memref<38x128xf32, #tpu.memory_space<vmem>>, vector<24x128xf32>
    %119 = arith.truncf %118 : vector<24x128xf32> to vector<24x128xbf16>
    %c7_106 = arith.constant 7 : index
    %c0_107 = arith.constant 0 : index
    %c0_108 = arith.constant 0 : index
    %120 = vector.load %arg4[%c7_106, %c0_107, %c0_108] : memref<9x128x128xbf16, #tpu.memory_space<vmem>>, vector<1x128x128xbf16>
    %121 = vector.shape_cast %120 : vector<1x128x128xbf16> to vector<128x128xbf16>
    %cst_109 = arith.constant dense<0.000000e+00> : vector<24x128xf32>
    %122 = tpu.matmul %119, %121, %cst_109 {dimension_numbers = #tpu.dot_dimension_numbers<[1], [0], [0], [1], [0, 0, 1, 1], [], []>} : vector<24x128xbf16>, vector<128x128xbf16>, vector<24x128xf32> -> vector<24x128xf32>
    %123 = arith.addf %117, %122 : vector<24x128xf32>
    %c14_110 = arith.constant 14 : index
    %c0_111 = arith.constant 0 : index
    %124 = vector.load %arg9[%c14_110, %c0_111] : memref<38x128xf32, #tpu.memory_space<vmem>>, vector<24x128xf32>
    %125 = arith.truncf %124 : vector<24x128xf32> to vector<24x128xbf16>
    %c8_112 = arith.constant 8 : index
    %c0_113 = arith.constant 0 : index
    %c0_114 = arith.constant 0 : index
    %126 = vector.load %arg4[%c8_112, %c0_113, %c0_114] : memref<9x128x128xbf16, #tpu.memory_space<vmem>>, vector<1x128x128xbf16>
    %127 = vector.shape_cast %126 : vector<1x128x128xbf16> to vector<128x128xbf16>
    %cst_115 = arith.constant dense<0.000000e+00> : vector<24x128xf32>
    %128 = tpu.matmul %125, %127, %cst_115 {dimension_numbers = #tpu.dot_dimension_numbers<[1], [0], [0], [1], [0, 0, 1, 1], [], []>} : vector<24x128xbf16>, vector<128x128xbf16>, vector<24x128xf32> -> vector<24x128xf32>
    %129 = arith.addf %123, %128 : vector<24x128xf32>
    %c0_116 = arith.constant 0 : index
    %c0_117 = arith.constant 0 : index
    %130 = vector.load %arg5[%c0_116, %c0_117] : memref<1x128xf32, #tpu.memory_space<vmem>>, vector<1x128xf32>
    %131 = vector.broadcast %130 : vector<1x128xf32> to vector<24x128xf32>
    %132 = arith.addf %129, %131 : vector<24x128xf32>
    %cst_118 = arith.constant 0.000000e+00 : f32
    %133 = vector.broadcast %cst_118 : f32 to vector<24x128xf32>
    %134 = arith.maximumf %132, %133 : vector<24x128xf32>
    %c0_119 = arith.constant 0 : index
    %c0_120 = arith.constant 0 : index
    %135 = vector.load %arg10[%c0_119, %c0_120] : memref<24x128xf32, #tpu.memory_space<vmem>>, vector<24x128xf32>
    tpu.vector_store %arg10[%c0_119, %c0_120], %134 {strides = array<i32>} : memref<24x128xf32, #tpu.memory_space<vmem>>, vector<24x128xf32>,
    %c0_121 = arith.constant 0 : index
    %c0_122 = arith.constant 0 : index
    %136 = vector.load %arg10[%c0_121, %c0_122] : memref<24x128xf32, #tpu.memory_space<vmem>>, vector<17x128xf32>
    %c1_123 = arith.constant 1 : index
    %c0_124 = arith.constant 0 : index
    %137 = vector.load %arg10[%c1_123, %c0_124] : memref<24x128xf32, #tpu.memory_space<vmem>>, vector<17x128xf32>
    %138 = arith.maximumf %136, %137 : vector<17x128xf32>
    %c6_125 = arith.constant 6 : index
    %c0_126 = arith.constant 0 : index
    %139 = vector.load %arg10[%c6_125, %c0_126] : memref<24x128xf32, #tpu.memory_space<vmem>>, vector<17x128xf32>
    %c7_127 = arith.constant 7 : index
    %c0_128 = arith.constant 0 : index
    %140 = vector.load %arg10[%c7_127, %c0_128] : memref<24x128xf32, #tpu.memory_space<vmem>>, vector<17x128xf32>
    %141 = arith.maximumf %139, %140 : vector<17x128xf32>
    %142 = arith.maximumf %138, %141 : vector<17x128xf32>
    %c0_129 = arith.constant 0 : index
    %c0_130 = arith.constant 0 : index
    %143 = vector.load %arg7[%c0_129, %c0_130] : memref<4x17xf32, #tpu.memory_space<vmem>>, vector<4x17xf32>
    %cst_131 = arith.constant dense<0.000000e+00> : vector<4x128xf32>
    %144 = tpu.matmul %143, %142, %cst_131 {dimension_numbers = #tpu.dot_dimension_numbers<[1], [0], [0], [1], [0, 0, 1, 1], [], []>} : vector<4x17xf32>, vector<17x128xf32>, vector<4x128xf32> -> vector<4x128xf32>
    %c0_132 = arith.constant 0 : index
    %c0_133 = arith.constant 0 : index
    %c0_134 = arith.constant 0 : index
    %145 = vector.load %arg8[%c0_132, %c0_133, %c0_134] : memref<1x4x128xf32, #tpu.memory_space<vmem>>, vector<1x4x128xf32>
    %146 = vector.shape_cast %145 : vector<1x4x128xf32> to vector<4x128xf32>
    %147 = vector.shape_cast %144 : vector<4x128xf32> to vector<1x4x128xf32>
    tpu.vector_store %arg8[%c0_132, %c0_133, %c0_134], %147 {strides = array<i32>} : memref<1x4x128xf32, #tpu.memory_space<vmem>>, vector<1x4x128xf32>,
    return
  }
  func.func @transform_0(%arg0: i32) -> (i32, i32, i32) {
    %c0_i32 = arith.constant 0 : i32
    %c0_i32_0 = arith.constant 0 : i32
    %c0_i32_1 = arith.constant 0 : i32
    return %arg0, %c0_i32, %c0_i32_0 : i32, i32, i32
  }
  func.func @transform_1(%arg0: i32) -> (i32, i32, i32) {
    %c0_i32 = arith.constant 0 : i32
    %c0_i32_0 = arith.constant 0 : i32
    %c0_i32_1 = arith.constant 0 : i32
    %c0_i32_2 = arith.constant 0 : i32
    return %c0_i32, %c0_i32_0, %c0_i32_1 : i32, i32, i32
  }
  func.func @transform_2(%arg0: i32) -> (i32, i32) {
    %c0_i32 = arith.constant 0 : i32
    %c0_i32_0 = arith.constant 0 : i32
    %c0_i32_1 = arith.constant 0 : i32
    return %c0_i32, %c0_i32_0 : i32, i32
  }
  func.func @transform_3(%arg0: i32) -> (i32, i32, i32) {
    %c0_i32 = arith.constant 0 : i32
    %c0_i32_0 = arith.constant 0 : i32
    %c0_i32_1 = arith.constant 0 : i32
    %c0_i32_2 = arith.constant 0 : i32
    return %c0_i32, %c0_i32_0, %c0_i32_1 : i32, i32, i32
  }
  func.func @transform_4(%arg0: i32) -> (i32, i32) {
    %c0_i32 = arith.constant 0 : i32
    %c0_i32_0 = arith.constant 0 : i32
    %c0_i32_1 = arith.constant 0 : i32
    return %c0_i32, %c0_i32_0 : i32, i32
  }
  func.func @transform_5(%arg0: i32) -> (i32, i32) {
    %c0_i32 = arith.constant 0 : i32
    %c0_i32_0 = arith.constant 0 : i32
    %c0_i32_1 = arith.constant 0 : i32
    return %c0_i32, %c0_i32_0 : i32, i32
  }
  func.func @transform_6(%arg0: i32) -> (i32, i32) {
    %c0_i32 = arith.constant 0 : i32
    %c0_i32_0 = arith.constant 0 : i32
    %c0_i32_1 = arith.constant 0 : i32
    return %c0_i32, %c0_i32_0 : i32, i32
  }
  func.func @transform_7(%arg0: i32) -> (i32, i32, i32) {
    %c0_i32 = arith.constant 0 : i32
    %c0_i32_0 = arith.constant 0 : i32
    %c0_i32_1 = arith.constant 0 : i32
    return %arg0, %c0_i32, %c0_i32_0 : i32, i32, i32
  }
}

module attributes {stable_mosaic.version = 11 : i64} {
  func.func @_fc_heads_kernel(%arg0: memref<2x512xbf16, #tpu.memory_space<vmem>>, %arg1: memref<512x256xbf16, #tpu.memory_space<vmem>>, %arg2: memref<1x256xf32, #tpu.memory_space<vmem>>, %arg3: memref<256x128xbf16, #tpu.memory_space<vmem>>, %arg4: memref<1x128xf32, #tpu.memory_space<vmem>>, %arg5: memref<2x128xf32, #tpu.memory_space<vmem>>) attributes {dimension_semantics = [], scalar_prefetch = 0 : i64, scratch_operands = 0 : i64, tpu.core_type = #tpu.core_type<tc>} {
    %c0 = arith.constant 0 : index
    %c0_0 = arith.constant 0 : index
    %0 = vector.load %arg0[%c0, %c0_0] : memref<2x512xbf16, #tpu.memory_space<vmem>>, vector<2x512xbf16>
    %c0_1 = arith.constant 0 : index
    %c0_2 = arith.constant 0 : index
    %1 = vector.load %arg1[%c0_1, %c0_2] : memref<512x256xbf16, #tpu.memory_space<vmem>>, vector<512x256xbf16>
    %cst = arith.constant dense<0.000000e+00> : vector<2x256xf32>
    %2 = tpu.matmul %0, %1, %cst {dimension_numbers = #tpu.dot_dimension_numbers<[1], [0], [0], [1], [0, 0, 1, 1], [], []>} : vector<2x512xbf16>, vector<512x256xbf16>, vector<2x256xf32> -> vector<2x256xf32>
    %c0_3 = arith.constant 0 : index
    %c0_4 = arith.constant 0 : index
    %3 = vector.load %arg2[%c0_3, %c0_4] : memref<1x256xf32, #tpu.memory_space<vmem>>, vector<1x256xf32>
    %4 = vector.broadcast %3 : vector<1x256xf32> to vector<2x256xf32>
    %5 = arith.addf %2, %4 : vector<2x256xf32>
    %cst_5 = arith.constant 0.000000e+00 : f32
    %6 = vector.broadcast %cst_5 : f32 to vector<2x256xf32>
    %7 = arith.maximumf %5, %6 : vector<2x256xf32>
    %8 = arith.truncf %7 : vector<2x256xf32> to vector<2x256xbf16>
    %c0_6 = arith.constant 0 : index
    %c0_7 = arith.constant 0 : index
    %9 = vector.load %arg3[%c0_6, %c0_7] : memref<256x128xbf16, #tpu.memory_space<vmem>>, vector<256x128xbf16>
    %cst_8 = arith.constant dense<0.000000e+00> : vector<2x128xf32>
    %10 = tpu.matmul %8, %9, %cst_8 {dimension_numbers = #tpu.dot_dimension_numbers<[1], [0], [0], [1], [0, 0, 1, 1], [], []>} : vector<2x256xbf16>, vector<256x128xbf16>, vector<2x128xf32> -> vector<2x128xf32>
    %c0_9 = arith.constant 0 : index
    %c0_10 = arith.constant 0 : index
    %11 = vector.load %arg4[%c0_9, %c0_10] : memref<1x128xf32, #tpu.memory_space<vmem>>, vector<1x128xf32>
    %12 = vector.broadcast %11 : vector<1x128xf32> to vector<2x128xf32>
    %13 = arith.addf %10, %12 : vector<2x128xf32>
    %c0_11 = arith.constant 0 : index
    %c0_12 = arith.constant 0 : index
    %14 = vector.load %arg5[%c0_11, %c0_12] : memref<2x128xf32, #tpu.memory_space<vmem>>, vector<2x128xf32>
    tpu.vector_store %arg5[%c0_11, %c0_12], %13 {strides = array<i32>} : memref<2x128xf32, #tpu.memory_space<vmem>>, vector<2x128xf32>,
    return
  }
}

</mosaic_0001>

<llo_original>
// kernel: forward.5
$region0: #{forward.5}
  #allocation0 [shape = 'u32[]', space=smem, size = 0x4, offset = 0x4, fixed_abs, tag = 'smem constant byte address 0x4 - core index']
  #allocation1 [shape = 'u32[72,128]{1,0:T(1,128)}', space=vmem, size = 0x9000, scoped, tag = 'internal scratch']
  #allocation2 [shape = 'f32[102,64]{1,0:T(8,128)}', space=vmem, size = 0xd000, scoped, tag = 'scratch operand']
  #allocation3 [shape = 'f32[80,64]{1,0:T(8,128)}', space=vmem, size = 0xa000, scoped, tag = 'scratch operand']
  %s0 = inlined_call_operand.vmem [shape: f32[2,102,32], index: 0, kind: input, shape index: {}]
  %s1 = inlined_call_operand.vmem [shape: bf16[9,32,64], index: 1, kind: input, shape index: {}]
  %s2 = inlined_call_operand.vmem [shape: f32[1,64], index: 2, kind: input, shape index: {}]
  %s3 = inlined_call_operand.vmem [shape: bf16[9,64,64], index: 3, kind: input, shape index: {}]
  %s4 = inlined_call_operand.vmem [shape: f32[1,64], index: 4, kind: input, shape index: {}]
  %s5 = inlined_call_operand.vmem [shape: f32[80,1], index: 5, kind: input, shape index: {}]
  %s6 = inlined_call_operand.vmem [shape: f32[38,69], index: 6, kind: input, shape index: {}]
  %s7 = inlined_call_operand.vmem [shape: f32[2,38,64], index: 7, kind: output, shape index: {}]
  %s8 = sld [smem:[#allocation0]]
  $region61: #{forward.5} parent=0
    _
  %s10 = ssub.s32 1, %s8
  %s11 = scalar_select 0, %s10, %s8
  loop: start=0, step=1, limit=4
  $region2: #{forward.5} parent=0 // loop_pre_header
    _
  $region3: #{forward.5} parent=0 // loop_header
    %s13 = sphi 0, %s17
    %p14 = scmp.ge.s32.totalorder %s13, 4
    %s23 = sphi 0, %s25
    %s26 = sphi 0, %s23
    %s27 = sphi 0, %s26
    %s43 = sphi 0, %s27
    %s47 = sphi 0, %s47
    %s49 = sphi 0, %s47
    %s50 = sphi 0, %s49
    %s64 = sphi 0, %s50
    %s68 = sphi 0, %s68
    %s70 = sphi 0, %s68
    %s71 = sphi 0, %s70
    %s85 = sphi 0, %s71
    %s89 = sphi 0, %s89
    %s91 = sphi 0, %s89
    %s92 = sphi 0, %s91
    %s106 = sphi 0, %s92
    %s110 = sphi 0, %s110
    %s112 = sphi 0, %s110
    %s113 = sphi 0, %s112
    %s127 = sphi 0, %s113
    %s131 = sphi 0, %s131
    %s133 = sphi 0, %s131
    %s134 = sphi 0, %s133
    %s148 = sphi 0, %s134
    %s152 = sphi 0, %s152
    %s154 = sphi 0, %s152
    %s155 = sphi 0, %s154
    %s169 = sphi 0, %s155
    %s175 = sphi 0, %s177
    %s178 = sphi 0, %s175
    %s179 = sphi 0, %s178
    %s195 = sphi 0, %s179
  $region4: #{forward.5} parent=0 // loop_header_branch
    %16 = sbr.rel (%p14) target = $region8
  $region5: #{forward.5} parent=0 // loop_body
    %s18 = ssub.s32 %s13, 1
    %s19 = ssub.s32 %s13, 2
    %s20 = sadd.s32 %s13, 1
    %s21 = ssub.s32 %s13, %s20
    %p22 = scmp.eq.s32.totalorder %s21, 0
    %s24 = sadd.s32 %s23, 1
    %s25 = scalar_select %p22, %s23, %s24
    %p28 = pneg %p22
    %p29 = scmp.eq.s32.totalorder %s13, 1
    %p30 = por %p28, %p29
    %p31 = scmp.ne.s32.totalorder %s23, %s26
    %p32 = scmp.eq.s32.totalorder %s13, 0
    %p33 = por %p31, %p32
    %p34 = scmp.ne.s32.totalorder %s23, %s26
    %p35 = scmp.eq.s32.totalorder %s18, 1
    %p36 = por %p34, %p35
    %p37 = scmp.ne.s32.totalorder %s26, %s27
    %p38 = scmp.eq.s32.totalorder %s18, 0
    %p39 = por %p37, %p38
    %p40 = scmp.ne.s32.totalorder %s26, %s27
    %p41 = scmp.eq.s32.totalorder %s19, 1
    %p42 = por %p40, %p41
    %p44 = scmp.ne.s32.totalorder %s27, %s43
    %p45 = scmp.eq.s32.totalorder %s19, 0
    %p46 = por %p44, %p45
    %s48 = sadd.s32 %s47, 1
    %p51 = scmp.eq.s32.totalorder %s13, 1
    %p52 = scmp.ne.s32.totalorder %s47, %s49
    %p53 = scmp.eq.s32.totalorder %s13, 0
    %p54 = por %p52, %p53
    %p55 = scmp.ne.s32.totalorder %s47, %s49
    %p56 = scmp.eq.s32.totalorder %s18, 1
    %p57 = por %p55, %p56
    %p58 = scmp.ne.s32.totalorder %s49, %s50
    %p59 = scmp.eq.s32.totalorder %s18, 0
    %p60 = por %p58, %p59
    %p61 = scmp.ne.s32.totalorder %s49, %s50
    %p62 = scmp.eq.s32.totalorder %s19, 1
    %p63 = por %p61, %p62
    %p65 = scmp.ne.s32.totalorder %s50, %s64
    %p66 = scmp.eq.s32.totalorder %s19, 0
    %p67 = por %p65, %p66
    %s69 = sadd.s32 %s68, 1
    %p72 = scmp.eq.s32.totalorder %s13, 1
    %p73 = scmp.ne.s32.totalorder %s68, %s70
    %p74 = scmp.eq.s32.totalorder %s13, 0
    %p75 = por %p73, %p74
    %p76 = scmp.ne.s32.totalorder %s68, %s70
    %p77 = scmp.eq.s32.totalorder %s18, 1
    %p78 = por %p76, %p77
    %p79 = scmp.ne.s32.totalorder %s70, %s71
    %p80 = scmp.eq.s32.totalorder %s18, 0
    %p81 = por %p79, %p80
    %p82 = scmp.ne.s32.totalorder %s70, %s71
    %p83 = scmp.eq.s32.totalorder %s19, 1
    %p84 = por %p82, %p83
    %p86 = scmp.ne.s32.totalorder %s71, %s85
    %p87 = scmp.eq.s32.totalorder %s19, 0
    %p88 = por %p86, %p87
    %s90 = sadd.s32 %s89, 1
    %p93 = scmp.eq.s32.totalorder %s13, 1
    %p94 = scmp.ne.s32.totalorder %s89, %s91
    %p95 = scmp.eq.s32.totalorder %s13, 0
    %p96 = por %p94, %p95
    %p97 = scmp.ne.s32.totalorder %s89, %s91
    %p98 = scmp.eq.s32.totalorder %s18, 1
    %p99 = por %p97, %p98
    %p100 = scmp.ne.s32.totalorder %s91, %s92
    %p101 = scmp.eq.s32.totalorder %s18, 0
    %p102 = por %p100, %p101
    %p103 = scmp.ne.s32.totalorder %s91, %s92
    %p104 = scmp.eq.s32.totalorder %s19, 1
    %p105 = por %p103, %p104
    %p107 = scmp.ne.s32.totalorder %s92, %s106
    %p108 = scmp.eq.s32.totalorder %s19, 0
    %p109 = por %p107, %p108
    %s111 = sadd.s32 %s110, 1
    %p114 = scmp.eq.s32.totalorder %s13, 1
    %p115 = scmp.ne.s32.totalorder %s110, %s112
    %p116 = scmp.eq.s32.totalorder %s13, 0
    %p117 = por %p115, %p116
    %p118 = scmp.ne.s32.totalorder %s110, %s112
    %p119 = scmp.eq.s32.totalorder %s18, 1
    %p120 = por %p118, %p119
    %p121 = scmp.ne.s32.totalorder %s112, %s113
    %p122 = scmp.eq.s32.totalorder %s18, 0
    %p123 = por %p121, %p122
    %p124 = scmp.ne.s32.totalorder %s112, %s113
    %p125 = scmp.eq.s32.totalorder %s19, 1
    %p126 = por %p124, %p125
    %p128 = scmp.ne.s32.totalorder %s113, %s127
    %p129 = scmp.eq.s32.totalorder %s19, 0
    %p130 = por %p128, %p129
    %s132 = sadd.s32 %s131, 1
    %p135 = scmp.eq.s32.totalorder %s13, 1
    %p136 = scmp.ne.s32.totalorder %s131, %s133
    %p137 = scmp.eq.s32.totalorder %s13, 0
    %p138 = por %p136, %p137
    %p139 = scmp.ne.s32.totalorder %s131, %s133
    %p140 = scmp.eq.s32.totalorder %s18, 1
    %p141 = por %p139, %p140
    %p142 = scmp.ne.s32.totalorder %s133, %s134
    %p143 = scmp.eq.s32.totalorder %s18, 0
    %p144 = por %p142, %p143
    %p145 = scmp.ne.s32.totalorder %s133, %s134
    %p146 = scmp.eq.s32.totalorder %s19, 1
    %p147 = por %p145, %p146
    %p149 = scmp.ne.s32.totalorder %s134, %s148
    %p150 = scmp.eq.s32.totalorder %s19, 0
    %p151 = por %p149, %p150
    %s153 = sadd.s32 %s152, 1
    %p156 = scmp.eq.s32.totalorder %s13, 1
    %p157 = scmp.ne.s32.totalorder %s152, %s154
    %p158 = scmp.eq.s32.totalorder %s13, 0
    %p159 = por %p157, %p158
    %p160 = scmp.ne.s32.totalorder %s152, %s154
    %p161 = scmp.eq.s32.totalorder %s18, 1
    %p162 = por %p160, %p161
    %p163 = scmp.ne.s32.totalorder %s154, %s155
    %p164 = scmp.eq.s32.totalorder %s18, 0
    %p165 = por %p163, %p164
    %p166 = scmp.ne.s32.totalorder %s154, %s155
    %p167 = scmp.eq.s32.totalorder %s19, 1
    %p168 = por %p166, %p167
    %p170 = scmp.ne.s32.totalorder %s155, %s169
    %p171 = scmp.eq.s32.totalorder %s19, 0
    %p172 = por %p170, %p171
    %s173 = ssub.s32 %s13, %s20
    %p174 = scmp.eq.s32.totalorder %s173, 0
    %s176 = sadd.s32 %s175, 1
    %s177 = scalar_select %p174, %s175, %s176
    %p180 = pneg %p174
    %p181 = scmp.eq.s32.totalorder %s13, 1
    %p182 = por %p180, %p181
    %p183 = scmp.ne.s32.totalorder %s175, %s178
    %p184 = scmp.eq.s32.totalorder %s13, 0
    %p185 = por %p183, %p184
    %p186 = scmp.ne.s32.totalorder %s175, %s178
    %p187 = scmp.eq.s32.totalorder %s18, 1
    %p188 = por %p186, %p187
    %p189 = scmp.ne.s32.totalorder %s178, %s179
    %p190 = scmp.eq.s32.totalorder %s18, 0
    %p191 = por %p189, %p190
    %p192 = scmp.ne.s32.totalorder %s178, %s179
    %p193 = scmp.eq.s32.totalorder %s19, 1
    %p194 = por %p192, %p193
    %p196 = scmp.ne.s32.totalorder %s179, %s195
    %p197 = scmp.eq.s32.totalorder %s19, 0
    %p198 = por %p196, %p197
    %p199 = scmp.le.s32.totalorder 1, %s13
    %p200 = scmp.lt.s32.totalorder %s13, 3
    %p201 = pnand %p199, %p200
    %p202 = pneg %p201
    // Predicated region
    $region9: #{forward.5} parent=5 // pred_check
      _
    $region10: #{forward.5} parent=5 // pred_check_branch
      %204 = sbr.rel (%p201) target = $region12
    $region11: #{forward.5} parent=5 // pred_region
      %s205 = ssub.s32 %s13, 1
      // Predicated region
      $region13: #{forward.5} parent=11 // pred_check
        %p206 = pneg %p60
      $region14: #{forward.5} parent=11 // pred_check_branch
        %208 = sbr.rel (%p206) target = $region16
      $region15: #{forward.5} parent=11 // pred_region
        _
      $region16: #{forward.5} parent=11 // pred_fallthru
        _
      // Predicated region
      $region17: #{forward.5} parent=11 // pred_check
        %p209 = pneg %p81
      $region18: #{forward.5} parent=11 // pred_check_branch
        %211 = sbr.rel (%p209) target = $region20
      $region19: #{forward.5} parent=11 // pred_region
        _
      $region20: #{forward.5} parent=11 // pred_fallthru
        _
      // Predicated region
      $region21: #{forward.5} parent=11 // pred_check
        %p212 = pneg %p102
      $region22: #{forward.5} parent=11 // pred_check_branch
        %214 = sbr.rel (%p212) target = $region24
      $region23: #{forward.5} parent=11 // pred_region
        _
      $region24: #{forward.5} parent=11 // pred_fallthru
        _
      // Predicated region
      $region25: #{forward.5} parent=11 // pred_check
        %p215 = pneg %p123
      $region26: #{forward.5} parent=11 // pred_check_branch
        %217 = sbr.rel (%p215) target = $region28
      $region27: #{forward.5} parent=11 // pred_region
        _
      $region28: #{forward.5} parent=11 // pred_fallthru
        _
      // Predicated region
      $region29: #{forward.5} parent=11 // pred_check
        %p218 = pneg %p144
      $region30: #{forward.5} parent=11 // pred_check_branch
        %220 = sbr.rel (%p218) target = $region32
      $region31: #{forward.5} parent=11 // pred_region
        _
      $region32: #{forward.5} parent=11 // pred_fallthru
        _
      // Predicated region
      $region33: #{forward.5} parent=11 // pred_check
        %p221 = pneg %p165
      $region34: #{forward.5} parent=11 // pred_check_branch
        %223 = sbr.rel (%p221) target = $region36
      $region35: #{forward.5} parent=11 // pred_region
        _
      $region36: #{forward.5} parent=11 // pred_fallthru
        _
    $region12: #{forward.5} parent=5 // pred_fallthru
      _
    %p224 = scmp.lt.s32.totalorder %s13, 2
    // Predicated region
    $region37: #{forward.5} parent=5 // pred_check
      %p225 = pneg %p224
    $region38: #{forward.5} parent=5 // pred_check_branch
      %227 = sbr.rel (%p225) target = $region40
    $region39: #{forward.5} parent=5 // pred_region
      // Predicated region
      $region41: #{forward.5} parent=39 // pred_check
        %p228 = pneg %p33
      $region42: #{forward.5} parent=39 // pred_check_branch
        %230 = sbr.rel (%p228) target = $region44
      $region43: #{forward.5} parent=39 // pred_region
        %p231 = scmp.lt.s32.totalorder %s13, 1
        %s232 = scalar_select %p231, %s13, 1
        %s233 = smul.addr %s232, 13
        %s234 = smul.addr %s233, 8
        %s235 = scalar_lea.vmem %s0, %s234
      $region44: #{forward.5} parent=39 // pred_fallthru
        _
    $region40: #{forward.5} parent=5 // pred_fallthru
      _
    %p236 = scmp.le.s32.totalorder 1, %s13
    %p237 = scmp.lt.s32.totalorder %s13, 3
    %p238 = pnand %p236, %p237
    %p239 = pneg %p238
    // Predicated region
    $region45: #{forward.5} parent=5 // pred_check
      _
    $region46: #{forward.5} parent=5 // pred_check_branch
      %241 = sbr.rel (%p238) target = $region48
    $region47: #{forward.5} parent=5 // pred_region
      %s242 = ssub.s32 %s13, 1
      %p243 = scmp.lt.s32.totalorder %s18, 1
      %s244 = scalar_select %p243, %s18, 1
      %s245 = smul.addr %s244, 13
      %s246 = smul.addr %s245, 8
      %s247 = scalar_lea.vmem %s0, %s246
      %p248 = pneg %p39
      %p249 = pneg %p36
      %p250 = pneg %p60
      %p251 = pneg %p57
      %p252 = pneg %p81
      %p253 = pneg %p78
      %p254 = pneg %p102
      %p255 = pneg %p99
      %p256 = pneg %p123
      %p257 = pneg %p120
      %p258 = pneg %p144
      %p259 = pneg %p141
      %p260 = pneg %p165
      %p261 = pneg %p162
      %p262 = pneg %p191
      %p263 = pneg %p188
      %p264 = scmp.lt.s32.totalorder %s18, 1
      %s265 = scalar_select %p264, %s18, 1
      %s266 = smul.addr %s265, 5
      %s267 = smul.addr %s266, 8
      %s268 = scalar_lea.vmem %s7, %s267
      %p269 = scmp.lt.s32.totalorder %s18, 1
      %s270 = scalar_select %p269, %s18, 1
      %s271 = smul.addr %s270, 13
      %s272 = smul.addr %s271, 8
      %s273 = scalar_lea.vmem %s0, %s272
      %p274 = scmp.lt.s32.totalorder %s18, 1
      %s275 = scalar_select %p274, %s18, 1
      %s276 = smul.addr %s275, 5
      %s277 = smul.addr %s276, 8
      %s278 = scalar_lea.vmem %s7, %s277
      %v280 = vld [vmem:[%s273] sm:$0xff]
      %v281 = vld [vmem:[%s273 + $0x8] sm:$0xff]
      %v282 = vld [vmem:[%s273 + $0x10] sm:$0xff]
      %v283 = vld [vmem:[%s273 + $0x18] sm:$0xff]
      %v284 = vld [vmem:[%s273 + $0x20] sm:$0xff]
      %v285 = vld [vmem:[%s273 + $0x28] sm:$0xff]
      %v286 = vld [vmem:[%s273 + $0x30] sm:$0xff]
      %v287 = vld [vmem:[%s273 + $0x38] sm:$0xff]
      %v288 = vld [vmem:[%s273 + $0x40] sm:$0xff]
      %v289 = vld [vmem:[%s273 + $0x48] sm:$0xff]
      %v290 = vpack.c.bf16 %v281, %v280
      %v291 = vpack.c.bf16 %v283, %v282
      %v292 = vpack.c.bf16 %v285, %v284
      %v293 = vpack.c.bf16 %v287, %v286
      %v294 = vpack.c.bf16 %v289, %v288
      %v295 = vld [vmem:[%s1] sm:$0xf]
      %v296 = vld [vmem:[%s1 + $0x4] sm:$0xf]
      %v297 = vld [vmem:[%s1 + $0x8] sm:$0xf]
      %v298 = vld [vmem:[%s1 + $0xc] sm:$0xf]
      %v299 = vld [vmem:[%s273 + $0x1] sm:$0xff]
      %v300 = vld [vmem:[%s273 + $0x9] sm:$0xff]
      %v301 = vld [vmem:[%s273 + $0x11] sm:$0xff]
      %v302 = vld [vmem:[%s273 + $0x19] sm:$0xff]
      %v303 = vld [vmem:[%s273 + $0x21] sm:$0xff]
      %v304 = vld [vmem:[%s273 + $0x29] sm:$0xff]
      %v305 = vld [vmem:[%s273 + $0x31] sm:$0xff]
      %v306 = vld [vmem:[%s273 + $0x39] sm:$0xff]
      %v307 = vld [vmem:[%s273 + $0x41] sm:$0xff]
      %v308 = vld [vmem:[%s273 + $0x49] sm:$0xff]
      %v309 = vpack.c.bf16 %v300, %v299
      %v310 = vpack.c.bf16 %v302, %v301
      %v311 = vpack.c.bf16 %v304, %v303
      %v312 = vpack.c.bf16 %v306, %v305
      %v313 = vpack.c.bf16 %v308, %v307
      %s314 = scalar_lea.vmem %s1, 16
      %v315 = vld [vmem:[%s314] sm:$0xf]
      %v316 = vld [vmem:[%s314 + $0x4] sm:$0xf]
      %v317 = vld [vmem:[%s314 + $0x8] sm:$0xf]
      %v318 = vld [vmem:[%s314 + $0xc] sm:$0xf]
      %v323 = vunpack.c.l.b16 %v315
      %v324 = vunpack.c.l.b16 %v316
      %v325 = vunpack.c.l.b16 %v317
      %v326 = vunpack.c.l.b16 %v318
      %v327 = vpack.c.b16 %v324, %v323
      %v328 = vpack.c.b16 %v326, %v325
      %vm331 = vcmask 261120
      %v333 = vsel %vm331, %v309, 0
      %v336 = vsel %vm331, %v310, 0
      %v339 = vsel %vm331, %v311, 0
      %v342 = vsel %vm331, %v312, 0
      %v345 = vsel %vm331, %v313, 0
      %347 = vmatpush.bf16.msra.mxu0 0
      %348 = vmatpush.bf16.msra.mxu0 0
      %349 = vmatpush.bf16.msra.mxu0 0
      %350 = vmatpush.bf16.msra.mxu0 0
      %351 = vmatpush.bf16.msra.mxu0 0
      %352 = vmatpush.bf16.msra.mxu0 0
      %353 = vmatpush.bf16.msra.mxu0 %v328
      %354 = vmatpush.bf16.msra.mxu0 %v327
      %355 = vmatmul.bf16.gmra.mxu0 %v333
      %v356 = vpop.f32.mrf.mxu0
      %v357 = vadd.f32 0.0, %v356
      %v358 = vpop.f32.mrf.mxu0
      %v359 = vadd.f32 0.0, %v358
      %360 = vmatmul.bf16.gmra.mxu0 %v336
      %v361 = vpop.f32.mrf.mxu0
      %v362 = vadd.f32 0.0, %v361
      %v363 = vpop.f32.mrf.mxu0
      %v364 = vadd.f32 0.0, %v363
      %365 = vmatmul.bf16.gmra.mxu0 %v339
      %v366 = vpop.f32.mrf.mxu0
      %v367 = vadd.f32 0.0, %v366
      %v368 = vpop.f32.mrf.mxu0
      %v369 = vadd.f32 0.0, %v368
      %370 = vmatmul.bf16.gmra.mxu0 %v342
      %v371 = vpop.f32.mrf.mxu0
      %v372 = vadd.f32 0.0, %v371
      %v373 = vpop.f32.mrf.mxu0
      %v374 = vadd.f32 0.0, %v373
      %375 = vmatmul.bf16.gmra.mxu0 %v345
      %v376 = vpop.f32.mrf.mxu0
      %v377 = vadd.f32 0.0, %v376
      %v378 = vpop.f32.mrf.mxu0
      %v379 = vadd.f32 0.0, %v378
      %380 = vdwg.mxu0
      %v385 = vunpack.c.l.b16 %v295
      %v386 = vunpack.c.l.b16 %v296
      %v387 = vunpack.c.l.b16 %v297
      %v388 = vunpack.c.l.b16 %v298
      %v389 = vpack.c.b16 %v386, %v385
      %v390 = vpack.c.b16 %v388, %v387
      %v394 = vsel %vm331, %v290, 0
      %v397 = vsel %vm331, %v291, 0
      %v400 = vsel %vm331, %v292, 0
      %v403 = vsel %vm331, %v293, 0
      %v406 = vsel %vm331, %v294, 0
      %408 = vmatpush.bf16.msra.mxu0 0
      %409 = vmatpush.bf16.msra.mxu0 0
      %410 = vmatpush.bf16.msra.mxu0 0
      %411 = vmatpush.bf16.msra.mxu0 0
      %412 = vmatpush.bf16.msra.mxu0 0
      %413 = vmatpush.bf16.msra.mxu0 0
      %414 = vmatpush.bf16.msra.mxu0 %v390
      %415 = vmatpush.bf16.msra.mxu0 %v389
      %416 = vmatmul.bf16.gmra.mxu0 %v394
      %v417 = vpop.f32.mrf.mxu0
      %v418 = vadd.f32 %v357, %v417
      %v419 = vpop.f32.mrf.mxu0
      %v420 = vadd.f32 %v359, %v419
      %421 = vmatmul.bf16.gmra.mxu0 %v397
      %v422 = vpop.f32.mrf.mxu0
      %v423 = vadd.f32 %v362, %v422
      %v424 = vpop.f32.mrf.mxu0
      %v425 = vadd.f32 %v364, %v424
      %426 = vmatmul.bf16.gmra.mxu0 %v400
      %v427 = vpop.f32.mrf.mxu0
      %v428 = vadd.f32 %v367, %v427
      %v429 = vpop.f32.mrf.mxu0
      %v430 = vadd.f32 %v369, %v429
      %431 = vmatmul.bf16.gmra.mxu0 %v403
      %v432 = vpop.f32.mrf.mxu0
      %v433 = vadd.f32 %v372, %v432
      %v434 = vpop.f32.mrf.mxu0
      %v435 = vadd.f32 %v374, %v434
      %436 = vmatmul.bf16.gmra.mxu0 %v406
      %v437 = vpop.f32.mrf.mxu0
      %v438 = vadd.f32 %v377, %v437
      %v439 = vpop.f32.mrf.mxu0
      %v440 = vadd.f32 %v379, %v439
      %441 = vdwg.mxu0
      %v442 = vld [vmem:[%s273 + $0x2] sm:$0xff]
      %v443 = vld [vmem:[%s273 + $0xa] sm:$0xff]
      %v444 = vld [vmem:[%s273 + $0x12] sm:$0xff]
      %v445 = vld [vmem:[%s273 + $0x1a] sm:$0xff]
      %v446 = vld [vmem:[%s273 + $0x22] sm:$0xff]
      %v447 = vld [vmem:[%s273 + $0x2a] sm:$0xff]
      %v448 = vld [vmem:[%s273 + $0x32] sm:$0xff]
      %v449 = vld [vmem:[%s273 + $0x3a] sm:$0xff]
      %v450 = vld [vmem:[%s273 + $0x42] sm:$0xff]
      %v451 = vld [vmem:[%s273 + $0x4a] sm:$0xff]
      %v452 = vpack.c.bf16 %v443, %v442
      %v453 = vpack.c.bf16 %v445, %v444
      %v454 = vpack.c.bf16 %v447, %v446
      %v455 = vpack.c.bf16 %v449, %v448
      %v456 = vpack.c.bf16 %v451, %v450
      %s457 = scalar_lea.vmem %s1, 32
      %v458 = vld [vmem:[%s457] sm:$0xf]
      %v459 = vld [vmem:[%s457 + $0x4] sm:$0xf]
      %v460 = vld [vmem:[%s457 + $0x8] sm:$0xf]
      %v461 = vld [vmem:[%s457 + $0xc] sm:$0xf]
      %v466 = vunpack.c.l.b16 %v458
      %v467 = vunpack.c.l.b16 %v459
      %v468 = vunpack.c.l.b16 %v460
      %v469 = vunpack.c.l.b16 %v461
      %v470 = vpack.c.b16 %v467, %v466
      %v471 = vpack.c.b16 %v469, %v468
      %v475 = vsel %vm331, %v452, 0
      %v478 = vsel %vm331, %v453, 0
      %v481 = vsel %vm331, %v454, 0
      %v484 = vsel %vm331, %v455, 0
      %v487 = vsel %vm331, %v456, 0
      %489 = vmatpush.bf16.msra.mxu0 0
      %490 = vmatpush.bf16.msra.mxu0 0
      %491 = vmatpush.bf16.msra.mxu0 0
      %492 = vmatpush.bf16.msra.mxu0 0
      %493 = vmatpush.bf16.msra.mxu0 0
      %494 = vmatpush.bf16.msra.mxu0 0
      %495 = vmatpush.bf16.msra.mxu0 %v471
      %496 = vmatpush.bf16.msra.mxu0 %v470
      %497 = vmatmul.bf16.gmra.mxu0 %v475
      %v498 = vpop.f32.mrf.mxu0
      %v499 = vadd.f32 0.0, %v498
      %v500 = vpop.f32.mrf.mxu0
      %v501 = vadd.f32 0.0, %v500
      %502 = vmatmul.bf16.gmra.mxu0 %v478
      %v503 = vpop.f32.mrf.mxu0
      %v504 = vadd.f32 0.0, %v503
      %v505 = vpop.f32.mrf.mxu0
      %v506 = vadd.f32 0.0, %v505
      %507 = vmatmul.bf16.gmra.mxu0 %v481
      %v508 = vpop.f32.mrf.mxu0
      %v509 = vadd.f32 0.0, %v508
      %v510 = vpop.f32.mrf.mxu0
      %v511 = vadd.f32 0.0, %v510
      %512 = vmatmul.bf16.gmra.mxu0 %v484
      %v513 = vpop.f32.mrf.mxu0
      %v514 = vadd.f32 0.0, %v513
      %v515 = vpop.f32.mrf.mxu0
      %v516 = vadd.f32 0.0, %v515
      %517 = vmatmul.bf16.gmra.mxu0 %v487
      %v518 = vpop.f32.mrf.mxu0
      %v519 = vadd.f32 0.0, %v518
      %v520 = vpop.f32.mrf.mxu0
      %v521 = vadd.f32 0.0, %v520
      %522 = vdwg.mxu0
      %v523 = vadd.f32 %v418, %v499
      %v524 = vadd.f32 %v420, %v501
      %v525 = vadd.f32 %v423, %v504
      %v526 = vadd.f32 %v425, %v506
      %v527 = vadd.f32 %v428, %v509
      %v528 = vadd.f32 %v430, %v511
      %v529 = vadd.f32 %v433, %v514
      %v530 = vadd.f32 %v435, %v516
      %v531 = vadd.f32 %v438, %v519
      %v532 = vadd.f32 %v440, %v521
      %v533 = vld [vmem:[%s273 + $0xa] sm:$0xff]
      %v534 = vld [vmem:[%s273 + $0x12] sm:$0xff]
      %v535 = vld [vmem:[%s273 + $0x1a] sm:$0xff]
      %v536 = vld [vmem:[%s273 + $0x22] sm:$0xff]
      %v537 = vld [vmem:[%s273 + $0x2a] sm:$0xff]
      %v538 = vld [vmem:[%s273 + $0x32] sm:$0xff]
      %v539 = vld [vmem:[%s273 + $0x3a] sm:$0xff]
      %v540 = vld [vmem:[%s273 + $0x42] sm:$0xff]
      %v541 = vld [vmem:[%s273 + $0x4a] sm:$0xff]
      %v542 = vld [vmem:[%s273 + $0x52] sm:$0xff]
      %v543 = vpack.c.bf16 %v534, %v533
      %v544 = vpack.c.bf16 %v536, %v535
      %v545 = vpack.c.bf16 %v538, %v537
      %v546 = vpack.c.bf16 %v540, %v539
      %v547 = vpack.c.bf16 %v542, %v541
      %s548 = scalar_lea.vmem %s1, 48
      %v549 = vld [vmem:[%s548] sm:$0xf]
      %v550 = vld [vmem:[%s548 + $0x4] sm:$0xf]
      %v551 = vld [vmem:[%s548 + $0x8] sm:$0xf]
      %v552 = vld [vmem:[%s548 + $0xc] sm:$0xf]
      %v557 = vunpack.c.l.b16 %v549
      %v558 = vunpack.c.l.b16 %v550
      %v559 = vunpack.c.l.b16 %v551
      %v560 = vunpack.c.l.b16 %v552
      %v561 = vpack.c.b16 %v558, %v557
      %v562 = vpack.c.b16 %v560, %v559
      %v566 = vsel %vm331, %v543, 0
      %v569 = vsel %vm331, %v544, 0
      %v572 = vsel %vm331, %v545, 0
      %v575 = vsel %vm331, %v546, 0
      %v578 = vsel %vm331, %v547, 0
      %580 = vmatpush.bf16.msra.mxu0 0
      %581 = vmatpush.bf16.msra.mxu0 0
      %582 = vmatpush.bf16.msra.mxu0 0
      %583 = vmatpush.bf16.msra.mxu0 0
      %584 = vmatpush.bf16.msra.mxu0 0
      %585 = vmatpush.bf16.msra.mxu0 0
      %586 = vmatpush.bf16.msra.mxu0 %v562
      %587 = vmatpush.bf16.msra.mxu0 %v561
      %588 = vmatmul.bf16.gmra.mxu0 %v566
      %v589 = vpop.f32.mrf.mxu0
      %v590 = vadd.f32 0.0, %v589
      %v591 = vpop.f32.mrf.mxu0
      %v592 = vadd.f32 0.0, %v591
      %593 = vmatmul.bf16.gmra.mxu0 %v569
      %v594 = vpop.f32.mrf.mxu0
      %v595 = vadd.f32 0.0, %v594
      %v596 = vpop.f32.mrf.mxu0
      %v597 = vadd.f32 0.0, %v596
      %598 = vmatmul.bf16.gmra.mxu0 %v572
      %v599 = vpop.f32.mrf.mxu0
      %v600 = vadd.f32 0.0, %v599
      %v601 = vpop.f32.mrf.mxu0
      %v602 = vadd.f32 0.0, %v601
      %603 = vmatmul.bf16.gmra.mxu0 %v575
      %v604 = vpop.f32.mrf.mxu0
      %v605 = vadd.f32 0.0, %v604
      %v606 = vpop.f32.mrf.mxu0
      %v607 = vadd.f32 0.0, %v606
      %608 = vmatmul.bf16.gmra.mxu0 %v578
      %v609 = vpop.f32.mrf.mxu0
      %v610 = vadd.f32 0.0, %v609
      %v611 = vpop.f32.mrf.mxu0
      %v612 = vadd.f32 0.0, %v611
      %613 = vdwg.mxu0
      %v614 = vadd.f32 %v523, %v590
      %v615 = vadd.f32 %v524, %v592
      %v616 = vadd.f32 %v525, %v595
      %v617 = vadd.f32 %v526, %v597
      %v618 = vadd.f32 %v527, %v600
      %v619 = vadd.f32 %v528, %v602
      %v620 = vadd.f32 %v529, %v605
      %v621 = vadd.f32 %v530, %v607
      %v622 = vadd.f32 %v531, %v610
      %v623 = vadd.f32 %v532, %v612
      %v624 = vld [vmem:[%s273 + $0xb] sm:$0xff]
      %v625 = vld [vmem:[%s273 + $0x13] sm:$0xff]
      %v626 = vld [vmem:[%s273 + $0x1b] sm:$0xff]
      %v627 = vld [vmem:[%s273 + $0x23] sm:$0xff]
      %v628 = vld [vmem:[%s273 + $0x2b] sm:$0xff]
      %v629 = vld [vmem:[%s273 + $0x33] sm:$0xff]
      %v630 = vld [vmem:[%s273 + $0x3b] sm:$0xff]
      %v631 = vld [vmem:[%s273 + $0x43] sm:$0xff]
      %v632 = vld [vmem:[%s273 + $0x4b] sm:$0xff]
      %v633 = vld [vmem:[%s273 + $0x53] sm:$0xff]
      %v634 = vpack.c.bf16 %v625, %v624
      %v635 = vpack.c.bf16 %v627, %v626
      %v636 = vpack.c.bf16 %v629, %v628
      %v637 = vpack.c.bf16 %v631, %v630
      %v638 = vpack.c.bf16 %v633, %v632
      %s639 = scalar_lea.vmem %s1, 64
      %v640 = vld [vmem:[%s639] sm:$0xf]
      %v641 = vld [vmem:[%s639 + $0x4] sm:$0xf]
      %v642 = vld [vmem:[%s639 + $0x8] sm:$0xf]
      %v643 = vld [vmem:[%s639 + $0xc] sm:$0xf]
      %v648 = vunpack.c.l.b16 %v640
      %v649 = vunpack.c.l.b16 %v641
      %v650 = vunpack.c.l.b16 %v642
      %v651 = vunpack.c.l.b16 %v643
      %v652 = vpack.c.b16 %v649, %v648
      %v653 = vpack.c.b16 %v651, %v650
      %v657 = vsel %vm331, %v634, 0
      %v660 = vsel %vm331, %v635, 0
      %v663 = vsel %vm331, %v636, 0
      %v666 = vsel %vm331, %v637, 0
      %v669 = vsel %vm331, %v638, 0
      %671 = vmatpush.bf16.msra.mxu0 0
      %672 = vmatpush.bf16.msra.mxu0 0
      %673 = vmatpush.bf16.msra.mxu0 0
      %674 = vmatpush.bf16.msra.mxu0 0
      %675 = vmatpush.bf16.msra.mxu0 0
      %676 = vmatpush.bf16.msra.mxu0 0
      %677 = vmatpush.bf16.msra.mxu0 %v653
      %678 = vmatpush.bf16.msra.mxu0 %v652
      %679 = vmatmul.bf16.gmra.mxu0 %v657
      %v680 = vpop.f32.mrf.mxu0
      %v681 = vadd.f32 0.0, %v680
      %v682 = vpop.f32.mrf.mxu0
      %v683 = vadd.f32 0.0, %v682
      %684 = vmatmul.bf16.gmra.mxu0 %v660
      %v685 = vpop.f32.mrf.mxu0
      %v686 = vadd.f32 0.0, %v685
      %v687 = vpop.f32.mrf.mxu0
      %v688 = vadd.f32 0.0, %v687
      %689 = vmatmul.bf16.gmra.mxu0 %v663
      %v690 = vpop.f32.mrf.mxu0
      %v691 = vadd.f32 0.0, %v690
      %v692 = vpop.f32.mrf.mxu0
      %v693 = vadd.f32 0.0, %v692
      %694 = vmatmul.bf16.gmra.mxu0 %v666
      %v695 = vpop.f32.mrf.mxu0
      %v696 = vadd.f32 0.0, %v695
      %v697 = vpop.f32.mrf.mxu0
      %v698 = vadd.f32 0.0, %v697
      %699 = vmatmul.bf16.gmra.mxu0 %v669
      %v700 = vpop.f32.mrf.mxu0
      %v701 = vadd.f32 0.0, %v700
      %v702 = vpop.f32.mrf.mxu0
      %v703 = vadd.f32 0.0, %v702
      %704 = vdwg.mxu0
      %v705 = vadd.f32 %v614, %v681
      %v706 = vadd.f32 %v615, %v683
      %v707 = vadd.f32 %v616, %v686
      %v708 = vadd.f32 %v617, %v688
      %v709 = vadd.f32 %v618, %v691
      %v710 = vadd.f32 %v619, %v693
      %v711 = vadd.f32 %v620, %v696
      %v712 = vadd.f32 %v621, %v698
      %v713 = vadd.f32 %v622, %v701
      %v714 = vadd.f32 %v623, %v703
      %v715 = vld [vmem:[%s273 + $0xc] sm:$0xff]
      %v716 = vld [vmem:[%s273 + $0x14] sm:$0xff]
      %v717 = vld [vmem:[%s273 + $0x1c] sm:$0xff]
      %v718 = vld [vmem:[%s273 + $0x24] sm:$0xff]
      %v719 = vld [vmem:[%s273 + $0x2c] sm:$0xff]
      %v720 = vld [vmem:[%s273 + $0x34] sm:$0xff]
      %v721 = vld [vmem:[%s273 + $0x3c] sm:$0xff]
      %v722 = vld [vmem:[%s273 + $0x44] sm:$0xff]
      %v723 = vld [vmem:[%s273 + $0x4c] sm:$0xff]
      %v724 = vld [vmem:[%s273 + $0x54] sm:$0xff]
      %v725 = vpack.c.bf16 %v716, %v715
      %v726 = vpack.c.bf16 %v718, %v717
      %v727 = vpack.c.bf16 %v720, %v719
      %v728 = vpack.c.bf16 %v722, %v721
      %v729 = vpack.c.bf16 %v724, %v723
      %s730 = scalar_lea.vmem %s1, 80
      %v731 = vld [vmem:[%s730] sm:$0xf]
      %v732 = vld [vmem:[%s730 + $0x4] sm:$0xf]
      %v733 = vld [vmem:[%s730 + $0x8] sm:$0xf]
      %v734 = vld [vmem:[%s730 + $0xc] sm:$0xf]
      %v739 = vunpack.c.l.b16 %v731
      %v740 = vunpack.c.l.b16 %v732
      %v741 = vunpack.c.l.b16 %v733
      %v742 = vunpack.c.l.b16 %v734
      %v743 = vpack.c.b16 %v740, %v739
      %v744 = vpack.c.b16 %v742, %v741
      %v748 = vsel %vm331, %v725, 0
      %v751 = vsel %vm331, %v726, 0
      %v754 = vsel %vm331, %v727, 0
      %v757 = vsel %vm331, %v728, 0
      %v760 = vsel %vm331, %v729, 0
      %762 = vmatpush.bf16.msra.mxu0 0
      %763 = vmatpush.bf16.msra.mxu0 0
      %764 = vmatpush.bf16.msra.mxu0 0
      %765 = vmatpush.bf16.msra.mxu0 0
      %766 = vmatpush.bf16.msra.mxu0 0
      %767 = vmatpush.bf16.msra.mxu0 0
      %768 = vmatpush.bf16.msra.mxu0 %v744
      %769 = vmatpush.bf16.msra.mxu0 %v743
      %770 = vmatmul.bf16.gmra.mxu0 %v748
      %v771 = vpop.f32.mrf.mxu0
      %v772 = vadd.f32 0.0, %v771
      %v773 = vpop.f32.mrf.mxu0
      %v774 = vadd.f32 0.0, %v773
      %775 = vmatmul.bf16.gmra.mxu0 %v751
      %v776 = vpop.f32.mrf.mxu0
      %v777 = vadd.f32 0.0, %v776
      %v778 = vpop.f32.mrf.mxu0
      %v779 = vadd.f32 0.0, %v778
      %780 = vmatmul.bf16.gmra.mxu0 %v754
      %v781 = vpop.f32.mrf.mxu0
      %v782 = vadd.f32 0.0, %v781
      %v783 = vpop.f32.mrf.mxu0
      %v784 = vadd.f32 0.0, %v783
      %785 = vmatmul.bf16.gmra.mxu0 %v757
      %v786 = vpop.f32.mrf.mxu0
      %v787 = vadd.f32 0.0, %v786
      %v788 = vpop.f32.mrf.mxu0
      %v789 = vadd.f32 0.0, %v788
      %790 = vmatmul.bf16.gmra.mxu0 %v760
      %v791 = vpop.f32.mrf.mxu0
      %v792 = vadd.f32 0.0, %v791
      %v793 = vpop.f32.mrf.mxu0
      %v794 = vadd.f32 0.0, %v793
      %795 = vdwg.mxu0
      %v796 = vadd.f32 %v705, %v772
      %v797 = vadd.f32 %v706, %v774
      %v798 = vadd.f32 %v707, %v777
      %v799 = vadd.f32 %v708, %v779
      %v800 = vadd.f32 %v709, %v782
      %v801 = vadd.f32 %v710, %v784
      %v802 = vadd.f32 %v711, %v787
      %v803 = vadd.f32 %v712, %v789
      %v804 = vadd.f32 %v713, %v792
      %v805 = vadd.f32 %v714, %v794
      %v806 = vld [vmem:[%s273 + $0x14] sm:$0xff]
      %v807 = vld [vmem:[%s273 + $0x1c] sm:$0xff]
      %v808 = vld [vmem:[%s273 + $0x24] sm:$0xff]
      %v809 = vld [vmem:[%s273 + $0x2c] sm:$0xff]
      %v810 = vld [vmem:[%s273 + $0x34] sm:$0xff]
      %v811 = vld [vmem:[%s273 + $0x3c] sm:$0xff]
      %v812 = vld [vmem:[%s273 + $0x44] sm:$0xff]
      %v813 = vld [vmem:[%s273 + $0x4c] sm:$0xff]
      %v814 = vld [vmem:[%s273 + $0x54] sm:$0xff]
      %v815 = vld [vmem:[%s273 + $0x5c] sm:$0xff]
      %v816 = vpack.c.bf16 %v807, %v806
      %v817 = vpack.c.bf16 %v809, %v808
      %v818 = vpack.c.bf16 %v811, %v810
      %v819 = vpack.c.bf16 %v813, %v812
      %v820 = vpack.c.bf16 %v815, %v814
      %s821 = scalar_lea.vmem %s1, 96
      %v822 = vld [vmem:[%s821] sm:$0xf]
      %v823 = vld [vmem:[%s821 + $0x4] sm:$0xf]
      %v824 = vld [vmem:[%s821 + $0x8] sm:$0xf]
      %v825 = vld [vmem:[%s821 + $0xc] sm:$0xf]
      %v830 = vunpack.c.l.b16 %v822
      %v831 = vunpack.c.l.b16 %v823
      %v832 = vunpack.c.l.b16 %v824
      %v833 = vunpack.c.l.b16 %v825
      %v834 = vpack.c.b16 %v831, %v830
      %v835 = vpack.c.b16 %v833, %v832
      %v839 = vsel %vm331, %v816, 0
      %v842 = vsel %vm331, %v817, 0
      %v845 = vsel %vm331, %v818, 0
      %v848 = vsel %vm331, %v819, 0
      %v851 = vsel %vm331, %v820, 0
      %853 = vmatpush.bf16.msra.mxu0 0
      %854 = vmatpush.bf16.msra.mxu0 0
      %855 = vmatpush.bf16.msra.mxu0 0
      %856 = vmatpush.bf16.msra.mxu0 0
      %857 = vmatpush.bf16.msra.mxu0 0
      %858 = vmatpush.bf16.msra.mxu0 0
      %859 = vmatpush.bf16.msra.mxu0 %v835
      %860 = vmatpush.bf16.msra.mxu0 %v834
      %861 = vmatmul.bf16.gmra.mxu0 %v839
      %v862 = vpop.f32.mrf.mxu0
      %v863 = vadd.f32 0.0, %v862
      %v864 = vpop.f32.mrf.mxu0
      %v865 = vadd.f32 0.0, %v864
      %866 = vmatmul.bf16.gmra.mxu0 %v842
      %v867 = vpop.f32.mrf.mxu0
      %v868 = vadd.f32 0.0, %v867
      %v869 = vpop.f32.mrf.mxu0
      %v870 = vadd.f32 0.0, %v869
      %871 = vmatmul.bf16.gmra.mxu0 %v845
      %v872 = vpop.f32.mrf.mxu0
      %v873 = vadd.f32 0.0, %v872
      %v874 = vpop.f32.mrf.mxu0
      %v875 = vadd.f32 0.0, %v874
      %876 = vmatmul.bf16.gmra.mxu0 %v848
      %v877 = vpop.f32.mrf.mxu0
      %v878 = vadd.f32 0.0, %v877
      %v879 = vpop.f32.mrf.mxu0
      %v880 = vadd.f32 0.0, %v879
      %881 = vmatmul.bf16.gmra.mxu0 %v851
      %v882 = vpop.f32.mrf.mxu0
      %v883 = vadd.f32 0.0, %v882
      %v884 = vpop.f32.mrf.mxu0
      %v885 = vadd.f32 0.0, %v884
      %886 = vdwg.mxu0
      %v887 = vadd.f32 %v796, %v863
      %v888 = vadd.f32 %v797, %v865
      %v889 = vadd.f32 %v798, %v868
      %v890 = vadd.f32 %v799, %v870
      %v891 = vadd.f32 %v800, %v873
      %v892 = vadd.f32 %v801, %v875
      %v893 = vadd.f32 %v802, %v878
      %v894 = vadd.f32 %v803, %v880
      %v895 = vadd.f32 %v804, %v883
      %v896 = vadd.f32 %v805, %v885
      %v897 = vld [vmem:[%s273 + $0x15] sm:$0xff]
      %v898 = vld [vmem:[%s273 + $0x1d] sm:$0xff]
      %v899 = vld [vmem:[%s273 + $0x25] sm:$0xff]
      %v900 = vld [vmem:[%s273 + $0x2d] sm:$0xff]
      %v901 = vld [vmem:[%s273 + $0x35] sm:$0xff]
      %v902 = vld [vmem:[%s273 + $0x3d] sm:$0xff]
      %v903 = vld [vmem:[%s273 + $0x45] sm:$0xff]
      %v904 = vld [vmem:[%s273 + $0x4d] sm:$0xff]
      %v905 = vld [vmem:[%s273 + $0x55] sm:$0xff]
      %v906 = vld [vmem:[%s273 + $0x5d] sm:$0xff]
      %v907 = vpack.c.bf16 %v898, %v897
      %v908 = vpack.c.bf16 %v900, %v899
      %v909 = vpack.c.bf16 %v902, %v901
      %v910 = vpack.c.bf16 %v904, %v903
      %v911 = vpack.c.bf16 %v906, %v905
      %s912 = scalar_lea.vmem %s1, 112
      %v913 = vld [vmem:[%s912] sm:$0xf]
      %v914 = vld [vmem:[%s912 + $0x4] sm:$0xf]
      %v915 = vld [vmem:[%s912 + $0x8] sm:$0xf]
      %v916 = vld [vmem:[%s912 + $0xc] sm:$0xf]
      %v921 = vunpack.c.l.b16 %v913
      %v922 = vunpack.c.l.b16 %v914
      %v923 = vunpack.c.l.b16 %v915
      %v924 = vunpack.c.l.b16 %v916
      %v925 = vpack.c.b16 %v922, %v921
      %v926 = vpack.c.b16 %v924, %v923
      %v930 = vsel %vm331, %v907, 0
      %v933 = vsel %vm331, %v908, 0
      %v936 = vsel %vm331, %v909, 0
      %v939 = vsel %vm331, %v910, 0
      %v942 = vsel %vm331, %v911, 0
      %944 = vmatpush.bf16.msra.mxu0 0
      %945 = vmatpush.bf16.msra.mxu0 0
      %946 = vmatpush.bf16.msra.mxu0 0
      %947 = vmatpush.bf16.msra.mxu0 0
      %948 = vmatpush.bf16.msra.mxu0 0
      %949 = vmatpush.bf16.msra.mxu0 0
      %950 = vmatpush.bf16.msra.mxu0 %v926
      %951 = vmatpush.bf16.msra.mxu0 %v925
      %952 = vmatmul.bf16.gmra.mxu0 %v930
      %v953 = vpop.f32.mrf.mxu0
      %v954 = vadd.f32 0.0, %v953
      %v955 = vpop.f32.mrf.mxu0
      %v956 = vadd.f32 0.0, %v955
      %957 = vmatmul.bf16.gmra.mxu0 %v933
      %v958 = vpop.f32.mrf.mxu0
      %v959 = vadd.f32 0.0, %v958
      %v960 = vpop.f32.mrf.mxu0
      %v961 = vadd.f32 0.0, %v960
      %962 = vmatmul.bf16.gmra.mxu0 %v936
      %v963 = vpop.f32.mrf.mxu0
      %v964 = vadd.f32 0.0, %v963
      %v965 = vpop.f32.mrf.mxu0
      %v966 = vadd.f32 0.0, %v965
      %967 = vmatmul.bf16.gmra.mxu0 %v939
      %v968 = vpop.f32.mrf.mxu0
      %v969 = vadd.f32 0.0, %v968
      %v970 = vpop.f32.mrf.mxu0
      %v971 = vadd.f32 0.0, %v970
      %972 = vmatmul.bf16.gmra.mxu0 %v942
      %v973 = vpop.f32.mrf.mxu0
      %v974 = vadd.f32 0.0, %v973
      %v975 = vpop.f32.mrf.mxu0
      %v976 = vadd.f32 0.0, %v975
      %977 = vdwg.mxu0
      %v978 = vadd.f32 %v887, %v954
      %v979 = vadd.f32 %v888, %v956
      %v980 = vadd.f32 %v889, %v959
      %v981 = vadd.f32 %v890, %v961
      %v982 = vadd.f32 %v891, %v964
      %v983 = vadd.f32 %v892, %v966
      %v984 = vadd.f32 %v893, %v969
      %v985 = vadd.f32 %v894, %v971
      %v986 = vadd.f32 %v895, %v974
      %v987 = vadd.f32 %v896, %v976
      %v988 = vld [vmem:[%s273 + $0x16] sm:$0xff]
      %v989 = vld [vmem:[%s273 + $0x1e] sm:$0xff]
      %v990 = vld [vmem:[%s273 + $0x26] sm:$0xff]
      %v991 = vld [vmem:[%s273 + $0x2e] sm:$0xff]
      %v992 = vld [vmem:[%s273 + $0x36] sm:$0xff]
      %v993 = vld [vmem:[%s273 + $0x3e] sm:$0xff]
      %v994 = vld [vmem:[%s273 + $0x46] sm:$0xff]
      %v995 = vld [vmem:[%s273 + $0x4e] sm:$0xff]
      %v996 = vld [vmem:[%s273 + $0x56] sm:$0xff]
      %v997 = vld [vmem:[%s273 + $0x5e] sm:$0xff]
      %v998 = vpack.c.bf16 %v989, %v988
      %v999 = vpack.c.bf16 %v991, %v990
      %v1000 = vpack.c.bf16 %v993, %v992
      %v1001 = vpack.c.bf16 %v995, %v994
      %v1002 = vpack.c.bf16 %v997, %v996
      %s1003 = scalar_lea.vmem %s1, 128
      %v1004 = vld [vmem:[%s1003] sm:$0xf]
      %v1005 = vld [vmem:[%s1003 + $0x4] sm:$0xf]
      %v1006 = vld [vmem:[%s1003 + $0x8] sm:$0xf]
      %v1007 = vld [vmem:[%s1003 + $0xc] sm:$0xf]
      %v1012 = vunpack.c.l.b16 %v1004
      %v1013 = vunpack.c.l.b16 %v1005
      %v1014 = vunpack.c.l.b16 %v1006
      %v1015 = vunpack.c.l.b16 %v1007
      %v1016 = vpack.c.b16 %v1013, %v1012
      %v1017 = vpack.c.b16 %v1015, %v1014
      %v1021 = vsel %vm331, %v998, 0
      %v1024 = vsel %vm331, %v999, 0
      %v1027 = vsel %vm331, %v1000, 0
      %v1030 = vsel %vm331, %v1001, 0
      %v1033 = vsel %vm331, %v1002, 0
      %1035 = vmatpush.bf16.msra.mxu0 0
      %1036 = vmatpush.bf16.msra.mxu0 0
      %1037 = vmatpush.bf16.msra.mxu0 0
      %1038 = vmatpush.bf16.msra.mxu0 0
      %1039 = vmatpush.bf16.msra.mxu0 0
      %1040 = vmatpush.bf16.msra.mxu0 0
      %1041 = vmatpush.bf16.msra.mxu0 %v1017
      %1042 = vmatpush.bf16.msra.mxu0 %v1016
      %1043 = vmatmul.bf16.gmra.mxu0 %v1021
      %v1044 = vpop.f32.mrf.mxu0
      %v1045 = vadd.f32 0.0, %v1044
      %v1046 = vpop.f32.mrf.mxu0
      %v1047 = vadd.f32 0.0, %v1046
      %1048 = vmatmul.bf16.gmra.mxu0 %v1024
      %v1049 = vpop.f32.mrf.mxu0
      %v1050 = vadd.f32 0.0, %v1049
      %v1051 = vpop.f32.mrf.mxu0
      %v1052 = vadd.f32 0.0, %v1051
      %1053 = vmatmul.bf16.gmra.mxu0 %v1027
      %v1054 = vpop.f32.mrf.mxu0
      %v1055 = vadd.f32 0.0, %v1054
      %v1056 = vpop.f32.mrf.mxu0
      %v1057 = vadd.f32 0.0, %v1056
      %1058 = vmatmul.bf16.gmra.mxu0 %v1030
      %v1059 = vpop.f32.mrf.mxu0
      %v1060 = vadd.f32 0.0, %v1059
      %v1061 = vpop.f32.mrf.mxu0
      %v1062 = vadd.f32 0.0, %v1061
      %1063 = vmatmul.bf16.gmra.mxu0 %v1033
      %v1064 = vpop.f32.mrf.mxu0
      %v1065 = vadd.f32 0.0, %v1064
      %v1066 = vpop.f32.mrf.mxu0
      %v1067 = vadd.f32 0.0, %v1066
      %1068 = vdwg.mxu0
      %v1069 = vadd.f32 %v978, %v1045
      %v1070 = vadd.f32 %v979, %v1047
      %v1071 = vadd.f32 %v980, %v1050
      %v1072 = vadd.f32 %v981, %v1052
      %v1073 = vadd.f32 %v982, %v1055
      %v1074 = vadd.f32 %v983, %v1057
      %v1075 = vadd.f32 %v984, %v1060
      %v1076 = vadd.f32 %v985, %v1062
      %v1077 = vadd.f32 %v986, %v1065
      %v1078 = vadd.f32 %v987, %v1067
      %v1079 = vld [vmem:[%s2] sm:$0x1]
      %v1081 = vperm.slane %v1079, 0
      %v1083 = vadd.f32 %v1069, %v1081
      %v1084 = vadd.f32 %v1070, %v1081
      %v1085 = vadd.f32 %v1071, %v1081
      %v1086 = vadd.f32 %v1072, %v1081
      %v1087 = vadd.f32 %v1073, %v1081
      %v1088 = vadd.f32 %v1074, %v1081
      %v1089 = vadd.f32 %v1075, %v1081
      %v1090 = vadd.f32 %v1076, %v1081
      %v1091 = vadd.f32 %v1077, %v1081
      %v1092 = vadd.f32 %v1078, %v1081
      %v1093 = vmax.f32 %v1083, 0.0
      %v1094 = vmax.f32 %v1084, 0.0
      %v1095 = vmax.f32 %v1085, 0.0
      %v1096 = vmax.f32 %v1086, 0.0
      %v1097 = vmax.f32 %v1087, 0.0
      %v1098 = vmax.f32 %v1088, 0.0
      %v1099 = vmax.f32 %v1089, 0.0
      %v1100 = vmax.f32 %v1090, 0.0
      %v1101 = vmax.f32 %v1091, 0.0
      %v1102 = vmax.f32 %v1092, 0.0
      %v1103 = vld [vmem:[%s5] sm:$0xff]
      %v1104 = vld [vmem:[%s5 + $0x8] sm:$0xff]
      %v1105 = vld [vmem:[%s5 + $0x10] sm:$0xff]
      %v1106 = vld [vmem:[%s5 + $0x18] sm:$0xff]
      %v1107 = vld [vmem:[%s5 + $0x20] sm:$0xff]
      %v1108 = vld [vmem:[%s5 + $0x28] sm:$0xff]
      %v1109 = vld [vmem:[%s5 + $0x30] sm:$0xff]
      %v1110 = vld [vmem:[%s5 + $0x38] sm:$0xff]
      %v1111 = vld [vmem:[%s5 + $0x40] sm:$0xff]
      %v1112 = vld [vmem:[%s5 + $0x48] sm:$0xff]
      %1114 = vset.pattern.permute.xlu0 0
      %1115 = vperm.xlu0 %1114, %v1103
      %v1116 = vpop.permute.xlu0 %1115
      %1119 = vset.pattern.permute.xlu0 0
      %1120 = vperm.xlu0 %1119, %v1104
      %v1121 = vpop.permute.xlu0 %1120
      %1124 = vset.pattern.permute.xlu0 0
      %1125 = vperm.xlu0 %1124, %v1105
      %v1126 = vpop.permute.xlu0 %1125
      %1129 = vset.pattern.permute.xlu0 0
      %1130 = vperm.xlu0 %1129, %v1106
      %v1131 = vpop.permute.xlu0 %1130
      %1134 = vset.pattern.permute.xlu0 0
      %1135 = vperm.xlu0 %1134, %v1107
      %v1136 = vpop.permute.xlu0 %1135
      %1139 = vset.pattern.permute.xlu0 0
      %1140 = vperm.xlu0 %1139, %v1108
      %v1141 = vpop.permute.xlu0 %1140
      %1144 = vset.pattern.permute.xlu0 0
      %1145 = vperm.xlu0 %1144, %v1109
      %v1146 = vpop.permute.xlu0 %1145
      %1149 = vset.pattern.permute.xlu0 0
      %1150 = vperm.xlu0 %1149, %v1110
      %v1151 = vpop.permute.xlu0 %1150
      %1154 = vset.pattern.permute.xlu0 0
      %1155 = vperm.xlu0 %1154, %v1111
      %v1156 = vpop.permute.xlu0 %1155
      %1159 = vset.pattern.permute.xlu0 0
      %1160 = vperm.xlu0 %1159, %v1112
      %v1161 = vpop.permute.xlu0 %1160
      %v1163 = vmul.f32 %v1093, %v1116
      %v1164 = vmul.f32 %v1094, %v1121
      %v1165 = vmul.f32 %v1095, %v1126
      %v1166 = vmul.f32 %v1096, %v1131
      %v1167 = vmul.f32 %v1097, %v1136
      %v1168 = vmul.f32 %v1098, %v1141
      %v1169 = vmul.f32 %v1099, %v1146
      %v1170 = vmul.f32 %v1100, %v1151
      %v1171 = vmul.f32 %v1101, %v1156
      %v1172 = vmul.f32 %v1102, %v1161
      %vm1173 = vcmask 523264
      %1174 = vst.msk [vmem:[#allocation2] sm:$0xff] %vm1173, 0.0
      %1175 = vst.msk [vmem:[#allocation2 + $0x8] sm:$0xff] %vm1173, 0.0
      %1176 = vst.msk [vmem:[#allocation2 + $0x10] sm:$0xff] %vm1173, 0.0
      %1177 = vst.msk [vmem:[#allocation2 + $0x18] sm:$0xff] %vm1173, 0.0
      %1178 = vst.msk [vmem:[#allocation2 + $0x20] sm:$0xff] %vm1173, 0.0
      %1179 = vst.msk [vmem:[#allocation2 + $0x28] sm:$0xff] %vm1173, 0.0
      %1180 = vst.msk [vmem:[#allocation2 + $0x30] sm:$0xff] %vm1173, 0.0
      %1181 = vst.msk [vmem:[#allocation2 + $0x38] sm:$0xff] %vm1173, 0.0
      %1182 = vst.msk [vmem:[#allocation2 + $0x40] sm:$0xff] %vm1173, 0.0
      %1183 = vst.msk [vmem:[#allocation2 + $0x48] sm:$0xff] %vm1173, 0.0
      %1184 = vst.msk [vmem:[#allocation2 + $0x50] sm:$0xff] %vm1173, 0.0
      %1185 = vst.msk [vmem:[#allocation2 + $0x58] sm:$0xff] %vm1173, 0.0
      %vm1186 = vcmask 521216
      %1187 = vst.msk [vmem:[#allocation2 + $0x60] sm:$0x3f] %vm1186, 0.0
      %1188 = vst.msk [vmem:[#allocation2 + $0xb] sm:$0xff] %vm1173, %v1163
      %1189 = vst.msk [vmem:[#allocation2 + $0x13] sm:$0xff] %vm1173, %v1164
      %1190 = vst.msk [vmem:[#allocation2 + $0x1b] sm:$0xff] %vm1173, %v1165
      %1191 = vst.msk [vmem:[#allocation2 + $0x23] sm:$0xff] %vm1173, %v1166
      %1192 = vst.msk [vmem:[#allocation2 + $0x2b] sm:$0xff] %vm1173, %v1167
      %1193 = vst.msk [vmem:[#allocation2 + $0x33] sm:$0xff] %vm1173, %v1168
      %1194 = vst.msk [vmem:[#allocation2 + $0x3b] sm:$0xff] %vm1173, %v1169
      %1195 = vst.msk [vmem:[#allocation2 + $0x43] sm:$0xff] %vm1173, %v1170
      %1196 = vst.msk [vmem:[#allocation2 + $0x4b] sm:$0xff] %vm1173, %v1171
      %1197 = vst.msk [vmem:[#allocation2 + $0x53] sm:$0xff] %vm1173, %v1172
      %v1198 = vld [vmem:[#allocation2] sm:$0xff]
      %v1199 = vld [vmem:[#allocation2 + $0x8] sm:$0xff]
      %v1200 = vld [vmem:[#allocation2 + $0x10] sm:$0xff]
      %v1201 = vld [vmem:[#allocation2 + $0x18] sm:$0xff]
      %v1202 = vld [vmem:[#allocation2 + $0x20] sm:$0xff]
      %v1203 = vld [vmem:[#allocation2 + $0x28] sm:$0xff]
      %v1204 = vld [vmem:[#allocation2 + $0x30] sm:$0xff]
      %v1205 = vld [vmem:[#allocation2 + $0x38] sm:$0xff]
      %v1206 = vld [vmem:[#allocation2 + $0x40] sm:$0xff]
      %v1207 = vld [vmem:[#allocation2 + $0x48] sm:$0xff]
      %v1208 = vpack.c.bf16 %v1199, %v1198
      %v1209 = vpack.c.bf16 %v1201, %v1200
      %v1210 = vpack.c.bf16 %v1203, %v1202
      %v1211 = vpack.c.bf16 %v1205, %v1204
      %v1212 = vpack.c.bf16 %v1207, %v1206
      %v1213 = vld [vmem:[%s3] sm:$0xf]
      %v1214 = vld [vmem:[%s3 + $0x4] sm:$0xf]
      %v1215 = vld [vmem:[%s3 + $0x8] sm:$0xf]
      %v1216 = vld [vmem:[%s3 + $0xc] sm:$0xf]
      %v1217 = vld [vmem:[%s3 + $0x10] sm:$0xf]
      %v1218 = vld [vmem:[%s3 + $0x14] sm:$0xf]
      %v1219 = vld [vmem:[%s3 + $0x18] sm:$0xf]
      %v1220 = vld [vmem:[%s3 + $0x1c] sm:$0xf]
      %v1221 = vld [vmem:[#allocation2 + $0x1] sm:$0xff]
      %v1222 = vld [vmem:[#allocation2 + $0x9] sm:$0xff]
      %v1223 = vld [vmem:[#allocation2 + $0x11] sm:$0xff]
      %v1224 = vld [vmem:[#allocation2 + $0x19] sm:$0xff]
      %v1225 = vld [vmem:[#allocation2 + $0x21] sm:$0xff]
      %v1226 = vld [vmem:[#allocation2 + $0x29] sm:$0xff]
      %v1227 = vld [vmem:[#allocation2 + $0x31] sm:$0xff]
      %v1228 = vld [vmem:[#allocation2 + $0x39] sm:$0xff]
      %v1229 = vld [vmem:[#allocation2 + $0x41] sm:$0xff]
      %v1230 = vld [vmem:[#allocation2 + $0x49] sm:$0xff]
      %v1231 = vpack.c.bf16 %v1222, %v1221
      %v1232 = vpack.c.bf16 %v1224, %v1223
      %v1233 = vpack.c.bf16 %v1226, %v1225
      %v1234 = vpack.c.bf16 %v1228, %v1227
      %v1235 = vpack.c.bf16 %v1230, %v1229
      %s1236 = scalar_lea.vmem %s3, 32
      %v1237 = vld [vmem:[%s1236] sm:$0xf]
      %v1238 = vld [vmem:[%s1236 + $0x4] sm:$0xf]
      %v1239 = vld [vmem:[%s1236 + $0x8] sm:$0xf]
      %v1240 = vld [vmem:[%s1236 + $0xc] sm:$0xf]
      %v1241 = vld [vmem:[%s1236 + $0x10] sm:$0xf]
      %v1242 = vld [vmem:[%s1236 + $0x14] sm:$0xf]
      %v1243 = vld [vmem:[%s1236 + $0x18] sm:$0xf]
      %v1244 = vld [vmem:[%s1236 + $0x1c] sm:$0xf]
      %v1253 = vunpack.c.l.b16 %v1237
      %v1254 = vunpack.c.l.b16 %v1238
      %v1255 = vunpack.c.l.b16 %v1239
      %v1256 = vunpack.c.l.b16 %v1240
      %v1257 = vunpack.c.l.b16 %v1241
      %v1258 = vunpack.c.l.b16 %v1242
      %v1259 = vunpack.c.l.b16 %v1243
      %v1260 = vunpack.c.l.b16 %v1244
      %v1261 = vpack.c.b16 %v1254, %v1253
      %v1262 = vpack.c.b16 %v1256, %v1255
      %v1263 = vpack.c.b16 %v1258, %v1257
      %v1264 = vpack.c.b16 %v1260, %v1259
      %v1270 = vsel %vm1173, %v1231, 0
      %v1273 = vsel %vm1173, %v1232, 0
      %v1276 = vsel %vm1173, %v1233, 0
      %v1279 = vsel %vm1173, %v1234, 0
      %v1282 = vsel %vm1173, %v1235, 0
      %1284 = vmatpush.bf16.msra.mxu0 0
      %1285 = vmatpush.bf16.msra.mxu0 0
      %1286 = vmatpush.bf16.msra.mxu0 0
      %1287 = vmatpush.bf16.msra.mxu0 0
      %1288 = vmatpush.bf16.msra.mxu0 %v1264
      %1289 = vmatpush.bf16.msra.mxu0 %v1263
      %1290 = vmatpush.bf16.msra.mxu0 %v1262
      %1291 = vmatpush.bf16.msra.mxu0 %v1261
      %1292 = vmatmul.bf16.gmra.mxu0 %v1270
      %v1293 = vpop.f32.mrf.mxu0
      %v1294 = vadd.f32 0.0, %v1293
      %v1295 = vpop.f32.mrf.mxu0
      %v1296 = vadd.f32 0.0, %v1295
      %1297 = vmatmul.bf16.gmra.mxu0 %v1273
      %v1298 = vpop.f32.mrf.mxu0
      %v1299 = vadd.f32 0.0, %v1298
      %v1300 = vpop.f32.mrf.mxu0
      %v1301 = vadd.f32 0.0, %v1300
      %1302 = vmatmul.bf16.gmra.mxu0 %v1276
      %v1303 = vpop.f32.mrf.mxu0
      %v1304 = vadd.f32 0.0, %v1303
      %v1305 = vpop.f32.mrf.mxu0
      %v1306 = vadd.f32 0.0, %v1305
      %1307 = vmatmul.bf16.gmra.mxu0 %v1279
      %v1308 = vpop.f32.mrf.mxu0
      %v1309 = vadd.f32 0.0, %v1308
      %v1310 = vpop.f32.mrf.mxu0
      %v1311 = vadd.f32 0.0, %v1310
      %1312 = vmatmul.bf16.gmra.mxu0 %v1282
      %v1313 = vpop.f32.mrf.mxu0
      %v1314 = vadd.f32 0.0, %v1313
      %v1315 = vpop.f32.mrf.mxu0
      %v1316 = vadd.f32 0.0, %v1315
      %1317 = vdwg.mxu0
      %v1326 = vunpack.c.l.b16 %v1213
      %v1327 = vunpack.c.l.b16 %v1214
      %v1328 = vunpack.c.l.b16 %v1215
      %v1329 = vunpack.c.l.b16 %v1216
      %v1330 = vunpack.c.l.b16 %v1217
      %v1331 = vunpack.c.l.b16 %v1218
      %v1332 = vunpack.c.l.b16 %v1219
      %v1333 = vunpack.c.l.b16 %v1220
      %v1334 = vpack.c.b16 %v1327, %v1326
      %v1335 = vpack.c.b16 %v1329, %v1328
      %v1336 = vpack.c.b16 %v1331, %v1330
      %v1337 = vpack.c.b16 %v1333, %v1332
      %v1343 = vsel %vm1173, %v1208, 0
      %v1346 = vsel %vm1173, %v1209, 0
      %v1349 = vsel %vm1173, %v1210, 0
      %v1352 = vsel %vm1173, %v1211, 0
      %v1355 = vsel %vm1173, %v1212, 0
      %1357 = vmatpush.bf16.msra.mxu0 0
      %1358 = vmatpush.bf16.msra.mxu0 0
      %1359 = vmatpush.bf16.msra.mxu0 0
      %1360 = vmatpush.bf16.msra.mxu0 0
      %1361 = vmatpush.bf16.msra.mxu0 %v1337
      %1362 = vmatpush.bf16.msra.mxu0 %v1336
      %1363 = vmatpush.bf16.msra.mxu0 %v1335
      %1364 = vmatpush.bf16.msra.mxu0 %v1334
      %1365 = vmatmul.bf16.gmra.mxu0 %v1343
      %v1366 = vpop.f32.mrf.mxu0
      %v1367 = vadd.f32 %v1294, %v1366
      %v1368 = vpop.f32.mrf.mxu0
      %v1369 = vadd.f32 %v1296, %v1368
      %1370 = vmatmul.bf16.gmra.mxu0 %v1346
      %v1371 = vpop.f32.mrf.mxu0
      %v1372 = vadd.f32 %v1299, %v1371
      %v1373 = vpop.f32.mrf.mxu0
      %v1374 = vadd.f32 %v1301, %v1373
      %1375 = vmatmul.bf16.gmra.mxu0 %v1349
      %v1376 = vpop.f32.mrf.mxu0
      %v1377 = vadd.f32 %v1304, %v1376
      %v1378 = vpop.f32.mrf.mxu0
      %v1379 = vadd.f32 %v1306, %v1378
      %1380 = vmatmul.bf16.gmra.mxu0 %v1352
      %v1381 = vpop.f32.mrf.mxu0
      %v1382 = vadd.f32 %v1309, %v1381
      %v1383 = vpop.f32.mrf.mxu0
      %v1384 = vadd.f32 %v1311, %v1383
      %1385 = vmatmul.bf16.gmra.mxu0 %v1355
      %v1386 = vpop.f32.mrf.mxu0
      %v1387 = vadd.f32 %v1314, %v1386
      %v1388 = vpop.f32.mrf.mxu0
      %v1389 = vadd.f32 %v1316, %v1388
      %1390 = vdwg.mxu0
      %v1391 = vld [vmem:[#allocation2 + $0x2] sm:$0xff]
      %v1392 = vld [vmem:[#allocation2 + $0xa] sm:$0xff]
      %v1393 = vld [vmem:[#allocation2 + $0x12] sm:$0xff]
      %v1394 = vld [vmem:[#allocation2 + $0x1a] sm:$0xff]
      %v1395 = vld [vmem:[#allocation2 + $0x22] sm:$0xff]
      %v1396 = vld [vmem:[#allocation2 + $0x2a] sm:$0xff]
      %v1397 = vld [vmem:[#allocation2 + $0x32] sm:$0xff]
      %v1398 = vld [vmem:[#allocation2 + $0x3a] sm:$0xff]
      %v1399 = vld [vmem:[#allocation2 + $0x42] sm:$0xff]
      %v1400 = vld [vmem:[#allocation2 + $0x4a] sm:$0xff]
      %v1401 = vpack.c.bf16 %v1392, %v1391
      %v1402 = vpack.c.bf16 %v1394, %v1393
      %v1403 = vpack.c.bf16 %v1396, %v1395
      %v1404 = vpack.c.bf16 %v1398, %v1397
      %v1405 = vpack.c.bf16 %v1400, %v1399
      %s1406 = scalar_lea.vmem %s3, 64
      %v1407 = vld [vmem:[%s1406] sm:$0xf]
      %v1408 = vld [vmem:[%s1406 + $0x4] sm:$0xf]
      %v1409 = vld [vmem:[%s1406 + $0x8] sm:$0xf]
      %v1410 = vld [vmem:[%s1406 + $0xc] sm:$0xf]
      %v1411 = vld [vmem:[%s1406 + $0x10] sm:$0xf]
      %v1412 = vld [vmem:[%s1406 + $0x14] sm:$0xf]
      %v1413 = vld [vmem:[%s1406 + $0x18] sm:$0xf]
      %v1414 = vld [vmem:[%s1406 + $0x1c] sm:$0xf]
      %v1423 = vunpack.c.l.b16 %v1407
      %v1424 = vunpack.c.l.b16 %v1408
      %v1425 = vunpack.c.l.b16 %v1409
      %v1426 = vunpack.c.l.b16 %v1410
      %v1427 = vunpack.c.l.b16 %v1411
      %v1428 = vunpack.c.l.b16 %v1412
      %v1429 = vunpack.c.l.b16 %v1413
      %v1430 = vunpack.c.l.b16 %v1414
      %v1431 = vpack.c.b16 %v1424, %v1423
      %v1432 = vpack.c.b16 %v1426, %v1425
      %v1433 = vpack.c.b16 %v1428, %v1427
      %v1434 = vpack.c.b16 %v1430, %v1429
      %v1440 = vsel %vm1173, %v1401, 0
      %v1443 = vsel %vm1173, %v1402, 0
      %v1446 = vsel %vm1173, %v1403, 0
      %v1449 = vsel %vm1173, %v1404, 0
      %v1452 = vsel %vm1173, %v1405, 0
      %1454 = vmatpush.bf16.msra.mxu0 0
      %1455 = vmatpush.bf16.msra.mxu0 0
      %1456 = vmatpush.bf16.msra.mxu0 0
      %1457 = vmatpush.bf16.msra.mxu0 0
      %1458 = vmatpush.bf16.msra.mxu0 %v1434
      %1459 = vmatpush.bf16.msra.mxu0 %v1433
      %1460 = vmatpush.bf16.msra.mxu0 %v1432
      %1461 = vmatpush.bf16.msra.mxu0 %v1431
      %1462 = vmatmul.bf16.gmra.mxu0 %v1440
      %v1463 = vpop.f32.mrf.mxu0
      %v1464 = vadd.f32 0.0, %v1463
      %v1465 = vpop.f32.mrf.mxu0
      %v1466 = vadd.f32 0.0, %v1465
      %1467 = vmatmul.bf16.gmra.mxu0 %v1443
      %v1468 = vpop.f32.mrf.mxu0
      %v1469 = vadd.f32 0.0, %v1468
      %v1470 = vpop.f32.mrf.mxu0
      %v1471 = vadd.f32 0.0, %v1470
      %1472 = vmatmul.bf16.gmra.mxu0 %v1446
      %v1473 = vpop.f32.mrf.mxu0
      %v1474 = vadd.f32 0.0, %v1473
      %v1475 = vpop.f32.mrf.mxu0
      %v1476 = vadd.f32 0.0, %v1475
      %1477 = vmatmul.bf16.gmra.mxu0 %v1449
      %v1478 = vpop.f32.mrf.mxu0
      %v1479 = vadd.f32 0.0, %v1478
      %v1480 = vpop.f32.mrf.mxu0
      %v1481 = vadd.f32 0.0, %v1480
      %1482 = vmatmul.bf16.gmra.mxu0 %v1452
      %v1483 = vpop.f32.mrf.mxu0
      %v1484 = vadd.f32 0.0, %v1483
      %v1485 = vpop.f32.mrf.mxu0
      %v1486 = vadd.f32 0.0, %v1485
      %1487 = vdwg.mxu0
      %v1488 = vadd.f32 %v1367, %v1464
      %v1489 = vadd.f32 %v1369, %v1466
      %v1490 = vadd.f32 %v1372, %v1469
      %v1491 = vadd.f32 %v1374, %v1471
      %v1492 = vadd.f32 %v1377, %v1474
      %v1493 = vadd.f32 %v1379, %v1476
      %v1494 = vadd.f32 %v1382, %v1479
      %v1495 = vadd.f32 %v1384, %v1481
      %v1496 = vadd.f32 %v1387, %v1484
      %v1497 = vadd.f32 %v1389, %v1486
      %v1498 = vld [vmem:[#allocation2 + $0xa] sm:$0xff]
      %v1499 = vld [vmem:[#allocation2 + $0x12] sm:$0xff]
      %v1500 = vld [vmem:[#allocation2 + $0x1a] sm:$0xff]
      %v1501 = vld [vmem:[#allocation2 + $0x22] sm:$0xff]
      %v1502 = vld [vmem:[#allocation2 + $0x2a] sm:$0xff]
      %v1503 = vld [vmem:[#allocation2 + $0x32] sm:$0xff]
      %v1504 = vld [vmem:[#allocation2 + $0x3a] sm:$0xff]
      %v1505 = vld [vmem:[#allocation2 + $0x42] sm:$0xff]
      %v1506 = vld [vmem:[#allocation2 + $0x4a] sm:$0xff]
      %v1507 = vld [vmem:[#allocation2 + $0x52] sm:$0xff]
      %v1508 = vpack.c.bf16 %v1499, %v1498
      %v1509 = vpack.c.bf16 %v1501, %v1500
      %v1510 = vpack.c.bf16 %v1503, %v1502
      %v1511 = vpack.c.bf16 %v1505, %v1504
      %v1512 = vpack.c.bf16 %v1507, %v1506
      %s1513 = scalar_lea.vmem %s3, 96
      %v1514 = vld [vmem:[%s1513] sm:$0xf]
      %v1515 = vld [vmem:[%s1513 + $0x4] sm:$0xf]
      %v1516 = vld [vmem:[%s1513 + $0x8] sm:$0xf]
      %v1517 = vld [vmem:[%s1513 + $0xc] sm:$0xf]
      %v1518 = vld [vmem:[%s1513 + $0x10] sm:$0xf]
      %v1519 = vld [vmem:[%s1513 + $0x14] sm:$0xf]
      %v1520 = vld [vmem:[%s1513 + $0x18] sm:$0xf]
      %v1521 = vld [vmem:[%s1513 + $0x1c] sm:$0xf]
      %v1530 = vunpack.c.l.b16 %v1514
      %v1531 = vunpack.c.l.b16 %v1515
      %v1532 = vunpack.c.l.b16 %v1516
      %v1533 = vunpack.c.l.b16 %v1517
      %v1534 = vunpack.c.l.b16 %v1518
      %v1535 = vunpack.c.l.b16 %v1519
      %v1536 = vunpack.c.l.b16 %v1520
      %v1537 = vunpack.c.l.b16 %v1521
      %v1538 = vpack.c.b16 %v1531, %v1530
      %v1539 = vpack.c.b16 %v1533, %v1532
      %v1540 = vpack.c.b16 %v1535, %v1534
      %v1541 = vpack.c.b16 %v1537, %v1536
      %v1547 = vsel %vm1173, %v1508, 0
      %v1550 = vsel %vm1173, %v1509, 0
      %v1553 = vsel %vm1173, %v1510, 0
      %v1556 = vsel %vm1173, %v1511, 0
      %v1559 = vsel %vm1173, %v1512, 0
      %1561 = vmatpush.bf16.msra.mxu0 0
      %1562 = vmatpush.bf16.msra.mxu0 0
      %1563 = vmatpush.bf16.msra.mxu0 0
      %1564 = vmatpush.bf16.msra.mxu0 0
      %1565 = vmatpush.bf16.msra.mxu0 %v1541
      %1566 = vmatpush.bf16.msra.mxu0 %v1540
      %1567 = vmatpush.bf16.msra.mxu0 %v1539
      %1568 = vmatpush.bf16.msra.mxu0 %v1538
      %1569 = vmatmul.bf16.gmra.mxu0 %v1547
      %v1570 = vpop.f32.mrf.mxu0
      %v1571 = vadd.f32 0.0, %v1570
      %v1572 = vpop.f32.mrf.mxu0
      %v1573 = vadd.f32 0.0, %v1572
      %1574 = vmatmul.bf16.gmra.mxu0 %v1550
      %v1575 = vpop.f32.mrf.mxu0
      %v1576 = vadd.f32 0.0, %v1575
      %v1577 = vpop.f32.mrf.mxu0
      %v1578 = vadd.f32 0.0, %v1577
      %1579 = vmatmul.bf16.gmra.mxu0 %v1553
      %v1580 = vpop.f32.mrf.mxu0
      %v1581 = vadd.f32 0.0, %v1580
      %v1582 = vpop.f32.mrf.mxu0
      %v1583 = vadd.f32 0.0, %v1582
      %1584 = vmatmul.bf16.gmra.mxu0 %v1556
      %v1585 = vpop.f32.mrf.mxu0
      %v1586 = vadd.f32 0.0, %v1585
      %v1587 = vpop.f32.mrf.mxu0
      %v1588 = vadd.f32 0.0, %v1587
      %1589 = vmatmul.bf16.gmra.mxu0 %v1559
      %v1590 = vpop.f32.mrf.mxu0
      %v1591 = vadd.f32 0.0, %v1590
      %v1592 = vpop.f32.mrf.mxu0
      %v1593 = vadd.f32 0.0, %v1592
      %1594 = vdwg.mxu0
      %v1595 = vadd.f32 %v1488, %v1571
      %v1596 = vadd.f32 %v1489, %v1573
      %v1597 = vadd.f32 %v1490, %v1576
      %v1598 = vadd.f32 %v1491, %v1578
      %v1599 = vadd.f32 %v1492, %v1581
      %v1600 = vadd.f32 %v1493, %v1583
      %v1601 = vadd.f32 %v1494, %v1586
      %v1602 = vadd.f32 %v1495, %v1588
      %v1603 = vadd.f32 %v1496, %v1591
      %v1604 = vadd.f32 %v1497, %v1593
      %v1605 = vld [vmem:[#allocation2 + $0xb] sm:$0xff]
      %v1606 = vld [vmem:[#allocation2 + $0x13] sm:$0xff]
      %v1607 = vld [vmem:[#allocation2 + $0x1b] sm:$0xff]
      %v1608 = vld [vmem:[#allocation2 + $0x23] sm:$0xff]
      %v1609 = vld [vmem:[#allocation2 + $0x2b] sm:$0xff]
      %v1610 = vld [vmem:[#allocation2 + $0x33] sm:$0xff]
      %v1611 = vld [vmem:[#allocation2 + $0x3b] sm:$0xff]
      %v1612 = vld [vmem:[#allocation2 + $0x43] sm:$0xff]
      %v1613 = vld [vmem:[#allocation2 + $0x4b] sm:$0xff]
      %v1614 = vld [vmem:[#allocation2 + $0x53] sm:$0xff]
      %v1615 = vpack.c.bf16 %v1606, %v1605
      %v1616 = vpack.c.bf16 %v1608, %v1607
      %v1617 = vpack.c.bf16 %v1610, %v1609
      %v1618 = vpack.c.bf16 %v1612, %v1611
      %v1619 = vpack.c.bf16 %v1614, %v1613
      %s1620 = scalar_lea.vmem %s3, 128
      %v1621 = vld [vmem:[%s1620] sm:$0xf]
      %v1622 = vld [vmem:[%s1620 + $0x4] sm:$0xf]
      %v1623 = vld [vmem:[%s1620 + $0x8] sm:$0xf]
      %v1624 = vld [vmem:[%s1620 + $0xc] sm:$0xf]
      %v1625 = vld [vmem:[%s1620 + $0x10] sm:$0xf]
      %v1626 = vld [vmem:[%s1620 + $0x14] sm:$0xf]
      %v1627 = vld [vmem:[%s1620 + $0x18] sm:$0xf]
      %v1628 = vld [vmem:[%s1620 + $0x1c] sm:$0xf]
      %v1637 = vunpack.c.l.b16 %v1621
      %v1638 = vunpack.c.l.b16 %v1622
      %v1639 = vunpack.c.l.b16 %v1623
      %v1640 = vunpack.c.l.b16 %v1624
      %v1641 = vunpack.c.l.b16 %v1625
      %v1642 = vunpack.c.l.b16 %v1626
      %v1643 = vunpack.c.l.b16 %v1627
      %v1644 = vunpack.c.l.b16 %v1628
      %v1645 = vpack.c.b16 %v1638, %v1637
      %v1646 = vpack.c.b16 %v1640, %v1639
      %v1647 = vpack.c.b16 %v1642, %v1641
      %v1648 = vpack.c.b16 %v1644, %v1643
      %v1654 = vsel %vm1173, %v1615, 0
      %v1657 = vsel %vm1173, %v1616, 0
      %v1660 = vsel %vm1173, %v1617, 0
      %v1663 = vsel %vm1173, %v1618, 0
      %v1666 = vsel %vm1173, %v1619, 0
      %1668 = vmatpush.bf16.msra.mxu0 0
      %1669 = vmatpush.bf16.msra.mxu0 0
      %1670 = vmatpush.bf16.msra.mxu0 0
      %1671 = vmatpush.bf16.msra.mxu0 0
      %1672 = vmatpush.bf16.msra.mxu0 %v1648
      %1673 = vmatpush.bf16.msra.mxu0 %v1647
      %1674 = vmatpush.bf16.msra.mxu0 %v1646
      %1675 = vmatpush.bf16.msra.mxu0 %v1645
      %1676 = vmatmul.bf16.gmra.mxu0 %v1654
      %v1677 = vpop.f32.mrf.mxu0
      %v1678 = vadd.f32 0.0, %v1677
      %v1679 = vpop.f32.mrf.mxu0
      %v1680 = vadd.f32 0.0, %v1679
      %1681 = vmatmul.bf16.gmra.mxu0 %v1657
      %v1682 = vpop.f32.mrf.mxu0
      %v1683 = vadd.f32 0.0, %v1682
      %v1684 = vpop.f32.mrf.mxu0
      %v1685 = vadd.f32 0.0, %v1684
      %1686 = vmatmul.bf16.gmra.mxu0 %v1660
      %v1687 = vpop.f32.mrf.mxu0
      %v1688 = vadd.f32 0.0, %v1687
      %v1689 = vpop.f32.mrf.mxu0
      %v1690 = vadd.f32 0.0, %v1689
      %1691 = vmatmul.bf16.gmra.mxu0 %v1663
      %v1692 = vpop.f32.mrf.mxu0
      %v1693 = vadd.f32 0.0, %v1692
      %v1694 = vpop.f32.mrf.mxu0
      %v1695 = vadd.f32 0.0, %v1694
      %1696 = vmatmul.bf16.gmra.mxu0 %v1666
      %v1697 = vpop.f32.mrf.mxu0
      %v1698 = vadd.f32 0.0, %v1697
      %v1699 = vpop.f32.mrf.mxu0
      %v1700 = vadd.f32 0.0, %v1699
      %1701 = vdwg.mxu0
      %v1702 = vadd.f32 %v1595, %v1678
      %v1703 = vadd.f32 %v1596, %v1680
      %v1704 = vadd.f32 %v1597, %v1683
      %v1705 = vadd.f32 %v1598, %v1685
      %v1706 = vadd.f32 %v1599, %v1688
      %v1707 = vadd.f32 %v1600, %v1690
      %v1708 = vadd.f32 %v1601, %v1693
      %v1709 = vadd.f32 %v1602, %v1695
      %v1710 = vadd.f32 %v1603, %v1698
      %v1711 = vadd.f32 %v1604, %v1700
      %v1712 = vld [vmem:[#allocation2 + $0xc] sm:$0xff]
      %v1713 = vld [vmem:[#allocation2 + $0x14] sm:$0xff]
      %v1714 = vld [vmem:[#allocation2 + $0x1c] sm:$0xff]
      %v1715 = vld [vmem:[#allocation2 + $0x24] sm:$0xff]
      %v1716 = vld [vmem:[#allocation2 + $0x2c] sm:$0xff]
      %v1717 = vld [vmem:[#allocation2 + $0x34] sm:$0xff]
      %v1718 = vld [vmem:[#allocation2 + $0x3c] sm:$0xff]
      %v1719 = vld [vmem:[#allocation2 + $0x44] sm:$0xff]
      %v1720 = vld [vmem:[#allocation2 + $0x4c] sm:$0xff]
      %v1721 = vld [vmem:[#allocation2 + $0x54] sm:$0xff]
      %v1722 = vpack.c.bf16 %v1713, %v1712
      %v1723 = vpack.c.bf16 %v1715, %v1714
      %v1724 = vpack.c.bf16 %v1717, %v1716
      %v1725 = vpack.c.bf16 %v1719, %v1718
      %v1726 = vpack.c.bf16 %v1721, %v1720
      %s1727 = scalar_lea.vmem %s3, 160
      %v1728 = vld [vmem:[%s1727] sm:$0xf]
      %v1729 = vld [vmem:[%s1727 + $0x4] sm:$0xf]
      %v1730 = vld [vmem:[%s1727 + $0x8] sm:$0xf]
      %v1731 = vld [vmem:[%s1727 + $0xc] sm:$0xf]
      %v1732 = vld [vmem:[%s1727 + $0x10] sm:$0xf]
      %v1733 = vld [vmem:[%s1727 + $0x14] sm:$0xf]
      %v1734 = vld [vmem:[%s1727 + $0x18] sm:$0xf]
      %v1735 = vld [vmem:[%s1727 + $0x1c] sm:$0xf]
      %v1744 = vunpack.c.l.b16 %v1728
      %v1745 = vunpack.c.l.b16 %v1729
      %v1746 = vunpack.c.l.b16 %v1730
      %v1747 = vunpack.c.l.b16 %v1731
      %v1748 = vunpack.c.l.b16 %v1732
      %v1749 = vunpack.c.l.b16 %v1733
      %v1750 = vunpack.c.l.b16 %v1734
      %v1751 = vunpack.c.l.b16 %v1735
      %v1752 = vpack.c.b16 %v1745, %v1744
      %v1753 = vpack.c.b16 %v1747, %v1746
      %v1754 = vpack.c.b16 %v1749, %v1748
      %v1755 = vpack.c.b16 %v1751, %v1750
      %v1761 = vsel %vm1173, %v1722, 0
      %v1764 = vsel %vm1173, %v1723, 0
      %v1767 = vsel %vm1173, %v1724, 0
      %v1770 = vsel %vm1173, %v1725, 0
      %v1773 = vsel %vm1173, %v1726, 0
      %1775 = vmatpush.bf16.msra.mxu0 0
      %1776 = vmatpush.bf16.msra.mxu0 0
      %1777 = vmatpush.bf16.msra.mxu0 0
      %1778 = vmatpush.bf16.msra.mxu0 0
      %1779 = vmatpush.bf16.msra.mxu0 %v1755
      %1780 = vmatpush.bf16.msra.mxu0 %v1754
      %1781 = vmatpush.bf16.msra.mxu0 %v1753
      %1782 = vmatpush.bf16.msra.mxu0 %v1752
      %1783 = vmatmul.bf16.gmra.mxu0 %v1761
      %v1784 = vpop.f32.mrf.mxu0
      %v1785 = vadd.f32 0.0, %v1784
      %v1786 = vpop.f32.mrf.mxu0
      %v1787 = vadd.f32 0.0, %v1786
      %1788 = vmatmul.bf16.gmra.mxu0 %v1764
      %v1789 = vpop.f32.mrf.mxu0
      %v1790 = vadd.f32 0.0, %v1789
      %v1791 = vpop.f32.mrf.mxu0
      %v1792 = vadd.f32 0.0, %v1791
      %1793 = vmatmul.bf16.gmra.mxu0 %v1767
      %v1794 = vpop.f32.mrf.mxu0
      %v1795 = vadd.f32 0.0, %v1794
      %v1796 = vpop.f32.mrf.mxu0
      %v1797 = vadd.f32 0.0, %v1796
      %1798 = vmatmul.bf16.gmra.mxu0 %v1770
      %v1799 = vpop.f32.mrf.mxu0
      %v1800 = vadd.f32 0.0, %v1799
      %v1801 = vpop.f32.mrf.mxu0
      %v1802 = vadd.f32 0.0, %v1801
      %1803 = vmatmul.bf16.gmra.mxu0 %v1773
      %v1804 = vpop.f32.mrf.mxu0
      %v1805 = vadd.f32 0.0, %v1804
      %v1806 = vpop.f32.mrf.mxu0
      %v1807 = vadd.f32 0.0, %v1806
      %1808 = vdwg.mxu0
      %v1809 = vadd.f32 %v1702, %v1785
      %v1810 = vadd.f32 %v1703, %v1787
      %v1811 = vadd.f32 %v1704, %v1790
      %v1812 = vadd.f32 %v1705, %v1792
      %v1813 = vadd.f32 %v1706, %v1795
      %v1814 = vadd.f32 %v1707, %v1797
      %v1815 = vadd.f32 %v1708, %v1800
      %v1816 = vadd.f32 %v1709, %v1802
      %v1817 = vadd.f32 %v1710, %v1805
      %v1818 = vadd.f32 %v1711, %v1807
      %v1819 = vld [vmem:[#allocation2 + $0x14] sm:$0xff]
      %v1820 = vld [vmem:[#allocation2 + $0x1c] sm:$0xff]
      %v1821 = vld [vmem:[#allocation2 + $0x24] sm:$0xff]
      %v1822 = vld [vmem:[#allocation2 + $0x2c] sm:$0xff]
      %v1823 = vld [vmem:[#allocation2 + $0x34] sm:$0xff]
      %v1824 = vld [vmem:[#allocation2 + $0x3c] sm:$0xff]
      %v1825 = vld [vmem:[#allocation2 + $0x44] sm:$0xff]
      %v1826 = vld [vmem:[#allocation2 + $0x4c] sm:$0xff]
      %v1827 = vld [vmem:[#allocation2 + $0x54] sm:$0xff]
      %v1828 = vld [vmem:[#allocation2 + $0x5c] sm:$0xff]
      %v1829 = vpack.c.bf16 %v1820, %v1819
      %v1830 = vpack.c.bf16 %v1822, %v1821
      %v1831 = vpack.c.bf16 %v1824, %v1823
      %v1832 = vpack.c.bf16 %v1826, %v1825
      %v1833 = vpack.c.bf16 %v1828, %v1827
      %s1834 = scalar_lea.vmem %s3, 192
      %v1835 = vld [vmem:[%s1834] sm:$0xf]
      %v1836 = vld [vmem:[%s1834 + $0x4] sm:$0xf]
      %v1837 = vld [vmem:[%s1834 + $0x8] sm:$0xf]
      %v1838 = vld [vmem:[%s1834 + $0xc] sm:$0xf]
      %v1839 = vld [vmem:[%s1834 + $0x10] sm:$0xf]
      %v1840 = vld [vmem:[%s1834 + $0x14] sm:$0xf]
      %v1841 = vld [vmem:[%s1834 + $0x18] sm:$0xf]
      %v1842 = vld [vmem:[%s1834 + $0x1c] sm:$0xf]
      %v1851 = vunpack.c.l.b16 %v1835
      %v1852 = vunpack.c.l.b16 %v1836
      %v1853 = vunpack.c.l.b16 %v1837
      %v1854 = vunpack.c.l.b16 %v1838
      %v1855 = vunpack.c.l.b16 %v1839
      %v1856 = vunpack.c.l.b16 %v1840
      %v1857 = vunpack.c.l.b16 %v1841
      %v1858 = vunpack.c.l.b16 %v1842
      %v1859 = vpack.c.b16 %v1852, %v1851
      %v1860 = vpack.c.b16 %v1854, %v1853
      %v1861 = vpack.c.b16 %v1856, %v1855
      %v1862 = vpack.c.b16 %v1858, %v1857
      %v1868 = vsel %vm1173, %v1829, 0
      %v1871 = vsel %vm1173, %v1830, 0
      %v1874 = vsel %vm1173, %v1831, 0
      %v1877 = vsel %vm1173, %v1832, 0
      %v1880 = vsel %vm1173, %v1833, 0
      %1882 = vmatpush.bf16.msra.mxu0 0
      %1883 = vmatpush.bf16.msra.mxu0 0
      %1884 = vmatpush.bf16.msra.mxu0 0
      %1885 = vmatpush.bf16.msra.mxu0 0
      %1886 = vmatpush.bf16.msra.mxu0 %v1862
      %1887 = vmatpush.bf16.msra.mxu0 %v1861
      %1888 = vmatpush.bf16.msra.mxu0 %v1860
      %1889 = vmatpush.bf16.msra.mxu0 %v1859
      %1890 = vmatmul.bf16.gmra.mxu0 %v1868
      %v1891 = vpop.f32.mrf.mxu0
      %v1892 = vadd.f32 0.0, %v1891
      %v1893 = vpop.f32.mrf.mxu0
      %v1894 = vadd.f32 0.0, %v1893
      %1895 = vmatmul.bf16.gmra.mxu0 %v1871
      %v1896 = vpop.f32.mrf.mxu0
      %v1897 = vadd.f32 0.0, %v1896
      %v1898 = vpop.f32.mrf.mxu0
      %v1899 = vadd.f32 0.0, %v1898
      %1900 = vmatmul.bf16.gmra.mxu0 %v1874
      %v1901 = vpop.f32.mrf.mxu0
      %v1902 = vadd.f32 0.0, %v1901
      %v1903 = vpop.f32.mrf.mxu0
      %v1904 = vadd.f32 0.0, %v1903
      %1905 = vmatmul.bf16.gmra.mxu0 %v1877
      %v1906 = vpop.f32.mrf.mxu0
      %v1907 = vadd.f32 0.0, %v1906
      %v1908 = vpop.f32.mrf.mxu0
      %v1909 = vadd.f32 0.0, %v1908
      %1910 = vmatmul.bf16.gmra.mxu0 %v1880
      %v1911 = vpop.f32.mrf.mxu0
      %v1912 = vadd.f32 0.0, %v1911
      %v1913 = vpop.f32.mrf.mxu0
      %v1914 = vadd.f32 0.0, %v1913
      %1915 = vdwg.mxu0
      %v1916 = vadd.f32 %v1809, %v1892
      %v1917 = vadd.f32 %v1810, %v1894
      %v1918 = vadd.f32 %v1811, %v1897
      %v1919 = vadd.f32 %v1812, %v1899
      %v1920 = vadd.f32 %v1813, %v1902
      %v1921 = vadd.f32 %v1814, %v1904
      %v1922 = vadd.f32 %v1815, %v1907
      %v1923 = vadd.f32 %v1816, %v1909
      %v1924 = vadd.f32 %v1817, %v1912
      %v1925 = vadd.f32 %v1818, %v1914
      %v1926 = vld [vmem:[#allocation2 + $0x15] sm:$0xff]
      %v1927 = vld [vmem:[#allocation2 + $0x1d] sm:$0xff]
      %v1928 = vld [vmem:[#allocation2 + $0x25] sm:$0xff]
      %v1929 = vld [vmem:[#allocation2 + $0x2d] sm:$0xff]
      %v1930 = vld [vmem:[#allocation2 + $0x35] sm:$0xff]
      %v1931 = vld [vmem:[#allocation2 + $0x3d] sm:$0xff]
      %v1932 = vld [vmem:[#allocation2 + $0x45] sm:$0xff]
      %v1933 = vld [vmem:[#allocation2 + $0x4d] sm:$0xff]
      %v1934 = vld [vmem:[#allocation2 + $0x55] sm:$0xff]
      %v1935 = vld [vmem:[#allocation2 + $0x5d] sm:$0xff]
      %v1936 = vpack.c.bf16 %v1927, %v1926
      %v1937 = vpack.c.bf16 %v1929, %v1928
      %v1938 = vpack.c.bf16 %v1931, %v1930
      %v1939 = vpack.c.bf16 %v1933, %v1932
      %v1940 = vpack.c.bf16 %v1935, %v1934
      %s1941 = scalar_lea.vmem %s3, 224
      %v1942 = vld [vmem:[%s1941] sm:$0xf]
      %v1943 = vld [vmem:[%s1941 + $0x4] sm:$0xf]
      %v1944 = vld [vmem:[%s1941 + $0x8] sm:$0xf]
      %v1945 = vld [vmem:[%s1941 + $0xc] sm:$0xf]
      %v1946 = vld [vmem:[%s1941 + $0x10] sm:$0xf]
      %v1947 = vld [vmem:[%s1941 + $0x14] sm:$0xf]
      %v1948 = vld [vmem:[%s1941 + $0x18] sm:$0xf]
      %v1949 = vld [vmem:[%s1941 + $0x1c] sm:$0xf]
      %v1958 = vunpack.c.l.b16 %v1942
      %v1959 = vunpack.c.l.b16 %v1943
      %v1960 = vunpack.c.l.b16 %v1944
      %v1961 = vunpack.c.l.b16 %v1945
      %v1962 = vunpack.c.l.b16 %v1946
      %v1963 = vunpack.c.l.b16 %v1947
      %v1964 = vunpack.c.l.b16 %v1948
      %v1965 = vunpack.c.l.b16 %v1949
      %v1966 = vpack.c.b16 %v1959, %v1958
      %v1967 = vpack.c.b16 %v1961, %v1960
      %v1968 = vpack.c.b16 %v1963, %v1962
      %v1969 = vpack.c.b16 %v1965, %v1964
      %v1975 = vsel %vm1173, %v1936, 0
      %v1978 = vsel %vm1173, %v1937, 0
      %v1981 = vsel %vm1173, %v1938, 0
      %v1984 = vsel %vm1173, %v1939, 0
      %v1987 = vsel %vm1173, %v1940, 0
      %1989 = vmatpush.bf16.msra.mxu0 0
      %1990 = vmatpush.bf16.msra.mxu0 0
      %1991 = vmatpush.bf16.msra.mxu0 0
      %1992 = vmatpush.bf16.msra.mxu0 0
      %1993 = vmatpush.bf16.msra.mxu0 %v1969
      %1994 = vmatpush.bf16.msra.mxu0 %v1968
      %1995 = vmatpush.bf16.msra.mxu0 %v1967
      %1996 = vmatpush.bf16.msra.mxu0 %v1966
      %1997 = vmatmul.bf16.gmra.mxu0 %v1975
      %v1998 = vpop.f32.mrf.mxu0
      %v1999 = vadd.f32 0.0, %v1998
      %v2000 = vpop.f32.mrf.mxu0
      %v2001 = vadd.f32 0.0, %v2000
      %2002 = vmatmul.bf16.gmra.mxu0 %v1978
      %v2003 = vpop.f32.mrf.mxu0
      %v2004 = vadd.f32 0.0, %v2003
      %v2005 = vpop.f32.mrf.mxu0
      %v2006 = vadd.f32 0.0, %v2005
      %2007 = vmatmul.bf16.gmra.mxu0 %v1981
      %v2008 = vpop.f32.mrf.mxu0
      %v2009 = vadd.f32 0.0, %v2008
      %v2010 = vpop.f32.mrf.mxu0
      %v2011 = vadd.f32 0.0, %v2010
      %2012 = vmatmul.bf16.gmra.mxu0 %v1984
      %v2013 = vpop.f32.mrf.mxu0
      %v2014 = vadd.f32 0.0, %v2013
      %v2015 = vpop.f32.mrf.mxu0
      %v2016 = vadd.f32 0.0, %v2015
      %2017 = vmatmul.bf16.gmra.mxu0 %v1987
      %v2018 = vpop.f32.mrf.mxu0
      %v2019 = vadd.f32 0.0, %v2018
      %v2020 = vpop.f32.mrf.mxu0
      %v2021 = vadd.f32 0.0, %v2020
      %2022 = vdwg.mxu0
      %v2023 = vadd.f32 %v1916, %v1999
      %v2024 = vadd.f32 %v1917, %v2001
      %v2025 = vadd.f32 %v1918, %v2004
      %v2026 = vadd.f32 %v1919, %v2006
      %v2027 = vadd.f32 %v1920, %v2009
      %v2028 = vadd.f32 %v1921, %v2011
      %v2029 = vadd.f32 %v1922, %v2014
      %v2030 = vadd.f32 %v1923, %v2016
      %v2031 = vadd.f32 %v1924, %v2019
      %v2032 = vadd.f32 %v1925, %v2021
      %v2033 = vld [vmem:[#allocation2 + $0x16] sm:$0xff]
      %v2034 = vld [vmem:[#allocation2 + $0x1e] sm:$0xff]
      %v2035 = vld [vmem:[#allocation2 + $0x26] sm:$0xff]
      %v2036 = vld [vmem:[#allocation2 + $0x2e] sm:$0xff]
      %v2037 = vld [vmem:[#allocation2 + $0x36] sm:$0xff]
      %v2038 = vld [vmem:[#allocation2 + $0x3e] sm:$0xff]
      %v2039 = vld [vmem:[#allocation2 + $0x46] sm:$0xff]
      %v2040 = vld [vmem:[#allocation2 + $0x4e] sm:$0xff]
      %v2041 = vld [vmem:[#allocation2 + $0x56] sm:$0xff]
      %v2042 = vld [vmem:[#allocation2 + $0x5e] sm:$0xff]
      %v2043 = vpack.c.bf16 %v2034, %v2033
      %v2044 = vpack.c.bf16 %v2036, %v2035
      %v2045 = vpack.c.bf16 %v2038, %v2037
      %v2046 = vpack.c.bf16 %v2040, %v2039
      %v2047 = vpack.c.bf16 %v2042, %v2041
      %s2048 = scalar_lea.vmem %s3, 256
      %v2049 = vld [vmem:[%s2048] sm:$0xf]
      %v2050 = vld [vmem:[%s2048 + $0x4] sm:$0xf]
      %v2051 = vld [vmem:[%s2048 + $0x8] sm:$0xf]
      %v2052 = vld [vmem:[%s2048 + $0xc] sm:$0xf]
      %v2053 = vld [vmem:[%s2048 + $0x10] sm:$0xf]
      %v2054 = vld [vmem:[%s2048 + $0x14] sm:$0xf]
      %v2055 = vld [vmem:[%s2048 + $0x18] sm:$0xf]
      %v2056 = vld [vmem:[%s2048 + $0x1c] sm:$0xf]
      %v2065 = vunpack.c.l.b16 %v2049
      %v2066 = vunpack.c.l.b16 %v2050
      %v2067 = vunpack.c.l.b16 %v2051
      %v2068 = vunpack.c.l.b16 %v2052
      %v2069 = vunpack.c.l.b16 %v2053
      %v2070 = vunpack.c.l.b16 %v2054
      %v2071 = vunpack.c.l.b16 %v2055
      %v2072 = vunpack.c.l.b16 %v2056
      %v2073 = vpack.c.b16 %v2066, %v2065
      %v2074 = vpack.c.b16 %v2068, %v2067
      %v2075 = vpack.c.b16 %v2070, %v2069
      %v2076 = vpack.c.b16 %v2072, %v2071
      %v2082 = vsel %vm1173, %v2043, 0
      %v2085 = vsel %vm1173, %v2044, 0
      %v2088 = vsel %vm1173, %v2045, 0
      %v2091 = vsel %vm1173, %v2046, 0
      %v2094 = vsel %vm1173, %v2047, 0
      %2096 = vmatpush.bf16.msra.mxu0 0
      %2097 = vmatpush.bf16.msra.mxu0 0
      %2098 = vmatpush.bf16.msra.mxu0 0
      %2099 = vmatpush.bf16.msra.mxu0 0
      %2100 = vmatpush.bf16.msra.mxu0 %v2076
      %2101 = vmatpush.bf16.msra.mxu0 %v2075
      %2102 = vmatpush.bf16.msra.mxu0 %v2074
      %2103 = vmatpush.bf16.msra.mxu0 %v2073
      %2104 = vmatmul.bf16.gmra.mxu0 %v2082
      %v2105 = vpop.f32.mrf.mxu0
      %v2106 = vadd.f32 0.0, %v2105
      %v2107 = vpop.f32.mrf.mxu0
      %v2108 = vadd.f32 0.0, %v2107
      %2109 = vmatmul.bf16.gmra.mxu0 %v2085
      %v2110 = vpop.f32.mrf.mxu0
      %v2111 = vadd.f32 0.0, %v2110
      %v2112 = vpop.f32.mrf.mxu0
      %v2113 = vadd.f32 0.0, %v2112
      %2114 = vmatmul.bf16.gmra.mxu0 %v2088
      %v2115 = vpop.f32.mrf.mxu0
      %v2116 = vadd.f32 0.0, %v2115
      %v2117 = vpop.f32.mrf.mxu0
      %v2118 = vadd.f32 0.0, %v2117
      %2119 = vmatmul.bf16.gmra.mxu0 %v2091
      %v2120 = vpop.f32.mrf.mxu0
      %v2121 = vadd.f32 0.0, %v2120
      %v2122 = vpop.f32.mrf.mxu0
      %v2123 = vadd.f32 0.0, %v2122
      %2124 = vmatmul.bf16.gmra.mxu0 %v2094
      %v2125 = vpop.f32.mrf.mxu0
      %v2126 = vadd.f32 0.0, %v2125
      %v2127 = vpop.f32.mrf.mxu0
      %v2128 = vadd.f32 0.0, %v2127
      %2129 = vdwg.mxu0
      %v2130 = vadd.f32 %v2023, %v2106
      %v2131 = vadd.f32 %v2024, %v2108
      %v2132 = vadd.f32 %v2025, %v2111
      %v2133 = vadd.f32 %v2026, %v2113
      %v2134 = vadd.f32 %v2027, %v2116
      %v2135 = vadd.f32 %v2028, %v2118
      %v2136 = vadd.f32 %v2029, %v2121
      %v2137 = vadd.f32 %v2030, %v2123
      %v2138 = vadd.f32 %v2031, %v2126
      %v2139 = vadd.f32 %v2032, %v2128
      %v2140 = vld [vmem:[%s4] sm:$0x1]
      %v2142 = vperm.slane %v2140, 0
      %v2144 = vadd.f32 %v2130, %v2142
      %v2145 = vadd.f32 %v2131, %v2142
      %v2146 = vadd.f32 %v2132, %v2142
      %v2147 = vadd.f32 %v2133, %v2142
      %v2148 = vadd.f32 %v2134, %v2142
      %v2149 = vadd.f32 %v2135, %v2142
      %v2150 = vadd.f32 %v2136, %v2142
      %v2151 = vadd.f32 %v2137, %v2142
      %v2152 = vadd.f32 %v2138, %v2142
      %v2153 = vadd.f32 %v2139, %v2142
      %v2154 = vmax.f32 %v2144, 0.0
      %v2155 = vmax.f32 %v2145, 0.0
      %v2156 = vmax.f32 %v2146, 0.0
      %v2157 = vmax.f32 %v2147, 0.0
      %v2158 = vmax.f32 %v2148, 0.0
      %v2159 = vmax.f32 %v2149, 0.0
      %v2160 = vmax.f32 %v2150, 0.0
      %v2161 = vmax.f32 %v2151, 0.0
      %v2162 = vmax.f32 %v2152, 0.0
      %v2163 = vmax.f32 %v2153, 0.0
      %2164 = vst.msk [vmem:[#allocation3] sm:$0xff] %vm1173, %v2154
      %2165 = vst.msk [vmem:[#allocation3 + $0x8] sm:$0xff] %vm1173, %v2155
      %2166 = vst.msk [vmem:[#allocation3 + $0x10] sm:$0xff] %vm1173, %v2156
      %2167 = vst.msk [vmem:[#allocation3 + $0x18] sm:$0xff] %vm1173, %v2157
      %2168 = vst.msk [vmem:[#allocation3 + $0x20] sm:$0xff] %vm1173, %v2158
      %2169 = vst.msk [vmem:[#allocation3 + $0x28] sm:$0xff] %vm1173, %v2159
      %2170 = vst.msk [vmem:[#allocation3 + $0x30] sm:$0xff] %vm1173, %v2160
      %2171 = vst.msk [vmem:[#allocation3 + $0x38] sm:$0xff] %vm1173, %v2161
      %2172 = vst.msk [vmem:[#allocation3 + $0x40] sm:$0xff] %vm1173, %v2162
      %2173 = vst.msk [vmem:[#allocation3 + $0x48] sm:$0xff] %vm1173, %v2163
      %v2174 = vld [vmem:[#allocation3] sm:$0xff]
      %v2175 = vld [vmem:[#allocation3 + $0x8] sm:$0xff]
      %v2176 = vld [vmem:[#allocation3 + $0x10] sm:$0xff]
      %v2177 = vld [vmem:[#allocation3 + $0x18] sm:$0xff]
      %v2178 = vld [vmem:[#allocation3 + $0x20] sm:$0xff]
      %v2179 = vld [vmem:[#allocation3 + $0x28] sm:$0xff]
      %v2180 = vld [vmem:[#allocation3 + $0x30] sm:$0xff]
      %v2181 = vld [vmem:[#allocation3 + $0x38] sm:$0xff]
      %v2182 = vld [vmem:[#allocation3 + $0x40] sm:$0x1f]
      %v2183 = vld [vmem:[#allocation3 + $0x1] sm:$0xff]
      %v2184 = vld [vmem:[#allocation3 + $0x9] sm:$0xff]
      %v2185 = vld [vmem:[#allocation3 + $0x11] sm:$0xff]
      %v2186 = vld [vmem:[#allocation3 + $0x19] sm:$0xff]
      %v2187 = vld [vmem:[#allocation3 + $0x21] sm:$0xff]
      %v2188 = vld [vmem:[#allocation3 + $0x29] sm:$0xff]
      %v2189 = vld [vmem:[#allocation3 + $0x31] sm:$0xff]
      %v2190 = vld [vmem:[#allocation3 + $0x39] sm:$0xff]
      %v2191 = vld [vmem:[#allocation3 + $0x41] sm:$0x1f]
      %v2192 = vmax.f32 %v2174, %v2183
      %v2193 = vmax.f32 %v2175, %v2184
      %v2194 = vmax.f32 %v2176, %v2185
      %v2195 = vmax.f32 %v2177, %v2186
      %v2196 = vmax.f32 %v2178, %v2187
      %v2197 = vmax.f32 %v2179, %v2188
      %v2198 = vmax.f32 %v2180, %v2189
      %v2199 = vmax.f32 %v2181, %v2190
      %v2200 = vmax.f32 %v2182, %v2191
      %v2201 = vld [vmem:[#allocation3 + $0xa] sm:$0xff]
      %v2202 = vld [vmem:[#allocation3 + $0x12] sm:$0xff]
      %v2203 = vld [vmem:[#allocation3 + $0x1a] sm:$0xff]
      %v2204 = vld [vmem:[#allocation3 + $0x22] sm:$0xff]
      %v2205 = vld [vmem:[#allocation3 + $0x2a] sm:$0xff]
      %v2206 = vld [vmem:[#allocation3 + $0x32] sm:$0xff]
      %v2207 = vld [vmem:[#allocation3 + $0x3a] sm:$0xff]
      %v2208 = vld [vmem:[#allocation3 + $0x42] sm:$0xff]
      %v2209 = vld [vmem:[#allocation3 + $0x4a] sm:$0x1f]
      %v2210 = vld [vmem:[#allocation3 + $0xb] sm:$0xff]
      %v2211 = vld [vmem:[#allocation3 + $0x13] sm:$0xff]
      %v2212 = vld [vmem:[#allocation3 + $0x1b] sm:$0xff]
      %v2213 = vld [vmem:[#allocation3 + $0x23] sm:$0xff]
      %v2214 = vld [vmem:[#allocation3 + $0x2b] sm:$0xff]
      %v2215 = vld [vmem:[#allocation3 + $0x33] sm:$0xff]
      %v2216 = vld [vmem:[#allocation3 + $0x3b] sm:$0xff]
      %v2217 = vld [vmem:[#allocation3 + $0x43] sm:$0xff]
      %v2218 = vld [vmem:[#allocation3 + $0x4b] sm:$0x1f]
      %v2219 = vmax.f32 %v2201, %v2210
      %v2220 = vmax.f32 %v2202, %v2211
      %v2221 = vmax.f32 %v2203, %v2212
      %v2222 = vmax.f32 %v2204, %v2213
      %v2223 = vmax.f32 %v2205, %v2214
      %v2224 = vmax.f32 %v2206, %v2215
      %v2225 = vmax.f32 %v2207, %v2216
      %v2226 = vmax.f32 %v2208, %v2217
      %v2227 = vmax.f32 %v2209, %v2218
      %v2228 = vmax.f32 %v2192, %v2219
      %v2229 = vmax.f32 %v2193, %v2220
      %v2230 = vmax.f32 %v2194, %v2221
      %v2231 = vmax.f32 %v2195, %v2222
      %v2232 = vmax.f32 %v2196, %v2223
      %v2233 = vmax.f32 %v2197, %v2224
      %v2234 = vmax.f32 %v2198, %v2225
      %v2235 = vmax.f32 %v2199, %v2226
      %v2236 = vmax.f32 %v2200, %v2227
      %v2237 = vld [vmem:[%s6] sm:$0xff]
      %v2238 = vld [vmem:[%s6 + $0x8] sm:$0xff]
      %v2239 = vld [vmem:[%s6 + $0x10] sm:$0xff]
      %v2240 = vld [vmem:[%s6 + $0x18] sm:$0xff]
      %v2241 = vld [vmem:[%s6 + $0x20] sm:$0x3f]
      %vm2242 = vcmask 564224
      %v2244 = vsel %vm2242, %v2237, 0
      %v2247 = vsel %vm2242, %v2238, 0
      %v2250 = vsel %vm2242, %v2239, 0
      %v2253 = vsel %vm2242, %v2240, 0
      %v2256 = vsel %vm2242, %v2241, 0
      %vm2258 = vcmask 1044480
      %v2260 = vsel %vm2258, %v2236, 0
      %2262 = vmatpush.msra.mxu0 0.0
      %2263 = vmatpush.msra.mxu0 0.0
      %2264 = vmatpush.msra.mxu0 0.0
      %2265 = vmatpush.msra.mxu0 0.0
      %2266 = vmatpush.msra.mxu0 0.0
      %2267 = vmatpush.msra.mxu0 0.0
      %2268 = vmatpush.msra.mxu0 0.0
      %2269 = vmatpush.msra.mxu0 %v2260
      %2270 = vmatpush.msra.mxu0 %v2235
      %2271 = vmatpush.msra.mxu0 %v2234
      %2272 = vmatpush.msra.mxu0 %v2233
      %2273 = vmatpush.msra.mxu0 %v2232
      %2274 = vmatpush.msra.mxu0 %v2231
      %2275 = vmatpush.msra.mxu0 %v2230
      %2276 = vmatpush.msra.mxu0 %v2229
      %2277 = vmatpush.msra.mxu0 %v2228
      %2278 = vmatmul.f32.gmra.mxu0 %v2244
      %v2279 = vpop.f32.mrf.mxu0
      %v2280 = vadd.f32 0.0, %v2279
      %2281 = vmatmul.f32.gmra.mxu0 %v2247
      %v2282 = vpop.f32.mrf.mxu0
      %v2283 = vadd.f32 0.0, %v2282
      %2284 = vmatmul.f32.gmra.mxu0 %v2250
      %v2285 = vpop.f32.mrf.mxu0
      %v2286 = vadd.f32 0.0, %v2285
      %2287 = vmatmul.f32.gmra.mxu0 %v2253
      %v2288 = vpop.f32.mrf.mxu0
      %v2289 = vadd.f32 0.0, %v2288
      %2290 = vmatmul.f32.gmra.mxu0 %v2256
      %v2291 = vpop.f32.mrf.mxu0
      %v2292 = vadd.f32 0.0, %v2291
      %2293 = vdwg.mxu0
      %2294 = vst.msk [vmem:[%s278] sm:$0xff] %vm1173, %v2280
      %2295 = vst.msk [vmem:[%s278 + $0x8] sm:$0xff] %vm1173, %v2283
      %2296 = vst.msk [vmem:[%s278 + $0x10] sm:$0xff] %vm1173, %v2286
      %2297 = vst.msk [vmem:[%s278 + $0x18] sm:$0xff] %vm1173, %v2289
      %2298 = vst.msk [vmem:[%s278 + $0x20] sm:$0x3f] %vm1186, %v2292
      %p2299 = scmp.lt.s32.totalorder %s18, 1
      %s2300 = scalar_select %p2299, %s18, 1
      %s2301 = smul.addr %s2300, 5
      %s2302 = smul.addr %s2301, 8
      %s2303 = scalar_lea.vmem %s7, %s2302
      // Predicated region
      $region49: #{forward.5} parent=47 // pred_check
        %p2304 = pneg %p188
      $region50: #{forward.5} parent=47 // pred_check_branch
        %2306 = sbr.rel (%p2304) target = $region52
      $region51: #{forward.5} parent=47 // pred_region
        _
      $region52: #{forward.5} parent=47 // pred_fallthru
        _
    $region48: #{forward.5} parent=5 // pred_fallthru
      _
    %p2307 = scmp.le.s32.totalorder 2, %s13
    // Predicated region
    $region53: #{forward.5} parent=5 // pred_check
      %p2308 = pneg %p2307
    $region54: #{forward.5} parent=5 // pred_check_branch
      %2310 = sbr.rel (%p2308) target = $region56
    $region55: #{forward.5} parent=5 // pred_region
      %s2311 = ssub.s32 %s13, 2
      // Predicated region
      $region57: #{forward.5} parent=55 // pred_check
        %p2312 = pneg %p194
      $region58: #{forward.5} parent=55 // pred_check_branch
        %2314 = sbr.rel (%p2312) target = $region60
      $region59: #{forward.5} parent=55 // pred_region
        %p2315 = scmp.lt.s32.totalorder %s19, 1
        %s2316 = scalar_select %p2315, %s19, 1
        %s2317 = smul.addr %s2316, 5
        %s2318 = smul.addr %s2317, 8
        %s2319 = scalar_lea.vmem %s7, %s2318
      $region60: #{forward.5} parent=55 // pred_fallthru
        _
    $region56: #{forward.5} parent=5 // pred_fallthru
      _
  $region6: #{forward.5} parent=0 // loop_footer
    %s17 = sadd.s32 1, %s13
  $region7: #{forward.5} parent=0 // loop_footer_branch
    %12 = sbr.rel target = $region3
  $region8: #{forward.5} parent=0 // loop_exit
    _

// kernel: forward.7
$region0: #{forward.7}
  #allocation0 [shape = 'u32[]', space=smem, size = 0x4, offset = 0x4, fixed_abs, tag = 'smem constant byte address 0x4 - core index']
  #allocation1 [shape = 'u32[72,128]{1,0:T(1,128)}', space=vmem, size = 0x9000, scoped, tag = 'internal scratch']
  %s0 = inlined_call_operand.vmem [shape: bf16[2,512], index: 0, kind: input, shape index: {}]
  %s1 = inlined_call_operand.vmem [shape: bf16[512,256], index: 1, kind: input, shape index: {}]
  %s2 = inlined_call_operand.vmem [shape: f32[1,256], index: 2, kind: input, shape index: {}]
  %s3 = inlined_call_operand.vmem [shape: bf16[256,128], index: 3, kind: input, shape index: {}]
  %s4 = inlined_call_operand.vmem [shape: f32[1,128], index: 4, kind: input, shape index: {}]
  %s5 = inlined_call_operand.vmem [shape: f32[2,128], index: 5, kind: output, shape index: {}]
  %s6 = sld [smem:[#allocation0]]
  $region30: #{forward.7} parent=0
    _
  %s8 = ssub.s32 1, %s6
  %s9 = scalar_select 0, %s8, %s6
  // Predicated region
  $region2: #{forward.7} parent=0 // pred_check
    _
  $region3: #{forward.7} parent=0 // pred_check_branch
    %11 = sbr.rel (0) target = $region5
  $region4: #{forward.7} parent=0 // pred_region
    _
  $region5: #{forward.7} parent=0 // pred_fallthru
    _
  // Predicated region
  $region6: #{forward.7} parent=0 // pred_check
    _
  $region7: #{forward.7} parent=0 // pred_check_branch
    %13 = sbr.rel (0) target = $region9
  $region8: #{forward.7} parent=0 // pred_region
    _
  $region9: #{forward.7} parent=0 // pred_fallthru
    _
  // Predicated region
  $region10: #{forward.7} parent=0 // pred_check
    _
  $region11: #{forward.7} parent=0 // pred_check_branch
    %15 = sbr.rel (0) target = $region13
  $region12: #{forward.7} parent=0 // pred_region
    _
  $region13: #{forward.7} parent=0 // pred_fallthru
    _
  // Predicated region
  $region14: #{forward.7} parent=0 // pred_check
    _
  $region15: #{forward.7} parent=0 // pred_check_branch
    %17 = sbr.rel (0) target = $region17
  $region16: #{forward.7} parent=0 // pred_region
    _
  $region17: #{forward.7} parent=0 // pred_fallthru
    _
  // Predicated region
  $region18: #{forward.7} parent=0 // pred_check
    _
  $region19: #{forward.7} parent=0 // pred_check_branch
    %19 = sbr.rel (0) target = $region21
  $region20: #{forward.7} parent=0 // pred_region
    _
  $region21: #{forward.7} parent=0 // pred_fallthru
    _
  %v20 = vld [vmem:[%s0] sm:$0xf]
  %v21 = vld [vmem:[%s1] sm:$0xff]
  %v22 = vld [vmem:[%s1 + $0x8] sm:$0xff]
  %v23 = vld [vmem:[%s1 + $0x10] sm:$0xff]
  %v24 = vld [vmem:[%s1 + $0x18] sm:$0xff]
  %v25 = vld [vmem:[%s1 + $0x20] sm:$0xff]
  %v26 = vld [vmem:[%s1 + $0x28] sm:$0xff]
  %v27 = vld [vmem:[%s1 + $0x30] sm:$0xff]
  %v28 = vld [vmem:[%s1 + $0x38] sm:$0xff]
  %v29 = vld [vmem:[%s1 + $0x40] sm:$0xff]
  %v30 = vld [vmem:[%s1 + $0x48] sm:$0xff]
  %v31 = vld [vmem:[%s1 + $0x50] sm:$0xff]
  %v32 = vld [vmem:[%s1 + $0x58] sm:$0xff]
  %v33 = vld [vmem:[%s1 + $0x60] sm:$0xff]
  %v34 = vld [vmem:[%s1 + $0x68] sm:$0xff]
  %v35 = vld [vmem:[%s1 + $0x70] sm:$0xff]
  %v36 = vld [vmem:[%s1 + $0x78] sm:$0xff]
  %v37 = vld [vmem:[%s1 + $0x80] sm:$0xff]
  %v38 = vld [vmem:[%s1 + $0x88] sm:$0xff]
  %v39 = vld [vmem:[%s1 + $0x90] sm:$0xff]
  %v40 = vld [vmem:[%s1 + $0x98] sm:$0xff]
  %v41 = vld [vmem:[%s1 + $0xa0] sm:$0xff]
  %v42 = vld [vmem:[%s1 + $0xa8] sm:$0xff]
  %v43 = vld [vmem:[%s1 + $0xb0] sm:$0xff]
  %v44 = vld [vmem:[%s1 + $0xb8] sm:$0xff]
  %v45 = vld [vmem:[%s1 + $0xc0] sm:$0xff]
  %v46 = vld [vmem:[%s1 + $0xc8] sm:$0xff]
  %v47 = vld [vmem:[%s1 + $0xd0] sm:$0xff]
  %v48 = vld [vmem:[%s1 + $0xd8] sm:$0xff]
  %v49 = vld [vmem:[%s1 + $0xe0] sm:$0xff]
  %v50 = vld [vmem:[%s1 + $0xe8] sm:$0xff]
  %v51 = vld [vmem:[%s1 + $0xf0] sm:$0xff]
  %v52 = vld [vmem:[%s1 + $0xf8] sm:$0xff]
  %v53 = vld [vmem:[%s1 + $0x100] sm:$0xff]
  %v54 = vld [vmem:[%s1 + $0x108] sm:$0xff]
  %v55 = vld [vmem:[%s1 + $0x110] sm:$0xff]
  %v56 = vld [vmem:[%s1 + $0x118] sm:$0xff]
  %v57 = vld [vmem:[%s1 + $0x120] sm:$0xff]
  %v58 = vld [vmem:[%s1 + $0x128] sm:$0xff]
  %v59 = vld [vmem:[%s1 + $0x130] sm:$0xff]
  %v60 = vld [vmem:[%s1 + $0x138] sm:$0xff]
  %v61 = vld [vmem:[%s1 + $0x140] sm:$0xff]
  %v62 = vld [vmem:[%s1 + $0x148] sm:$0xff]
  %v63 = vld [vmem:[%s1 + $0x150] sm:$0xff]
  %v64 = vld [vmem:[%s1 + $0x158] sm:$0xff]
  %v65 = vld [vmem:[%s1 + $0x160] sm:$0xff]
  %v66 = vld [vmem:[%s1 + $0x168] sm:$0xff]
  %v67 = vld [vmem:[%s1 + $0x170] sm:$0xff]
  %v68 = vld [vmem:[%s1 + $0x178] sm:$0xff]
  %v69 = vld [vmem:[%s1 + $0x180] sm:$0xff]
  %v70 = vld [vmem:[%s1 + $0x188] sm:$0xff]
  %v71 = vld [vmem:[%s1 + $0x190] sm:$0xff]
  %v72 = vld [vmem:[%s1 + $0x198] sm:$0xff]
  %v73 = vld [vmem:[%s1 + $0x1a0] sm:$0xff]
  %v74 = vld [vmem:[%s1 + $0x1a8] sm:$0xff]
  %v75 = vld [vmem:[%s1 + $0x1b0] sm:$0xff]
  %v76 = vld [vmem:[%s1 + $0x1b8] sm:$0xff]
  %v77 = vld [vmem:[%s1 + $0x1c0] sm:$0xff]
  %v78 = vld [vmem:[%s1 + $0x1c8] sm:$0xff]
  %v79 = vld [vmem:[%s1 + $0x1d0] sm:$0xff]
  %v80 = vld [vmem:[%s1 + $0x1d8] sm:$0xff]
  %v81 = vld [vmem:[%s1 + $0x1e0] sm:$0xff]
  %v82 = vld [vmem:[%s1 + $0x1e8] sm:$0xff]
  %v83 = vld [vmem:[%s1 + $0x1f0] sm:$0xff]
  %v84 = vld [vmem:[%s1 + $0x1f8] sm:$0xff]
  %v85 = vld [vmem:[%s2] sm:$0x3]
  %v87 = vperm.slane %v85, 0
  %v88 = vperm.slane %v85, 1
  %92 = vst [vmem:[#allocation1] ss:$9 sm:$0xff] %v20
  %v93 = vld [vmem:[#allocation1] sm:$0xff]
  %v94 = vld [vmem:[#allocation1 + $0x9] sm:$0xff]
  %v95 = vld [vmem:[#allocation1 + $0x12] sm:$0xff]
  %v96 = vld [vmem:[#allocation1 + $0x1b] sm:$0xff]
  %v165 = vunpack.c.l.b16 %v21
  %v166 = vunpack.c.h.b16 %v21
  %v167 = vunpack.c.l.b16 %v22
  %v168 = vunpack.c.h.b16 %v22
  %v169 = vunpack.c.l.b16 %v23
  %v170 = vunpack.c.h.b16 %v23
  %v171 = vunpack.c.l.b16 %v24
  %v172 = vunpack.c.h.b16 %v24
  %v173 = vunpack.c.l.b16 %v25
  %v174 = vunpack.c.h.b16 %v25
  %v175 = vunpack.c.l.b16 %v26
  %v176 = vunpack.c.h.b16 %v26
  %v177 = vunpack.c.l.b16 %v27
  %v178 = vunpack.c.h.b16 %v27
  %v179 = vunpack.c.l.b16 %v28
  %v180 = vunpack.c.h.b16 %v28
  %v181 = vunpack.c.l.b16 %v29
  %v182 = vunpack.c.h.b16 %v29
  %v183 = vunpack.c.l.b16 %v30
  %v184 = vunpack.c.h.b16 %v30
  %v185 = vunpack.c.l.b16 %v31
  %v186 = vunpack.c.h.b16 %v31
  %v187 = vunpack.c.l.b16 %v32
  %v188 = vunpack.c.h.b16 %v32
  %v189 = vunpack.c.l.b16 %v33
  %v190 = vunpack.c.h.b16 %v33
  %v191 = vunpack.c.l.b16 %v34
  %v192 = vunpack.c.h.b16 %v34
  %v193 = vunpack.c.l.b16 %v35
  %v194 = vunpack.c.h.b16 %v35
  %v195 = vunpack.c.l.b16 %v36
  %v196 = vunpack.c.h.b16 %v36
  %v197 = vunpack.c.l.b16 %v37
  %v198 = vunpack.c.h.b16 %v37
  %v199 = vunpack.c.l.b16 %v38
  %v200 = vunpack.c.h.b16 %v38
  %v201 = vunpack.c.l.b16 %v39
  %v202 = vunpack.c.h.b16 %v39
  %v203 = vunpack.c.l.b16 %v40
  %v204 = vunpack.c.h.b16 %v40
  %v205 = vunpack.c.l.b16 %v41
  %v206 = vunpack.c.h.b16 %v41
  %v207 = vunpack.c.l.b16 %v42
  %v208 = vunpack.c.h.b16 %v42
  %v209 = vunpack.c.l.b16 %v43
  %v210 = vunpack.c.h.b16 %v43
  %v211 = vunpack.c.l.b16 %v44
  %v212 = vunpack.c.h.b16 %v44
  %v213 = vunpack.c.l.b16 %v45
  %v214 = vunpack.c.h.b16 %v45
  %v215 = vunpack.c.l.b16 %v46
  %v216 = vunpack.c.h.b16 %v46
  %v217 = vunpack.c.l.b16 %v47
  %v218 = vunpack.c.h.b16 %v47
  %v219 = vunpack.c.l.b16 %v48
  %v220 = vunpack.c.h.b16 %v48
  %v221 = vunpack.c.l.b16 %v49
  %v222 = vunpack.c.h.b16 %v49
  %v223 = vunpack.c.l.b16 %v50
  %v224 = vunpack.c.h.b16 %v50
  %v225 = vunpack.c.l.b16 %v51
  %v226 = vunpack.c.h.b16 %v51
  %v227 = vunpack.c.l.b16 %v52
  %v228 = vunpack.c.h.b16 %v52
  %v229 = vunpack.c.l.b16 %v53
  %v230 = vunpack.c.h.b16 %v53
  %v231 = vunpack.c.l.b16 %v54
  %v232 = vunpack.c.h.b16 %v54
  %v233 = vunpack.c.l.b16 %v55
  %v234 = vunpack.c.h.b16 %v55
  %v235 = vunpack.c.l.b16 %v56
  %v236 = vunpack.c.h.b16 %v56
  %v237 = vunpack.c.l.b16 %v57
  %v238 = vunpack.c.h.b16 %v57
  %v239 = vunpack.c.l.b16 %v58
  %v240 = vunpack.c.h.b16 %v58
  %v241 = vunpack.c.l.b16 %v59
  %v242 = vunpack.c.h.b16 %v59
  %v243 = vunpack.c.l.b16 %v60
  %v244 = vunpack.c.h.b16 %v60
  %v245 = vunpack.c.l.b16 %v61
  %v246 = vunpack.c.h.b16 %v61
  %v247 = vunpack.c.l.b16 %v62
  %v248 = vunpack.c.h.b16 %v62
  %v249 = vunpack.c.l.b16 %v63
  %v250 = vunpack.c.h.b16 %v63
  %v251 = vunpack.c.l.b16 %v64
  %v252 = vunpack.c.h.b16 %v64
  %v253 = vunpack.c.l.b16 %v65
  %v254 = vunpack.c.h.b16 %v65
  %v255 = vunpack.c.l.b16 %v66
  %v256 = vunpack.c.h.b16 %v66
  %v257 = vunpack.c.l.b16 %v67
  %v258 = vunpack.c.h.b16 %v67
  %v259 = vunpack.c.l.b16 %v68
  %v260 = vunpack.c.h.b16 %v68
  %v261 = vunpack.c.l.b16 %v69
  %v262 = vunpack.c.h.b16 %v69
  %v263 = vunpack.c.l.b16 %v70
  %v264 = vunpack.c.h.b16 %v70
  %v265 = vunpack.c.l.b16 %v71
  %v266 = vunpack.c.h.b16 %v71
  %v267 = vunpack.c.l.b16 %v72
  %v268 = vunpack.c.h.b16 %v72
  %v269 = vunpack.c.l.b16 %v73
  %v270 = vunpack.c.h.b16 %v73
  %v271 = vunpack.c.l.b16 %v74
  %v272 = vunpack.c.h.b16 %v74
  %v273 = vunpack.c.l.b16 %v75
  %v274 = vunpack.c.h.b16 %v75
  %v275 = vunpack.c.l.b16 %v76
  %v276 = vunpack.c.h.b16 %v76
  %v277 = vunpack.c.l.b16 %v77
  %v278 = vunpack.c.h.b16 %v77
  %v279 = vunpack.c.l.b16 %v78
  %v280 = vunpack.c.h.b16 %v78
  %v281 = vunpack.c.l.b16 %v79
  %v282 = vunpack.c.h.b16 %v79
  %v283 = vunpack.c.l.b16 %v80
  %v284 = vunpack.c.h.b16 %v80
  %v285 = vunpack.c.l.b16 %v81
  %v286 = vunpack.c.h.b16 %v81
  %v287 = vunpack.c.l.b16 %v82
  %v288 = vunpack.c.h.b16 %v82
  %v289 = vunpack.c.l.b16 %v83
  %v290 = vunpack.c.h.b16 %v83
  %v291 = vunpack.c.l.b16 %v84
  %v292 = vunpack.c.h.b16 %v84
  %v293 = vpack.c.b16 %v167, %v165
  %v294 = vpack.c.b16 %v168, %v166
  %v295 = vpack.c.b16 %v171, %v169
  %v296 = vpack.c.b16 %v172, %v170
  %v297 = vpack.c.b16 %v175, %v173
  %v298 = vpack.c.b16 %v176, %v174
  %v299 = vpack.c.b16 %v179, %v177
  %v300 = vpack.c.b16 %v180, %v178
  %v301 = vpack.c.b16 %v183, %v181
  %v302 = vpack.c.b16 %v184, %v182
  %v303 = vpack.c.b16 %v187, %v185
  %v304 = vpack.c.b16 %v188, %v186
  %v305 = vpack.c.b16 %v191, %v189
  %v306 = vpack.c.b16 %v192, %v190
  %v307 = vpack.c.b16 %v195, %v193
  %v308 = vpack.c.b16 %v196, %v194
  %v309 = vpack.c.b16 %v199, %v197
  %v310 = vpack.c.b16 %v200, %v198
  %v311 = vpack.c.b16 %v203, %v201
  %v312 = vpack.c.b16 %v204, %v202
  %v313 = vpack.c.b16 %v207, %v205
  %v314 = vpack.c.b16 %v208, %v206
  %v315 = vpack.c.b16 %v211, %v209
  %v316 = vpack.c.b16 %v212, %v210
  %v317 = vpack.c.b16 %v215, %v213
  %v318 = vpack.c.b16 %v216, %v214
  %v319 = vpack.c.b16 %v219, %v217
  %v320 = vpack.c.b16 %v220, %v218
  %v321 = vpack.c.b16 %v223, %v221
  %v322 = vpack.c.b16 %v224, %v222
  %v323 = vpack.c.b16 %v227, %v225
  %v324 = vpack.c.b16 %v228, %v226
  %v325 = vpack.c.b16 %v231, %v229
  %v326 = vpack.c.b16 %v232, %v230
  %v327 = vpack.c.b16 %v235, %v233
  %v328 = vpack.c.b16 %v236, %v234
  %v329 = vpack.c.b16 %v239, %v237
  %v330 = vpack.c.b16 %v240, %v238
  %v331 = vpack.c.b16 %v243, %v241
  %v332 = vpack.c.b16 %v244, %v242
  %v333 = vpack.c.b16 %v247, %v245
  %v334 = vpack.c.b16 %v248, %v246
  %v335 = vpack.c.b16 %v251, %v249
  %v336 = vpack.c.b16 %v252, %v250
  %v337 = vpack.c.b16 %v255, %v253
  %v338 = vpack.c.b16 %v256, %v254
  %v339 = vpack.c.b16 %v259, %v257
  %v340 = vpack.c.b16 %v260, %v258
  %v341 = vpack.c.b16 %v263, %v261
  %v342 = vpack.c.b16 %v264, %v262
  %v343 = vpack.c.b16 %v267, %v265
  %v344 = vpack.c.b16 %v268, %v266
  %v345 = vpack.c.b16 %v271, %v269
  %v346 = vpack.c.b16 %v272, %v270
  %v347 = vpack.c.b16 %v275, %v273
  %v348 = vpack.c.b16 %v276, %v274
  %v349 = vpack.c.b16 %v279, %v277
  %v350 = vpack.c.b16 %v280, %v278
  %v351 = vpack.c.b16 %v283, %v281
  %v352 = vpack.c.b16 %v284, %v282
  %v353 = vpack.c.b16 %v287, %v285
  %v354 = vpack.c.b16 %v288, %v286
  %v355 = vpack.c.b16 %v291, %v289
  %v356 = vpack.c.b16 %v292, %v290
  %421 = vmatpush.bf16.msra.mxu0 %v307
  %422 = vmatpush.bf16.msra.mxu0 %v305
  %423 = vmatpush.bf16.msra.mxu0 %v303
  %424 = vmatpush.bf16.msra.mxu0 %v301
  %425 = vmatpush.bf16.msra.mxu0 %v299
  %426 = vmatpush.bf16.msra.mxu0 %v297
  %427 = vmatpush.bf16.msra.mxu0 %v295
  %428 = vmatpush.bf16.msra.mxu0 %v293
  %429 = vmatmul.bf16.gmra.mxu0 %v93
  %v430 = vpop.f32.mrf.mxu0
  %v431 = vadd.f32 %v87, %v430
  %v432 = vpop.f32.mrf.mxu0
  %433 = vdwg.mxu0
  %434 = vmatpush.bf16.msra.mxu0 %v323
  %435 = vmatpush.bf16.msra.mxu0 %v321
  %436 = vmatpush.bf16.msra.mxu0 %v319
  %437 = vmatpush.bf16.msra.mxu0 %v317
  %438 = vmatpush.bf16.msra.mxu0 %v315
  %439 = vmatpush.bf16.msra.mxu0 %v313
  %440 = vmatpush.bf16.msra.mxu0 %v311
  %441 = vmatpush.bf16.msra.mxu0 %v309
  %442 = vmatmul.bf16.gmra.mxu0 %v94
  %v443 = vpop.f32.mrf.mxu0
  %v444 = vadd.f32 %v431, %v443
  %v445 = vpop.f32.mrf.mxu0
  %446 = vdwg.mxu0
  %447 = vmatpush.bf16.msra.mxu0 %v339
  %448 = vmatpush.bf16.msra.mxu0 %v337
  %449 = vmatpush.bf16.msra.mxu0 %v335
  %450 = vmatpush.bf16.msra.mxu0 %v333
  %451 = vmatpush.bf16.msra.mxu0 %v331
  %452 = vmatpush.bf16.msra.mxu0 %v329
  %453 = vmatpush.bf16.msra.mxu0 %v327
  %454 = vmatpush.bf16.msra.mxu0 %v325
  %455 = vmatmul.bf16.gmra.mxu0 %v95
  %v456 = vpop.f32.mrf.mxu0
  %v457 = vadd.f32 %v444, %v456
  %v458 = vpop.f32.mrf.mxu0
  %459 = vdwg.mxu0
  %460 = vmatpush.bf16.msra.mxu0 %v355
  %461 = vmatpush.bf16.msra.mxu0 %v353
  %462 = vmatpush.bf16.msra.mxu0 %v351
  %463 = vmatpush.bf16.msra.mxu0 %v349
  %464 = vmatpush.bf16.msra.mxu0 %v347
  %465 = vmatpush.bf16.msra.mxu0 %v345
  %466 = vmatpush.bf16.msra.mxu0 %v343
  %467 = vmatpush.bf16.msra.mxu0 %v341
  %468 = vmatmul.bf16.gmra.mxu0 %v96
  %v469 = vpop.f32.mrf.mxu0
  %v470 = vadd.f32 %v457, %v469
  %v471 = vpop.f32.mrf.mxu0
  %472 = vdwg.mxu0
  %473 = vmatpush.bf16.msra.mxu0 %v308
  %474 = vmatpush.bf16.msra.mxu0 %v306
  %475 = vmatpush.bf16.msra.mxu0 %v304
  %476 = vmatpush.bf16.msra.mxu0 %v302
  %477 = vmatpush.bf16.msra.mxu0 %v300
  %478 = vmatpush.bf16.msra.mxu0 %v298
  %479 = vmatpush.bf16.msra.mxu0 %v296
  %480 = vmatpush.bf16.msra.mxu0 %v294
  %481 = vmatmul.bf16.gmra.mxu0 %v93
  %v482 = vpop.f32.mrf.mxu0
  %v483 = vadd.f32 %v88, %v482
  %v484 = vpop.f32.mrf.mxu0
  %485 = vdwg.mxu0
  %486 = vmatpush.bf16.msra.mxu0 %v324
  %487 = vmatpush.bf16.msra.mxu0 %v322
  %488 = vmatpush.bf16.msra.mxu0 %v320
  %489 = vmatpush.bf16.msra.mxu0 %v318
  %490 = vmatpush.bf16.msra.mxu0 %v316
  %491 = vmatpush.bf16.msra.mxu0 %v314
  %492 = vmatpush.bf16.msra.mxu0 %v312
  %493 = vmatpush.bf16.msra.mxu0 %v310
  %494 = vmatmul.bf16.gmra.mxu0 %v94
  %v495 = vpop.f32.mrf.mxu0
  %v496 = vadd.f32 %v483, %v495
  %v497 = vpop.f32.mrf.mxu0
  %498 = vdwg.mxu0
  %499 = vmatpush.bf16.msra.mxu0 %v340
  %500 = vmatpush.bf16.msra.mxu0 %v338
  %501 = vmatpush.bf16.msra.mxu0 %v336
  %502 = vmatpush.bf16.msra.mxu0 %v334
  %503 = vmatpush.bf16.msra.mxu0 %v332
  %504 = vmatpush.bf16.msra.mxu0 %v330
  %505 = vmatpush.bf16.msra.mxu0 %v328
  %506 = vmatpush.bf16.msra.mxu0 %v326
  %507 = vmatmul.bf16.gmra.mxu0 %v95
  %v508 = vpop.f32.mrf.mxu0
  %v509 = vadd.f32 %v496, %v508
  %v510 = vpop.f32.mrf.mxu0
  %511 = vdwg.mxu0
  %512 = vmatpush.bf16.msra.mxu0 %v356
  %513 = vmatpush.bf16.msra.mxu0 %v354
  %514 = vmatpush.bf16.msra.mxu0 %v352
  %515 = vmatpush.bf16.msra.mxu0 %v350
  %516 = vmatpush.bf16.msra.mxu0 %v348
  %517 = vmatpush.bf16.msra.mxu0 %v346
  %518 = vmatpush.bf16.msra.mxu0 %v344
  %519 = vmatpush.bf16.msra.mxu0 %v342
  %520 = vmatmul.bf16.gmra.mxu0 %v96
  %v521 = vpop.f32.mrf.mxu0
  %v522 = vadd.f32 %v509, %v521
  %v523 = vpop.f32.mrf.mxu0
  %524 = vdwg.mxu0
  %v525 = vmax.f32 %v470, 0.0
  %v526 = vmax.f32 %v522, 0.0
  %v527 = vpack.c.bf16 %v525, %v525
  %v528 = vpack.c.bf16 %v526, %v526
  %v529 = vld [vmem:[%s3] sm:$0xf]
  %v530 = vld [vmem:[%s3 + $0x4] sm:$0xf]
  %v531 = vld [vmem:[%s3 + $0x8] sm:$0xf]
  %v532 = vld [vmem:[%s3 + $0xc] sm:$0xf]
  %v533 = vld [vmem:[%s3 + $0x10] sm:$0xf]
  %v534 = vld [vmem:[%s3 + $0x14] sm:$0xf]
  %v535 = vld [vmem:[%s3 + $0x18] sm:$0xf]
  %v536 = vld [vmem:[%s3 + $0x1c] sm:$0xf]
  %v537 = vld [vmem:[%s3 + $0x20] sm:$0xf]
  %v538 = vld [vmem:[%s3 + $0x24] sm:$0xf]
  %v539 = vld [vmem:[%s3 + $0x28] sm:$0xf]
  %v540 = vld [vmem:[%s3 + $0x2c] sm:$0xf]
  %v541 = vld [vmem:[%s3 + $0x30] sm:$0xf]
  %v542 = vld [vmem:[%s3 + $0x34] sm:$0xf]
  %v543 = vld [vmem:[%s3 + $0x38] sm:$0xf]
  %v544 = vld [vmem:[%s3 + $0x3c] sm:$0xf]
  %v545 = vld [vmem:[%s3 + $0x40] sm:$0xf]
  %v546 = vld [vmem:[%s3 + $0x44] sm:$0xf]
  %v547 = vld [vmem:[%s3 + $0x48] sm:$0xf]
  %v548 = vld [vmem:[%s3 + $0x4c] sm:$0xf]
  %v549 = vld [vmem:[%s3 + $0x50] sm:$0xf]
  %v550 = vld [vmem:[%s3 + $0x54] sm:$0xf]
  %v551 = vld [vmem:[%s3 + $0x58] sm:$0xf]
  %v552 = vld [vmem:[%s3 + $0x5c] sm:$0xf]
  %v553 = vld [vmem:[%s3 + $0x60] sm:$0xf]
  %v554 = vld [vmem:[%s3 + $0x64] sm:$0xf]
  %v555 = vld [vmem:[%s3 + $0x68] sm:$0xf]
  %v556 = vld [vmem:[%s3 + $0x6c] sm:$0xf]
  %v557 = vld [vmem:[%s3 + $0x70] sm:$0xf]
  %v558 = vld [vmem:[%s3 + $0x74] sm:$0xf]
  %v559 = vld [vmem:[%s3 + $0x78] sm:$0xf]
  %v560 = vld [vmem:[%s3 + $0x7c] sm:$0xf]
  %v561 = vld [vmem:[%s4] sm:$0x1]
  %v563 = vperm.slane %v561, 0
  %v597 = vunpack.c.l.b16 %v529
  %v598 = vunpack.c.l.b16 %v530
  %v599 = vunpack.c.l.b16 %v531
  %v600 = vunpack.c.l.b16 %v532
  %v601 = vunpack.c.l.b16 %v533
  %v602 = vunpack.c.l.b16 %v534
  %v603 = vunpack.c.l.b16 %v535
  %v604 = vunpack.c.l.b16 %v536
  %v605 = vunpack.c.l.b16 %v537
  %v606 = vunpack.c.l.b16 %v538
  %v607 = vunpack.c.l.b16 %v539
  %v608 = vunpack.c.l.b16 %v540
  %v609 = vunpack.c.l.b16 %v541
  %v610 = vunpack.c.l.b16 %v542
  %v611 = vunpack.c.l.b16 %v543
  %v612 = vunpack.c.l.b16 %v544
  %v613 = vunpack.c.l.b16 %v545
  %v614 = vunpack.c.l.b16 %v546
  %v615 = vunpack.c.l.b16 %v547
  %v616 = vunpack.c.l.b16 %v548
  %v617 = vunpack.c.l.b16 %v549
  %v618 = vunpack.c.l.b16 %v550
  %v619 = vunpack.c.l.b16 %v551
  %v620 = vunpack.c.l.b16 %v552
  %v621 = vunpack.c.l.b16 %v553
  %v622 = vunpack.c.l.b16 %v554
  %v623 = vunpack.c.l.b16 %v555
  %v624 = vunpack.c.l.b16 %v556
  %v625 = vunpack.c.l.b16 %v557
  %v626 = vunpack.c.l.b16 %v558
  %v627 = vunpack.c.l.b16 %v559
  %v628 = vunpack.c.l.b16 %v560
  %v629 = vpack.c.b16 %v598, %v597
  %v630 = vpack.c.b16 %v600, %v599
  %v631 = vpack.c.b16 %v602, %v601
  %v632 = vpack.c.b16 %v604, %v603
  %v633 = vpack.c.b16 %v606, %v605
  %v634 = vpack.c.b16 %v608, %v607
  %v635 = vpack.c.b16 %v610, %v609
  %v636 = vpack.c.b16 %v612, %v611
  %v637 = vpack.c.b16 %v614, %v613
  %v638 = vpack.c.b16 %v616, %v615
  %v639 = vpack.c.b16 %v618, %v617
  %v640 = vpack.c.b16 %v620, %v619
  %v641 = vpack.c.b16 %v622, %v621
  %v642 = vpack.c.b16 %v624, %v623
  %v643 = vpack.c.b16 %v626, %v625
  %v644 = vpack.c.b16 %v628, %v627
  %661 = vmatpush.bf16.msra.mxu0 %v636
  %662 = vmatpush.bf16.msra.mxu0 %v635
  %663 = vmatpush.bf16.msra.mxu0 %v634
  %664 = vmatpush.bf16.msra.mxu0 %v633
  %665 = vmatpush.bf16.msra.mxu0 %v632
  %666 = vmatpush.bf16.msra.mxu0 %v631
  %667 = vmatpush.bf16.msra.mxu0 %v630
  %668 = vmatpush.bf16.msra.mxu0 %v629
  %669 = vmatmul.bf16.gmra.mxu0 %v527
  %v670 = vpop.f32.mrf.mxu0
  %v671 = vadd.f32 %v563, %v670
  %v672 = vpop.f32.mrf.mxu0
  %673 = vdwg.mxu0
  %674 = vmatpush.bf16.msra.mxu0 %v644
  %675 = vmatpush.bf16.msra.mxu0 %v643
  %676 = vmatpush.bf16.msra.mxu0 %v642
  %677 = vmatpush.bf16.msra.mxu0 %v641
  %678 = vmatpush.bf16.msra.mxu0 %v640
  %679 = vmatpush.bf16.msra.mxu0 %v639
  %680 = vmatpush.bf16.msra.mxu0 %v638
  %681 = vmatpush.bf16.msra.mxu0 %v637
  %682 = vmatmul.bf16.gmra.mxu0 %v528
  %v683 = vpop.f32.mrf.mxu0
  %v684 = vadd.f32 %v671, %v683
  %v685 = vpop.f32.mrf.mxu0
  %686 = vdwg.mxu0
  %687 = vst [vmem:[%s5] sm:$0x3] %v684
  // Predicated region
  $region22: #{forward.7} parent=0 // pred_check
    _
  $region23: #{forward.7} parent=0 // pred_check_branch
    %689 = sbr.rel (0) target = $region25
  $region24: #{forward.7} parent=0 // pred_region
    _
  $region25: #{forward.7} parent=0 // pred_fallthru
    _
  // Predicated region
  $region26: #{forward.7} parent=0 // pred_check
    _
  $region27: #{forward.7} parent=0 // pred_check_branch
    %691 = sbr.rel (0) target = $region29
  $region28: #{forward.7} parent=0 // pred_region
    _
  $region29: #{forward.7} parent=0 // pred_fallthru
    _

// kernel: forward.6
$region0: #{forward.6}
  #allocation0 [shape = 'u32[]', space=smem, size = 0x4, offset = 0x4, fixed_abs, tag = 'smem constant byte address 0x4 - core index']
  #allocation1 [shape = 'u32[72,128]{1,0:T(1,128)}', space=vmem, size = 0x9000, scoped, tag = 'internal scratch']
  #allocation2 [shape = 'f32[38,128]{1,0:T(8,128)}', space=vmem, size = 0x5000, scoped, tag = 'scratch operand']
  #allocation3 [shape = 'f32[24,128]{1,0:T(8,128)}', space=vmem, size = 0x3000, scoped, tag = 'scratch operand']
  %s0 = inlined_call_operand.vmem [shape: f32[2,38,64], index: 0, kind: input, shape index: {}]
  %s1 = inlined_call_operand.vmem [shape: bf16[9,64,128], index: 1, kind: input, shape index: {}]
  %s2 = inlined_call_operand.vmem [shape: f32[1,128], index: 2, kind: input, shape index: {}]
  %s3 = inlined_call_operand.vmem [shape: bf16[9,128,128], index: 3, kind: input, shape index: {}]
  %s4 = inlined_call_operand.vmem [shape: f32[1,128], index: 4, kind: input, shape index: {}]
  %s5 = inlined_call_operand.vmem [shape: f32[24,1], index: 5, kind: input, shape index: {}]
  %s6 = inlined_call_operand.vmem [shape: f32[4,17], index: 6, kind: input, shape index: {}]
  %s7 = inlined_call_operand.vmem [shape: f32[2,4,128], index: 7, kind: output, shape index: {}]
  %s8 = sld [smem:[#allocation0]]
  $region61: #{forward.6} parent=0
    _
  %s10 = ssub.s32 1, %s8
  %s11 = scalar_select 0, %s10, %s8
  loop: start=0, step=1, limit=4
  $region2: #{forward.6} parent=0 // loop_pre_header
    _
  $region3: #{forward.6} parent=0 // loop_header
    %s13 = sphi 0, %s17
    %p14 = scmp.ge.s32.totalorder %s13, 4
    %s23 = sphi 0, %s25
    %s26 = sphi 0, %s23
    %s27 = sphi 0, %s26
    %s43 = sphi 0, %s27
    %s47 = sphi 0, %s47
    %s49 = sphi 0, %s47
    %s50 = sphi 0, %s49
    %s64 = sphi 0, %s50
    %s68 = sphi 0, %s68
    %s70 = sphi 0, %s68
    %s71 = sphi 0, %s70
    %s85 = sphi 0, %s71
    %s89 = sphi 0, %s89
    %s91 = sphi 0, %s89
    %s92 = sphi 0, %s91
    %s106 = sphi 0, %s92
    %s110 = sphi 0, %s110
    %s112 = sphi 0, %s110
    %s113 = sphi 0, %s112
    %s127 = sphi 0, %s113
    %s131 = sphi 0, %s131
    %s133 = sphi 0, %s131
    %s134 = sphi 0, %s133
    %s148 = sphi 0, %s134
    %s152 = sphi 0, %s152
    %s154 = sphi 0, %s152
    %s155 = sphi 0, %s154
    %s169 = sphi 0, %s155
    %s175 = sphi 0, %s177
    %s178 = sphi 0, %s175
    %s179 = sphi 0, %s178
    %s195 = sphi 0, %s179
  $region4: #{forward.6} parent=0 // loop_header_branch
    %16 = sbr.rel (%p14) target = $region8
  $region5: #{forward.6} parent=0 // loop_body
    %s18 = ssub.s32 %s13, 1
    %s19 = ssub.s32 %s13, 2
    %s20 = sadd.s32 %s13, 1
    %s21 = ssub.s32 %s13, %s20
    %p22 = scmp.eq.s32.totalorder %s21, 0
    %s24 = sadd.s32 %s23, 1
    %s25 = scalar_select %p22, %s23, %s24
    %p28 = pneg %p22
    %p29 = scmp.eq.s32.totalorder %s13, 1
    %p30 = por %p28, %p29
    %p31 = scmp.ne.s32.totalorder %s23, %s26
    %p32 = scmp.eq.s32.totalorder %s13, 0
    %p33 = por %p31, %p32
    %p34 = scmp.ne.s32.totalorder %s23, %s26
    %p35 = scmp.eq.s32.totalorder %s18, 1
    %p36 = por %p34, %p35
    %p37 = scmp.ne.s32.totalorder %s26, %s27
    %p38 = scmp.eq.s32.totalorder %s18, 0
    %p39 = por %p37, %p38
    %p40 = scmp.ne.s32.totalorder %s26, %s27
    %p41 = scmp.eq.s32.totalorder %s19, 1
    %p42 = por %p40, %p41
    %p44 = scmp.ne.s32.totalorder %s27, %s43
    %p45 = scmp.eq.s32.totalorder %s19, 0
    %p46 = por %p44, %p45
    %s48 = sadd.s32 %s47, 1
    %p51 = scmp.eq.s32.totalorder %s13, 1
    %p52 = scmp.ne.s32.totalorder %s47, %s49
    %p53 = scmp.eq.s32.totalorder %s13, 0
    %p54 = por %p52, %p53
    %p55 = scmp.ne.s32.totalorder %s47, %s49
    %p56 = scmp.eq.s32.totalorder %s18, 1
    %p57 = por %p55, %p56
    %p58 = scmp.ne.s32.totalorder %s49, %s50
    %p59 = scmp.eq.s32.totalorder %s18, 0
    %p60 = por %p58, %p59
    %p61 = scmp.ne.s32.totalorder %s49, %s50
    %p62 = scmp.eq.s32.totalorder %s19, 1
    %p63 = por %p61, %p62
    %p65 = scmp.ne.s32.totalorder %s50, %s64
    %p66 = scmp.eq.s32.totalorder %s19, 0
    %p67 = por %p65, %p66
    %s69 = sadd.s32 %s68, 1
    %p72 = scmp.eq.s32.totalorder %s13, 1
    %p73 = scmp.ne.s32.totalorder %s68, %s70
    %p74 = scmp.eq.s32.totalorder %s13, 0
    %p75 = por %p73, %p74
    %p76 = scmp.ne.s32.totalorder %s68, %s70
    %p77 = scmp.eq.s32.totalorder %s18, 1
    %p78 = por %p76, %p77
    %p79 = scmp.ne.s32.totalorder %s70, %s71
    %p80 = scmp.eq.s32.totalorder %s18, 0
    %p81 = por %p79, %p80
    %p82 = scmp.ne.s32.totalorder %s70, %s71
    %p83 = scmp.eq.s32.totalorder %s19, 1
    %p84 = por %p82, %p83
    %p86 = scmp.ne.s32.totalorder %s71, %s85
    %p87 = scmp.eq.s32.totalorder %s19, 0
    %p88 = por %p86, %p87
    %s90 = sadd.s32 %s89, 1
    %p93 = scmp.eq.s32.totalorder %s13, 1
    %p94 = scmp.ne.s32.totalorder %s89, %s91
    %p95 = scmp.eq.s32.totalorder %s13, 0
    %p96 = por %p94, %p95
    %p97 = scmp.ne.s32.totalorder %s89, %s91
    %p98 = scmp.eq.s32.totalorder %s18, 1
    %p99 = por %p97, %p98
    %p100 = scmp.ne.s32.totalorder %s91, %s92
    %p101 = scmp.eq.s32.totalorder %s18, 0
    %p102 = por %p100, %p101
    %p103 = scmp.ne.s32.totalorder %s91, %s92
    %p104 = scmp.eq.s32.totalorder %s19, 1
    %p105 = por %p103, %p104
    %p107 = scmp.ne.s32.totalorder %s92, %s106
    %p108 = scmp.eq.s32.totalorder %s19, 0
    %p109 = por %p107, %p108
    %s111 = sadd.s32 %s110, 1
    %p114 = scmp.eq.s32.totalorder %s13, 1
    %p115 = scmp.ne.s32.totalorder %s110, %s112
    %p116 = scmp.eq.s32.totalorder %s13, 0
    %p117 = por %p115, %p116
    %p118 = scmp.ne.s32.totalorder %s110, %s112
    %p119 = scmp.eq.s32.totalorder %s18, 1
    %p120 = por %p118, %p119
    %p121 = scmp.ne.s32.totalorder %s112, %s113
    %p122 = scmp.eq.s32.totalorder %s18, 0
    %p123 = por %p121, %p122
    %p124 = scmp.ne.s32.totalorder %s112, %s113
    %p125 = scmp.eq.s32.totalorder %s19, 1
    %p126 = por %p124, %p125
    %p128 = scmp.ne.s32.totalorder %s113, %s127
    %p129 = scmp.eq.s32.totalorder %s19, 0
    %p130 = por %p128, %p129
    %s132 = sadd.s32 %s131, 1
    %p135 = scmp.eq.s32.totalorder %s13, 1
    %p136 = scmp.ne.s32.totalorder %s131, %s133
    %p137 = scmp.eq.s32.totalorder %s13, 0
    %p138 = por %p136, %p137
    %p139 = scmp.ne.s32.totalorder %s131, %s133
    %p140 = scmp.eq.s32.totalorder %s18, 1
    %p141 = por %p139, %p140
    %p142 = scmp.ne.s32.totalorder %s133, %s134
    %p143 = scmp.eq.s32.totalorder %s18, 0
    %p144 = por %p142, %p143
    %p145 = scmp.ne.s32.totalorder %s133, %s134
    %p146 = scmp.eq.s32.totalorder %s19, 1
    %p147 = por %p145, %p146
    %p149 = scmp.ne.s32.totalorder %s134, %s148
    %p150 = scmp.eq.s32.totalorder %s19, 0
    %p151 = por %p149, %p150
    %s153 = sadd.s32 %s152, 1
    %p156 = scmp.eq.s32.totalorder %s13, 1
    %p157 = scmp.ne.s32.totalorder %s152, %s154
    %p158 = scmp.eq.s32.totalorder %s13, 0
    %p159 = por %p157, %p158
    %p160 = scmp.ne.s32.totalorder %s152, %s154
    %p161 = scmp.eq.s32.totalorder %s18, 1
    %p162 = por %p160, %p161
    %p163 = scmp.ne.s32.totalorder %s154, %s155
    %p164 = scmp.eq.s32.totalorder %s18, 0
    %p165 = por %p163, %p164
    %p166 = scmp.ne.s32.totalorder %s154, %s155
    %p167 = scmp.eq.s32.totalorder %s19, 1
    %p168 = por %p166, %p167
    %p170 = scmp.ne.s32.totalorder %s155, %s169
    %p171 = scmp.eq.s32.totalorder %s19, 0
    %p172 = por %p170, %p171
    %s173 = ssub.s32 %s13, %s20
    %p174 = scmp.eq.s32.totalorder %s173, 0
    %s176 = sadd.s32 %s175, 1
    %s177 = scalar_select %p174, %s175, %s176
    %p180 = pneg %p174
    %p181 = scmp.eq.s32.totalorder %s13, 1
    %p182 = por %p180, %p181
    %p183 = scmp.ne.s32.totalorder %s175, %s178
    %p184 = scmp.eq.s32.totalorder %s13, 0
    %p185 = por %p183, %p184
    %p186 = scmp.ne.s32.totalorder %s175, %s178
    %p187 = scmp.eq.s32.totalorder %s18, 1
    %p188 = por %p186, %p187
    %p189 = scmp.ne.s32.totalorder %s178, %s179
    %p190 = scmp.eq.s32.totalorder %s18, 0
    %p191 = por %p189, %p190
    %p192 = scmp.ne.s32.totalorder %s178, %s179
    %p193 = scmp.eq.s32.totalorder %s19, 1
    %p194 = por %p192, %p193
    %p196 = scmp.ne.s32.totalorder %s179, %s195
    %p197 = scmp.eq.s32.totalorder %s19, 0
    %p198 = por %p196, %p197
    %p199 = scmp.le.s32.totalorder 1, %s13
    %p200 = scmp.lt.s32.totalorder %s13, 3
    %p201 = pnand %p199, %p200
    %p202 = pneg %p201
    // Predicated region
    $region9: #{forward.6} parent=5 // pred_check
      _
    $region10: #{forward.6} parent=5 // pred_check_branch
      %204 = sbr.rel (%p201) target = $region12
    $region11: #{forward.6} parent=5 // pred_region
      %s205 = ssub.s32 %s13, 1
      // Predicated region
      $region13: #{forward.6} parent=11 // pred_check
        %p206 = pneg %p60
      $region14: #{forward.6} parent=11 // pred_check_branch
        %208 = sbr.rel (%p206) target = $region16
      $region15: #{forward.6} parent=11 // pred_region
        _
      $region16: #{forward.6} parent=11 // pred_fallthru
        _
      // Predicated region
      $region17: #{forward.6} parent=11 // pred_check
        %p209 = pneg %p81
      $region18: #{forward.6} parent=11 // pred_check_branch
        %211 = sbr.rel (%p209) target = $region20
      $region19: #{forward.6} parent=11 // pred_region
        _
      $region20: #{forward.6} parent=11 // pred_fallthru
        _
      // Predicated region
      $region21: #{forward.6} parent=11 // pred_check
        %p212 = pneg %p102
      $region22: #{forward.6} parent=11 // pred_check_branch
        %214 = sbr.rel (%p212) target = $region24
      $region23: #{forward.6} parent=11 // pred_region
        _
      $region24: #{forward.6} parent=11 // pred_fallthru
        _
      // Predicated region
      $region25: #{forward.6} parent=11 // pred_check
        %p215 = pneg %p123
      $region26: #{forward.6} parent=11 // pred_check_branch
        %217 = sbr.rel (%p215) target = $region28
      $region27: #{forward.6} parent=11 // pred_region
        _
      $region28: #{forward.6} parent=11 // pred_fallthru
        _
      // Predicated region
      $region29: #{forward.6} parent=11 // pred_check
        %p218 = pneg %p144
      $region30: #{forward.6} parent=11 // pred_check_branch
        %220 = sbr.rel (%p218) target = $region32
      $region31: #{forward.6} parent=11 // pred_region
        _
      $region32: #{forward.6} parent=11 // pred_fallthru
        _
      // Predicated region
      $region33: #{forward.6} parent=11 // pred_check
        %p221 = pneg %p165
      $region34: #{forward.6} parent=11 // pred_check_branch
        %223 = sbr.rel (%p221) target = $region36
      $region35: #{forward.6} parent=11 // pred_region
        _
      $region36: #{forward.6} parent=11 // pred_fallthru
        _
    $region12: #{forward.6} parent=5 // pred_fallthru
      _
    %p224 = scmp.lt.s32.totalorder %s13, 2
    // Predicated region
    $region37: #{forward.6} parent=5 // pred_check
      %p225 = pneg %p224
    $region38: #{forward.6} parent=5 // pred_check_branch
      %227 = sbr.rel (%p225) target = $region40
    $region39: #{forward.6} parent=5 // pred_region
      // Predicated region
      $region41: #{forward.6} parent=39 // pred_check
        %p228 = pneg %p33
      $region42: #{forward.6} parent=39 // pred_check_branch
        %230 = sbr.rel (%p228) target = $region44
      $region43: #{forward.6} parent=39 // pred_region
        %p231 = scmp.lt.s32.totalorder %s13, 1
        %s232 = scalar_select %p231, %s13, 1
        %s233 = smul.addr %s232, 5
        %s234 = smul.addr %s233, 8
        %s235 = scalar_lea.vmem %s0, %s234
      $region44: #{forward.6} parent=39 // pred_fallthru
        _
    $region40: #{forward.6} parent=5 // pred_fallthru
      _
    %p236 = scmp.le.s32.totalorder 1, %s13
    %p237 = scmp.lt.s32.totalorder %s13, 3
    %p238 = pnand %p236, %p237
    %p239 = pneg %p238
    // Predicated region
    $region45: #{forward.6} parent=5 // pred_check
      _
    $region46: #{forward.6} parent=5 // pred_check_branch
      %241 = sbr.rel (%p238) target = $region48
    $region47: #{forward.6} parent=5 // pred_region
      %s242 = ssub.s32 %s13, 1
      %p243 = scmp.lt.s32.totalorder %s18, 1
      %s244 = scalar_select %p243, %s18, 1
      %s245 = smul.addr %s244, 5
      %s246 = smul.addr %s245, 8
      %s247 = scalar_lea.vmem %s0, %s246
      %p248 = pneg %p39
      %p249 = pneg %p36
      %p250 = pneg %p60
      %p251 = pneg %p57
      %p252 = pneg %p81
      %p253 = pneg %p78
      %p254 = pneg %p102
      %p255 = pneg %p99
      %p256 = pneg %p123
      %p257 = pneg %p120
      %p258 = pneg %p144
      %p259 = pneg %p141
      %p260 = pneg %p165
      %p261 = pneg %p162
      %p262 = pneg %p191
      %p263 = pneg %p188
      %p264 = scmp.lt.s32.totalorder %s18, 1
      %s265 = scalar_select %p264, %s18, 1
      %s266 = smul.addr %s265, 4
      %s267 = scalar_lea.vmem %s7, %s266
      %p268 = scmp.lt.s32.totalorder %s18, 1
      %s269 = scalar_select %p268, %s18, 1
      %s270 = smul.addr %s269, 5
      %s271 = smul.addr %s270, 8
      %s272 = scalar_lea.vmem %s0, %s271
      %p273 = scmp.lt.s32.totalorder %s18, 1
      %s274 = scalar_select %p273, %s18, 1
      %s275 = smul.addr %s274, 4
      %s276 = scalar_lea.vmem %s7, %s275
      %v278 = vld [vmem:[%s272] sm:$0xff]
      %v279 = vld [vmem:[%s272 + $0x8] sm:$0xff]
      %v280 = vld [vmem:[%s272 + $0x10] sm:$0xff]
      %v281 = vpack.c.bf16 %v279, %v278
      %v282 = vpack.c.bf16 %v280, %v280
      %v283 = vld [vmem:[%s1] sm:$0xf]
      %v284 = vld [vmem:[%s1 + $0x4] sm:$0xf]
      %v285 = vld [vmem:[%s1 + $0x8] sm:$0xf]
      %v286 = vld [vmem:[%s1 + $0xc] sm:$0xf]
      %v287 = vld [vmem:[%s1 + $0x10] sm:$0xf]
      %v288 = vld [vmem:[%s1 + $0x14] sm:$0xf]
      %v289 = vld [vmem:[%s1 + $0x18] sm:$0xf]
      %v290 = vld [vmem:[%s1 + $0x1c] sm:$0xf]
      %v291 = vld [vmem:[%s272 + $0x1] sm:$0xff]
      %v292 = vld [vmem:[%s272 + $0x9] sm:$0xff]
      %v293 = vld [vmem:[%s272 + $0x11] sm:$0xff]
      %v294 = vpack.c.bf16 %v292, %v291
      %v295 = vpack.c.bf16 %v293, %v293
      %s296 = scalar_lea.vmem %s1, 32
      %v297 = vld [vmem:[%s296] sm:$0xf]
      %v298 = vld [vmem:[%s296 + $0x4] sm:$0xf]
      %v299 = vld [vmem:[%s296 + $0x8] sm:$0xf]
      %v300 = vld [vmem:[%s296 + $0xc] sm:$0xf]
      %v301 = vld [vmem:[%s296 + $0x10] sm:$0xf]
      %v302 = vld [vmem:[%s296 + $0x14] sm:$0xf]
      %v303 = vld [vmem:[%s296 + $0x18] sm:$0xf]
      %v304 = vld [vmem:[%s296 + $0x1c] sm:$0xf]
      %v313 = vunpack.c.l.b16 %v297
      %v314 = vunpack.c.l.b16 %v298
      %v315 = vunpack.c.l.b16 %v299
      %v316 = vunpack.c.l.b16 %v300
      %v317 = vunpack.c.l.b16 %v301
      %v318 = vunpack.c.l.b16 %v302
      %v319 = vunpack.c.l.b16 %v303
      %v320 = vunpack.c.l.b16 %v304
      %v321 = vpack.c.b16 %v314, %v313
      %v322 = vpack.c.b16 %v316, %v315
      %v323 = vpack.c.b16 %v318, %v317
      %v324 = vpack.c.b16 %v320, %v319
      %vm329 = vcmask 523264
      %v331 = vsel %vm329, %v294, 0
      %v334 = vsel %vm329, %v295, 0
      %336 = vmatpush.bf16.msra.mxu0 0
      %337 = vmatpush.bf16.msra.mxu0 0
      %338 = vmatpush.bf16.msra.mxu0 0
      %339 = vmatpush.bf16.msra.mxu0 0
      %340 = vmatpush.bf16.msra.mxu0 %v324
      %341 = vmatpush.bf16.msra.mxu0 %v323
      %342 = vmatpush.bf16.msra.mxu0 %v322
      %343 = vmatpush.bf16.msra.mxu0 %v321
      %344 = vmatmul.bf16.gmra.mxu0 %v331
      %v345 = vpop.f32.mrf.mxu0
      %v346 = vadd.f32 0.0, %v345
      %v347 = vpop.f32.mrf.mxu0
      %v348 = vadd.f32 0.0, %v347
      %349 = vmatmul.bf16.gmra.mxu0 %v334
      %v350 = vpop.f32.mrf.mxu0
      %v351 = vadd.f32 0.0, %v350
      %v352 = vpop.f32.mrf.mxu0
      %353 = vdwg.mxu0
      %v362 = vunpack.c.l.b16 %v283
      %v363 = vunpack.c.l.b16 %v284
      %v364 = vunpack.c.l.b16 %v285
      %v365 = vunpack.c.l.b16 %v286
      %v366 = vunpack.c.l.b16 %v287
      %v367 = vunpack.c.l.b16 %v288
      %v368 = vunpack.c.l.b16 %v289
      %v369 = vunpack.c.l.b16 %v290
      %v370 = vpack.c.b16 %v363, %v362
      %v371 = vpack.c.b16 %v365, %v364
      %v372 = vpack.c.b16 %v367, %v366
      %v373 = vpack.c.b16 %v369, %v368
      %v379 = vsel %vm329, %v281, 0
      %v382 = vsel %vm329, %v282, 0
      %384 = vmatpush.bf16.msra.mxu0 0
      %385 = vmatpush.bf16.msra.mxu0 0
      %386 = vmatpush.bf16.msra.mxu0 0
      %387 = vmatpush.bf16.msra.mxu0 0
      %388 = vmatpush.bf16.msra.mxu0 %v373
      %389 = vmatpush.bf16.msra.mxu0 %v372
      %390 = vmatpush.bf16.msra.mxu0 %v371
      %391 = vmatpush.bf16.msra.mxu0 %v370
      %392 = vmatmul.bf16.gmra.mxu0 %v379
      %v393 = vpop.f32.mrf.mxu0
      %v394 = vadd.f32 %v346, %v393
      %v395 = vpop.f32.mrf.mxu0
      %v396 = vadd.f32 %v348, %v395
      %397 = vmatmul.bf16.gmra.mxu0 %v382
      %v398 = vpop.f32.mrf.mxu0
      %v399 = vadd.f32 %v351, %v398
      %v400 = vpop.f32.mrf.mxu0
      %401 = vdwg.mxu0
      %v402 = vld [vmem:[%s272 + $0x2] sm:$0xff]
      %v403 = vld [vmem:[%s272 + $0xa] sm:$0xff]
      %v404 = vld [vmem:[%s272 + $0x12] sm:$0xff]
      %v405 = vpack.c.bf16 %v403, %v402
      %v406 = vpack.c.bf16 %v404, %v404
      %s407 = scalar_lea.vmem %s1, 64
      %v408 = vld [vmem:[%s407] sm:$0xf]
      %v409 = vld [vmem:[%s407 + $0x4] sm:$0xf]
      %v410 = vld [vmem:[%s407 + $0x8] sm:$0xf]
      %v411 = vld [vmem:[%s407 + $0xc] sm:$0xf]
      %v412 = vld [vmem:[%s407 + $0x10] sm:$0xf]
      %v413 = vld [vmem:[%s407 + $0x14] sm:$0xf]
      %v414 = vld [vmem:[%s407 + $0x18] sm:$0xf]
      %v415 = vld [vmem:[%s407 + $0x1c] sm:$0xf]
      %v424 = vunpack.c.l.b16 %v408
      %v425 = vunpack.c.l.b16 %v409
      %v426 = vunpack.c.l.b16 %v410
      %v427 = vunpack.c.l.b16 %v411
      %v428 = vunpack.c.l.b16 %v412
      %v429 = vunpack.c.l.b16 %v413
      %v430 = vunpack.c.l.b16 %v414
      %v431 = vunpack.c.l.b16 %v415
      %v432 = vpack.c.b16 %v425, %v424
      %v433 = vpack.c.b16 %v427, %v426
      %v434 = vpack.c.b16 %v429, %v428
      %v435 = vpack.c.b16 %v431, %v430
      %v441 = vsel %vm329, %v405, 0
      %v444 = vsel %vm329, %v406, 0
      %446 = vmatpush.bf16.msra.mxu0 0
      %447 = vmatpush.bf16.msra.mxu0 0
      %448 = vmatpush.bf16.msra.mxu0 0
      %449 = vmatpush.bf16.msra.mxu0 0
      %450 = vmatpush.bf16.msra.mxu0 %v435
      %451 = vmatpush.bf16.msra.mxu0 %v434
      %452 = vmatpush.bf16.msra.mxu0 %v433
      %453 = vmatpush.bf16.msra.mxu0 %v432
      %454 = vmatmul.bf16.gmra.mxu0 %v441
      %v455 = vpop.f32.mrf.mxu0
      %v456 = vadd.f32 0.0, %v455
      %v457 = vpop.f32.mrf.mxu0
      %v458 = vadd.f32 0.0, %v457
      %459 = vmatmul.bf16.gmra.mxu0 %v444
      %v460 = vpop.f32.mrf.mxu0
      %v461 = vadd.f32 0.0, %v460
      %v462 = vpop.f32.mrf.mxu0
      %463 = vdwg.mxu0
      %v464 = vadd.f32 %v394, %v456
      %v465 = vadd.f32 %v396, %v458
      %v466 = vadd.f32 %v399, %v461
      %v467 = vld [vmem:[%s272 + $0x6] sm:$0xff]
      %v468 = vld [vmem:[%s272 + $0xe] sm:$0xff]
      %v469 = vld [vmem:[%s272 + $0x16] sm:$0xff]
      %v470 = vpack.c.bf16 %v468, %v467
      %v471 = vpack.c.bf16 %v469, %v469
      %s472 = scalar_lea.vmem %s1, 96
      %v473 = vld [vmem:[%s472] sm:$0xf]
      %v474 = vld [vmem:[%s472 + $0x4] sm:$0xf]
      %v475 = vld [vmem:[%s472 + $0x8] sm:$0xf]
      %v476 = vld [vmem:[%s472 + $0xc] sm:$0xf]
      %v477 = vld [vmem:[%s472 + $0x10] sm:$0xf]
      %v478 = vld [vmem:[%s472 + $0x14] sm:$0xf]
      %v479 = vld [vmem:[%s472 + $0x18] sm:$0xf]
      %v480 = vld [vmem:[%s472 + $0x1c] sm:$0xf]
      %v489 = vunpack.c.l.b16 %v473
      %v490 = vunpack.c.l.b16 %v474
      %v491 = vunpack.c.l.b16 %v475
      %v492 = vunpack.c.l.b16 %v476
      %v493 = vunpack.c.l.b16 %v477
      %v494 = vunpack.c.l.b16 %v478
      %v495 = vunpack.c.l.b16 %v479
      %v496 = vunpack.c.l.b16 %v480
      %v497 = vpack.c.b16 %v490, %v489
      %v498 = vpack.c.b16 %v492, %v491
      %v499 = vpack.c.b16 %v494, %v493
      %v500 = vpack.c.b16 %v496, %v495
      %v506 = vsel %vm329, %v470, 0
      %v509 = vsel %vm329, %v471, 0
      %511 = vmatpush.bf16.msra.mxu0 0
      %512 = vmatpush.bf16.msra.mxu0 0
      %513 = vmatpush.bf16.msra.mxu0 0
      %514 = vmatpush.bf16.msra.mxu0 0
      %515 = vmatpush.bf16.msra.mxu0 %v500
      %516 = vmatpush.bf16.msra.mxu0 %v499
      %517 = vmatpush.bf16.msra.mxu0 %v498
      %518 = vmatpush.bf16.msra.mxu0 %v497
      %519 = vmatmul.bf16.gmra.mxu0 %v506
      %v520 = vpop.f32.mrf.mxu0
      %v521 = vadd.f32 0.0, %v520
      %v522 = vpop.f32.mrf.mxu0
      %v523 = vadd.f32 0.0, %v522
      %524 = vmatmul.bf16.gmra.mxu0 %v509
      %v525 = vpop.f32.mrf.mxu0
      %v526 = vadd.f32 0.0, %v525
      %v527 = vpop.f32.mrf.mxu0
      %528 = vdwg.mxu0
      %v529 = vadd.f32 %v464, %v521
      %v530 = vadd.f32 %v465, %v523
      %v531 = vadd.f32 %v466, %v526
      %v532 = vld [vmem:[%s272 + $0x7] sm:$0xff]
      %v533 = vld [vmem:[%s272 + $0xf] sm:$0xff]
      %v534 = vld [vmem:[%s272 + $0x17] sm:$0xff]
      %v535 = vpack.c.bf16 %v533, %v532
      %v536 = vpack.c.bf16 %v534, %v534
      %s537 = scalar_lea.vmem %s1, 128
      %v538 = vld [vmem:[%s537] sm:$0xf]
      %v539 = vld [vmem:[%s537 + $0x4] sm:$0xf]
      %v540 = vld [vmem:[%s537 + $0x8] sm:$0xf]
      %v541 = vld [vmem:[%s537 + $0xc] sm:$0xf]
      %v542 = vld [vmem:[%s537 + $0x10] sm:$0xf]
      %v543 = vld [vmem:[%s537 + $0x14] sm:$0xf]
      %v544 = vld [vmem:[%s537 + $0x18] sm:$0xf]
      %v545 = vld [vmem:[%s537 + $0x1c] sm:$0xf]
      %v554 = vunpack.c.l.b16 %v538
      %v555 = vunpack.c.l.b16 %v539
      %v556 = vunpack.c.l.b16 %v540
      %v557 = vunpack.c.l.b16 %v541
      %v558 = vunpack.c.l.b16 %v542
      %v559 = vunpack.c.l.b16 %v543
      %v560 = vunpack.c.l.b16 %v544
      %v561 = vunpack.c.l.b16 %v545
      %v562 = vpack.c.b16 %v555, %v554
      %v563 = vpack.c.b16 %v557, %v556
      %v564 = vpack.c.b16 %v559, %v558
      %v565 = vpack.c.b16 %v561, %v560
      %v571 = vsel %vm329, %v535, 0
      %v574 = vsel %vm329, %v536, 0
      %576 = vmatpush.bf16.msra.mxu0 0
      %577 = vmatpush.bf16.msra.mxu0 0
      %578 = vmatpush.bf16.msra.mxu0 0
      %579 = vmatpush.bf16.msra.mxu0 0
      %580 = vmatpush.bf16.msra.mxu0 %v565
      %581 = vmatpush.bf16.msra.mxu0 %v564
      %582 = vmatpush.bf16.msra.mxu0 %v563
      %583 = vmatpush.bf16.msra.mxu0 %v562
      %584 = vmatmul.bf16.gmra.mxu0 %v571
      %v585 = vpop.f32.mrf.mxu0
      %v586 = vadd.f32 0.0, %v585
      %v587 = vpop.f32.mrf.mxu0
      %v588 = vadd.f32 0.0, %v587
      %589 = vmatmul.bf16.gmra.mxu0 %v574
      %v590 = vpop.f32.mrf.mxu0
      %v591 = vadd.f32 0.0, %v590
      %v592 = vpop.f32.mrf.mxu0
      %593 = vdwg.mxu0
      %v594 = vadd.f32 %v529, %v586
      %v595 = vadd.f32 %v530, %v588
      %v596 = vadd.f32 %v531, %v591
      %v597 = vld [vmem:[%s272 + $0x8] sm:$0xff]
      %v598 = vld [vmem:[%s272 + $0x10] sm:$0xff]
      %v599 = vld [vmem:[%s272 + $0x18] sm:$0xff]
      %v600 = vpack.c.bf16 %v598, %v597
      %v601 = vpack.c.bf16 %v599, %v599
      %s602 = scalar_lea.vmem %s1, 160
      %v603 = vld [vmem:[%s602] sm:$0xf]
      %v604 = vld [vmem:[%s602 + $0x4] sm:$0xf]
      %v605 = vld [vmem:[%s602 + $0x8] sm:$0xf]
      %v606 = vld [vmem:[%s602 + $0xc] sm:$0xf]
      %v607 = vld [vmem:[%s602 + $0x10] sm:$0xf]
      %v608 = vld [vmem:[%s602 + $0x14] sm:$0xf]
      %v609 = vld [vmem:[%s602 + $0x18] sm:$0xf]
      %v610 = vld [vmem:[%s602 + $0x1c] sm:$0xf]
      %v619 = vunpack.c.l.b16 %v603
      %v620 = vunpack.c.l.b16 %v604
      %v621 = vunpack.c.l.b16 %v605
      %v622 = vunpack.c.l.b16 %v606
      %v623 = vunpack.c.l.b16 %v607
      %v624 = vunpack.c.l.b16 %v608
      %v625 = vunpack.c.l.b16 %v609
      %v626 = vunpack.c.l.b16 %v610
      %v627 = vpack.c.b16 %v620, %v619
      %v628 = vpack.c.b16 %v622, %v621
      %v629 = vpack.c.b16 %v624, %v623
      %v630 = vpack.c.b16 %v626, %v625
      %v636 = vsel %vm329, %v600, 0
      %v639 = vsel %vm329, %v601, 0
      %641 = vmatpush.bf16.msra.mxu0 0
      %642 = vmatpush.bf16.msra.mxu0 0
      %643 = vmatpush.bf16.msra.mxu0 0
      %644 = vmatpush.bf16.msra.mxu0 0
      %645 = vmatpush.bf16.msra.mxu0 %v630
      %646 = vmatpush.bf16.msra.mxu0 %v629
      %647 = vmatpush.bf16.msra.mxu0 %v628
      %648 = vmatpush.bf16.msra.mxu0 %v627
      %649 = vmatmul.bf16.gmra.mxu0 %v636
      %v650 = vpop.f32.mrf.mxu0
      %v651 = vadd.f32 0.0, %v650
      %v652 = vpop.f32.mrf.mxu0
      %v653 = vadd.f32 0.0, %v652
      %654 = vmatmul.bf16.gmra.mxu0 %v639
      %v655 = vpop.f32.mrf.mxu0
      %v656 = vadd.f32 0.0, %v655
      %v657 = vpop.f32.mrf.mxu0
      %658 = vdwg.mxu0
      %v659 = vadd.f32 %v594, %v651
      %v660 = vadd.f32 %v595, %v653
      %v661 = vadd.f32 %v596, %v656
      %v662 = vld [vmem:[%s272 + $0xc] sm:$0xff]
      %v663 = vld [vmem:[%s272 + $0x14] sm:$0xff]
      %v664 = vld [vmem:[%s272 + $0x1c] sm:$0xff]
      %v665 = vpack.c.bf16 %v663, %v662
      %v666 = vpack.c.bf16 %v664, %v664
      %s667 = scalar_lea.vmem %s1, 192
      %v668 = vld [vmem:[%s667] sm:$0xf]
      %v669 = vld [vmem:[%s667 + $0x4] sm:$0xf]
      %v670 = vld [vmem:[%s667 + $0x8] sm:$0xf]
      %v671 = vld [vmem:[%s667 + $0xc] sm:$0xf]
      %v672 = vld [vmem:[%s667 + $0x10] sm:$0xf]
      %v673 = vld [vmem:[%s667 + $0x14] sm:$0xf]
      %v674 = vld [vmem:[%s667 + $0x18] sm:$0xf]
      %v675 = vld [vmem:[%s667 + $0x1c] sm:$0xf]
      %v684 = vunpack.c.l.b16 %v668
      %v685 = vunpack.c.l.b16 %v669
      %v686 = vunpack.c.l.b16 %v670
      %v687 = vunpack.c.l.b16 %v671
      %v688 = vunpack.c.l.b16 %v672
      %v689 = vunpack.c.l.b16 %v673
      %v690 = vunpack.c.l.b16 %v674
      %v691 = vunpack.c.l.b16 %v675
      %v692 = vpack.c.b16 %v685, %v684
      %v693 = vpack.c.b16 %v687, %v686
      %v694 = vpack.c.b16 %v689, %v688
      %v695 = vpack.c.b16 %v691, %v690
      %v701 = vsel %vm329, %v665, 0
      %v704 = vsel %vm329, %v666, 0
      %706 = vmatpush.bf16.msra.mxu0 0
      %707 = vmatpush.bf16.msra.mxu0 0
      %708 = vmatpush.bf16.msra.mxu0 0
      %709 = vmatpush.bf16.msra.mxu0 0
      %710 = vmatpush.bf16.msra.mxu0 %v695
      %711 = vmatpush.bf16.msra.mxu0 %v694
      %712 = vmatpush.bf16.msra.mxu0 %v693
      %713 = vmatpush.bf16.msra.mxu0 %v692
      %714 = vmatmul.bf16.gmra.mxu0 %v701
      %v715 = vpop.f32.mrf.mxu0
      %v716 = vadd.f32 0.0, %v715
      %v717 = vpop.f32.mrf.mxu0
      %v718 = vadd.f32 0.0, %v717
      %719 = vmatmul.bf16.gmra.mxu0 %v704
      %v720 = vpop.f32.mrf.mxu0
      %v721 = vadd.f32 0.0, %v720
      %v722 = vpop.f32.mrf.mxu0
      %723 = vdwg.mxu0
      %v724 = vadd.f32 %v659, %v716
      %v725 = vadd.f32 %v660, %v718
      %v726 = vadd.f32 %v661, %v721
      %v727 = vld [vmem:[%s272 + $0xd] sm:$0xff]
      %v728 = vld [vmem:[%s272 + $0x15] sm:$0xff]
      %v729 = vld [vmem:[%s272 + $0x1d] sm:$0xff]
      %v730 = vpack.c.bf16 %v728, %v727
      %v731 = vpack.c.bf16 %v729, %v729
      %s732 = scalar_lea.vmem %s1, 224
      %v733 = vld [vmem:[%s732] sm:$0xf]
      %v734 = vld [vmem:[%s732 + $0x4] sm:$0xf]
      %v735 = vld [vmem:[%s732 + $0x8] sm:$0xf]
      %v736 = vld [vmem:[%s732 + $0xc] sm:$0xf]
      %v737 = vld [vmem:[%s732 + $0x10] sm:$0xf]
      %v738 = vld [vmem:[%s732 + $0x14] sm:$0xf]
      %v739 = vld [vmem:[%s732 + $0x18] sm:$0xf]
      %v740 = vld [vmem:[%s732 + $0x1c] sm:$0xf]
      %v749 = vunpack.c.l.b16 %v733
      %v750 = vunpack.c.l.b16 %v734
      %v751 = vunpack.c.l.b16 %v735
      %v752 = vunpack.c.l.b16 %v736
      %v753 = vunpack.c.l.b16 %v737
      %v754 = vunpack.c.l.b16 %v738
      %v755 = vunpack.c.l.b16 %v739
      %v756 = vunpack.c.l.b16 %v740
      %v757 = vpack.c.b16 %v750, %v749
      %v758 = vpack.c.b16 %v752, %v751
      %v759 = vpack.c.b16 %v754, %v753
      %v760 = vpack.c.b16 %v756, %v755
      %v766 = vsel %vm329, %v730, 0
      %v769 = vsel %vm329, %v731, 0
      %771 = vmatpush.bf16.msra.mxu0 0
      %772 = vmatpush.bf16.msra.mxu0 0
      %773 = vmatpush.bf16.msra.mxu0 0
      %774 = vmatpush.bf16.msra.mxu0 0
      %775 = vmatpush.bf16.msra.mxu0 %v760
      %776 = vmatpush.bf16.msra.mxu0 %v759
      %777 = vmatpush.bf16.msra.mxu0 %v758
      %778 = vmatpush.bf16.msra.mxu0 %v757
      %779 = vmatmul.bf16.gmra.mxu0 %v766
      %v780 = vpop.f32.mrf.mxu0
      %v781 = vadd.f32 0.0, %v780
      %v782 = vpop.f32.mrf.mxu0
      %v783 = vadd.f32 0.0, %v782
      %784 = vmatmul.bf16.gmra.mxu0 %v769
      %v785 = vpop.f32.mrf.mxu0
      %v786 = vadd.f32 0.0, %v785
      %v787 = vpop.f32.mrf.mxu0
      %788 = vdwg.mxu0
      %v789 = vadd.f32 %v724, %v781
      %v790 = vadd.f32 %v725, %v783
      %v791 = vadd.f32 %v726, %v786
      %v792 = vld [vmem:[%s272 + $0xe] sm:$0xff]
      %v793 = vld [vmem:[%s272 + $0x16] sm:$0xff]
      %v794 = vld [vmem:[%s272 + $0x1e] sm:$0xff]
      %v795 = vpack.c.bf16 %v793, %v792
      %v796 = vpack.c.bf16 %v794, %v794
      %s797 = scalar_lea.vmem %s1, 256
      %v798 = vld [vmem:[%s797] sm:$0xf]
      %v799 = vld [vmem:[%s797 + $0x4] sm:$0xf]
      %v800 = vld [vmem:[%s797 + $0x8] sm:$0xf]
      %v801 = vld [vmem:[%s797 + $0xc] sm:$0xf]
      %v802 = vld [vmem:[%s797 + $0x10] sm:$0xf]
      %v803 = vld [vmem:[%s797 + $0x14] sm:$0xf]
      %v804 = vld [vmem:[%s797 + $0x18] sm:$0xf]
      %v805 = vld [vmem:[%s797 + $0x1c] sm:$0xf]
      %v814 = vunpack.c.l.b16 %v798
      %v815 = vunpack.c.l.b16 %v799
      %v816 = vunpack.c.l.b16 %v800
      %v817 = vunpack.c.l.b16 %v801
      %v818 = vunpack.c.l.b16 %v802
      %v819 = vunpack.c.l.b16 %v803
      %v820 = vunpack.c.l.b16 %v804
      %v821 = vunpack.c.l.b16 %v805
      %v822 = vpack.c.b16 %v815, %v814
      %v823 = vpack.c.b16 %v817, %v816
      %v824 = vpack.c.b16 %v819, %v818
      %v825 = vpack.c.b16 %v821, %v820
      %v831 = vsel %vm329, %v795, 0
      %v834 = vsel %vm329, %v796, 0
      %836 = vmatpush.bf16.msra.mxu0 0
      %837 = vmatpush.bf16.msra.mxu0 0
      %838 = vmatpush.bf16.msra.mxu0 0
      %839 = vmatpush.bf16.msra.mxu0 0
      %840 = vmatpush.bf16.msra.mxu0 %v825
      %841 = vmatpush.bf16.msra.mxu0 %v824
      %842 = vmatpush.bf16.msra.mxu0 %v823
      %843 = vmatpush.bf16.msra.mxu0 %v822
      %844 = vmatmul.bf16.gmra.mxu0 %v831
      %v845 = vpop.f32.mrf.mxu0
      %v846 = vadd.f32 0.0, %v845
      %v847 = vpop.f32.mrf.mxu0
      %v848 = vadd.f32 0.0, %v847
      %849 = vmatmul.bf16.gmra.mxu0 %v834
      %v850 = vpop.f32.mrf.mxu0
      %v851 = vadd.f32 0.0, %v850
      %v852 = vpop.f32.mrf.mxu0
      %853 = vdwg.mxu0
      %v854 = vadd.f32 %v789, %v846
      %v855 = vadd.f32 %v790, %v848
      %v856 = vadd.f32 %v791, %v851
      %v857 = vld [vmem:[%s2] sm:$0x1]
      %v859 = vperm.slane %v857, 0
      %v861 = vadd.f32 %v854, %v859
      %v862 = vadd.f32 %v855, %v859
      %v863 = vadd.f32 %v856, %v859
      %v864 = vmax.f32 %v861, 0.0
      %v865 = vmax.f32 %v862, 0.0
      %v866 = vmax.f32 %v863, 0.0
      %v867 = vld [vmem:[%s5] sm:$0xff]
      %v868 = vld [vmem:[%s5 + $0x8] sm:$0xff]
      %v869 = vld [vmem:[%s5 + $0x10] sm:$0xff]
      %871 = vset.pattern.permute.xlu0 0
      %872 = vperm.xlu0 %871, %v867
      %v873 = vpop.permute.xlu0 %872
      %876 = vset.pattern.permute.xlu0 0
      %877 = vperm.xlu0 %876, %v868
      %v878 = vpop.permute.xlu0 %877
      %881 = vset.pattern.permute.xlu0 0
      %882 = vperm.xlu0 %881, %v869
      %v883 = vpop.permute.xlu0 %882
      %v885 = vmul.f32 %v864, %v873
      %v886 = vmul.f32 %v865, %v878
      %v887 = vmul.f32 %v866, %v883
      %888 = vst [vmem:[#allocation2] sm:$0xff] 0.0
      %889 = vst [vmem:[#allocation2 + $0x8] sm:$0xff] 0.0
      %890 = vst [vmem:[#allocation2 + $0x10] sm:$0xff] 0.0
      %891 = vst [vmem:[#allocation2 + $0x18] sm:$0xff] 0.0
      %892 = vst [vmem:[#allocation2 + $0x20] sm:$0x3f] 0.0
      %893 = vst [vmem:[#allocation2 + $0x7] sm:$0xff] %v885
      %894 = vst [vmem:[#allocation2 + $0xf] sm:$0xff] %v886
      %895 = vst [vmem:[#allocation2 + $0x17] sm:$0xff] %v887
      %v896 = vld [vmem:[#allocation2] sm:$0xff]
      %v897 = vld [vmem:[#allocation2 + $0x8] sm:$0xff]
      %v898 = vld [vmem:[#allocation2 + $0x10] sm:$0xff]
      %v899 = vpack.c.bf16 %v897, %v896
      %v900 = vpack.c.bf16 %v898, %v898
      %v901 = vld [vmem:[%s3] sm:$0xf]
      %v902 = vld [vmem:[%s3 + $0x4] sm:$0xf]
      %v903 = vld [vmem:[%s3 + $0x8] sm:$0xf]
      %v904 = vld [vmem:[%s3 + $0xc] sm:$0xf]
      %v905 = vld [vmem:[%s3 + $0x10] sm:$0xf]
      %v906 = vld [vmem:[%s3 + $0x14] sm:$0xf]
      %v907 = vld [vmem:[%s3 + $0x18] sm:$0xf]
      %v908 = vld [vmem:[%s3 + $0x1c] sm:$0xf]
      %v909 = vld [vmem:[%s3 + $0x20] sm:$0xf]
      %v910 = vld [vmem:[%s3 + $0x24] sm:$0xf]
      %v911 = vld [vmem:[%s3 + $0x28] sm:$0xf]
      %v912 = vld [vmem:[%s3 + $0x2c] sm:$0xf]
      %v913 = vld [vmem:[%s3 + $0x30] sm:$0xf]
      %v914 = vld [vmem:[%s3 + $0x34] sm:$0xf]
      %v915 = vld [vmem:[%s3 + $0x38] sm:$0xf]
      %v916 = vld [vmem:[%s3 + $0x3c] sm:$0xf]
      %v917 = vld [vmem:[#allocation2 + $0x1] sm:$0xff]
      %v918 = vld [vmem:[#allocation2 + $0x9] sm:$0xff]
      %v919 = vld [vmem:[#allocation2 + $0x11] sm:$0xff]
      %v920 = vpack.c.bf16 %v918, %v917
      %v921 = vpack.c.bf16 %v919, %v919
      %s922 = scalar_lea.vmem %s3, 64
      %v923 = vld [vmem:[%s922] sm:$0xf]
      %v924 = vld [vmem:[%s922 + $0x4] sm:$0xf]
      %v925 = vld [vmem:[%s922 + $0x8] sm:$0xf]
      %v926 = vld [vmem:[%s922 + $0xc] sm:$0xf]
      %v927 = vld [vmem:[%s922 + $0x10] sm:$0xf]
      %v928 = vld [vmem:[%s922 + $0x14] sm:$0xf]
      %v929 = vld [vmem:[%s922 + $0x18] sm:$0xf]
      %v930 = vld [vmem:[%s922 + $0x1c] sm:$0xf]
      %v931 = vld [vmem:[%s922 + $0x20] sm:$0xf]
      %v932 = vld [vmem:[%s922 + $0x24] sm:$0xf]
      %v933 = vld [vmem:[%s922 + $0x28] sm:$0xf]
      %v934 = vld [vmem:[%s922 + $0x2c] sm:$0xf]
      %v935 = vld [vmem:[%s922 + $0x30] sm:$0xf]
      %v936 = vld [vmem:[%s922 + $0x34] sm:$0xf]
      %v937 = vld [vmem:[%s922 + $0x38] sm:$0xf]
      %v938 = vld [vmem:[%s922 + $0x3c] sm:$0xf]
      %v955 = vunpack.c.l.b16 %v923
      %v956 = vunpack.c.l.b16 %v924
      %v957 = vunpack.c.l.b16 %v925
      %v958 = vunpack.c.l.b16 %v926
      %v959 = vunpack.c.l.b16 %v927
      %v960 = vunpack.c.l.b16 %v928
      %v961 = vunpack.c.l.b16 %v929
      %v962 = vunpack.c.l.b16 %v930
      %v963 = vunpack.c.l.b16 %v931
      %v964 = vunpack.c.l.b16 %v932
      %v965 = vunpack.c.l.b16 %v933
      %v966 = vunpack.c.l.b16 %v934
      %v967 = vunpack.c.l.b16 %v935
      %v968 = vunpack.c.l.b16 %v936
      %v969 = vunpack.c.l.b16 %v937
      %v970 = vunpack.c.l.b16 %v938
      %v971 = vpack.c.b16 %v956, %v955
      %v972 = vpack.c.b16 %v958, %v957
      %v973 = vpack.c.b16 %v960, %v959
      %v974 = vpack.c.b16 %v962, %v961
      %v975 = vpack.c.b16 %v964, %v963
      %v976 = vpack.c.b16 %v966, %v965
      %v977 = vpack.c.b16 %v968, %v967
      %v978 = vpack.c.b16 %v970, %v969
      %987 = vmatpush.bf16.msra.mxu0 %v978
      %988 = vmatpush.bf16.msra.mxu0 %v977
      %989 = vmatpush.bf16.msra.mxu0 %v976
      %990 = vmatpush.bf16.msra.mxu0 %v975
      %991 = vmatpush.bf16.msra.mxu0 %v974
      %992 = vmatpush.bf16.msra.mxu0 %v973
      %993 = vmatpush.bf16.msra.mxu0 %v972
      %994 = vmatpush.bf16.msra.mxu0 %v971
      %995 = vmatmul.bf16.gmra.mxu0 %v920
      %v996 = vpop.f32.mrf.mxu0
      %v997 = vadd.f32 0.0, %v996
      %v998 = vpop.f32.mrf.mxu0
      %v999 = vadd.f32 0.0, %v998
      %1000 = vmatmul.bf16.gmra.mxu0 %v921
      %v1001 = vpop.f32.mrf.mxu0
      %v1002 = vadd.f32 0.0, %v1001
      %v1003 = vpop.f32.mrf.mxu0
      %1004 = vdwg.mxu0
      %v1021 = vunpack.c.l.b16 %v901
      %v1022 = vunpack.c.l.b16 %v902
      %v1023 = vunpack.c.l.b16 %v903
      %v1024 = vunpack.c.l.b16 %v904
      %v1025 = vunpack.c.l.b16 %v905
      %v1026 = vunpack.c.l.b16 %v906
      %v1027 = vunpack.c.l.b16 %v907
      %v1028 = vunpack.c.l.b16 %v908
      %v1029 = vunpack.c.l.b16 %v909
      %v1030 = vunpack.c.l.b16 %v910
      %v1031 = vunpack.c.l.b16 %v911
      %v1032 = vunpack.c.l.b16 %v912
      %v1033 = vunpack.c.l.b16 %v913
      %v1034 = vunpack.c.l.b16 %v914
      %v1035 = vunpack.c.l.b16 %v915
      %v1036 = vunpack.c.l.b16 %v916
      %v1037 = vpack.c.b16 %v1022, %v1021
      %v1038 = vpack.c.b16 %v1024, %v1023
      %v1039 = vpack.c.b16 %v1026, %v1025
      %v1040 = vpack.c.b16 %v1028, %v1027
      %v1041 = vpack.c.b16 %v1030, %v1029
      %v1042 = vpack.c.b16 %v1032, %v1031
      %v1043 = vpack.c.b16 %v1034, %v1033
      %v1044 = vpack.c.b16 %v1036, %v1035
      %1053 = vmatpush.bf16.msra.mxu0 %v1044
      %1054 = vmatpush.bf16.msra.mxu0 %v1043
      %1055 = vmatpush.bf16.msra.mxu0 %v1042
      %1056 = vmatpush.bf16.msra.mxu0 %v1041
      %1057 = vmatpush.bf16.msra.mxu0 %v1040
      %1058 = vmatpush.bf16.msra.mxu0 %v1039
      %1059 = vmatpush.bf16.msra.mxu0 %v1038
      %1060 = vmatpush.bf16.msra.mxu0 %v1037
      %1061 = vmatmul.bf16.gmra.mxu0 %v899
      %v1062 = vpop.f32.mrf.mxu0
      %v1063 = vadd.f32 %v997, %v1062
      %v1064 = vpop.f32.mrf.mxu0
      %v1065 = vadd.f32 %v999, %v1064
      %1066 = vmatmul.bf16.gmra.mxu0 %v900
      %v1067 = vpop.f32.mrf.mxu0
      %v1068 = vadd.f32 %v1002, %v1067
      %v1069 = vpop.f32.mrf.mxu0
      %1070 = vdwg.mxu0
      %v1071 = vld [vmem:[#allocation2 + $0x2] sm:$0xff]
      %v1072 = vld [vmem:[#allocation2 + $0xa] sm:$0xff]
      %v1073 = vld [vmem:[#allocation2 + $0x12] sm:$0xff]
      %v1074 = vpack.c.bf16 %v1072, %v1071
      %v1075 = vpack.c.bf16 %v1073, %v1073
      %s1076 = scalar_lea.vmem %s3, 128
      %v1077 = vld [vmem:[%s1076] sm:$0xf]
      %v1078 = vld [vmem:[%s1076 + $0x4] sm:$0xf]
      %v1079 = vld [vmem:[%s1076 + $0x8] sm:$0xf]
      %v1080 = vld [vmem:[%s1076 + $0xc] sm:$0xf]
      %v1081 = vld [vmem:[%s1076 + $0x10] sm:$0xf]
      %v1082 = vld [vmem:[%s1076 + $0x14] sm:$0xf]
      %v1083 = vld [vmem:[%s1076 + $0x18] sm:$0xf]
      %v1084 = vld [vmem:[%s1076 + $0x1c] sm:$0xf]
      %v1085 = vld [vmem:[%s1076 + $0x20] sm:$0xf]
      %v1086 = vld [vmem:[%s1076 + $0x24] sm:$0xf]
      %v1087 = vld [vmem:[%s1076 + $0x28] sm:$0xf]
      %v1088 = vld [vmem:[%s1076 + $0x2c] sm:$0xf]
      %v1089 = vld [vmem:[%s1076 + $0x30] sm:$0xf]
      %v1090 = vld [vmem:[%s1076 + $0x34] sm:$0xf]
      %v1091 = vld [vmem:[%s1076 + $0x38] sm:$0xf]
      %v1092 = vld [vmem:[%s1076 + $0x3c] sm:$0xf]
      %v1109 = vunpack.c.l.b16 %v1077
      %v1110 = vunpack.c.l.b16 %v1078
      %v1111 = vunpack.c.l.b16 %v1079
      %v1112 = vunpack.c.l.b16 %v1080
      %v1113 = vunpack.c.l.b16 %v1081
      %v1114 = vunpack.c.l.b16 %v1082
      %v1115 = vunpack.c.l.b16 %v1083
      %v1116 = vunpack.c.l.b16 %v1084
      %v1117 = vunpack.c.l.b16 %v1085
      %v1118 = vunpack.c.l.b16 %v1086
      %v1119 = vunpack.c.l.b16 %v1087
      %v1120 = vunpack.c.l.b16 %v1088
      %v1121 = vunpack.c.l.b16 %v1089
      %v1122 = vunpack.c.l.b16 %v1090
      %v1123 = vunpack.c.l.b16 %v1091
      %v1124 = vunpack.c.l.b16 %v1092
      %v1125 = vpack.c.b16 %v1110, %v1109
      %v1126 = vpack.c.b16 %v1112, %v1111
      %v1127 = vpack.c.b16 %v1114, %v1113
      %v1128 = vpack.c.b16 %v1116, %v1115
      %v1129 = vpack.c.b16 %v1118, %v1117
      %v1130 = vpack.c.b16 %v1120, %v1119
      %v1131 = vpack.c.b16 %v1122, %v1121
      %v1132 = vpack.c.b16 %v1124, %v1123
      %1141 = vmatpush.bf16.msra.mxu0 %v1132
      %1142 = vmatpush.bf16.msra.mxu0 %v1131
      %1143 = vmatpush.bf16.msra.mxu0 %v1130
      %1144 = vmatpush.bf16.msra.mxu0 %v1129
      %1145 = vmatpush.bf16.msra.mxu0 %v1128
      %1146 = vmatpush.bf16.msra.mxu0 %v1127
      %1147 = vmatpush.bf16.msra.mxu0 %v1126
      %1148 = vmatpush.bf16.msra.mxu0 %v1125
      %1149 = vmatmul.bf16.gmra.mxu0 %v1074
      %v1150 = vpop.f32.mrf.mxu0
      %v1151 = vadd.f32 0.0, %v1150
      %v1152 = vpop.f32.mrf.mxu0
      %v1153 = vadd.f32 0.0, %v1152
      %1154 = vmatmul.bf16.gmra.mxu0 %v1075
      %v1155 = vpop.f32.mrf.mxu0
      %v1156 = vadd.f32 0.0, %v1155
      %v1157 = vpop.f32.mrf.mxu0
      %1158 = vdwg.mxu0
      %v1159 = vadd.f32 %v1063, %v1151
      %v1160 = vadd.f32 %v1065, %v1153
      %v1161 = vadd.f32 %v1068, %v1156
      %v1162 = vld [vmem:[#allocation2 + $0x6] sm:$0xff]
      %v1163 = vld [vmem:[#allocation2 + $0xe] sm:$0xff]
      %v1164 = vld [vmem:[#allocation2 + $0x16] sm:$0xff]
      %v1165 = vpack.c.bf16 %v1163, %v1162
      %v1166 = vpack.c.bf16 %v1164, %v1164
      %s1167 = scalar_lea.vmem %s3, 192
      %v1168 = vld [vmem:[%s1167] sm:$0xf]
      %v1169 = vld [vmem:[%s1167 + $0x4] sm:$0xf]
      %v1170 = vld [vmem:[%s1167 + $0x8] sm:$0xf]
      %v1171 = vld [vmem:[%s1167 + $0xc] sm:$0xf]
      %v1172 = vld [vmem:[%s1167 + $0x10] sm:$0xf]
      %v1173 = vld [vmem:[%s1167 + $0x14] sm:$0xf]
      %v1174 = vld [vmem:[%s1167 + $0x18] sm:$0xf]
      %v1175 = vld [vmem:[%s1167 + $0x1c] sm:$0xf]
      %v1176 = vld [vmem:[%s1167 + $0x20] sm:$0xf]
      %v1177 = vld [vmem:[%s1167 + $0x24] sm:$0xf]
      %v1178 = vld [vmem:[%s1167 + $0x28] sm:$0xf]
      %v1179 = vld [vmem:[%s1167 + $0x2c] sm:$0xf]
      %v1180 = vld [vmem:[%s1167 + $0x30] sm:$0xf]
      %v1181 = vld [vmem:[%s1167 + $0x34] sm:$0xf]
      %v1182 = vld [vmem:[%s1167 + $0x38] sm:$0xf]
      %v1183 = vld [vmem:[%s1167 + $0x3c] sm:$0xf]
      %v1200 = vunpack.c.l.b16 %v1168
      %v1201 = vunpack.c.l.b16 %v1169
      %v1202 = vunpack.c.l.b16 %v1170
      %v1203 = vunpack.c.l.b16 %v1171
      %v1204 = vunpack.c.l.b16 %v1172
      %v1205 = vunpack.c.l.b16 %v1173
      %v1206 = vunpack.c.l.b16 %v1174
      %v1207 = vunpack.c.l.b16 %v1175
      %v1208 = vunpack.c.l.b16 %v1176
      %v1209 = vunpack.c.l.b16 %v1177
      %v1210 = vunpack.c.l.b16 %v1178
      %v1211 = vunpack.c.l.b16 %v1179
      %v1212 = vunpack.c.l.b16 %v1180
      %v1213 = vunpack.c.l.b16 %v1181
      %v1214 = vunpack.c.l.b16 %v1182
      %v1215 = vunpack.c.l.b16 %v1183
      %v1216 = vpack.c.b16 %v1201, %v1200
      %v1217 = vpack.c.b16 %v1203, %v1202
      %v1218 = vpack.c.b16 %v1205, %v1204
      %v1219 = vpack.c.b16 %v1207, %v1206
      %v1220 = vpack.c.b16 %v1209, %v1208
      %v1221 = vpack.c.b16 %v1211, %v1210
      %v1222 = vpack.c.b16 %v1213, %v1212
      %v1223 = vpack.c.b16 %v1215, %v1214
      %1232 = vmatpush.bf16.msra.mxu0 %v1223
      %1233 = vmatpush.bf16.msra.mxu0 %v1222
      %1234 = vmatpush.bf16.msra.mxu0 %v1221
      %1235 = vmatpush.bf16.msra.mxu0 %v1220
      %1236 = vmatpush.bf16.msra.mxu0 %v1219
      %1237 = vmatpush.bf16.msra.mxu0 %v1218
      %1238 = vmatpush.bf16.msra.mxu0 %v1217
      %1239 = vmatpush.bf16.msra.mxu0 %v1216
      %1240 = vmatmul.bf16.gmra.mxu0 %v1165
      %v1241 = vpop.f32.mrf.mxu0
      %v1242 = vadd.f32 0.0, %v1241
      %v1243 = vpop.f32.mrf.mxu0
      %v1244 = vadd.f32 0.0, %v1243
      %1245 = vmatmul.bf16.gmra.mxu0 %v1166
      %v1246 = vpop.f32.mrf.mxu0
      %v1247 = vadd.f32 0.0, %v1246
      %v1248 = vpop.f32.mrf.mxu0
      %1249 = vdwg.mxu0
      %v1250 = vadd.f32 %v1159, %v1242
      %v1251 = vadd.f32 %v1160, %v1244
      %v1252 = vadd.f32 %v1161, %v1247
      %v1253 = vld [vmem:[#allocation2 + $0x7] sm:$0xff]
      %v1254 = vld [vmem:[#allocation2 + $0xf] sm:$0xff]
      %v1255 = vld [vmem:[#allocation2 + $0x17] sm:$0xff]
      %v1256 = vpack.c.bf16 %v1254, %v1253
      %v1257 = vpack.c.bf16 %v1255, %v1255
      %s1258 = scalar_lea.vmem %s3, 256
      %v1259 = vld [vmem:[%s1258] sm:$0xf]
      %v1260 = vld [vmem:[%s1258 + $0x4] sm:$0xf]
      %v1261 = vld [vmem:[%s1258 + $0x8] sm:$0xf]
      %v1262 = vld [vmem:[%s1258 + $0xc] sm:$0xf]
      %v1263 = vld [vmem:[%s1258 + $0x10] sm:$0xf]
      %v1264 = vld [vmem:[%s1258 + $0x14] sm:$0xf]
      %v1265 = vld [vmem:[%s1258 + $0x18] sm:$0xf]
      %v1266 = vld [vmem:[%s1258 + $0x1c] sm:$0xf]
      %v1267 = vld [vmem:[%s1258 + $0x20] sm:$0xf]
      %v1268 = vld [vmem:[%s1258 + $0x24] sm:$0xf]
      %v1269 = vld [vmem:[%s1258 + $0x28] sm:$0xf]
      %v1270 = vld [vmem:[%s1258 + $0x2c] sm:$0xf]
      %v1271 = vld [vmem:[%s1258 + $0x30] sm:$0xf]
      %v1272 = vld [vmem:[%s1258 + $0x34] sm:$0xf]
      %v1273 = vld [vmem:[%s1258 + $0x38] sm:$0xf]
      %v1274 = vld [vmem:[%s1258 + $0x3c] sm:$0xf]
      %v1291 = vunpack.c.l.b16 %v1259
      %v1292 = vunpack.c.l.b16 %v1260
      %v1293 = vunpack.c.l.b16 %v1261
      %v1294 = vunpack.c.l.b16 %v1262
      %v1295 = vunpack.c.l.b16 %v1263
      %v1296 = vunpack.c.l.b16 %v1264
      %v1297 = vunpack.c.l.b16 %v1265
      %v1298 = vunpack.c.l.b16 %v1266
      %v1299 = vunpack.c.l.b16 %v1267
      %v1300 = vunpack.c.l.b16 %v1268
      %v1301 = vunpack.c.l.b16 %v1269
      %v1302 = vunpack.c.l.b16 %v1270
      %v1303 = vunpack.c.l.b16 %v1271
      %v1304 = vunpack.c.l.b16 %v1272
      %v1305 = vunpack.c.l.b16 %v1273
      %v1306 = vunpack.c.l.b16 %v1274
      %v1307 = vpack.c.b16 %v1292, %v1291
      %v1308 = vpack.c.b16 %v1294, %v1293
      %v1309 = vpack.c.b16 %v1296, %v1295
      %v1310 = vpack.c.b16 %v1298, %v1297
      %v1311 = vpack.c.b16 %v1300, %v1299
      %v1312 = vpack.c.b16 %v1302, %v1301
      %v1313 = vpack.c.b16 %v1304, %v1303
      %v1314 = vpack.c.b16 %v1306, %v1305
      %1323 = vmatpush.bf16.msra.mxu0 %v1314
      %1324 = vmatpush.bf16.msra.mxu0 %v1313
      %1325 = vmatpush.bf16.msra.mxu0 %v1312
      %1326 = vmatpush.bf16.msra.mxu0 %v1311
      %1327 = vmatpush.bf16.msra.mxu0 %v1310
      %1328 = vmatpush.bf16.msra.mxu0 %v1309
      %1329 = vmatpush.bf16.msra.mxu0 %v1308
      %1330 = vmatpush.bf16.msra.mxu0 %v1307
      %1331 = vmatmul.bf16.gmra.mxu0 %v1256
      %v1332 = vpop.f32.mrf.mxu0
      %v1333 = vadd.f32 0.0, %v1332
      %v1334 = vpop.f32.mrf.mxu0
      %v1335 = vadd.f32 0.0, %v1334
      %1336 = vmatmul.bf16.gmra.mxu0 %v1257
      %v1337 = vpop.f32.mrf.mxu0
      %v1338 = vadd.f32 0.0, %v1337
      %v1339 = vpop.f32.mrf.mxu0
      %1340 = vdwg.mxu0
      %v1341 = vadd.f32 %v1250, %v1333
      %v1342 = vadd.f32 %v1251, %v1335
      %v1343 = vadd.f32 %v1252, %v1338
      %v1344 = vld [vmem:[#allocation2 + $0x8] sm:$0xff]
      %v1345 = vld [vmem:[#allocation2 + $0x10] sm:$0xff]
      %v1346 = vld [vmem:[#allocation2 + $0x18] sm:$0xff]
      %v1347 = vpack.c.bf16 %v1345, %v1344
      %v1348 = vpack.c.bf16 %v1346, %v1346
      %s1349 = scalar_lea.vmem %s3, 320
      %v1350 = vld [vmem:[%s1349] sm:$0xf]
      %v1351 = vld [vmem:[%s1349 + $0x4] sm:$0xf]
      %v1352 = vld [vmem:[%s1349 + $0x8] sm:$0xf]
      %v1353 = vld [vmem:[%s1349 + $0xc] sm:$0xf]
      %v1354 = vld [vmem:[%s1349 + $0x10] sm:$0xf]
      %v1355 = vld [vmem:[%s1349 + $0x14] sm:$0xf]
      %v1356 = vld [vmem:[%s1349 + $0x18] sm:$0xf]
      %v1357 = vld [vmem:[%s1349 + $0x1c] sm:$0xf]
      %v1358 = vld [vmem:[%s1349 + $0x20] sm:$0xf]
      %v1359 = vld [vmem:[%s1349 + $0x24] sm:$0xf]
      %v1360 = vld [vmem:[%s1349 + $0x28] sm:$0xf]
      %v1361 = vld [vmem:[%s1349 + $0x2c] sm:$0xf]
      %v1362 = vld [vmem:[%s1349 + $0x30] sm:$0xf]
      %v1363 = vld [vmem:[%s1349 + $0x34] sm:$0xf]
      %v1364 = vld [vmem:[%s1349 + $0x38] sm:$0xf]
      %v1365 = vld [vmem:[%s1349 + $0x3c] sm:$0xf]
      %v1382 = vunpack.c.l.b16 %v1350
      %v1383 = vunpack.c.l.b16 %v1351
      %v1384 = vunpack.c.l.b16 %v1352
      %v1385 = vunpack.c.l.b16 %v1353
      %v1386 = vunpack.c.l.b16 %v1354
      %v1387 = vunpack.c.l.b16 %v1355
      %v1388 = vunpack.c.l.b16 %v1356
      %v1389 = vunpack.c.l.b16 %v1357
      %v1390 = vunpack.c.l.b16 %v1358
      %v1391 = vunpack.c.l.b16 %v1359
      %v1392 = vunpack.c.l.b16 %v1360
      %v1393 = vunpack.c.l.b16 %v1361
      %v1394 = vunpack.c.l.b16 %v1362
      %v1395 = vunpack.c.l.b16 %v1363
      %v1396 = vunpack.c.l.b16 %v1364
      %v1397 = vunpack.c.l.b16 %v1365
      %v1398 = vpack.c.b16 %v1383, %v1382
      %v1399 = vpack.c.b16 %v1385, %v1384
      %v1400 = vpack.c.b16 %v1387, %v1386
      %v1401 = vpack.c.b16 %v1389, %v1388
      %v1402 = vpack.c.b16 %v1391, %v1390
      %v1403 = vpack.c.b16 %v1393, %v1392
      %v1404 = vpack.c.b16 %v1395, %v1394
      %v1405 = vpack.c.b16 %v1397, %v1396
      %1414 = vmatpush.bf16.msra.mxu0 %v1405
      %1415 = vmatpush.bf16.msra.mxu0 %v1404
      %1416 = vmatpush.bf16.msra.mxu0 %v1403
      %1417 = vmatpush.bf16.msra.mxu0 %v1402
      %1418 = vmatpush.bf16.msra.mxu0 %v1401
      %1419 = vmatpush.bf16.msra.mxu0 %v1400
      %1420 = vmatpush.bf16.msra.mxu0 %v1399
      %1421 = vmatpush.bf16.msra.mxu0 %v1398
      %1422 = vmatmul.bf16.gmra.mxu0 %v1347
      %v1423 = vpop.f32.mrf.mxu0
      %v1424 = vadd.f32 0.0, %v1423
      %v1425 = vpop.f32.mrf.mxu0
      %v1426 = vadd.f32 0.0, %v1425
      %1427 = vmatmul.bf16.gmra.mxu0 %v1348
      %v1428 = vpop.f32.mrf.mxu0
      %v1429 = vadd.f32 0.0, %v1428
      %v1430 = vpop.f32.mrf.mxu0
      %1431 = vdwg.mxu0
      %v1432 = vadd.f32 %v1341, %v1424
      %v1433 = vadd.f32 %v1342, %v1426
      %v1434 = vadd.f32 %v1343, %v1429
      %v1435 = vld [vmem:[#allocation2 + $0xc] sm:$0xff]
      %v1436 = vld [vmem:[#allocation2 + $0x14] sm:$0xff]
      %v1437 = vld [vmem:[#allocation2 + $0x1c] sm:$0xff]
      %v1438 = vpack.c.bf16 %v1436, %v1435
      %v1439 = vpack.c.bf16 %v1437, %v1437
      %s1440 = scalar_lea.vmem %s3, 384
      %v1441 = vld [vmem:[%s1440] sm:$0xf]
      %v1442 = vld [vmem:[%s1440 + $0x4] sm:$0xf]
      %v1443 = vld [vmem:[%s1440 + $0x8] sm:$0xf]
      %v1444 = vld [vmem:[%s1440 + $0xc] sm:$0xf]
      %v1445 = vld [vmem:[%s1440 + $0x10] sm:$0xf]
      %v1446 = vld [vmem:[%s1440 + $0x14] sm:$0xf]
      %v1447 = vld [vmem:[%s1440 + $0x18] sm:$0xf]
      %v1448 = vld [vmem:[%s1440 + $0x1c] sm:$0xf]
      %v1449 = vld [vmem:[%s1440 + $0x20] sm:$0xf]
      %v1450 = vld [vmem:[%s1440 + $0x24] sm:$0xf]
      %v1451 = vld [vmem:[%s1440 + $0x28] sm:$0xf]
      %v1452 = vld [vmem:[%s1440 + $0x2c] sm:$0xf]
      %v1453 = vld [vmem:[%s1440 + $0x30] sm:$0xf]
      %v1454 = vld [vmem:[%s1440 + $0x34] sm:$0xf]
      %v1455 = vld [vmem:[%s1440 + $0x38] sm:$0xf]
      %v1456 = vld [vmem:[%s1440 + $0x3c] sm:$0xf]
      %v1473 = vunpack.c.l.b16 %v1441
      %v1474 = vunpack.c.l.b16 %v1442
      %v1475 = vunpack.c.l.b16 %v1443
      %v1476 = vunpack.c.l.b16 %v1444
      %v1477 = vunpack.c.l.b16 %v1445
      %v1478 = vunpack.c.l.b16 %v1446
      %v1479 = vunpack.c.l.b16 %v1447
      %v1480 = vunpack.c.l.b16 %v1448
      %v1481 = vunpack.c.l.b16 %v1449
      %v1482 = vunpack.c.l.b16 %v1450
      %v1483 = vunpack.c.l.b16 %v1451
      %v1484 = vunpack.c.l.b16 %v1452
      %v1485 = vunpack.c.l.b16 %v1453
      %v1486 = vunpack.c.l.b16 %v1454
      %v1487 = vunpack.c.l.b16 %v1455
      %v1488 = vunpack.c.l.b16 %v1456
      %v1489 = vpack.c.b16 %v1474, %v1473
      %v1490 = vpack.c.b16 %v1476, %v1475
      %v1491 = vpack.c.b16 %v1478, %v1477
      %v1492 = vpack.c.b16 %v1480, %v1479
      %v1493 = vpack.c.b16 %v1482, %v1481
      %v1494 = vpack.c.b16 %v1484, %v1483
      %v1495 = vpack.c.b16 %v1486, %v1485
      %v1496 = vpack.c.b16 %v1488, %v1487
      %1505 = vmatpush.bf16.msra.mxu0 %v1496
      %1506 = vmatpush.bf16.msra.mxu0 %v1495
      %1507 = vmatpush.bf16.msra.mxu0 %v1494
      %1508 = vmatpush.bf16.msra.mxu0 %v1493
      %1509 = vmatpush.bf16.msra.mxu0 %v1492
      %1510 = vmatpush.bf16.msra.mxu0 %v1491
      %1511 = vmatpush.bf16.msra.mxu0 %v1490
      %1512 = vmatpush.bf16.msra.mxu0 %v1489
      %1513 = vmatmul.bf16.gmra.mxu0 %v1438
      %v1514 = vpop.f32.mrf.mxu0
      %v1515 = vadd.f32 0.0, %v1514
      %v1516 = vpop.f32.mrf.mxu0
      %v1517 = vadd.f32 0.0, %v1516
      %1518 = vmatmul.bf16.gmra.mxu0 %v1439
      %v1519 = vpop.f32.mrf.mxu0
      %v1520 = vadd.f32 0.0, %v1519
      %v1521 = vpop.f32.mrf.mxu0
      %1522 = vdwg.mxu0
      %v1523 = vadd.f32 %v1432, %v1515
      %v1524 = vadd.f32 %v1433, %v1517
      %v1525 = vadd.f32 %v1434, %v1520
      %v1526 = vld [vmem:[#allocation2 + $0xd] sm:$0xff]
      %v1527 = vld [vmem:[#allocation2 + $0x15] sm:$0xff]
      %v1528 = vld [vmem:[#allocation2 + $0x1d] sm:$0xff]
      %v1529 = vpack.c.bf16 %v1527, %v1526
      %v1530 = vpack.c.bf16 %v1528, %v1528
      %s1531 = scalar_lea.vmem %s3, 448
      %v1532 = vld [vmem:[%s1531] sm:$0xf]
      %v1533 = vld [vmem:[%s1531 + $0x4] sm:$0xf]
      %v1534 = vld [vmem:[%s1531 + $0x8] sm:$0xf]
      %v1535 = vld [vmem:[%s1531 + $0xc] sm:$0xf]
      %v1536 = vld [vmem:[%s1531 + $0x10] sm:$0xf]
      %v1537 = vld [vmem:[%s1531 + $0x14] sm:$0xf]
      %v1538 = vld [vmem:[%s1531 + $0x18] sm:$0xf]
      %v1539 = vld [vmem:[%s1531 + $0x1c] sm:$0xf]
      %v1540 = vld [vmem:[%s1531 + $0x20] sm:$0xf]
      %v1541 = vld [vmem:[%s1531 + $0x24] sm:$0xf]
      %v1542 = vld [vmem:[%s1531 + $0x28] sm:$0xf]
      %v1543 = vld [vmem:[%s1531 + $0x2c] sm:$0xf]
      %v1544 = vld [vmem:[%s1531 + $0x30] sm:$0xf]
      %v1545 = vld [vmem:[%s1531 + $0x34] sm:$0xf]
      %v1546 = vld [vmem:[%s1531 + $0x38] sm:$0xf]
      %v1547 = vld [vmem:[%s1531 + $0x3c] sm:$0xf]
      %v1564 = vunpack.c.l.b16 %v1532
      %v1565 = vunpack.c.l.b16 %v1533
      %v1566 = vunpack.c.l.b16 %v1534
      %v1567 = vunpack.c.l.b16 %v1535
      %v1568 = vunpack.c.l.b16 %v1536
      %v1569 = vunpack.c.l.b16 %v1537
      %v1570 = vunpack.c.l.b16 %v1538
      %v1571 = vunpack.c.l.b16 %v1539
      %v1572 = vunpack.c.l.b16 %v1540
      %v1573 = vunpack.c.l.b16 %v1541
      %v1574 = vunpack.c.l.b16 %v1542
      %v1575 = vunpack.c.l.b16 %v1543
      %v1576 = vunpack.c.l.b16 %v1544
      %v1577 = vunpack.c.l.b16 %v1545
      %v1578 = vunpack.c.l.b16 %v1546
      %v1579 = vunpack.c.l.b16 %v1547
      %v1580 = vpack.c.b16 %v1565, %v1564
      %v1581 = vpack.c.b16 %v1567, %v1566
      %v1582 = vpack.c.b16 %v1569, %v1568
      %v1583 = vpack.c.b16 %v1571, %v1570
      %v1584 = vpack.c.b16 %v1573, %v1572
      %v1585 = vpack.c.b16 %v1575, %v1574
      %v1586 = vpack.c.b16 %v1577, %v1576
      %v1587 = vpack.c.b16 %v1579, %v1578
      %1596 = vmatpush.bf16.msra.mxu0 %v1587
      %1597 = vmatpush.bf16.msra.mxu0 %v1586
      %1598 = vmatpush.bf16.msra.mxu0 %v1585
      %1599 = vmatpush.bf16.msra.mxu0 %v1584
      %1600 = vmatpush.bf16.msra.mxu0 %v1583
      %1601 = vmatpush.bf16.msra.mxu0 %v1582
      %1602 = vmatpush.bf16.msra.mxu0 %v1581
      %1603 = vmatpush.bf16.msra.mxu0 %v1580
      %1604 = vmatmul.bf16.gmra.mxu0 %v1529
      %v1605 = vpop.f32.mrf.mxu0
      %v1606 = vadd.f32 0.0, %v1605
      %v1607 = vpop.f32.mrf.mxu0
      %v1608 = vadd.f32 0.0, %v1607
      %1609 = vmatmul.bf16.gmra.mxu0 %v1530
      %v1610 = vpop.f32.mrf.mxu0
      %v1611 = vadd.f32 0.0, %v1610
      %v1612 = vpop.f32.mrf.mxu0
      %1613 = vdwg.mxu0
      %v1614 = vadd.f32 %v1523, %v1606
      %v1615 = vadd.f32 %v1524, %v1608
      %v1616 = vadd.f32 %v1525, %v1611
      %v1617 = vld [vmem:[#allocation2 + $0xe] sm:$0xff]
      %v1618 = vld [vmem:[#allocation2 + $0x16] sm:$0xff]
      %v1619 = vld [vmem:[#allocation2 + $0x1e] sm:$0xff]
      %v1620 = vpack.c.bf16 %v1618, %v1617
      %v1621 = vpack.c.bf16 %v1619, %v1619
      %s1622 = scalar_lea.vmem %s3, 512
      %v1623 = vld [vmem:[%s1622] sm:$0xf]
      %v1624 = vld [vmem:[%s1622 + $0x4] sm:$0xf]
      %v1625 = vld [vmem:[%s1622 + $0x8] sm:$0xf]
      %v1626 = vld [vmem:[%s1622 + $0xc] sm:$0xf]
      %v1627 = vld [vmem:[%s1622 + $0x10] sm:$0xf]
      %v1628 = vld [vmem:[%s1622 + $0x14] sm:$0xf]
      %v1629 = vld [vmem:[%s1622 + $0x18] sm:$0xf]
      %v1630 = vld [vmem:[%s1622 + $0x1c] sm:$0xf]
      %v1631 = vld [vmem:[%s1622 + $0x20] sm:$0xf]
      %v1632 = vld [vmem:[%s1622 + $0x24] sm:$0xf]
      %v1633 = vld [vmem:[%s1622 + $0x28] sm:$0xf]
      %v1634 = vld [vmem:[%s1622 + $0x2c] sm:$0xf]
      %v1635 = vld [vmem:[%s1622 + $0x30] sm:$0xf]
      %v1636 = vld [vmem:[%s1622 + $0x34] sm:$0xf]
      %v1637 = vld [vmem:[%s1622 + $0x38] sm:$0xf]
      %v1638 = vld [vmem:[%s1622 + $0x3c] sm:$0xf]
      %v1655 = vunpack.c.l.b16 %v1623
      %v1656 = vunpack.c.l.b16 %v1624
      %v1657 = vunpack.c.l.b16 %v1625
      %v1658 = vunpack.c.l.b16 %v1626
      %v1659 = vunpack.c.l.b16 %v1627
      %v1660 = vunpack.c.l.b16 %v1628
      %v1661 = vunpack.c.l.b16 %v1629
      %v1662 = vunpack.c.l.b16 %v1630
      %v1663 = vunpack.c.l.b16 %v1631
      %v1664 = vunpack.c.l.b16 %v1632
      %v1665 = vunpack.c.l.b16 %v1633
      %v1666 = vunpack.c.l.b16 %v1634
      %v1667 = vunpack.c.l.b16 %v1635
      %v1668 = vunpack.c.l.b16 %v1636
      %v1669 = vunpack.c.l.b16 %v1637
      %v1670 = vunpack.c.l.b16 %v1638
      %v1671 = vpack.c.b16 %v1656, %v1655
      %v1672 = vpack.c.b16 %v1658, %v1657
      %v1673 = vpack.c.b16 %v1660, %v1659
      %v1674 = vpack.c.b16 %v1662, %v1661
      %v1675 = vpack.c.b16 %v1664, %v1663
      %v1676 = vpack.c.b16 %v1666, %v1665
      %v1677 = vpack.c.b16 %v1668, %v1667
      %v1678 = vpack.c.b16 %v1670, %v1669
      %1687 = vmatpush.bf16.msra.mxu0 %v1678
      %1688 = vmatpush.bf16.msra.mxu0 %v1677
      %1689 = vmatpush.bf16.msra.mxu0 %v1676
      %1690 = vmatpush.bf16.msra.mxu0 %v1675
      %1691 = vmatpush.bf16.msra.mxu0 %v1674
      %1692 = vmatpush.bf16.msra.mxu0 %v1673
      %1693 = vmatpush.bf16.msra.mxu0 %v1672
      %1694 = vmatpush.bf16.msra.mxu0 %v1671
      %1695 = vmatmul.bf16.gmra.mxu0 %v1620
      %v1696 = vpop.f32.mrf.mxu0
      %v1697 = vadd.f32 0.0, %v1696
      %v1698 = vpop.f32.mrf.mxu0
      %v1699 = vadd.f32 0.0, %v1698
      %1700 = vmatmul.bf16.gmra.mxu0 %v1621
      %v1701 = vpop.f32.mrf.mxu0
      %v1702 = vadd.f32 0.0, %v1701
      %v1703 = vpop.f32.mrf.mxu0
      %1704 = vdwg.mxu0
      %v1705 = vadd.f32 %v1614, %v1697
      %v1706 = vadd.f32 %v1615, %v1699
      %v1707 = vadd.f32 %v1616, %v1702
      %v1708 = vld [vmem:[%s4] sm:$0x1]
      %v1710 = vperm.slane %v1708, 0
      %v1712 = vadd.f32 %v1705, %v1710
      %v1713 = vadd.f32 %v1706, %v1710
      %v1714 = vadd.f32 %v1707, %v1710
      %v1715 = vmax.f32 %v1712, 0.0
      %v1716 = vmax.f32 %v1713, 0.0
      %v1717 = vmax.f32 %v1714, 0.0
      %1718 = vst [vmem:[#allocation3] sm:$0xff] %v1715
      %1719 = vst [vmem:[#allocation3 + $0x8] sm:$0xff] %v1716
      %1720 = vst [vmem:[#allocation3 + $0x10] sm:$0xff] %v1717
      %v1721 = vld [vmem:[#allocation3] sm:$0xff]
      %v1722 = vld [vmem:[#allocation3 + $0x8] sm:$0xff]
      %v1723 = vld [vmem:[#allocation3 + $0x10] sm:$0x1]
      %v1724 = vld [vmem:[#allocation3 + $0x1] sm:$0xff]
      %v1725 = vld [vmem:[#allocation3 + $0x9] sm:$0xff]
      %v1726 = vld [vmem:[#allocation3 + $0x11] sm:$0x1]
      %v1727 = vmax.f32 %v1721, %v1724
      %v1728 = vmax.f32 %v1722, %v1725
      %v1729 = vmax.f32 %v1723, %v1726
      %v1730 = vld [vmem:[#allocation3 + $0x6] sm:$0xff]
      %v1731 = vld [vmem:[#allocation3 + $0xe] sm:$0xff]
      %v1732 = vld [vmem:[#allocation3 + $0x16] sm:$0x1]
      %v1733 = vld [vmem:[#allocation3 + $0x7] sm:$0xff]
      %v1734 = vld [vmem:[#allocation3 + $0xf] sm:$0xff]
      %v1735 = vld [vmem:[#allocation3 + $0x17] sm:$0x1]
      %v1736 = vmax.f32 %v1730, %v1733
      %v1737 = vmax.f32 %v1731, %v1734
      %v1738 = vmax.f32 %v1732, %v1735
      %v1739 = vmax.f32 %v1727, %v1736
      %v1740 = vmax.f32 %v1728, %v1737
      %v1741 = vmax.f32 %v1729, %v1738
      %v1742 = vld [vmem:[%s6] sm:$0xf]
      %vm1743 = vcmask 138240
      %v1745 = vsel %vm1743, %v1742, 0
      %vm1747 = vcmask 1040384
      %v1749 = vsel %vm1747, %v1741, 0
      %1751 = vmatpush.msra.mxu0 0.0
      %1752 = vmatpush.msra.mxu0 0.0
      %1753 = vmatpush.msra.mxu0 0.0
      %1754 = vmatpush.msra.mxu0 0.0
      %1755 = vmatpush.msra.mxu0 0.0
      %1756 = vmatpush.msra.mxu0 0.0
      %1757 = vmatpush.msra.mxu0 0.0
      %1758 = vmatpush.msra.mxu0 0.0
      %1759 = vmatpush.msra.mxu0 0.0
      %1760 = vmatpush.msra.mxu0 0.0
      %1761 = vmatpush.msra.mxu0 0.0
      %1762 = vmatpush.msra.mxu0 0.0
      %1763 = vmatpush.msra.mxu0 0.0
      %1764 = vmatpush.msra.mxu0 %v1749
      %1765 = vmatpush.msra.mxu0 %v1740
      %1766 = vmatpush.msra.mxu0 %v1739
      %1767 = vmatmul.f32.gmra.mxu0 %v1745
      %v1768 = vpop.f32.mrf.mxu0
      %v1769 = vadd.f32 0.0, %v1768
      %1770 = vdwg.mxu0
      %1771 = vst [vmem:[%s276] sm:$0xf] %v1769
      %p1772 = scmp.lt.s32.totalorder %s18, 1
      %s1773 = scalar_select %p1772, %s18, 1
      %s1774 = smul.addr %s1773, 4
      %s1775 = scalar_lea.vmem %s7, %s1774
      // Predicated region
      $region49: #{forward.6} parent=47 // pred_check
        %p1776 = pneg %p188
      $region50: #{forward.6} parent=47 // pred_check_branch
        %1778 = sbr.rel (%p1776) target = $region52
      $region51: #{forward.6} parent=47 // pred_region
        _
      $region52: #{forward.6} parent=47 // pred_fallthru
        _
    $region48: #{forward.6} parent=5 // pred_fallthru
      _
    %p1779 = scmp.le.s32.totalorder 2, %s13
    // Predicated region
    $region53: #{forward.6} parent=5 // pred_check
      %p1780 = pneg %p1779
    $region54: #{forward.6} parent=5 // pred_check_branch
      %1782 = sbr.rel (%p1780) target = $region56
    $region55: #{forward.6} parent=5 // pred_region
      %s1783 = ssub.s32 %s13, 2
      // Predicated region
      $region57: #{forward.6} parent=55 // pred_check
        %p1784 = pneg %p194
      $region58: #{forward.6} parent=55 // pred_check_branch
        %1786 = sbr.rel (%p1784) target = $region60
      $region59: #{forward.6} parent=55 // pred_region
        %p1787 = scmp.lt.s32.totalorder %s19, 1
        %s1788 = scalar_select %p1787, %s19, 1
        %s1789 = smul.addr %s1788, 4
        %s1790 = scalar_lea.vmem %s7, %s1789
      $region60: #{forward.6} parent=55 // pred_fallthru
        _
    $region56: #{forward.6} parent=5 // pred_fallthru
      _
  $region6: #{forward.6} parent=0 // loop_footer
    %s17 = sadd.s32 1, %s13
  $region7: #{forward.6} parent=0 // loop_footer_branch
    %12 = sbr.rel target = $region3
  $region8: #{forward.6} parent=0 // loop_exit
    _

// kernel: forward.4
$region0: #{forward.4}
  #allocation0 [shape = 'u32[]', space=smem, size = 0x4, offset = 0x4, fixed_abs, tag = 'smem constant byte address 0x4 - core index']
  #allocation1 [shape = 'u32[72,128]{1,0:T(1,128)}', space=vmem, size = 0x9000, scoped, tag = 'internal scratch']
  #allocation2 [shape = 'f32[326,32]{1,0:T(8,128)}', space=vmem, size = 0x29000, scoped, tag = 'scratch operand']
  #allocation3 [shape = 'f32[288,32]{1,0:T(8,128)}', space=vmem, size = 0x24000, scoped, tag = 'scratch operand']
  %s0 = inlined_call_operand.vmem [shape: f32[2,326,4], index: 0, kind: input, shape index: {}]
  %s1 = inlined_call_operand.vmem [shape: bf16[9,4,32], index: 1, kind: input, shape index: {}]
  %s2 = inlined_call_operand.vmem [shape: f32[1,32], index: 2, kind: input, shape index: {}]
  %s3 = inlined_call_operand.vmem [shape: bf16[9,32,32], index: 3, kind: input, shape index: {}]
  %s4 = inlined_call_operand.vmem [shape: f32[1,32], index: 4, kind: input, shape index: {}]
  %s5 = inlined_call_operand.vmem [shape: f32[288,1], index: 5, kind: input, shape index: {}]
  %s6 = inlined_call_operand.vmem [shape: f32[102,269], index: 6, kind: input, shape index: {}]
  %s7 = inlined_call_operand.vmem [shape: f32[2,102,32], index: 7, kind: output, shape index: {}]
  %s8 = sld [smem:[#allocation0]]
  $region61: #{forward.4} parent=0
    _
  %s10 = ssub.s32 1, %s8
  %s11 = scalar_select 0, %s10, %s8
  loop: start=0, step=1, limit=4
  $region2: #{forward.4} parent=0 // loop_pre_header
    _
  $region3: #{forward.4} parent=0 // loop_header
    %s13 = sphi 0, %s17
    %p14 = scmp.ge.s32.totalorder %s13, 4
    %s23 = sphi 0, %s25
    %s26 = sphi 0, %s23
    %s27 = sphi 0, %s26
    %s43 = sphi 0, %s27
    %s47 = sphi 0, %s47
    %s49 = sphi 0, %s47
    %s50 = sphi 0, %s49
    %s64 = sphi 0, %s50
    %s68 = sphi 0, %s68
    %s70 = sphi 0, %s68
    %s71 = sphi 0, %s70
    %s85 = sphi 0, %s71
    %s89 = sphi 0, %s89
    %s91 = sphi 0, %s89
    %s92 = sphi 0, %s91
    %s106 = sphi 0, %s92
    %s110 = sphi 0, %s110
    %s112 = sphi 0, %s110
    %s113 = sphi 0, %s112
    %s127 = sphi 0, %s113
    %s131 = sphi 0, %s131
    %s133 = sphi 0, %s131
    %s134 = sphi 0, %s133
    %s148 = sphi 0, %s134
    %s152 = sphi 0, %s152
    %s154 = sphi 0, %s152
    %s155 = sphi 0, %s154
    %s169 = sphi 0, %s155
    %s175 = sphi 0, %s177
    %s178 = sphi 0, %s175
    %s179 = sphi 0, %s178
    %s195 = sphi 0, %s179
  $region4: #{forward.4} parent=0 // loop_header_branch
    %16 = sbr.rel (%p14) target = $region8
  $region5: #{forward.4} parent=0 // loop_body
    %s18 = ssub.s32 %s13, 1
    %s19 = ssub.s32 %s13, 2
    %s20 = sadd.s32 %s13, 1
    %s21 = ssub.s32 %s13, %s20
    %p22 = scmp.eq.s32.totalorder %s21, 0
    %s24 = sadd.s32 %s23, 1
    %s25 = scalar_select %p22, %s23, %s24
    %p28 = pneg %p22
    %p29 = scmp.eq.s32.totalorder %s13, 1
    %p30 = por %p28, %p29
    %p31 = scmp.ne.s32.totalorder %s23, %s26
    %p32 = scmp.eq.s32.totalorder %s13, 0
    %p33 = por %p31, %p32
    %p34 = scmp.ne.s32.totalorder %s23, %s26
    %p35 = scmp.eq.s32.totalorder %s18, 1
    %p36 = por %p34, %p35
    %p37 = scmp.ne.s32.totalorder %s26, %s27
    %p38 = scmp.eq.s32.totalorder %s18, 0
    %p39 = por %p37, %p38
    %p40 = scmp.ne.s32.totalorder %s26, %s27
    %p41 = scmp.eq.s32.totalorder %s19, 1
    %p42 = por %p40, %p41
    %p44 = scmp.ne.s32.totalorder %s27, %s43
    %p45 = scmp.eq.s32.totalorder %s19, 0
    %p46 = por %p44, %p45
    %s48 = sadd.s32 %s47, 1
    %p51 = scmp.eq.s32.totalorder %s13, 1
    %p52 = scmp.ne.s32.totalorder %s47, %s49
    %p53 = scmp.eq.s32.totalorder %s13, 0
    %p54 = por %p52, %p53
    %p55 = scmp.ne.s32.totalorder %s47, %s49
    %p56 = scmp.eq.s32.totalorder %s18, 1
    %p57 = por %p55, %p56
    %p58 = scmp.ne.s32.totalorder %s49, %s50
    %p59 = scmp.eq.s32.totalorder %s18, 0
    %p60 = por %p58, %p59
    %p61 = scmp.ne.s32.totalorder %s49, %s50
    %p62 = scmp.eq.s32.totalorder %s19, 1
    %p63 = por %p61, %p62
    %p65 = scmp.ne.s32.totalorder %s50, %s64
    %p66 = scmp.eq.s32.totalorder %s19, 0
    %p67 = por %p65, %p66
    %s69 = sadd.s32 %s68, 1
    %p72 = scmp.eq.s32.totalorder %s13, 1
    %p73 = scmp.ne.s32.totalorder %s68, %s70
    %p74 = scmp.eq.s32.totalorder %s13, 0
    %p75 = por %p73, %p74
    %p76 = scmp.ne.s32.totalorder %s68, %s70
    %p77 = scmp.eq.s32.totalorder %s18, 1
    %p78 = por %p76, %p77
    %p79 = scmp.ne.s32.totalorder %s70, %s71
    %p80 = scmp.eq.s32.totalorder %s18, 0
    %p81 = por %p79, %p80
    %p82 = scmp.ne.s32.totalorder %s70, %s71
    %p83 = scmp.eq.s32.totalorder %s19, 1
    %p84 = por %p82, %p83
    %p86 = scmp.ne.s32.totalorder %s71, %s85
    %p87 = scmp.eq.s32.totalorder %s19, 0
    %p88 = por %p86, %p87
    %s90 = sadd.s32 %s89, 1
    %p93 = scmp.eq.s32.totalorder %s13, 1
    %p94 = scmp.ne.s32.totalorder %s89, %s91
    %p95 = scmp.eq.s32.totalorder %s13, 0
    %p96 = por %p94, %p95
    %p97 = scmp.ne.s32.totalorder %s89, %s91
    %p98 = scmp.eq.s32.totalorder %s18, 1
    %p99 = por %p97, %p98
    %p100 = scmp.ne.s32.totalorder %s91, %s92
    %p101 = scmp.eq.s32.totalorder %s18, 0
    %p102 = por %p100, %p101
    %p103 = scmp.ne.s32.totalorder %s91, %s92
    %p104 = scmp.eq.s32.totalorder %s19, 1
    %p105 = por %p103, %p104
    %p107 = scmp.ne.s32.totalorder %s92, %s106
    %p108 = scmp.eq.s32.totalorder %s19, 0
    %p109 = por %p107, %p108
    %s111 = sadd.s32 %s110, 1
    %p114 = scmp.eq.s32.totalorder %s13, 1
    %p115 = scmp.ne.s32.totalorder %s110, %s112
    %p116 = scmp.eq.s32.totalorder %s13, 0
    %p117 = por %p115, %p116
    %p118 = scmp.ne.s32.totalorder %s110, %s112
    %p119 = scmp.eq.s32.totalorder %s18, 1
    %p120 = por %p118, %p119
    %p121 = scmp.ne.s32.totalorder %s112, %s113
    %p122 = scmp.eq.s32.totalorder %s18, 0
    %p123 = por %p121, %p122
    %p124 = scmp.ne.s32.totalorder %s112, %s113
    %p125 = scmp.eq.s32.totalorder %s19, 1
    %p126 = por %p124, %p125
    %p128 = scmp.ne.s32.totalorder %s113, %s127
    %p129 = scmp.eq.s32.totalorder %s19, 0
    %p130 = por %p128, %p129
    %s132 = sadd.s32 %s131, 1
    %p135 = scmp.eq.s32.totalorder %s13, 1
    %p136 = scmp.ne.s32.totalorder %s131, %s133
    %p137 = scmp.eq.s32.totalorder %s13, 0
    %p138 = por %p136, %p137
    %p139 = scmp.ne.s32.totalorder %s131, %s133
    %p140 = scmp.eq.s32.totalorder %s18, 1
    %p141 = por %p139, %p140
    %p142 = scmp.ne.s32.totalorder %s133, %s134
    %p143 = scmp.eq.s32.totalorder %s18, 0
    %p144 = por %p142, %p143
    %p145 = scmp.ne.s32.totalorder %s133, %s134
    %p146 = scmp.eq.s32.totalorder %s19, 1
    %p147 = por %p145, %p146
    %p149 = scmp.ne.s32.totalorder %s134, %s148
    %p150 = scmp.eq.s32.totalorder %s19, 0
    %p151 = por %p149, %p150
    %s153 = sadd.s32 %s152, 1
    %p156 = scmp.eq.s32.totalorder %s13, 1
    %p157 = scmp.ne.s32.totalorder %s152, %s154
    %p158 = scmp.eq.s32.totalorder %s13, 0
    %p159 = por %p157, %p158
    %p160 = scmp.ne.s32.totalorder %s152, %s154
    %p161 = scmp.eq.s32.totalorder %s18, 1
    %p162 = por %p160, %p161
    %p163 = scmp.ne.s32.totalorder %s154, %s155
    %p164 = scmp.eq.s32.totalorder %s18, 0
    %p165 = por %p163, %p164
    %p166 = scmp.ne.s32.totalorder %s154, %s155
    %p167 = scmp.eq.s32.totalorder %s19, 1
    %p168 = por %p166, %p167
    %p170 = scmp.ne.s32.totalorder %s155, %s169
    %p171 = scmp.eq.s32.totalorder %s19, 0
    %p172 = por %p170, %p171
    %s173 = ssub.s32 %s13, %s20
    %p174 = scmp.eq.s32.totalorder %s173, 0
    %s176 = sadd.s32 %s175, 1
    %s177 = scalar_select %p174, %s175, %s176
    %p180 = pneg %p174
    %p181 = scmp.eq.s32.totalorder %s13, 1
    %p182 = por %p180, %p181
    %p183 = scmp.ne.s32.totalorder %s175, %s178
    %p184 = scmp.eq.s32.totalorder %s13, 0
    %p185 = por %p183, %p184
    %p186 = scmp.ne.s32.totalorder %s175, %s178
    %p187 = scmp.eq.s32.totalorder %s18, 1
    %p188 = por %p186, %p187
    %p189 = scmp.ne.s32.totalorder %s178, %s179
    %p190 = scmp.eq.s32.totalorder %s18, 0
    %p191 = por %p189, %p190
    %p192 = scmp.ne.s32.totalorder %s178, %s179
    %p193 = scmp.eq.s32.totalorder %s19, 1
    %p194 = por %p192, %p193
    %p196 = scmp.ne.s32.totalorder %s179, %s195
    %p197 = scmp.eq.s32.totalorder %s19, 0
    %p198 = por %p196, %p197
    %p199 = scmp.le.s32.totalorder 1, %s13
    %p200 = scmp.lt.s32.totalorder %s13, 3
    %p201 = pnand %p199, %p200
    %p202 = pneg %p201
    // Predicated region
    $region9: #{forward.4} parent=5 // pred_check
      _
    $region10: #{forward.4} parent=5 // pred_check_branch
      %204 = sbr.rel (%p201) target = $region12
    $region11: #{forward.4} parent=5 // pred_region
      %s205 = ssub.s32 %s13, 1
      // Predicated region
      $region13: #{forward.4} parent=11 // pred_check
        %p206 = pneg %p60
      $region14: #{forward.4} parent=11 // pred_check_branch
        %208 = sbr.rel (%p206) target = $region16
      $region15: #{forward.4} parent=11 // pred_region
        _
      $region16: #{forward.4} parent=11 // pred_fallthru
        _
      // Predicated region
      $region17: #{forward.4} parent=11 // pred_check
        %p209 = pneg %p81
      $region18: #{forward.4} parent=11 // pred_check_branch
        %211 = sbr.rel (%p209) target = $region20
      $region19: #{forward.4} parent=11 // pred_region
        _
      $region20: #{forward.4} parent=11 // pred_fallthru
        _
      // Predicated region
      $region21: #{forward.4} parent=11 // pred_check
        %p212 = pneg %p102
      $region22: #{forward.4} parent=11 // pred_check_branch
        %214 = sbr.rel (%p212) target = $region24
      $region23: #{forward.4} parent=11 // pred_region
        _
      $region24: #{forward.4} parent=11 // pred_fallthru
        _
      // Predicated region
      $region25: #{forward.4} parent=11 // pred_check
        %p215 = pneg %p123
      $region26: #{forward.4} parent=11 // pred_check_branch
        %217 = sbr.rel (%p215) target = $region28
      $region27: #{forward.4} parent=11 // pred_region
        _
      $region28: #{forward.4} parent=11 // pred_fallthru
        _
      // Predicated region
      $region29: #{forward.4} parent=11 // pred_check
        %p218 = pneg %p144
      $region30: #{forward.4} parent=11 // pred_check_branch
        %220 = sbr.rel (%p218) target = $region32
      $region31: #{forward.4} parent=11 // pred_region
        _
      $region32: #{forward.4} parent=11 // pred_fallthru
        _
      // Predicated region
      $region33: #{forward.4} parent=11 // pred_check
        %p221 = pneg %p165
      $region34: #{forward.4} parent=11 // pred_check_branch
        %223 = sbr.rel (%p221) target = $region36
      $region35: #{forward.4} parent=11 // pred_region
        _
      $region36: #{forward.4} parent=11 // pred_fallthru
        _
    $region12: #{forward.4} parent=5 // pred_fallthru
      _
    %p224 = scmp.lt.s32.totalorder %s13, 2
    // Predicated region
    $region37: #{forward.4} parent=5 // pred_check
      %p225 = pneg %p224
    $region38: #{forward.4} parent=5 // pred_check_branch
      %227 = sbr.rel (%p225) target = $region40
    $region39: #{forward.4} parent=5 // pred_region
      // Predicated region
      $region41: #{forward.4} parent=39 // pred_check
        %p228 = pneg %p33
      $region42: #{forward.4} parent=39 // pred_check_branch
        %230 = sbr.rel (%p228) target = $region44
      $region43: #{forward.4} parent=39 // pred_region
        %p231 = scmp.lt.s32.totalorder %s13, 1
        %s232 = scalar_select %p231, %s13, 1
        %s233 = smul.addr %s232, 41
        %s234 = smul.addr %s233, 8
        %s235 = scalar_lea.vmem %s0, %s234
      $region44: #{forward.4} parent=39 // pred_fallthru
        _
    $region40: #{forward.4} parent=5 // pred_fallthru
      _
    %p236 = scmp.le.s32.totalorder 1, %s13
    %p237 = scmp.lt.s32.totalorder %s13, 3
    %p238 = pnand %p236, %p237
    %p239 = pneg %p238
    // Predicated region
    $region45: #{forward.4} parent=5 // pred_check
      _
    $region46: #{forward.4} parent=5 // pred_check_branch
      %241 = sbr.rel (%p238) target = $region48
    $region47: #{forward.4} parent=5 // pred_region
      %s242 = ssub.s32 %s13, 1
      %p243 = scmp.lt.s32.totalorder %s18, 1
      %s244 = scalar_select %p243, %s18, 1
      %s245 = smul.addr %s244, 41
      %s246 = smul.addr %s245, 8
      %s247 = scalar_lea.vmem %s0, %s246
      %p248 = pneg %p39
      %p249 = pneg %p36
      %p250 = pneg %p60
      %p251 = pneg %p57
      %p252 = pneg %p81
      %p253 = pneg %p78
      %p254 = pneg %p102
      %p255 = pneg %p99
      %p256 = pneg %p123
      %p257 = pneg %p120
      %p258 = pneg %p144
      %p259 = pneg %p141
      %p260 = pneg %p165
      %p261 = pneg %p162
      %p262 = pneg %p191
      %p263 = pneg %p188
      %p264 = scmp.lt.s32.totalorder %s18, 1
      %s265 = scalar_select %p264, %s18, 1
      %s266 = smul.addr %s265, 13
      %s267 = smul.addr %s266, 8
      %s268 = scalar_lea.vmem %s7, %s267
      %p269 = scmp.lt.s32.totalorder %s18, 1
      %s270 = scalar_select %p269, %s18, 1
      %s271 = smul.addr %s270, 41
      %s272 = smul.addr %s271, 8
      %s273 = scalar_lea.vmem %s0, %s272
      %p274 = scmp.lt.s32.totalorder %s18, 1
      %s275 = scalar_select %p274, %s18, 1
      %s276 = smul.addr %s275, 13
      %s277 = smul.addr %s276, 8
      %s278 = scalar_lea.vmem %s7, %s277
      %v280 = vld [vmem:[%s273] sm:$0xff]
      %v281 = vld [vmem:[%s273 + $0x8] sm:$0xff]
      %v282 = vld [vmem:[%s273 + $0x10] sm:$0xff]
      %v283 = vld [vmem:[%s273 + $0x18] sm:$0xff]
      %v284 = vld [vmem:[%s273 + $0x20] sm:$0xff]
      %v285 = vld [vmem:[%s273 + $0x28] sm:$0xff]
      %v286 = vld [vmem:[%s273 + $0x30] sm:$0xff]
      %v287 = vld [vmem:[%s273 + $0x38] sm:$0xff]
      %v288 = vld [vmem:[%s273 + $0x40] sm:$0xff]
      %v289 = vld [vmem:[%s273 + $0x48] sm:$0xff]
      %v290 = vld [vmem:[%s273 + $0x50] sm:$0xff]
      %v291 = vld [vmem:[%s273 + $0x58] sm:$0xff]
      %v292 = vld [vmem:[%s273 + $0x60] sm:$0xff]
      %v293 = vld [vmem:[%s273 + $0x68] sm:$0xff]
      %v294 = vld [vmem:[%s273 + $0x70] sm:$0xff]
      %v295 = vld [vmem:[%s273 + $0x78] sm:$0xff]
      %v296 = vld [vmem:[%s273 + $0x80] sm:$0xff]
      %v297 = vld [vmem:[%s273 + $0x88] sm:$0xff]
      %v298 = vld [vmem:[%s273 + $0x90] sm:$0xff]
      %v299 = vld [vmem:[%s273 + $0x98] sm:$0xff]
      %v300 = vld [vmem:[%s273 + $0xa0] sm:$0xff]
      %v301 = vld [vmem:[%s273 + $0xa8] sm:$0xff]
      %v302 = vld [vmem:[%s273 + $0xb0] sm:$0xff]
      %v303 = vld [vmem:[%s273 + $0xb8] sm:$0xff]
      %v304 = vld [vmem:[%s273 + $0xc0] sm:$0xff]
      %v305 = vld [vmem:[%s273 + $0xc8] sm:$0xff]
      %v306 = vld [vmem:[%s273 + $0xd0] sm:$0xff]
      %v307 = vld [vmem:[%s273 + $0xd8] sm:$0xff]
      %v308 = vld [vmem:[%s273 + $0xe0] sm:$0xff]
      %v309 = vld [vmem:[%s273 + $0xe8] sm:$0xff]
      %v310 = vld [vmem:[%s273 + $0xf0] sm:$0xff]
      %v311 = vld [vmem:[%s273 + $0xf8] sm:$0xff]
      %v312 = vld [vmem:[%s273 + $0x100] sm:$0xff]
      %v313 = vld [vmem:[%s273 + $0x108] sm:$0xff]
      %v314 = vld [vmem:[%s273 + $0x110] sm:$0xff]
      %v315 = vld [vmem:[%s273 + $0x118] sm:$0xff]
      %v316 = vpack.c.bf16 %v281, %v280
      %v317 = vpack.c.bf16 %v283, %v282
      %v318 = vpack.c.bf16 %v285, %v284
      %v319 = vpack.c.bf16 %v287, %v286
      %v320 = vpack.c.bf16 %v289, %v288
      %v321 = vpack.c.bf16 %v291, %v290
      %v322 = vpack.c.bf16 %v293, %v292
      %v323 = vpack.c.bf16 %v295, %v294
      %v324 = vpack.c.bf16 %v297, %v296
      %v325 = vpack.c.bf16 %v299, %v298
      %v326 = vpack.c.bf16 %v301, %v300
      %v327 = vpack.c.bf16 %v303, %v302
      %v328 = vpack.c.bf16 %v305, %v304
      %v329 = vpack.c.bf16 %v307, %v306
      %v330 = vpack.c.bf16 %v309, %v308
      %v331 = vpack.c.bf16 %v311, %v310
      %v332 = vpack.c.bf16 %v313, %v312
      %v333 = vpack.c.bf16 %v315, %v314
      %v334 = vld [vmem:[%s1] sm:$0x3]
      %v335 = vld [vmem:[%s273 + $0x1] sm:$0xff]
      %v336 = vld [vmem:[%s273 + $0x9] sm:$0xff]
      %v337 = vld [vmem:[%s273 + $0x11] sm:$0xff]
      %v338 = vld [vmem:[%s273 + $0x19] sm:$0xff]
      %v339 = vld [vmem:[%s273 + $0x21] sm:$0xff]
      %v340 = vld [vmem:[%s273 + $0x29] sm:$0xff]
      %v341 = vld [vmem:[%s273 + $0x31] sm:$0xff]
      %v342 = vld [vmem:[%s273 + $0x39] sm:$0xff]
      %v343 = vld [vmem:[%s273 + $0x41] sm:$0xff]
      %v344 = vld [vmem:[%s273 + $0x49] sm:$0xff]
      %v345 = vld [vmem:[%s273 + $0x51] sm:$0xff]
      %v346 = vld [vmem:[%s273 + $0x59] sm:$0xff]
      %v347 = vld [vmem:[%s273 + $0x61] sm:$0xff]
      %v348 = vld [vmem:[%s273 + $0x69] sm:$0xff]
      %v349 = vld [vmem:[%s273 + $0x71] sm:$0xff]
      %v350 = vld [vmem:[%s273 + $0x79] sm:$0xff]
      %v351 = vld [vmem:[%s273 + $0x81] sm:$0xff]
      %v352 = vld [vmem:[%s273 + $0x89] sm:$0xff]
      %v353 = vld [vmem:[%s273 + $0x91] sm:$0xff]
      %v354 = vld [vmem:[%s273 + $0x99] sm:$0xff]
      %v355 = vld [vmem:[%s273 + $0xa1] sm:$0xff]
      %v356 = vld [vmem:[%s273 + $0xa9] sm:$0xff]
      %v357 = vld [vmem:[%s273 + $0xb1] sm:$0xff]
      %v358 = vld [vmem:[%s273 + $0xb9] sm:$0xff]
      %v359 = vld [vmem:[%s273 + $0xc1] sm:$0xff]
      %v360 = vld [vmem:[%s273 + $0xc9] sm:$0xff]
      %v361 = vld [vmem:[%s273 + $0xd1] sm:$0xff]
      %v362 = vld [vmem:[%s273 + $0xd9] sm:$0xff]
      %v363 = vld [vmem:[%s273 + $0xe1] sm:$0xff]
      %v364 = vld [vmem:[%s273 + $0xe9] sm:$0xff]
      %v365 = vld [vmem:[%s273 + $0xf1] sm:$0xff]
      %v366 = vld [vmem:[%s273 + $0xf9] sm:$0xff]
      %v367 = vld [vmem:[%s273 + $0x101] sm:$0xff]
      %v368 = vld [vmem:[%s273 + $0x109] sm:$0xff]
      %v369 = vld [vmem:[%s273 + $0x111] sm:$0xff]
      %v370 = vld [vmem:[%s273 + $0x119] sm:$0xff]
      %v371 = vpack.c.bf16 %v336, %v335
      %v372 = vpack.c.bf16 %v338, %v337
      %v373 = vpack.c.bf16 %v340, %v339
      %v374 = vpack.c.bf16 %v342, %v341
      %v375 = vpack.c.bf16 %v344, %v343
      %v376 = vpack.c.bf16 %v346, %v345
      %v377 = vpack.c.bf16 %v348, %v347
      %v378 = vpack.c.bf16 %v350, %v349
      %v379 = vpack.c.bf16 %v352, %v351
      %v380 = vpack.c.bf16 %v354, %v353
      %v381 = vpack.c.bf16 %v356, %v355
      %v382 = vpack.c.bf16 %v358, %v357
      %v383 = vpack.c.bf16 %v360, %v359
      %v384 = vpack.c.bf16 %v362, %v361
      %v385 = vpack.c.bf16 %v364, %v363
      %v386 = vpack.c.bf16 %v366, %v365
      %v387 = vpack.c.bf16 %v368, %v367
      %v388 = vpack.c.bf16 %v370, %v369
      %s389 = scalar_lea.vmem %s1, 2
      %v390 = vld [vmem:[%s389] sm:$0x3]
      %vm391 = vcmask 31744
      %v393 = vsel %vm391, %v371, 0
      %v396 = vsel %vm391, %v372, 0
      %v399 = vsel %vm391, %v373, 0
      %v402 = vsel %vm391, %v374, 0
      %v405 = vsel %vm391, %v375, 0
      %v408 = vsel %vm391, %v376, 0
      %v411 = vsel %vm391, %v377, 0
      %v414 = vsel %vm391, %v378, 0
      %v417 = vsel %vm391, %v379, 0
      %v420 = vsel %vm391, %v380, 0
      %v423 = vsel %vm391, %v381, 0
      %v426 = vsel %vm391, %v382, 0
      %v429 = vsel %vm391, %v383, 0
      %v432 = vsel %vm391, %v384, 0
      %v435 = vsel %vm391, %v385, 0
      %v438 = vsel %vm391, %v386, 0
      %v441 = vsel %vm391, %v387, 0
      %v444 = vsel %vm391, %v388, 0
      %vm446 = vcmask 1041408
      %v448 = vsel %vm446, %v390, 0
      %450 = vmatpush.bf16.msra.mxu0 0
      %451 = vmatpush.bf16.msra.mxu0 0
      %452 = vmatpush.bf16.msra.mxu0 0
      %453 = vmatpush.bf16.msra.mxu0 0
      %454 = vmatpush.bf16.msra.mxu0 0
      %455 = vmatpush.bf16.msra.mxu0 0
      %456 = vmatpush.bf16.msra.mxu0 0
      %457 = vmatpush.bf16.msra.mxu0 %v448
      %458 = vmatmul.bf16.gmra.mxu0 %v393
      %v459 = vpop.f32.mrf.mxu0
      %v460 = vadd.f32 0.0, %v459
      %v461 = vpop.f32.mrf.mxu0
      %v462 = vadd.f32 0.0, %v461
      %463 = vmatmul.bf16.gmra.mxu0 %v396
      %v464 = vpop.f32.mrf.mxu0
      %v465 = vadd.f32 0.0, %v464
      %v466 = vpop.f32.mrf.mxu0
      %v467 = vadd.f32 0.0, %v466
      %468 = vmatmul.bf16.gmra.mxu0 %v399
      %v469 = vpop.f32.mrf.mxu0
      %v470 = vadd.f32 0.0, %v469
      %v471 = vpop.f32.mrf.mxu0
      %v472 = vadd.f32 0.0, %v471
      %473 = vmatmul.bf16.gmra.mxu0 %v402
      %v474 = vpop.f32.mrf.mxu0
      %v475 = vadd.f32 0.0, %v474
      %v476 = vpop.f32.mrf.mxu0
      %v477 = vadd.f32 0.0, %v476
      %478 = vmatmul.bf16.gmra.mxu0 %v405
      %v479 = vpop.f32.mrf.mxu0
      %v480 = vadd.f32 0.0, %v479
      %v481 = vpop.f32.mrf.mxu0
      %v482 = vadd.f32 0.0, %v481
      %483 = vmatmul.bf16.gmra.mxu0 %v408
      %v484 = vpop.f32.mrf.mxu0
      %v485 = vadd.f32 0.0, %v484
      %v486 = vpop.f32.mrf.mxu0
      %v487 = vadd.f32 0.0, %v486
      %488 = vmatmul.bf16.gmra.mxu0 %v411
      %v489 = vpop.f32.mrf.mxu0
      %v490 = vadd.f32 0.0, %v489
      %v491 = vpop.f32.mrf.mxu0
      %v492 = vadd.f32 0.0, %v491
      %493 = vmatmul.bf16.gmra.mxu0 %v414
      %v494 = vpop.f32.mrf.mxu0
      %v495 = vadd.f32 0.0, %v494
      %v496 = vpop.f32.mrf.mxu0
      %v497 = vadd.f32 0.0, %v496
      %498 = vmatmul.bf16.gmra.mxu0 %v417
      %v499 = vpop.f32.mrf.mxu0
      %v500 = vadd.f32 0.0, %v499
      %v501 = vpop.f32.mrf.mxu0
      %v502 = vadd.f32 0.0, %v501
      %503 = vmatmul.bf16.gmra.mxu0 %v420
      %v504 = vpop.f32.mrf.mxu0
      %v505 = vadd.f32 0.0, %v504
      %v506 = vpop.f32.mrf.mxu0
      %v507 = vadd.f32 0.0, %v506
      %508 = vmatmul.bf16.gmra.mxu0 %v423
      %v509 = vpop.f32.mrf.mxu0
      %v510 = vadd.f32 0.0, %v509
      %v511 = vpop.f32.mrf.mxu0
      %v512 = vadd.f32 0.0, %v511
      %513 = vmatmul.bf16.gmra.mxu0 %v426
      %v514 = vpop.f32.mrf.mxu0
      %v515 = vadd.f32 0.0, %v514
      %v516 = vpop.f32.mrf.mxu0
      %v517 = vadd.f32 0.0, %v516
      %518 = vmatmul.bf16.gmra.mxu0 %v429
      %v519 = vpop.f32.mrf.mxu0
      %v520 = vadd.f32 0.0, %v519
      %v521 = vpop.f32.mrf.mxu0
      %v522 = vadd.f32 0.0, %v521
      %523 = vmatmul.bf16.gmra.mxu0 %v432
      %v524 = vpop.f32.mrf.mxu0
      %v525 = vadd.f32 0.0, %v524
      %v526 = vpop.f32.mrf.mxu0
      %v527 = vadd.f32 0.0, %v526
      %528 = vmatmul.bf16.gmra.mxu0 %v435
      %v529 = vpop.f32.mrf.mxu0
      %v530 = vadd.f32 0.0, %v529
      %v531 = vpop.f32.mrf.mxu0
      %v532 = vadd.f32 0.0, %v531
      %533 = vmatmul.bf16.gmra.mxu0 %v438
      %v534 = vpop.f32.mrf.mxu0
      %v535 = vadd.f32 0.0, %v534
      %v536 = vpop.f32.mrf.mxu0
      %v537 = vadd.f32 0.0, %v536
      %538 = vmatmul.bf16.gmra.mxu0 %v441
      %v539 = vpop.f32.mrf.mxu0
      %v540 = vadd.f32 0.0, %v539
      %v541 = vpop.f32.mrf.mxu0
      %v542 = vadd.f32 0.0, %v541
      %543 = vmatmul.bf16.gmra.mxu0 %v444
      %v544 = vpop.f32.mrf.mxu0
      %v545 = vadd.f32 0.0, %v544
      %v546 = vpop.f32.mrf.mxu0
      %v547 = vadd.f32 0.0, %v546
      %548 = vdwg.mxu0
      %v550 = vsel %vm391, %v316, 0
      %v553 = vsel %vm391, %v317, 0
      %v556 = vsel %vm391, %v318, 0
      %v559 = vsel %vm391, %v319, 0
      %v562 = vsel %vm391, %v320, 0
      %v565 = vsel %vm391, %v321, 0
      %v568 = vsel %vm391, %v322, 0
      %v571 = vsel %vm391, %v323, 0
      %v574 = vsel %vm391, %v324, 0
      %v577 = vsel %vm391, %v325, 0
      %v580 = vsel %vm391, %v326, 0
      %v583 = vsel %vm391, %v327, 0
      %v586 = vsel %vm391, %v328, 0
      %v589 = vsel %vm391, %v329, 0
      %v592 = vsel %vm391, %v330, 0
      %v595 = vsel %vm391, %v331, 0
      %v598 = vsel %vm391, %v332, 0
      %v601 = vsel %vm391, %v333, 0
      %v604 = vsel %vm446, %v334, 0
      %606 = vmatpush.bf16.msra.mxu0 0
      %607 = vmatpush.bf16.msra.mxu0 0
      %608 = vmatpush.bf16.msra.mxu0 0
      %609 = vmatpush.bf16.msra.mxu0 0
      %610 = vmatpush.bf16.msra.mxu0 0
      %611 = vmatpush.bf16.msra.mxu0 0
      %612 = vmatpush.bf16.msra.mxu0 0
      %613 = vmatpush.bf16.msra.mxu0 %v604
      %614 = vmatmul.bf16.gmra.mxu0 %v550
      %v615 = vpop.f32.mrf.mxu0
      %v616 = vadd.f32 %v460, %v615
      %v617 = vpop.f32.mrf.mxu0
      %v618 = vadd.f32 %v462, %v617
      %619 = vmatmul.bf16.gmra.mxu0 %v553
      %v620 = vpop.f32.mrf.mxu0
      %v621 = vadd.f32 %v465, %v620
      %v622 = vpop.f32.mrf.mxu0
      %v623 = vadd.f32 %v467, %v622
      %624 = vmatmul.bf16.gmra.mxu0 %v556
      %v625 = vpop.f32.mrf.mxu0
      %v626 = vadd.f32 %v470, %v625
      %v627 = vpop.f32.mrf.mxu0
      %v628 = vadd.f32 %v472, %v627
      %629 = vmatmul.bf16.gmra.mxu0 %v559
      %v630 = vpop.f32.mrf.mxu0
      %v631 = vadd.f32 %v475, %v630
      %v632 = vpop.f32.mrf.mxu0
      %v633 = vadd.f32 %v477, %v632
      %634 = vmatmul.bf16.gmra.mxu0 %v562
      %v635 = vpop.f32.mrf.mxu0
      %v636 = vadd.f32 %v480, %v635
      %v637 = vpop.f32.mrf.mxu0
      %v638 = vadd.f32 %v482, %v637
      %639 = vmatmul.bf16.gmra.mxu0 %v565
      %v640 = vpop.f32.mrf.mxu0
      %v641 = vadd.f32 %v485, %v640
      %v642 = vpop.f32.mrf.mxu0
      %v643 = vadd.f32 %v487, %v642
      %644 = vmatmul.bf16.gmra.mxu0 %v568
      %v645 = vpop.f32.mrf.mxu0
      %v646 = vadd.f32 %v490, %v645
      %v647 = vpop.f32.mrf.mxu0
      %v648 = vadd.f32 %v492, %v647
      %649 = vmatmul.bf16.gmra.mxu0 %v571
      %v650 = vpop.f32.mrf.mxu0
      %v651 = vadd.f32 %v495, %v650
      %v652 = vpop.f32.mrf.mxu0
      %v653 = vadd.f32 %v497, %v652
      %654 = vmatmul.bf16.gmra.mxu0 %v574
      %v655 = vpop.f32.mrf.mxu0
      %v656 = vadd.f32 %v500, %v655
      %v657 = vpop.f32.mrf.mxu0
      %v658 = vadd.f32 %v502, %v657
      %659 = vmatmul.bf16.gmra.mxu0 %v577
      %v660 = vpop.f32.mrf.mxu0
      %v661 = vadd.f32 %v505, %v660
      %v662 = vpop.f32.mrf.mxu0
      %v663 = vadd.f32 %v507, %v662
      %664 = vmatmul.bf16.gmra.mxu0 %v580
      %v665 = vpop.f32.mrf.mxu0
      %v666 = vadd.f32 %v510, %v665
      %v667 = vpop.f32.mrf.mxu0
      %v668 = vadd.f32 %v512, %v667
      %669 = vmatmul.bf16.gmra.mxu0 %v583
      %v670 = vpop.f32.mrf.mxu0
      %v671 = vadd.f32 %v515, %v670
      %v672 = vpop.f32.mrf.mxu0
      %v673 = vadd.f32 %v517, %v672
      %674 = vmatmul.bf16.gmra.mxu0 %v586
      %v675 = vpop.f32.mrf.mxu0
      %v676 = vadd.f32 %v520, %v675
      %v677 = vpop.f32.mrf.mxu0
      %v678 = vadd.f32 %v522, %v677
      %679 = vmatmul.bf16.gmra.mxu0 %v589
      %v680 = vpop.f32.mrf.mxu0
      %v681 = vadd.f32 %v525, %v680
      %v682 = vpop.f32.mrf.mxu0
      %v683 = vadd.f32 %v527, %v682
      %684 = vmatmul.bf16.gmra.mxu0 %v592
      %v685 = vpop.f32.mrf.mxu0
      %v686 = vadd.f32 %v530, %v685
      %v687 = vpop.f32.mrf.mxu0
      %v688 = vadd.f32 %v532, %v687
      %689 = vmatmul.bf16.gmra.mxu0 %v595
      %v690 = vpop.f32.mrf.mxu0
      %v691 = vadd.f32 %v535, %v690
      %v692 = vpop.f32.mrf.mxu0
      %v693 = vadd.f32 %v537, %v692
      %694 = vmatmul.bf16.gmra.mxu0 %v598
      %v695 = vpop.f32.mrf.mxu0
      %v696 = vadd.f32 %v540, %v695
      %v697 = vpop.f32.mrf.mxu0
      %v698 = vadd.f32 %v542, %v697
      %699 = vmatmul.bf16.gmra.mxu0 %v601
      %v700 = vpop.f32.mrf.mxu0
      %v701 = vadd.f32 %v545, %v700
      %v702 = vpop.f32.mrf.mxu0
      %v703 = vadd.f32 %v547, %v702
      %704 = vdwg.mxu0
      %v705 = vld [vmem:[%s273 + $0x2] sm:$0xff]
      %v706 = vld [vmem:[%s273 + $0xa] sm:$0xff]
      %v707 = vld [vmem:[%s273 + $0x12] sm:$0xff]
      %v708 = vld [vmem:[%s273 + $0x1a] sm:$0xff]
      %v709 = vld [vmem:[%s273 + $0x22] sm:$0xff]
      %v710 = vld [vmem:[%s273 + $0x2a] sm:$0xff]
      %v711 = vld [vmem:[%s273 + $0x32] sm:$0xff]
      %v712 = vld [vmem:[%s273 + $0x3a] sm:$0xff]
      %v713 = vld [vmem:[%s273 + $0x42] sm:$0xff]
      %v714 = vld [vmem:[%s273 + $0x4a] sm:$0xff]
      %v715 = vld [vmem:[%s273 + $0x52] sm:$0xff]
      %v716 = vld [vmem:[%s273 + $0x5a] sm:$0xff]
      %v717 = vld [vmem:[%s273 + $0x62] sm:$0xff]
      %v718 = vld [vmem:[%s273 + $0x6a] sm:$0xff]
      %v719 = vld [vmem:[%s273 + $0x72] sm:$0xff]
      %v720 = vld [vmem:[%s273 + $0x7a] sm:$0xff]
      %v721 = vld [vmem:[%s273 + $0x82] sm:$0xff]
      %v722 = vld [vmem:[%s273 + $0x8a] sm:$0xff]
      %v723 = vld [vmem:[%s273 + $0x92] sm:$0xff]
      %v724 = vld [vmem:[%s273 + $0x9a] sm:$0xff]
      %v725 = vld [vmem:[%s273 + $0xa2] sm:$0xff]
      %v726 = vld [vmem:[%s273 + $0xaa] sm:$0xff]
      %v727 = vld [vmem:[%s273 + $0xb2] sm:$0xff]
      %v728 = vld [vmem:[%s273 + $0xba] sm:$0xff]
      %v729 = vld [vmem:[%s273 + $0xc2] sm:$0xff]
      %v730 = vld [vmem:[%s273 + $0xca] sm:$0xff]
      %v731 = vld [vmem:[%s273 + $0xd2] sm:$0xff]
      %v732 = vld [vmem:[%s273 + $0xda] sm:$0xff]
      %v733 = vld [vmem:[%s273 + $0xe2] sm:$0xff]
      %v734 = vld [vmem:[%s273 + $0xea] sm:$0xff]
      %v735 = vld [vmem:[%s273 + $0xf2] sm:$0xff]
      %v736 = vld [vmem:[%s273 + $0xfa] sm:$0xff]
      %v737 = vld [vmem:[%s273 + $0x102] sm:$0xff]
      %v738 = vld [vmem:[%s273 + $0x10a] sm:$0xff]
      %v739 = vld [vmem:[%s273 + $0x112] sm:$0xff]
      %v740 = vld [vmem:[%s273 + $0x11a] sm:$0xff]
      %v741 = vpack.c.bf16 %v706, %v705
      %v742 = vpack.c.bf16 %v708, %v707
      %v743 = vpack.c.bf16 %v710, %v709
      %v744 = vpack.c.bf16 %v712, %v711
      %v745 = vpack.c.bf16 %v714, %v713
      %v746 = vpack.c.bf16 %v716, %v715
      %v747 = vpack.c.bf16 %v718, %v717
      %v748 = vpack.c.bf16 %v720, %v719
      %v749 = vpack.c.bf16 %v722, %v721
      %v750 = vpack.c.bf16 %v724, %v723
      %v751 = vpack.c.bf16 %v726, %v725
      %v752 = vpack.c.bf16 %v728, %v727
      %v753 = vpack.c.bf16 %v730, %v729
      %v754 = vpack.c.bf16 %v732, %v731
      %v755 = vpack.c.bf16 %v734, %v733
      %v756 = vpack.c.bf16 %v736, %v735
      %v757 = vpack.c.bf16 %v738, %v737
      %v758 = vpack.c.bf16 %v740, %v739
      %s759 = scalar_lea.vmem %s1, 4
      %v760 = vld [vmem:[%s759] sm:$0x3]
      %v762 = vsel %vm391, %v741, 0
      %v765 = vsel %vm391, %v742, 0
      %v768 = vsel %vm391, %v743, 0
      %v771 = vsel %vm391, %v744, 0
      %v774 = vsel %vm391, %v745, 0
      %v777 = vsel %vm391, %v746, 0
      %v780 = vsel %vm391, %v747, 0
      %v783 = vsel %vm391, %v748, 0
      %v786 = vsel %vm391, %v749, 0
      %v789 = vsel %vm391, %v750, 0
      %v792 = vsel %vm391, %v751, 0
      %v795 = vsel %vm391, %v752, 0
      %v798 = vsel %vm391, %v753, 0
      %v801 = vsel %vm391, %v754, 0
      %v804 = vsel %vm391, %v755, 0
      %v807 = vsel %vm391, %v756, 0
      %v810 = vsel %vm391, %v757, 0
      %v813 = vsel %vm391, %v758, 0
      %v816 = vsel %vm446, %v760, 0
      %818 = vmatpush.bf16.msra.mxu0 0
      %819 = vmatpush.bf16.msra.mxu0 0
      %820 = vmatpush.bf16.msra.mxu0 0
      %821 = vmatpush.bf16.msra.mxu0 0
      %822 = vmatpush.bf16.msra.mxu0 0
      %823 = vmatpush.bf16.msra.mxu0 0
      %824 = vmatpush.bf16.msra.mxu0 0
      %825 = vmatpush.bf16.msra.mxu0 %v816
      %826 = vmatmul.bf16.gmra.mxu0 %v762
      %v827 = vpop.f32.mrf.mxu0
      %v828 = vadd.f32 0.0, %v827
      %v829 = vpop.f32.mrf.mxu0
      %v830 = vadd.f32 0.0, %v829
      %831 = vmatmul.bf16.gmra.mxu0 %v765
      %v832 = vpop.f32.mrf.mxu0
      %v833 = vadd.f32 0.0, %v832
      %v834 = vpop.f32.mrf.mxu0
      %v835 = vadd.f32 0.0, %v834
      %836 = vmatmul.bf16.gmra.mxu0 %v768
      %v837 = vpop.f32.mrf.mxu0
      %v838 = vadd.f32 0.0, %v837
      %v839 = vpop.f32.mrf.mxu0
      %v840 = vadd.f32 0.0, %v839
      %841 = vmatmul.bf16.gmra.mxu0 %v771
      %v842 = vpop.f32.mrf.mxu0
      %v843 = vadd.f32 0.0, %v842
      %v844 = vpop.f32.mrf.mxu0
      %v845 = vadd.f32 0.0, %v844
      %846 = vmatmul.bf16.gmra.mxu0 %v774
      %v847 = vpop.f32.mrf.mxu0
      %v848 = vadd.f32 0.0, %v847
      %v849 = vpop.f32.mrf.mxu0
      %v850 = vadd.f32 0.0, %v849
      %851 = vmatmul.bf16.gmra.mxu0 %v777
      %v852 = vpop.f32.mrf.mxu0
      %v853 = vadd.f32 0.0, %v852
      %v854 = vpop.f32.mrf.mxu0
      %v855 = vadd.f32 0.0, %v854
      %856 = vmatmul.bf16.gmra.mxu0 %v780
      %v857 = vpop.f32.mrf.mxu0
      %v858 = vadd.f32 0.0, %v857
      %v859 = vpop.f32.mrf.mxu0
      %v860 = vadd.f32 0.0, %v859
      %861 = vmatmul.bf16.gmra.mxu0 %v783
      %v862 = vpop.f32.mrf.mxu0
      %v863 = vadd.f32 0.0, %v862
      %v864 = vpop.f32.mrf.mxu0
      %v865 = vadd.f32 0.0, %v864
      %866 = vmatmul.bf16.gmra.mxu0 %v786
      %v867 = vpop.f32.mrf.mxu0
      %v868 = vadd.f32 0.0, %v867
      %v869 = vpop.f32.mrf.mxu0
      %v870 = vadd.f32 0.0, %v869
      %871 = vmatmul.bf16.gmra.mxu0 %v789
      %v872 = vpop.f32.mrf.mxu0
      %v873 = vadd.f32 0.0, %v872
      %v874 = vpop.f32.mrf.mxu0
      %v875 = vadd.f32 0.0, %v874
      %876 = vmatmul.bf16.gmra.mxu0 %v792
      %v877 = vpop.f32.mrf.mxu0
      %v878 = vadd.f32 0.0, %v877
      %v879 = vpop.f32.mrf.mxu0
      %v880 = vadd.f32 0.0, %v879
      %881 = vmatmul.bf16.gmra.mxu0 %v795
      %v882 = vpop.f32.mrf.mxu0
      %v883 = vadd.f32 0.0, %v882
      %v884 = vpop.f32.mrf.mxu0
      %v885 = vadd.f32 0.0, %v884
      %886 = vmatmul.bf16.gmra.mxu0 %v798
      %v887 = vpop.f32.mrf.mxu0
      %v888 = vadd.f32 0.0, %v887
      %v889 = vpop.f32.mrf.mxu0
      %v890 = vadd.f32 0.0, %v889
      %891 = vmatmul.bf16.gmra.mxu0 %v801
      %v892 = vpop.f32.mrf.mxu0
      %v893 = vadd.f32 0.0, %v892
      %v894 = vpop.f32.mrf.mxu0
      %v895 = vadd.f32 0.0, %v894
      %896 = vmatmul.bf16.gmra.mxu0 %v804
      %v897 = vpop.f32.mrf.mxu0
      %v898 = vadd.f32 0.0, %v897
      %v899 = vpop.f32.mrf.mxu0
      %v900 = vadd.f32 0.0, %v899
      %901 = vmatmul.bf16.gmra.mxu0 %v807
      %v902 = vpop.f32.mrf.mxu0
      %v903 = vadd.f32 0.0, %v902
      %v904 = vpop.f32.mrf.mxu0
      %v905 = vadd.f32 0.0, %v904
      %906 = vmatmul.bf16.gmra.mxu0 %v810
      %v907 = vpop.f32.mrf.mxu0
      %v908 = vadd.f32 0.0, %v907
      %v909 = vpop.f32.mrf.mxu0
      %v910 = vadd.f32 0.0, %v909
      %911 = vmatmul.bf16.gmra.mxu0 %v813
      %v912 = vpop.f32.mrf.mxu0
      %v913 = vadd.f32 0.0, %v912
      %v914 = vpop.f32.mrf.mxu0
      %v915 = vadd.f32 0.0, %v914
      %916 = vdwg.mxu0
      %v917 = vadd.f32 %v616, %v828
      %v918 = vadd.f32 %v618, %v830
      %v919 = vadd.f32 %v621, %v833
      %v920 = vadd.f32 %v623, %v835
      %v921 = vadd.f32 %v626, %v838
      %v922 = vadd.f32 %v628, %v840
      %v923 = vadd.f32 %v631, %v843
      %v924 = vadd.f32 %v633, %v845
      %v925 = vadd.f32 %v636, %v848
      %v926 = vadd.f32 %v638, %v850
      %v927 = vadd.f32 %v641, %v853
      %v928 = vadd.f32 %v643, %v855
      %v929 = vadd.f32 %v646, %v858
      %v930 = vadd.f32 %v648, %v860
      %v931 = vadd.f32 %v651, %v863
      %v932 = vadd.f32 %v653, %v865
      %v933 = vadd.f32 %v656, %v868
      %v934 = vadd.f32 %v658, %v870
      %v935 = vadd.f32 %v661, %v873
      %v936 = vadd.f32 %v663, %v875
      %v937 = vadd.f32 %v666, %v878
      %v938 = vadd.f32 %v668, %v880
      %v939 = vadd.f32 %v671, %v883
      %v940 = vadd.f32 %v673, %v885
      %v941 = vadd.f32 %v676, %v888
      %v942 = vadd.f32 %v678, %v890
      %v943 = vadd.f32 %v681, %v893
      %v944 = vadd.f32 %v683, %v895
      %v945 = vadd.f32 %v686, %v898
      %v946 = vadd.f32 %v688, %v900
      %v947 = vadd.f32 %v691, %v903
      %v948 = vadd.f32 %v693, %v905
      %v949 = vadd.f32 %v696, %v908
      %v950 = vadd.f32 %v698, %v910
      %v951 = vadd.f32 %v701, %v913
      %v952 = vadd.f32 %v703, %v915
      %v953 = vld [vmem:[%s273 + $0x12] sm:$0xff]
      %v954 = vld [vmem:[%s273 + $0x1a] sm:$0xff]
      %v955 = vld [vmem:[%s273 + $0x22] sm:$0xff]
      %v956 = vld [vmem:[%s273 + $0x2a] sm:$0xff]
      %v957 = vld [vmem:[%s273 + $0x32] sm:$0xff]
      %v958 = vld [vmem:[%s273 + $0x3a] sm:$0xff]
      %v959 = vld [vmem:[%s273 + $0x42] sm:$0xff]
      %v960 = vld [vmem:[%s273 + $0x4a] sm:$0xff]
      %v961 = vld [vmem:[%s273 + $0x52] sm:$0xff]
      %v962 = vld [vmem:[%s273 + $0x5a] sm:$0xff]
      %v963 = vld [vmem:[%s273 + $0x62] sm:$0xff]
      %v964 = vld [vmem:[%s273 + $0x6a] sm:$0xff]
      %v965 = vld [vmem:[%s273 + $0x72] sm:$0xff]
      %v966 = vld [vmem:[%s273 + $0x7a] sm:$0xff]
      %v967 = vld [vmem:[%s273 + $0x82] sm:$0xff]
      %v968 = vld [vmem:[%s273 + $0x8a] sm:$0xff]
      %v969 = vld [vmem:[%s273 + $0x92] sm:$0xff]
      %v970 = vld [vmem:[%s273 + $0x9a] sm:$0xff]
      %v971 = vld [vmem:[%s273 + $0xa2] sm:$0xff]
      %v972 = vld [vmem:[%s273 + $0xaa] sm:$0xff]
      %v973 = vld [vmem:[%s273 + $0xb2] sm:$0xff]
      %v974 = vld [vmem:[%s273 + $0xba] sm:$0xff]
      %v975 = vld [vmem:[%s273 + $0xc2] sm:$0xff]
      %v976 = vld [vmem:[%s273 + $0xca] sm:$0xff]
      %v977 = vld [vmem:[%s273 + $0xd2] sm:$0xff]
      %v978 = vld [vmem:[%s273 + $0xda] sm:$0xff]
      %v979 = vld [vmem:[%s273 + $0xe2] sm:$0xff]
      %v980 = vld [vmem:[%s273 + $0xea] sm:$0xff]
      %v981 = vld [vmem:[%s273 + $0xf2] sm:$0xff]
      %v982 = vld [vmem:[%s273 + $0xfa] sm:$0xff]
      %v983 = vld [vmem:[%s273 + $0x102] sm:$0xff]
      %v984 = vld [vmem:[%s273 + $0x10a] sm:$0xff]
      %v985 = vld [vmem:[%s273 + $0x112] sm:$0xff]
      %v986 = vld [vmem:[%s273 + $0x11a] sm:$0xff]
      %v987 = vld [vmem:[%s273 + $0x122] sm:$0xff]
      %v988 = vld [vmem:[%s273 + $0x12a] sm:$0xff]
      %v989 = vpack.c.bf16 %v954, %v953
      %v990 = vpack.c.bf16 %v956, %v955
      %v991 = vpack.c.bf16 %v958, %v957
      %v992 = vpack.c.bf16 %v960, %v959
      %v993 = vpack.c.bf16 %v962, %v961
      %v994 = vpack.c.bf16 %v964, %v963
      %v995 = vpack.c.bf16 %v966, %v965
      %v996 = vpack.c.bf16 %v968, %v967
      %v997 = vpack.c.bf16 %v970, %v969
      %v998 = vpack.c.bf16 %v972, %v971
      %v999 = vpack.c.bf16 %v974, %v973
      %v1000 = vpack.c.bf16 %v976, %v975
      %v1001 = vpack.c.bf16 %v978, %v977
      %v1002 = vpack.c.bf16 %v980, %v979
      %v1003 = vpack.c.bf16 %v982, %v981
      %v1004 = vpack.c.bf16 %v984, %v983
      %v1005 = vpack.c.bf16 %v986, %v985
      %v1006 = vpack.c.bf16 %v988, %v987
      %s1007 = scalar_lea.vmem %s1, 6
      %v1008 = vld [vmem:[%s1007] sm:$0x3]
      %v1010 = vsel %vm391, %v989, 0
      %v1013 = vsel %vm391, %v990, 0
      %v1016 = vsel %vm391, %v991, 0
      %v1019 = vsel %vm391, %v992, 0
      %v1022 = vsel %vm391, %v993, 0
      %v1025 = vsel %vm391, %v994, 0
      %v1028 = vsel %vm391, %v995, 0
      %v1031 = vsel %vm391, %v996, 0
      %v1034 = vsel %vm391, %v997, 0
      %v1037 = vsel %vm391, %v998, 0
      %v1040 = vsel %vm391, %v999, 0
      %v1043 = vsel %vm391, %v1000, 0
      %v1046 = vsel %vm391, %v1001, 0
      %v1049 = vsel %vm391, %v1002, 0
      %v1052 = vsel %vm391, %v1003, 0
      %v1055 = vsel %vm391, %v1004, 0
      %v1058 = vsel %vm391, %v1005, 0
      %v1061 = vsel %vm391, %v1006, 0
      %v1064 = vsel %vm446, %v1008, 0
      %1066 = vmatpush.bf16.msra.mxu0 0
      %1067 = vmatpush.bf16.msra.mxu0 0
      %1068 = vmatpush.bf16.msra.mxu0 0
      %1069 = vmatpush.bf16.msra.mxu0 0
      %1070 = vmatpush.bf16.msra.mxu0 0
      %1071 = vmatpush.bf16.msra.mxu0 0
      %1072 = vmatpush.bf16.msra.mxu0 0
      %1073 = vmatpush.bf16.msra.mxu0 %v1064
      %1074 = vmatmul.bf16.gmra.mxu0 %v1010
      %v1075 = vpop.f32.mrf.mxu0
      %v1076 = vadd.f32 0.0, %v1075
      %v1077 = vpop.f32.mrf.mxu0
      %v1078 = vadd.f32 0.0, %v1077
      %1079 = vmatmul.bf16.gmra.mxu0 %v1013
      %v1080 = vpop.f32.mrf.mxu0
      %v1081 = vadd.f32 0.0, %v1080
      %v1082 = vpop.f32.mrf.mxu0
      %v1083 = vadd.f32 0.0, %v1082
      %1084 = vmatmul.bf16.gmra.mxu0 %v1016
      %v1085 = vpop.f32.mrf.mxu0
      %v1086 = vadd.f32 0.0, %v1085
      %v1087 = vpop.f32.mrf.mxu0
      %v1088 = vadd.f32 0.0, %v1087
      %1089 = vmatmul.bf16.gmra.mxu0 %v1019
      %v1090 = vpop.f32.mrf.mxu0
      %v1091 = vadd.f32 0.0, %v1090
      %v1092 = vpop.f32.mrf.mxu0
      %v1093 = vadd.f32 0.0, %v1092
      %1094 = vmatmul.bf16.gmra.mxu0 %v1022
      %v1095 = vpop.f32.mrf.mxu0
      %v1096 = vadd.f32 0.0, %v1095
      %v1097 = vpop.f32.mrf.mxu0
      %v1098 = vadd.f32 0.0, %v1097
      %1099 = vmatmul.bf16.gmra.mxu0 %v1025
      %v1100 = vpop.f32.mrf.mxu0
      %v1101 = vadd.f32 0.0, %v1100
      %v1102 = vpop.f32.mrf.mxu0
      %v1103 = vadd.f32 0.0, %v1102
      %1104 = vmatmul.bf16.gmra.mxu0 %v1028
      %v1105 = vpop.f32.mrf.mxu0
      %v1106 = vadd.f32 0.0, %v1105
      %v1107 = vpop.f32.mrf.mxu0
      %v1108 = vadd.f32 0.0, %v1107
      %1109 = vmatmul.bf16.gmra.mxu0 %v1031
      %v1110 = vpop.f32.mrf.mxu0
      %v1111 = vadd.f32 0.0, %v1110
      %v1112 = vpop.f32.mrf.mxu0
      %v1113 = vadd.f32 0.0, %v1112
      %1114 = vmatmul.bf16.gmra.mxu0 %v1034
      %v1115 = vpop.f32.mrf.mxu0
      %v1116 = vadd.f32 0.0, %v1115
      %v1117 = vpop.f32.mrf.mxu0
      %v1118 = vadd.f32 0.0, %v1117
      %1119 = vmatmul.bf16.gmra.mxu0 %v1037
      %v1120 = vpop.f32.mrf.mxu0
      %v1121 = vadd.f32 0.0, %v1120
      %v1122 = vpop.f32.mrf.mxu0
      %v1123 = vadd.f32 0.0, %v1122
      %1124 = vmatmul.bf16.gmra.mxu0 %v1040
      %v1125 = vpop.f32.mrf.mxu0
      %v1126 = vadd.f32 0.0, %v1125
      %v1127 = vpop.f32.mrf.mxu0
      %v1128 = vadd.f32 0.0, %v1127
      %1129 = vmatmul.bf16.gmra.mxu0 %v1043
      %v1130 = vpop.f32.mrf.mxu0
      %v1131 = vadd.f32 0.0, %v1130
      %v1132 = vpop.f32.mrf.mxu0
      %v1133 = vadd.f32 0.0, %v1132
      %1134 = vmatmul.bf16.gmra.mxu0 %v1046
      %v1135 = vpop.f32.mrf.mxu0
      %v1136 = vadd.f32 0.0, %v1135
      %v1137 = vpop.f32.mrf.mxu0
      %v1138 = vadd.f32 0.0, %v1137
      %1139 = vmatmul.bf16.gmra.mxu0 %v1049
      %v1140 = vpop.f32.mrf.mxu0
      %v1141 = vadd.f32 0.0, %v1140
      %v1142 = vpop.f32.mrf.mxu0
      %v1143 = vadd.f32 0.0, %v1142
      %1144 = vmatmul.bf16.gmra.mxu0 %v1052
      %v1145 = vpop.f32.mrf.mxu0
      %v1146 = vadd.f32 0.0, %v1145
      %v1147 = vpop.f32.mrf.mxu0
      %v1148 = vadd.f32 0.0, %v1147
      %1149 = vmatmul.bf16.gmra.mxu0 %v1055
      %v1150 = vpop.f32.mrf.mxu0
      %v1151 = vadd.f32 0.0, %v1150
      %v1152 = vpop.f32.mrf.mxu0
      %v1153 = vadd.f32 0.0, %v1152
      %1154 = vmatmul.bf16.gmra.mxu0 %v1058
      %v1155 = vpop.f32.mrf.mxu0
      %v1156 = vadd.f32 0.0, %v1155
      %v1157 = vpop.f32.mrf.mxu0
      %v1158 = vadd.f32 0.0, %v1157
      %1159 = vmatmul.bf16.gmra.mxu0 %v1061
      %v1160 = vpop.f32.mrf.mxu0
      %v1161 = vadd.f32 0.0, %v1160
      %v1162 = vpop.f32.mrf.mxu0
      %v1163 = vadd.f32 0.0, %v1162
      %1164 = vdwg.mxu0
      %v1165 = vadd.f32 %v917, %v1076
      %v1166 = vadd.f32 %v918, %v1078
      %v1167 = vadd.f32 %v919, %v1081
      %v1168 = vadd.f32 %v920, %v1083
      %v1169 = vadd.f32 %v921, %v1086
      %v1170 = vadd.f32 %v922, %v1088
      %v1171 = vadd.f32 %v923, %v1091
      %v1172 = vadd.f32 %v924, %v1093
      %v1173 = vadd.f32 %v925, %v1096
      %v1174 = vadd.f32 %v926, %v1098
      %v1175 = vadd.f32 %v927, %v1101
      %v1176 = vadd.f32 %v928, %v1103
      %v1177 = vadd.f32 %v929, %v1106
      %v1178 = vadd.f32 %v930, %v1108
      %v1179 = vadd.f32 %v931, %v1111
      %v1180 = vadd.f32 %v932, %v1113
      %v1181 = vadd.f32 %v933, %v1116
      %v1182 = vadd.f32 %v934, %v1118
      %v1183 = vadd.f32 %v935, %v1121
      %v1184 = vadd.f32 %v936, %v1123
      %v1185 = vadd.f32 %v937, %v1126
      %v1186 = vadd.f32 %v938, %v1128
      %v1187 = vadd.f32 %v939, %v1131
      %v1188 = vadd.f32 %v940, %v1133
      %v1189 = vadd.f32 %v941, %v1136
      %v1190 = vadd.f32 %v942, %v1138
      %v1191 = vadd.f32 %v943, %v1141
      %v1192 = vadd.f32 %v944, %v1143
      %v1193 = vadd.f32 %v945, %v1146
      %v1194 = vadd.f32 %v946, %v1148
      %v1195 = vadd.f32 %v947, %v1151
      %v1196 = vadd.f32 %v948, %v1153
      %v1197 = vadd.f32 %v949, %v1156
      %v1198 = vadd.f32 %v950, %v1158
      %v1199 = vadd.f32 %v951, %v1161
      %v1200 = vadd.f32 %v952, %v1163
      %v1201 = vld [vmem:[%s273 + $0x13] sm:$0xff]
      %v1202 = vld [vmem:[%s273 + $0x1b] sm:$0xff]
      %v1203 = vld [vmem:[%s273 + $0x23] sm:$0xff]
      %v1204 = vld [vmem:[%s273 + $0x2b] sm:$0xff]
      %v1205 = vld [vmem:[%s273 + $0x33] sm:$0xff]
      %v1206 = vld [vmem:[%s273 + $0x3b] sm:$0xff]
      %v1207 = vld [vmem:[%s273 + $0x43] sm:$0xff]
      %v1208 = vld [vmem:[%s273 + $0x4b] sm:$0xff]
      %v1209 = vld [vmem:[%s273 + $0x53] sm:$0xff]
      %v1210 = vld [vmem:[%s273 + $0x5b] sm:$0xff]
      %v1211 = vld [vmem:[%s273 + $0x63] sm:$0xff]
      %v1212 = vld [vmem:[%s273 + $0x6b] sm:$0xff]
      %v1213 = vld [vmem:[%s273 + $0x73] sm:$0xff]
      %v1214 = vld [vmem:[%s273 + $0x7b] sm:$0xff]
      %v1215 = vld [vmem:[%s273 + $0x83] sm:$0xff]
      %v1216 = vld [vmem:[%s273 + $0x8b] sm:$0xff]
      %v1217 = vld [vmem:[%s273 + $0x93] sm:$0xff]
      %v1218 = vld [vmem:[%s273 + $0x9b] sm:$0xff]
      %v1219 = vld [vmem:[%s273 + $0xa3] sm:$0xff]
      %v1220 = vld [vmem:[%s273 + $0xab] sm:$0xff]
      %v1221 = vld [vmem:[%s273 + $0xb3] sm:$0xff]
      %v1222 = vld [vmem:[%s273 + $0xbb] sm:$0xff]
      %v1223 = vld [vmem:[%s273 + $0xc3] sm:$0xff]
      %v1224 = vld [vmem:[%s273 + $0xcb] sm:$0xff]
      %v1225 = vld [vmem:[%s273 + $0xd3] sm:$0xff]
      %v1226 = vld [vmem:[%s273 + $0xdb] sm:$0xff]
      %v1227 = vld [vmem:[%s273 + $0xe3] sm:$0xff]
      %v1228 = vld [vmem:[%s273 + $0xeb] sm:$0xff]
      %v1229 = vld [vmem:[%s273 + $0xf3] sm:$0xff]
      %v1230 = vld [vmem:[%s273 + $0xfb] sm:$0xff]
      %v1231 = vld [vmem:[%s273 + $0x103] sm:$0xff]
      %v1232 = vld [vmem:[%s273 + $0x10b] sm:$0xff]
      %v1233 = vld [vmem:[%s273 + $0x113] sm:$0xff]
      %v1234 = vld [vmem:[%s273 + $0x11b] sm:$0xff]
      %v1235 = vld [vmem:[%s273 + $0x123] sm:$0xff]
      %v1236 = vld [vmem:[%s273 + $0x12b] sm:$0xff]
      %v1237 = vpack.c.bf16 %v1202, %v1201
      %v1238 = vpack.c.bf16 %v1204, %v1203
      %v1239 = vpack.c.bf16 %v1206, %v1205
      %v1240 = vpack.c.bf16 %v1208, %v1207
      %v1241 = vpack.c.bf16 %v1210, %v1209
      %v1242 = vpack.c.bf16 %v1212, %v1211
      %v1243 = vpack.c.bf16 %v1214, %v1213
      %v1244 = vpack.c.bf16 %v1216, %v1215
      %v1245 = vpack.c.bf16 %v1218, %v1217
      %v1246 = vpack.c.bf16 %v1220, %v1219
      %v1247 = vpack.c.bf16 %v1222, %v1221
      %v1248 = vpack.c.bf16 %v1224, %v1223
      %v1249 = vpack.c.bf16 %v1226, %v1225
      %v1250 = vpack.c.bf16 %v1228, %v1227
      %v1251 = vpack.c.bf16 %v1230, %v1229
      %v1252 = vpack.c.bf16 %v1232, %v1231
      %v1253 = vpack.c.bf16 %v1234, %v1233
      %v1254 = vpack.c.bf16 %v1236, %v1235
      %s1255 = scalar_lea.vmem %s1, 8
      %v1256 = vld [vmem:[%s1255] sm:$0x3]
      %v1258 = vsel %vm391, %v1237, 0
      %v1261 = vsel %vm391, %v1238, 0
      %v1264 = vsel %vm391, %v1239, 0
      %v1267 = vsel %vm391, %v1240, 0
      %v1270 = vsel %vm391, %v1241, 0
      %v1273 = vsel %vm391, %v1242, 0
      %v1276 = vsel %vm391, %v1243, 0
      %v1279 = vsel %vm391, %v1244, 0
      %v1282 = vsel %vm391, %v1245, 0
      %v1285 = vsel %vm391, %v1246, 0
      %v1288 = vsel %vm391, %v1247, 0
      %v1291 = vsel %vm391, %v1248, 0
      %v1294 = vsel %vm391, %v1249, 0
      %v1297 = vsel %vm391, %v1250, 0
      %v1300 = vsel %vm391, %v1251, 0
      %v1303 = vsel %vm391, %v1252, 0
      %v1306 = vsel %vm391, %v1253, 0
      %v1309 = vsel %vm391, %v1254, 0
      %v1312 = vsel %vm446, %v1256, 0
      %1314 = vmatpush.bf16.msra.mxu0 0
      %1315 = vmatpush.bf16.msra.mxu0 0
      %1316 = vmatpush.bf16.msra.mxu0 0
      %1317 = vmatpush.bf16.msra.mxu0 0
      %1318 = vmatpush.bf16.msra.mxu0 0
      %1319 = vmatpush.bf16.msra.mxu0 0
      %1320 = vmatpush.bf16.msra.mxu0 0
      %1321 = vmatpush.bf16.msra.mxu0 %v1312
      %1322 = vmatmul.bf16.gmra.mxu0 %v1258
      %v1323 = vpop.f32.mrf.mxu0
      %v1324 = vadd.f32 0.0, %v1323
      %v1325 = vpop.f32.mrf.mxu0
      %v1326 = vadd.f32 0.0, %v1325
      %1327 = vmatmul.bf16.gmra.mxu0 %v1261
      %v1328 = vpop.f32.mrf.mxu0
      %v1329 = vadd.f32 0.0, %v1328
      %v1330 = vpop.f32.mrf.mxu0
      %v1331 = vadd.f32 0.0, %v1330
      %1332 = vmatmul.bf16.gmra.mxu0 %v1264
      %v1333 = vpop.f32.mrf.mxu0
      %v1334 = vadd.f32 0.0, %v1333
      %v1335 = vpop.f32.mrf.mxu0
      %v1336 = vadd.f32 0.0, %v1335
      %1337 = vmatmul.bf16.gmra.mxu0 %v1267
      %v1338 = vpop.f32.mrf.mxu0
      %v1339 = vadd.f32 0.0, %v1338
      %v1340 = vpop.f32.mrf.mxu0
      %v1341 = vadd.f32 0.0, %v1340
      %1342 = vmatmul.bf16.gmra.mxu0 %v1270
      %v1343 = vpop.f32.mrf.mxu0
      %v1344 = vadd.f32 0.0, %v1343
      %v1345 = vpop.f32.mrf.mxu0
      %v1346 = vadd.f32 0.0, %v1345
      %1347 = vmatmul.bf16.gmra.mxu0 %v1273
      %v1348 = vpop.f32.mrf.mxu0
      %v1349 = vadd.f32 0.0, %v1348
      %v1350 = vpop.f32.mrf.mxu0
      %v1351 = vadd.f32 0.0, %v1350
      %1352 = vmatmul.bf16.gmra.mxu0 %v1276
      %v1353 = vpop.f32.mrf.mxu0
      %v1354 = vadd.f32 0.0, %v1353
      %v1355 = vpop.f32.mrf.mxu0
      %v1356 = vadd.f32 0.0, %v1355
      %1357 = vmatmul.bf16.gmra.mxu0 %v1279
      %v1358 = vpop.f32.mrf.mxu0
      %v1359 = vadd.f32 0.0, %v1358
      %v1360 = vpop.f32.mrf.mxu0
      %v1361 = vadd.f32 0.0, %v1360
      %1362 = vmatmul.bf16.gmra.mxu0 %v1282
      %v1363 = vpop.f32.mrf.mxu0
      %v1364 = vadd.f32 0.0, %v1363
      %v1365 = vpop.f32.mrf.mxu0
      %v1366 = vadd.f32 0.0, %v1365
      %1367 = vmatmul.bf16.gmra.mxu0 %v1285
      %v1368 = vpop.f32.mrf.mxu0
      %v1369 = vadd.f32 0.0, %v1368
      %v1370 = vpop.f32.mrf.mxu0
      %v1371 = vadd.f32 0.0, %v1370
      %1372 = vmatmul.bf16.gmra.mxu0 %v1288
      %v1373 = vpop.f32.mrf.mxu0
      %v1374 = vadd.f32 0.0, %v1373
      %v1375 = vpop.f32.mrf.mxu0
      %v1376 = vadd.f32 0.0, %v1375
      %1377 = vmatmul.bf16.gmra.mxu0 %v1291
      %v1378 = vpop.f32.mrf.mxu0
      %v1379 = vadd.f32 0.0, %v1378
      %v1380 = vpop.f32.mrf.mxu0
      %v1381 = vadd.f32 0.0, %v1380
      %1382 = vmatmul.bf16.gmra.mxu0 %v1294
      %v1383 = vpop.f32.mrf.mxu0
      %v1384 = vadd.f32 0.0, %v1383
      %v1385 = vpop.f32.mrf.mxu0
      %v1386 = vadd.f32 0.0, %v1385
      %1387 = vmatmul.bf16.gmra.mxu0 %v1297
      %v1388 = vpop.f32.mrf.mxu0
      %v1389 = vadd.f32 0.0, %v1388
      %v1390 = vpop.f32.mrf.mxu0
      %v1391 = vadd.f32 0.0, %v1390
      %1392 = vmatmul.bf16.gmra.mxu0 %v1300
      %v1393 = vpop.f32.mrf.mxu0
      %v1394 = vadd.f32 0.0, %v1393
      %v1395 = vpop.f32.mrf.mxu0
      %v1396 = vadd.f32 0.0, %v1395
      %1397 = vmatmul.bf16.gmra.mxu0 %v1303
      %v1398 = vpop.f32.mrf.mxu0
      %v1399 = vadd.f32 0.0, %v1398
      %v1400 = vpop.f32.mrf.mxu0
      %v1401 = vadd.f32 0.0, %v1400
      %1402 = vmatmul.bf16.gmra.mxu0 %v1306
      %v1403 = vpop.f32.mrf.mxu0
      %v1404 = vadd.f32 0.0, %v1403
      %v1405 = vpop.f32.mrf.mxu0
      %v1406 = vadd.f32 0.0, %v1405
      %1407 = vmatmul.bf16.gmra.mxu0 %v1309
      %v1408 = vpop.f32.mrf.mxu0
      %v1409 = vadd.f32 0.0, %v1408
      %v1410 = vpop.f32.mrf.mxu0
      %v1411 = vadd.f32 0.0, %v1410
      %1412 = vdwg.mxu0
      %v1413 = vadd.f32 %v1165, %v1324
      %v1414 = vadd.f32 %v1166, %v1326
      %v1415 = vadd.f32 %v1167, %v1329
      %v1416 = vadd.f32 %v1168, %v1331
      %v1417 = vadd.f32 %v1169, %v1334
      %v1418 = vadd.f32 %v1170, %v1336
      %v1419 = vadd.f32 %v1171, %v1339
      %v1420 = vadd.f32 %v1172, %v1341
      %v1421 = vadd.f32 %v1173, %v1344
      %v1422 = vadd.f32 %v1174, %v1346
      %v1423 = vadd.f32 %v1175, %v1349
      %v1424 = vadd.f32 %v1176, %v1351
      %v1425 = vadd.f32 %v1177, %v1354
      %v1426 = vadd.f32 %v1178, %v1356
      %v1427 = vadd.f32 %v1179, %v1359
      %v1428 = vadd.f32 %v1180, %v1361
      %v1429 = vadd.f32 %v1181, %v1364
      %v1430 = vadd.f32 %v1182, %v1366
      %v1431 = vadd.f32 %v1183, %v1369
      %v1432 = vadd.f32 %v1184, %v1371
      %v1433 = vadd.f32 %v1185, %v1374
      %v1434 = vadd.f32 %v1186, %v1376
      %v1435 = vadd.f32 %v1187, %v1379
      %v1436 = vadd.f32 %v1188, %v1381
      %v1437 = vadd.f32 %v1189, %v1384
      %v1438 = vadd.f32 %v1190, %v1386
      %v1439 = vadd.f32 %v1191, %v1389
      %v1440 = vadd.f32 %v1192, %v1391
      %v1441 = vadd.f32 %v1193, %v1394
      %v1442 = vadd.f32 %v1194, %v1396
      %v1443 = vadd.f32 %v1195, %v1399
      %v1444 = vadd.f32 %v1196, %v1401
      %v1445 = vadd.f32 %v1197, %v1404
      %v1446 = vadd.f32 %v1198, %v1406
      %v1447 = vadd.f32 %v1199, %v1409
      %v1448 = vadd.f32 %v1200, %v1411
      %v1449 = vld [vmem:[%s273 + $0x14] sm:$0xff]
      %v1450 = vld [vmem:[%s273 + $0x1c] sm:$0xff]
      %v1451 = vld [vmem:[%s273 + $0x24] sm:$0xff]
      %v1452 = vld [vmem:[%s273 + $0x2c] sm:$0xff]
      %v1453 = vld [vmem:[%s273 + $0x34] sm:$0xff]
      %v1454 = vld [vmem:[%s273 + $0x3c] sm:$0xff]
      %v1455 = vld [vmem:[%s273 + $0x44] sm:$0xff]
      %v1456 = vld [vmem:[%s273 + $0x4c] sm:$0xff]
      %v1457 = vld [vmem:[%s273 + $0x54] sm:$0xff]
      %v1458 = vld [vmem:[%s273 + $0x5c] sm:$0xff]
      %v1459 = vld [vmem:[%s273 + $0x64] sm:$0xff]
      %v1460 = vld [vmem:[%s273 + $0x6c] sm:$0xff]
      %v1461 = vld [vmem:[%s273 + $0x74] sm:$0xff]
      %v1462 = vld [vmem:[%s273 + $0x7c] sm:$0xff]
      %v1463 = vld [vmem:[%s273 + $0x84] sm:$0xff]
      %v1464 = vld [vmem:[%s273 + $0x8c] sm:$0xff]
      %v1465 = vld [vmem:[%s273 + $0x94] sm:$0xff]
      %v1466 = vld [vmem:[%s273 + $0x9c] sm:$0xff]
      %v1467 = vld [vmem:[%s273 + $0xa4] sm:$0xff]
      %v1468 = vld [vmem:[%s273 + $0xac] sm:$0xff]
      %v1469 = vld [vmem:[%s273 + $0xb4] sm:$0xff]
      %v1470 = vld [vmem:[%s273 + $0xbc] sm:$0xff]
      %v1471 = vld [vmem:[%s273 + $0xc4] sm:$0xff]
      %v1472 = vld [vmem:[%s273 + $0xcc] sm:$0xff]
      %v1473 = vld [vmem:[%s273 + $0xd4] sm:$0xff]
      %v1474 = vld [vmem:[%s273 + $0xdc] sm:$0xff]
      %v1475 = vld [vmem:[%s273 + $0xe4] sm:$0xff]
      %v1476 = vld [vmem:[%s273 + $0xec] sm:$0xff]
      %v1477 = vld [vmem:[%s273 + $0xf4] sm:$0xff]
      %v1478 = vld [vmem:[%s273 + $0xfc] sm:$0xff]
      %v1479 = vld [vmem:[%s273 + $0x104] sm:$0xff]
      %v1480 = vld [vmem:[%s273 + $0x10c] sm:$0xff]
      %v1481 = vld [vmem:[%s273 + $0x114] sm:$0xff]
      %v1482 = vld [vmem:[%s273 + $0x11c] sm:$0xff]
      %v1483 = vld [vmem:[%s273 + $0x124] sm:$0xff]
      %v1484 = vld [vmem:[%s273 + $0x12c] sm:$0xff]
      %v1485 = vpack.c.bf16 %v1450, %v1449
      %v1486 = vpack.c.bf16 %v1452, %v1451
      %v1487 = vpack.c.bf16 %v1454, %v1453
      %v1488 = vpack.c.bf16 %v1456, %v1455
      %v1489 = vpack.c.bf16 %v1458, %v1457
      %v1490 = vpack.c.bf16 %v1460, %v1459
      %v1491 = vpack.c.bf16 %v1462, %v1461
      %v1492 = vpack.c.bf16 %v1464, %v1463
      %v1493 = vpack.c.bf16 %v1466, %v1465
      %v1494 = vpack.c.bf16 %v1468, %v1467
      %v1495 = vpack.c.bf16 %v1470, %v1469
      %v1496 = vpack.c.bf16 %v1472, %v1471
      %v1497 = vpack.c.bf16 %v1474, %v1473
      %v1498 = vpack.c.bf16 %v1476, %v1475
      %v1499 = vpack.c.bf16 %v1478, %v1477
      %v1500 = vpack.c.bf16 %v1480, %v1479
      %v1501 = vpack.c.bf16 %v1482, %v1481
      %v1502 = vpack.c.bf16 %v1484, %v1483
      %s1503 = scalar_lea.vmem %s1, 10
      %v1504 = vld [vmem:[%s1503] sm:$0x3]
      %v1506 = vsel %vm391, %v1485, 0
      %v1509 = vsel %vm391, %v1486, 0
      %v1512 = vsel %vm391, %v1487, 0
      %v1515 = vsel %vm391, %v1488, 0
      %v1518 = vsel %vm391, %v1489, 0
      %v1521 = vsel %vm391, %v1490, 0
      %v1524 = vsel %vm391, %v1491, 0
      %v1527 = vsel %vm391, %v1492, 0
      %v1530 = vsel %vm391, %v1493, 0
      %v1533 = vsel %vm391, %v1494, 0
      %v1536 = vsel %vm391, %v1495, 0
      %v1539 = vsel %vm391, %v1496, 0
      %v1542 = vsel %vm391, %v1497, 0
      %v1545 = vsel %vm391, %v1498, 0
      %v1548 = vsel %vm391, %v1499, 0
      %v1551 = vsel %vm391, %v1500, 0
      %v1554 = vsel %vm391, %v1501, 0
      %v1557 = vsel %vm391, %v1502, 0
      %v1560 = vsel %vm446, %v1504, 0
      %1562 = vmatpush.bf16.msra.mxu0 0
      %1563 = vmatpush.bf16.msra.mxu0 0
      %1564 = vmatpush.bf16.msra.mxu0 0
      %1565 = vmatpush.bf16.msra.mxu0 0
      %1566 = vmatpush.bf16.msra.mxu0 0
      %1567 = vmatpush.bf16.msra.mxu0 0
      %1568 = vmatpush.bf16.msra.mxu0 0
      %1569 = vmatpush.bf16.msra.mxu0 %v1560
      %1570 = vmatmul.bf16.gmra.mxu0 %v1506
      %v1571 = vpop.f32.mrf.mxu0
      %v1572 = vadd.f32 0.0, %v1571
      %v1573 = vpop.f32.mrf.mxu0
      %v1574 = vadd.f32 0.0, %v1573
      %1575 = vmatmul.bf16.gmra.mxu0 %v1509
      %v1576 = vpop.f32.mrf.mxu0
      %v1577 = vadd.f32 0.0, %v1576
      %v1578 = vpop.f32.mrf.mxu0
      %v1579 = vadd.f32 0.0, %v1578
      %1580 = vmatmul.bf16.gmra.mxu0 %v1512
      %v1581 = vpop.f32.mrf.mxu0
      %v1582 = vadd.f32 0.0, %v1581
      %v1583 = vpop.f32.mrf.mxu0
      %v1584 = vadd.f32 0.0, %v1583
      %1585 = vmatmul.bf16.gmra.mxu0 %v1515
      %v1586 = vpop.f32.mrf.mxu0
      %v1587 = vadd.f32 0.0, %v1586
      %v1588 = vpop.f32.mrf.mxu0
      %v1589 = vadd.f32 0.0, %v1588
      %1590 = vmatmul.bf16.gmra.mxu0 %v1518
      %v1591 = vpop.f32.mrf.mxu0
      %v1592 = vadd.f32 0.0, %v1591
      %v1593 = vpop.f32.mrf.mxu0
      %v1594 = vadd.f32 0.0, %v1593
      %1595 = vmatmul.bf16.gmra.mxu0 %v1521
      %v1596 = vpop.f32.mrf.mxu0
      %v1597 = vadd.f32 0.0, %v1596
      %v1598 = vpop.f32.mrf.mxu0
      %v1599 = vadd.f32 0.0, %v1598
      %1600 = vmatmul.bf16.gmra.mxu0 %v1524
      %v1601 = vpop.f32.mrf.mxu0
      %v1602 = vadd.f32 0.0, %v1601
      %v1603 = vpop.f32.mrf.mxu0
      %v1604 = vadd.f32 0.0, %v1603
      %1605 = vmatmul.bf16.gmra.mxu0 %v1527
      %v1606 = vpop.f32.mrf.mxu0
      %v1607 = vadd.f32 0.0, %v1606
      %v1608 = vpop.f32.mrf.mxu0
      %v1609 = vadd.f32 0.0, %v1608
      %1610 = vmatmul.bf16.gmra.mxu0 %v1530
      %v1611 = vpop.f32.mrf.mxu0
      %v1612 = vadd.f32 0.0, %v1611
      %v1613 = vpop.f32.mrf.mxu0
      %v1614 = vadd.f32 0.0, %v1613
      %1615 = vmatmul.bf16.gmra.mxu0 %v1533
      %v1616 = vpop.f32.mrf.mxu0
      %v1617 = vadd.f32 0.0, %v1616
      %v1618 = vpop.f32.mrf.mxu0
      %v1619 = vadd.f32 0.0, %v1618
      %1620 = vmatmul.bf16.gmra.mxu0 %v1536
      %v1621 = vpop.f32.mrf.mxu0
      %v1622 = vadd.f32 0.0, %v1621
      %v1623 = vpop.f32.mrf.mxu0
      %v1624 = vadd.f32 0.0, %v1623
      %1625 = vmatmul.bf16.gmra.mxu0 %v1539
      %v1626 = vpop.f32.mrf.mxu0
      %v1627 = vadd.f32 0.0, %v1626
      %v1628 = vpop.f32.mrf.mxu0
      %v1629 = vadd.f32 0.0, %v1628
      %1630 = vmatmul.bf16.gmra.mxu0 %v1542
      %v1631 = vpop.f32.mrf.mxu0
      %v1632 = vadd.f32 0.0, %v1631
      %v1633 = vpop.f32.mrf.mxu0
      %v1634 = vadd.f32 0.0, %v1633
      %1635 = vmatmul.bf16.gmra.mxu0 %v1545
      %v1636 = vpop.f32.mrf.mxu0
      %v1637 = vadd.f32 0.0, %v1636
      %v1638 = vpop.f32.mrf.mxu0
      %v1639 = vadd.f32 0.0, %v1638
      %1640 = vmatmul.bf16.gmra.mxu0 %v1548
      %v1641 = vpop.f32.mrf.mxu0
      %v1642 = vadd.f32 0.0, %v1641
      %v1643 = vpop.f32.mrf.mxu0
      %v1644 = vadd.f32 0.0, %v1643
      %1645 = vmatmul.bf16.gmra.mxu0 %v1551
      %v1646 = vpop.f32.mrf.mxu0
      %v1647 = vadd.f32 0.0, %v1646
      %v1648 = vpop.f32.mrf.mxu0
      %v1649 = vadd.f32 0.0, %v1648
      %1650 = vmatmul.bf16.gmra.mxu0 %v1554
      %v1651 = vpop.f32.mrf.mxu0
      %v1652 = vadd.f32 0.0, %v1651
      %v1653 = vpop.f32.mrf.mxu0
      %v1654 = vadd.f32 0.0, %v1653
      %1655 = vmatmul.bf16.gmra.mxu0 %v1557
      %v1656 = vpop.f32.mrf.mxu0
      %v1657 = vadd.f32 0.0, %v1656
      %v1658 = vpop.f32.mrf.mxu0
      %v1659 = vadd.f32 0.0, %v1658
      %1660 = vdwg.mxu0
      %v1661 = vadd.f32 %v1413, %v1572
      %v1662 = vadd.f32 %v1414, %v1574
      %v1663 = vadd.f32 %v1415, %v1577
      %v1664 = vadd.f32 %v1416, %v1579
      %v1665 = vadd.f32 %v1417, %v1582
      %v1666 = vadd.f32 %v1418, %v1584
      %v1667 = vadd.f32 %v1419, %v1587
      %v1668 = vadd.f32 %v1420, %v1589
      %v1669 = vadd.f32 %v1421, %v1592
      %v1670 = vadd.f32 %v1422, %v1594
      %v1671 = vadd.f32 %v1423, %v1597
      %v1672 = vadd.f32 %v1424, %v1599
      %v1673 = vadd.f32 %v1425, %v1602
      %v1674 = vadd.f32 %v1426, %v1604
      %v1675 = vadd.f32 %v1427, %v1607
      %v1676 = vadd.f32 %v1428, %v1609
      %v1677 = vadd.f32 %v1429, %v1612
      %v1678 = vadd.f32 %v1430, %v1614
      %v1679 = vadd.f32 %v1431, %v1617
      %v1680 = vadd.f32 %v1432, %v1619
      %v1681 = vadd.f32 %v1433, %v1622
      %v1682 = vadd.f32 %v1434, %v1624
      %v1683 = vadd.f32 %v1435, %v1627
      %v1684 = vadd.f32 %v1436, %v1629
      %v1685 = vadd.f32 %v1437, %v1632
      %v1686 = vadd.f32 %v1438, %v1634
      %v1687 = vadd.f32 %v1439, %v1637
      %v1688 = vadd.f32 %v1440, %v1639
      %v1689 = vadd.f32 %v1441, %v1642
      %v1690 = vadd.f32 %v1442, %v1644
      %v1691 = vadd.f32 %v1443, %v1647
      %v1692 = vadd.f32 %v1444, %v1649
      %v1693 = vadd.f32 %v1445, %v1652
      %v1694 = vadd.f32 %v1446, %v1654
      %v1695 = vadd.f32 %v1447, %v1657
      %v1696 = vadd.f32 %v1448, %v1659
      %v1697 = vld [vmem:[%s273 + $0x24] sm:$0xff]
      %v1698 = vld [vmem:[%s273 + $0x2c] sm:$0xff]
      %v1699 = vld [vmem:[%s273 + $0x34] sm:$0xff]
      %v1700 = vld [vmem:[%s273 + $0x3c] sm:$0xff]
      %v1701 = vld [vmem:[%s273 + $0x44] sm:$0xff]
      %v1702 = vld [vmem:[%s273 + $0x4c] sm:$0xff]
      %v1703 = vld [vmem:[%s273 + $0x54] sm:$0xff]
      %v1704 = vld [vmem:[%s273 + $0x5c] sm:$0xff]
      %v1705 = vld [vmem:[%s273 + $0x64] sm:$0xff]
      %v1706 = vld [vmem:[%s273 + $0x6c] sm:$0xff]
      %v1707 = vld [vmem:[%s273 + $0x74] sm:$0xff]
      %v1708 = vld [vmem:[%s273 + $0x7c] sm:$0xff]
      %v1709 = vld [vmem:[%s273 + $0x84] sm:$0xff]
      %v1710 = vld [vmem:[%s273 + $0x8c] sm:$0xff]
      %v1711 = vld [vmem:[%s273 + $0x94] sm:$0xff]
      %v1712 = vld [vmem:[%s273 + $0x9c] sm:$0xff]
      %v1713 = vld [vmem:[%s273 + $0xa4] sm:$0xff]
      %v1714 = vld [vmem:[%s273 + $0xac] sm:$0xff]
      %v1715 = vld [vmem:[%s273 + $0xb4] sm:$0xff]
      %v1716 = vld [vmem:[%s273 + $0xbc] sm:$0xff]
      %v1717 = vld [vmem:[%s273 + $0xc4] sm:$0xff]
      %v1718 = vld [vmem:[%s273 + $0xcc] sm:$0xff]
      %v1719 = vld [vmem:[%s273 + $0xd4] sm:$0xff]
      %v1720 = vld [vmem:[%s273 + $0xdc] sm:$0xff]
      %v1721 = vld [vmem:[%s273 + $0xe4] sm:$0xff]
      %v1722 = vld [vmem:[%s273 + $0xec] sm:$0xff]
      %v1723 = vld [vmem:[%s273 + $0xf4] sm:$0xff]
      %v1724 = vld [vmem:[%s273 + $0xfc] sm:$0xff]
      %v1725 = vld [vmem:[%s273 + $0x104] sm:$0xff]
      %v1726 = vld [vmem:[%s273 + $0x10c] sm:$0xff]
      %v1727 = vld [vmem:[%s273 + $0x114] sm:$0xff]
      %v1728 = vld [vmem:[%s273 + $0x11c] sm:$0xff]
      %v1729 = vld [vmem:[%s273 + $0x124] sm:$0xff]
      %v1730 = vld [vmem:[%s273 + $0x12c] sm:$0xff]
      %v1731 = vld [vmem:[%s273 + $0x134] sm:$0xff]
      %v1732 = vld [vmem:[%s273 + $0x13c] sm:$0xff]
      %v1733 = vpack.c.bf16 %v1698, %v1697
      %v1734 = vpack.c.bf16 %v1700, %v1699
      %v1735 = vpack.c.bf16 %v1702, %v1701
      %v1736 = vpack.c.bf16 %v1704, %v1703
      %v1737 = vpack.c.bf16 %v1706, %v1705
      %v1738 = vpack.c.bf16 %v1708, %v1707
      %v1739 = vpack.c.bf16 %v1710, %v1709
      %v1740 = vpack.c.bf16 %v1712, %v1711
      %v1741 = vpack.c.bf16 %v1714, %v1713
      %v1742 = vpack.c.bf16 %v1716, %v1715
      %v1743 = vpack.c.bf16 %v1718, %v1717
      %v1744 = vpack.c.bf16 %v1720, %v1719
      %v1745 = vpack.c.bf16 %v1722, %v1721
      %v1746 = vpack.c.bf16 %v1724, %v1723
      %v1747 = vpack.c.bf16 %v1726, %v1725
      %v1748 = vpack.c.bf16 %v1728, %v1727
      %v1749 = vpack.c.bf16 %v1730, %v1729
      %v1750 = vpack.c.bf16 %v1732, %v1731
      %s1751 = scalar_lea.vmem %s1, 12
      %v1752 = vld [vmem:[%s1751] sm:$0x3]
      %v1754 = vsel %vm391, %v1733, 0
      %v1757 = vsel %vm391, %v1734, 0
      %v1760 = vsel %vm391, %v1735, 0
      %v1763 = vsel %vm391, %v1736, 0
      %v1766 = vsel %vm391, %v1737, 0
      %v1769 = vsel %vm391, %v1738, 0
      %v1772 = vsel %vm391, %v1739, 0
      %v1775 = vsel %vm391, %v1740, 0
      %v1778 = vsel %vm391, %v1741, 0
      %v1781 = vsel %vm391, %v1742, 0
      %v1784 = vsel %vm391, %v1743, 0
      %v1787 = vsel %vm391, %v1744, 0
      %v1790 = vsel %vm391, %v1745, 0
      %v1793 = vsel %vm391, %v1746, 0
      %v1796 = vsel %vm391, %v1747, 0
      %v1799 = vsel %vm391, %v1748, 0
      %v1802 = vsel %vm391, %v1749, 0
      %v1805 = vsel %vm391, %v1750, 0
      %v1808 = vsel %vm446, %v1752, 0
      %1810 = vmatpush.bf16.msra.mxu0 0
      %1811 = vmatpush.bf16.msra.mxu0 0
      %1812 = vmatpush.bf16.msra.mxu0 0
      %1813 = vmatpush.bf16.msra.mxu0 0
      %1814 = vmatpush.bf16.msra.mxu0 0
      %1815 = vmatpush.bf16.msra.mxu0 0
      %1816 = vmatpush.bf16.msra.mxu0 0
      %1817 = vmatpush.bf16.msra.mxu0 %v1808
      %1818 = vmatmul.bf16.gmra.mxu0 %v1754
      %v1819 = vpop.f32.mrf.mxu0
      %v1820 = vadd.f32 0.0, %v1819
      %v1821 = vpop.f32.mrf.mxu0
      %v1822 = vadd.f32 0.0, %v1821
      %1823 = vmatmul.bf16.gmra.mxu0 %v1757
      %v1824 = vpop.f32.mrf.mxu0
      %v1825 = vadd.f32 0.0, %v1824
      %v1826 = vpop.f32.mrf.mxu0
      %v1827 = vadd.f32 0.0, %v1826
      %1828 = vmatmul.bf16.gmra.mxu0 %v1760
      %v1829 = vpop.f32.mrf.mxu0
      %v1830 = vadd.f32 0.0, %v1829
      %v1831 = vpop.f32.mrf.mxu0
      %v1832 = vadd.f32 0.0, %v1831
      %1833 = vmatmul.bf16.gmra.mxu0 %v1763
      %v1834 = vpop.f32.mrf.mxu0
      %v1835 = vadd.f32 0.0, %v1834
      %v1836 = vpop.f32.mrf.mxu0
      %v1837 = vadd.f32 0.0, %v1836
      %1838 = vmatmul.bf16.gmra.mxu0 %v1766
      %v1839 = vpop.f32.mrf.mxu0
      %v1840 = vadd.f32 0.0, %v1839
      %v1841 = vpop.f32.mrf.mxu0
      %v1842 = vadd.f32 0.0, %v1841
      %1843 = vmatmul.bf16.gmra.mxu0 %v1769
      %v1844 = vpop.f32.mrf.mxu0
      %v1845 = vadd.f32 0.0, %v1844
      %v1846 = vpop.f32.mrf.mxu0
      %v1847 = vadd.f32 0.0, %v1846
      %1848 = vmatmul.bf16.gmra.mxu0 %v1772
      %v1849 = vpop.f32.mrf.mxu0
      %v1850 = vadd.f32 0.0, %v1849
      %v1851 = vpop.f32.mrf.mxu0
      %v1852 = vadd.f32 0.0, %v1851
      %1853 = vmatmul.bf16.gmra.mxu0 %v1775
      %v1854 = vpop.f32.mrf.mxu0
      %v1855 = vadd.f32 0.0, %v1854
      %v1856 = vpop.f32.mrf.mxu0
      %v1857 = vadd.f32 0.0, %v1856
      %1858 = vmatmul.bf16.gmra.mxu0 %v1778
      %v1859 = vpop.f32.mrf.mxu0
      %v1860 = vadd.f32 0.0, %v1859
      %v1861 = vpop.f32.mrf.mxu0
      %v1862 = vadd.f32 0.0, %v1861
      %1863 = vmatmul.bf16.gmra.mxu0 %v1781
      %v1864 = vpop.f32.mrf.mxu0
      %v1865 = vadd.f32 0.0, %v1864
      %v1866 = vpop.f32.mrf.mxu0
      %v1867 = vadd.f32 0.0, %v1866
      %1868 = vmatmul.bf16.gmra.mxu0 %v1784
      %v1869 = vpop.f32.mrf.mxu0
      %v1870 = vadd.f32 0.0, %v1869
      %v1871 = vpop.f32.mrf.mxu0
      %v1872 = vadd.f32 0.0, %v1871
      %1873 = vmatmul.bf16.gmra.mxu0 %v1787
      %v1874 = vpop.f32.mrf.mxu0
      %v1875 = vadd.f32 0.0, %v1874
      %v1876 = vpop.f32.mrf.mxu0
      %v1877 = vadd.f32 0.0, %v1876
      %1878 = vmatmul.bf16.gmra.mxu0 %v1790
      %v1879 = vpop.f32.mrf.mxu0
      %v1880 = vadd.f32 0.0, %v1879
      %v1881 = vpop.f32.mrf.mxu0
      %v1882 = vadd.f32 0.0, %v1881
      %1883 = vmatmul.bf16.gmra.mxu0 %v1793
      %v1884 = vpop.f32.mrf.mxu0
      %v1885 = vadd.f32 0.0, %v1884
      %v1886 = vpop.f32.mrf.mxu0
      %v1887 = vadd.f32 0.0, %v1886
      %1888 = vmatmul.bf16.gmra.mxu0 %v1796
      %v1889 = vpop.f32.mrf.mxu0
      %v1890 = vadd.f32 0.0, %v1889
      %v1891 = vpop.f32.mrf.mxu0
      %v1892 = vadd.f32 0.0, %v1891
      %1893 = vmatmul.bf16.gmra.mxu0 %v1799
      %v1894 = vpop.f32.mrf.mxu0
      %v1895 = vadd.f32 0.0, %v1894
      %v1896 = vpop.f32.mrf.mxu0
      %v1897 = vadd.f32 0.0, %v1896
      %1898 = vmatmul.bf16.gmra.mxu0 %v1802
      %v1899 = vpop.f32.mrf.mxu0
      %v1900 = vadd.f32 0.0, %v1899
      %v1901 = vpop.f32.mrf.mxu0
      %v1902 = vadd.f32 0.0, %v1901
      %1903 = vmatmul.bf16.gmra.mxu0 %v1805
      %v1904 = vpop.f32.mrf.mxu0
      %v1905 = vadd.f32 0.0, %v1904
      %v1906 = vpop.f32.mrf.mxu0
      %v1907 = vadd.f32 0.0, %v1906
      %1908 = vdwg.mxu0
      %v1909 = vadd.f32 %v1661, %v1820
      %v1910 = vadd.f32 %v1662, %v1822
      %v1911 = vadd.f32 %v1663, %v1825
      %v1912 = vadd.f32 %v1664, %v1827
      %v1913 = vadd.f32 %v1665, %v1830
      %v1914 = vadd.f32 %v1666, %v1832
      %v1915 = vadd.f32 %v1667, %v1835
      %v1916 = vadd.f32 %v1668, %v1837
      %v1917 = vadd.f32 %v1669, %v1840
      %v1918 = vadd.f32 %v1670, %v1842
      %v1919 = vadd.f32 %v1671, %v1845
      %v1920 = vadd.f32 %v1672, %v1847
      %v1921 = vadd.f32 %v1673, %v1850
      %v1922 = vadd.f32 %v1674, %v1852
      %v1923 = vadd.f32 %v1675, %v1855
      %v1924 = vadd.f32 %v1676, %v1857
      %v1925 = vadd.f32 %v1677, %v1860
      %v1926 = vadd.f32 %v1678, %v1862
      %v1927 = vadd.f32 %v1679, %v1865
      %v1928 = vadd.f32 %v1680, %v1867
      %v1929 = vadd.f32 %v1681, %v1870
      %v1930 = vadd.f32 %v1682, %v1872
      %v1931 = vadd.f32 %v1683, %v1875
      %v1932 = vadd.f32 %v1684, %v1877
      %v1933 = vadd.f32 %v1685, %v1880
      %v1934 = vadd.f32 %v1686, %v1882
      %v1935 = vadd.f32 %v1687, %v1885
      %v1936 = vadd.f32 %v1688, %v1887
      %v1937 = vadd.f32 %v1689, %v1890
      %v1938 = vadd.f32 %v1690, %v1892
      %v1939 = vadd.f32 %v1691, %v1895
      %v1940 = vadd.f32 %v1692, %v1897
      %v1941 = vadd.f32 %v1693, %v1900
      %v1942 = vadd.f32 %v1694, %v1902
      %v1943 = vadd.f32 %v1695, %v1905
      %v1944 = vadd.f32 %v1696, %v1907
      %v1945 = vld [vmem:[%s273 + $0x25] sm:$0xff]
      %v1946 = vld [vmem:[%s273 + $0x2d] sm:$0xff]
      %v1947 = vld [vmem:[%s273 + $0x35] sm:$0xff]
      %v1948 = vld [vmem:[%s273 + $0x3d] sm:$0xff]
      %v1949 = vld [vmem:[%s273 + $0x45] sm:$0xff]
      %v1950 = vld [vmem:[%s273 + $0x4d] sm:$0xff]
      %v1951 = vld [vmem:[%s273 + $0x55] sm:$0xff]
      %v1952 = vld [vmem:[%s273 + $0x5d] sm:$0xff]
      %v1953 = vld [vmem:[%s273 + $0x65] sm:$0xff]
      %v1954 = vld [vmem:[%s273 + $0x6d] sm:$0xff]
      %v1955 = vld [vmem:[%s273 + $0x75] sm:$0xff]
      %v1956 = vld [vmem:[%s273 + $0x7d] sm:$0xff]
      %v1957 = vld [vmem:[%s273 + $0x85] sm:$0xff]
      %v1958 = vld [vmem:[%s273 + $0x8d] sm:$0xff]
      %v1959 = vld [vmem:[%s273 + $0x95] sm:$0xff]
      %v1960 = vld [vmem:[%s273 + $0x9d] sm:$0xff]
      %v1961 = vld [vmem:[%s273 + $0xa5] sm:$0xff]
      %v1962 = vld [vmem:[%s273 + $0xad] sm:$0xff]
      %v1963 = vld [vmem:[%s273 + $0xb5] sm:$0xff]
      %v1964 = vld [vmem:[%s273 + $0xbd] sm:$0xff]
      %v1965 = vld [vmem:[%s273 + $0xc5] sm:$0xff]
      %v1966 = vld [vmem:[%s273 + $0xcd] sm:$0xff]
      %v1967 = vld [vmem:[%s273 + $0xd5] sm:$0xff]
      %v1968 = vld [vmem:[%s273 + $0xdd] sm:$0xff]
      %v1969 = vld [vmem:[%s273 + $0xe5] sm:$0xff]
      %v1970 = vld [vmem:[%s273 + $0xed] sm:$0xff]
      %v1971 = vld [vmem:[%s273 + $0xf5] sm:$0xff]
      %v1972 = vld [vmem:[%s273 + $0xfd] sm:$0xff]
      %v1973 = vld [vmem:[%s273 + $0x105] sm:$0xff]
      %v1974 = vld [vmem:[%s273 + $0x10d] sm:$0xff]
      %v1975 = vld [vmem:[%s273 + $0x115] sm:$0xff]
      %v1976 = vld [vmem:[%s273 + $0x11d] sm:$0xff]
      %v1977 = vld [vmem:[%s273 + $0x125] sm:$0xff]
      %v1978 = vld [vmem:[%s273 + $0x12d] sm:$0xff]
      %v1979 = vld [vmem:[%s273 + $0x135] sm:$0xff]
      %v1980 = vld [vmem:[%s273 + $0x13d] sm:$0xff]
      %v1981 = vpack.c.bf16 %v1946, %v1945
      %v1982 = vpack.c.bf16 %v1948, %v1947
      %v1983 = vpack.c.bf16 %v1950, %v1949
      %v1984 = vpack.c.bf16 %v1952, %v1951
      %v1985 = vpack.c.bf16 %v1954, %v1953
      %v1986 = vpack.c.bf16 %v1956, %v1955
      %v1987 = vpack.c.bf16 %v1958, %v1957
      %v1988 = vpack.c.bf16 %v1960, %v1959
      %v1989 = vpack.c.bf16 %v1962, %v1961
      %v1990 = vpack.c.bf16 %v1964, %v1963
      %v1991 = vpack.c.bf16 %v1966, %v1965
      %v1992 = vpack.c.bf16 %v1968, %v1967
      %v1993 = vpack.c.bf16 %v1970, %v1969
      %v1994 = vpack.c.bf16 %v1972, %v1971
      %v1995 = vpack.c.bf16 %v1974, %v1973
      %v1996 = vpack.c.bf16 %v1976, %v1975
      %v1997 = vpack.c.bf16 %v1978, %v1977
      %v1998 = vpack.c.bf16 %v1980, %v1979
      %s1999 = scalar_lea.vmem %s1, 14
      %v2000 = vld [vmem:[%s1999] sm:$0x3]
      %v2002 = vsel %vm391, %v1981, 0
      %v2005 = vsel %vm391, %v1982, 0
      %v2008 = vsel %vm391, %v1983, 0
      %v2011 = vsel %vm391, %v1984, 0
      %v2014 = vsel %vm391, %v1985, 0
      %v2017 = vsel %vm391, %v1986, 0
      %v2020 = vsel %vm391, %v1987, 0
      %v2023 = vsel %vm391, %v1988, 0
      %v2026 = vsel %vm391, %v1989, 0
      %v2029 = vsel %vm391, %v1990, 0
      %v2032 = vsel %vm391, %v1991, 0
      %v2035 = vsel %vm391, %v1992, 0
      %v2038 = vsel %vm391, %v1993, 0
      %v2041 = vsel %vm391, %v1994, 0
      %v2044 = vsel %vm391, %v1995, 0
      %v2047 = vsel %vm391, %v1996, 0
      %v2050 = vsel %vm391, %v1997, 0
      %v2053 = vsel %vm391, %v1998, 0
      %v2056 = vsel %vm446, %v2000, 0
      %2058 = vmatpush.bf16.msra.mxu0 0
      %2059 = vmatpush.bf16.msra.mxu0 0
      %2060 = vmatpush.bf16.msra.mxu0 0
      %2061 = vmatpush.bf16.msra.mxu0 0
      %2062 = vmatpush.bf16.msra.mxu0 0
      %2063 = vmatpush.bf16.msra.mxu0 0
      %2064 = vmatpush.bf16.msra.mxu0 0
      %2065 = vmatpush.bf16.msra.mxu0 %v2056
      %2066 = vmatmul.bf16.gmra.mxu0 %v2002
      %v2067 = vpop.f32.mrf.mxu0
      %v2068 = vadd.f32 0.0, %v2067
      %v2069 = vpop.f32.mrf.mxu0
      %v2070 = vadd.f32 0.0, %v2069
      %2071 = vmatmul.bf16.gmra.mxu0 %v2005
      %v2072 = vpop.f32.mrf.mxu0
      %v2073 = vadd.f32 0.0, %v2072
      %v2074 = vpop.f32.mrf.mxu0
      %v2075 = vadd.f32 0.0, %v2074
      %2076 = vmatmul.bf16.gmra.mxu0 %v2008
      %v2077 = vpop.f32.mrf.mxu0
      %v2078 = vadd.f32 0.0, %v2077
      %v2079 = vpop.f32.mrf.mxu0
      %v2080 = vadd.f32 0.0, %v2079
      %2081 = vmatmul.bf16.gmra.mxu0 %v2011
      %v2082 = vpop.f32.mrf.mxu0
      %v2083 = vadd.f32 0.0, %v2082
      %v2084 = vpop.f32.mrf.mxu0
      %v2085 = vadd.f32 0.0, %v2084
      %2086 = vmatmul.bf16.gmra.mxu0 %v2014
      %v2087 = vpop.f32.mrf.mxu0
      %v2088 = vadd.f32 0.0, %v2087
      %v2089 = vpop.f32.mrf.mxu0
      %v2090 = vadd.f32 0.0, %v2089
      %2091 = vmatmul.bf16.gmra.mxu0 %v2017
      %v2092 = vpop.f32.mrf.mxu0
      %v2093 = vadd.f32 0.0, %v2092
      %v2094 = vpop.f32.mrf.mxu0
      %v2095 = vadd.f32 0.0, %v2094
      %2096 = vmatmul.bf16.gmra.mxu0 %v2020
      %v2097 = vpop.f32.mrf.mxu0
      %v2098 = vadd.f32 0.0, %v2097
      %v2099 = vpop.f32.mrf.mxu0
      %v2100 = vadd.f32 0.0, %v2099
      %2101 = vmatmul.bf16.gmra.mxu0 %v2023
      %v2102 = vpop.f32.mrf.mxu0
      %v2103 = vadd.f32 0.0, %v2102
      %v2104 = vpop.f32.mrf.mxu0
      %v2105 = vadd.f32 0.0, %v2104
      %2106 = vmatmul.bf16.gmra.mxu0 %v2026
      %v2107 = vpop.f32.mrf.mxu0
      %v2108 = vadd.f32 0.0, %v2107
      %v2109 = vpop.f32.mrf.mxu0
      %v2110 = vadd.f32 0.0, %v2109
      %2111 = vmatmul.bf16.gmra.mxu0 %v2029
      %v2112 = vpop.f32.mrf.mxu0
      %v2113 = vadd.f32 0.0, %v2112
      %v2114 = vpop.f32.mrf.mxu0
      %v2115 = vadd.f32 0.0, %v2114
      %2116 = vmatmul.bf16.gmra.mxu0 %v2032
      %v2117 = vpop.f32.mrf.mxu0
      %v2118 = vadd.f32 0.0, %v2117
      %v2119 = vpop.f32.mrf.mxu0
      %v2120 = vadd.f32 0.0, %v2119
      %2121 = vmatmul.bf16.gmra.mxu0 %v2035
      %v2122 = vpop.f32.mrf.mxu0
      %v2123 = vadd.f32 0.0, %v2122
      %v2124 = vpop.f32.mrf.mxu0
      %v2125 = vadd.f32 0.0, %v2124
      %2126 = vmatmul.bf16.gmra.mxu0 %v2038
      %v2127 = vpop.f32.mrf.mxu0
      %v2128 = vadd.f32 0.0, %v2127
      %v2129 = vpop.f32.mrf.mxu0
      %v2130 = vadd.f32 0.0, %v2129
      %2131 = vmatmul.bf16.gmra.mxu0 %v2041
      %v2132 = vpop.f32.mrf.mxu0
      %v2133 = vadd.f32 0.0, %v2132
      %v2134 = vpop.f32.mrf.mxu0
      %v2135 = vadd.f32 0.0, %v2134
      %2136 = vmatmul.bf16.gmra.mxu0 %v2044
      %v2137 = vpop.f32.mrf.mxu0
      %v2138 = vadd.f32 0.0, %v2137
      %v2139 = vpop.f32.mrf.mxu0
      %v2140 = vadd.f32 0.0, %v2139
      %2141 = vmatmul.bf16.gmra.mxu0 %v2047
      %v2142 = vpop.f32.mrf.mxu0
      %v2143 = vadd.f32 0.0, %v2142
      %v2144 = vpop.f32.mrf.mxu0
      %v2145 = vadd.f32 0.0, %v2144
      %2146 = vmatmul.bf16.gmra.mxu0 %v2050
      %v2147 = vpop.f32.mrf.mxu0
      %v2148 = vadd.f32 0.0, %v2147
      %v2149 = vpop.f32.mrf.mxu0
      %v2150 = vadd.f32 0.0, %v2149
      %2151 = vmatmul.bf16.gmra.mxu0 %v2053
      %v2152 = vpop.f32.mrf.mxu0
      %v2153 = vadd.f32 0.0, %v2152
      %v2154 = vpop.f32.mrf.mxu0
      %v2155 = vadd.f32 0.0, %v2154
      %2156 = vdwg.mxu0
      %v2157 = vadd.f32 %v1909, %v2068
      %v2158 = vadd.f32 %v1910, %v2070
      %v2159 = vadd.f32 %v1911, %v2073
      %v2160 = vadd.f32 %v1912, %v2075
      %v2161 = vadd.f32 %v1913, %v2078
      %v2162 = vadd.f32 %v1914, %v2080
      %v2163 = vadd.f32 %v1915, %v2083
      %v2164 = vadd.f32 %v1916, %v2085
      %v2165 = vadd.f32 %v1917, %v2088
      %v2166 = vadd.f32 %v1918, %v2090
      %v2167 = vadd.f32 %v1919, %v2093
      %v2168 = vadd.f32 %v1920, %v2095
      %v2169 = vadd.f32 %v1921, %v2098
      %v2170 = vadd.f32 %v1922, %v2100
      %v2171 = vadd.f32 %v1923, %v2103
      %v2172 = vadd.f32 %v1924, %v2105
      %v2173 = vadd.f32 %v1925, %v2108
      %v2174 = vadd.f32 %v1926, %v2110
      %v2175 = vadd.f32 %v1927, %v2113
      %v2176 = vadd.f32 %v1928, %v2115
      %v2177 = vadd.f32 %v1929, %v2118
      %v2178 = vadd.f32 %v1930, %v2120
      %v2179 = vadd.f32 %v1931, %v2123
      %v2180 = vadd.f32 %v1932, %v2125
      %v2181 = vadd.f32 %v1933, %v2128
      %v2182 = vadd.f32 %v1934, %v2130
      %v2183 = vadd.f32 %v1935, %v2133
      %v2184 = vadd.f32 %v1936, %v2135
      %v2185 = vadd.f32 %v1937, %v2138
      %v2186 = vadd.f32 %v1938, %v2140
      %v2187 = vadd.f32 %v1939, %v2143
      %v2188 = vadd.f32 %v1940, %v2145
      %v2189 = vadd.f32 %v1941, %v2148
      %v2190 = vadd.f32 %v1942, %v2150
      %v2191 = vadd.f32 %v1943, %v2153
      %v2192 = vadd.f32 %v1944, %v2155
      %v2193 = vld [vmem:[%s273 + $0x26] sm:$0xff]
      %v2194 = vld [vmem:[%s273 + $0x2e] sm:$0xff]
      %v2195 = vld [vmem:[%s273 + $0x36] sm:$0xff]
      %v2196 = vld [vmem:[%s273 + $0x3e] sm:$0xff]
      %v2197 = vld [vmem:[%s273 + $0x46] sm:$0xff]
      %v2198 = vld [vmem:[%s273 + $0x4e] sm:$0xff]
      %v2199 = vld [vmem:[%s273 + $0x56] sm:$0xff]
      %v2200 = vld [vmem:[%s273 + $0x5e] sm:$0xff]
      %v2201 = vld [vmem:[%s273 + $0x66] sm:$0xff]
      %v2202 = vld [vmem:[%s273 + $0x6e] sm:$0xff]
      %v2203 = vld [vmem:[%s273 + $0x76] sm:$0xff]
      %v2204 = vld [vmem:[%s273 + $0x7e] sm:$0xff]
      %v2205 = vld [vmem:[%s273 + $0x86] sm:$0xff]
      %v2206 = vld [vmem:[%s273 + $0x8e] sm:$0xff]
      %v2207 = vld [vmem:[%s273 + $0x96] sm:$0xff]
      %v2208 = vld [vmem:[%s273 + $0x9e] sm:$0xff]
      %v2209 = vld [vmem:[%s273 + $0xa6] sm:$0xff]
      %v2210 = vld [vmem:[%s273 + $0xae] sm:$0xff]
      %v2211 = vld [vmem:[%s273 + $0xb6] sm:$0xff]
      %v2212 = vld [vmem:[%s273 + $0xbe] sm:$0xff]
      %v2213 = vld [vmem:[%s273 + $0xc6] sm:$0xff]
      %v2214 = vld [vmem:[%s273 + $0xce] sm:$0xff]
      %v2215 = vld [vmem:[%s273 + $0xd6] sm:$0xff]
      %v2216 = vld [vmem:[%s273 + $0xde] sm:$0xff]
      %v2217 = vld [vmem:[%s273 + $0xe6] sm:$0xff]
      %v2218 = vld [vmem:[%s273 + $0xee] sm:$0xff]
      %v2219 = vld [vmem:[%s273 + $0xf6] sm:$0xff]
      %v2220 = vld [vmem:[%s273 + $0xfe] sm:$0xff]
      %v2221 = vld [vmem:[%s273 + $0x106] sm:$0xff]
      %v2222 = vld [vmem:[%s273 + $0x10e] sm:$0xff]
      %v2223 = vld [vmem:[%s273 + $0x116] sm:$0xff]
      %v2224 = vld [vmem:[%s273 + $0x11e] sm:$0xff]
      %v2225 = vld [vmem:[%s273 + $0x126] sm:$0xff]
      %v2226 = vld [vmem:[%s273 + $0x12e] sm:$0xff]
      %v2227 = vld [vmem:[%s273 + $0x136] sm:$0xff]
      %v2228 = vld [vmem:[%s273 + $0x13e] sm:$0xff]
      %v2229 = vpack.c.bf16 %v2194, %v2193
      %v2230 = vpack.c.bf16 %v2196, %v2195
      %v2231 = vpack.c.bf16 %v2198, %v2197
      %v2232 = vpack.c.bf16 %v2200, %v2199
      %v2233 = vpack.c.bf16 %v2202, %v2201
      %v2234 = vpack.c.bf16 %v2204, %v2203
      %v2235 = vpack.c.bf16 %v2206, %v2205
      %v2236 = vpack.c.bf16 %v2208, %v2207
      %v2237 = vpack.c.bf16 %v2210, %v2209
      %v2238 = vpack.c.bf16 %v2212, %v2211
      %v2239 = vpack.c.bf16 %v2214, %v2213
      %v2240 = vpack.c.bf16 %v2216, %v2215
      %v2241 = vpack.c.bf16 %v2218, %v2217
      %v2242 = vpack.c.bf16 %v2220, %v2219
      %v2243 = vpack.c.bf16 %v2222, %v2221
      %v2244 = vpack.c.bf16 %v2224, %v2223
      %v2245 = vpack.c.bf16 %v2226, %v2225
      %v2246 = vpack.c.bf16 %v2228, %v2227
      %s2247 = scalar_lea.vmem %s1, 16
      %v2248 = vld [vmem:[%s2247] sm:$0x3]
      %v2250 = vsel %vm391, %v2229, 0
      %v2253 = vsel %vm391, %v2230, 0
      %v2256 = vsel %vm391, %v2231, 0
      %v2259 = vsel %vm391, %v2232, 0
      %v2262 = vsel %vm391, %v2233, 0
      %v2265 = vsel %vm391, %v2234, 0
      %v2268 = vsel %vm391, %v2235, 0
      %v2271 = vsel %vm391, %v2236, 0
      %v2274 = vsel %vm391, %v2237, 0
      %v2277 = vsel %vm391, %v2238, 0
      %v2280 = vsel %vm391, %v2239, 0
      %v2283 = vsel %vm391, %v2240, 0
      %v2286 = vsel %vm391, %v2241, 0
      %v2289 = vsel %vm391, %v2242, 0
      %v2292 = vsel %vm391, %v2243, 0
      %v2295 = vsel %vm391, %v2244, 0
      %v2298 = vsel %vm391, %v2245, 0
      %v2301 = vsel %vm391, %v2246, 0
      %v2304 = vsel %vm446, %v2248, 0
      %2306 = vmatpush.bf16.msra.mxu0 0
      %2307 = vmatpush.bf16.msra.mxu0 0
      %2308 = vmatpush.bf16.msra.mxu0 0
      %2309 = vmatpush.bf16.msra.mxu0 0
      %2310 = vmatpush.bf16.msra.mxu0 0
      %2311 = vmatpush.bf16.msra.mxu0 0
      %2312 = vmatpush.bf16.msra.mxu0 0
      %2313 = vmatpush.bf16.msra.mxu0 %v2304
      %2314 = vmatmul.bf16.gmra.mxu0 %v2250
      %v2315 = vpop.f32.mrf.mxu0
      %v2316 = vadd.f32 0.0, %v2315
      %v2317 = vpop.f32.mrf.mxu0
      %v2318 = vadd.f32 0.0, %v2317
      %2319 = vmatmul.bf16.gmra.mxu0 %v2253
      %v2320 = vpop.f32.mrf.mxu0
      %v2321 = vadd.f32 0.0, %v2320
      %v2322 = vpop.f32.mrf.mxu0
      %v2323 = vadd.f32 0.0, %v2322
      %2324 = vmatmul.bf16.gmra.mxu0 %v2256
      %v2325 = vpop.f32.mrf.mxu0
      %v2326 = vadd.f32 0.0, %v2325
      %v2327 = vpop.f32.mrf.mxu0
      %v2328 = vadd.f32 0.0, %v2327
      %2329 = vmatmul.bf16.gmra.mxu0 %v2259
      %v2330 = vpop.f32.mrf.mxu0
      %v2331 = vadd.f32 0.0, %v2330
      %v2332 = vpop.f32.mrf.mxu0
      %v2333 = vadd.f32 0.0, %v2332
      %2334 = vmatmul.bf16.gmra.mxu0 %v2262
      %v2335 = vpop.f32.mrf.mxu0
      %v2336 = vadd.f32 0.0, %v2335
      %v2337 = vpop.f32.mrf.mxu0
      %v2338 = vadd.f32 0.0, %v2337
      %2339 = vmatmul.bf16.gmra.mxu0 %v2265
      %v2340 = vpop.f32.mrf.mxu0
      %v2341 = vadd.f32 0.0, %v2340
      %v2342 = vpop.f32.mrf.mxu0
      %v2343 = vadd.f32 0.0, %v2342
      %2344 = vmatmul.bf16.gmra.mxu0 %v2268
      %v2345 = vpop.f32.mrf.mxu0
      %v2346 = vadd.f32 0.0, %v2345
      %v2347 = vpop.f32.mrf.mxu0
      %v2348 = vadd.f32 0.0, %v2347
      %2349 = vmatmul.bf16.gmra.mxu0 %v2271
      %v2350 = vpop.f32.mrf.mxu0
      %v2351 = vadd.f32 0.0, %v2350
      %v2352 = vpop.f32.mrf.mxu0
      %v2353 = vadd.f32 0.0, %v2352
      %2354 = vmatmul.bf16.gmra.mxu0 %v2274
      %v2355 = vpop.f32.mrf.mxu0
      %v2356 = vadd.f32 0.0, %v2355
      %v2357 = vpop.f32.mrf.mxu0
      %v2358 = vadd.f32 0.0, %v2357
      %2359 = vmatmul.bf16.gmra.mxu0 %v2277
      %v2360 = vpop.f32.mrf.mxu0
      %v2361 = vadd.f32 0.0, %v2360
      %v2362 = vpop.f32.mrf.mxu0
      %v2363 = vadd.f32 0.0, %v2362
      %2364 = vmatmul.bf16.gmra.mxu0 %v2280
      %v2365 = vpop.f32.mrf.mxu0
      %v2366 = vadd.f32 0.0, %v2365
      %v2367 = vpop.f32.mrf.mxu0
      %v2368 = vadd.f32 0.0, %v2367
      %2369 = vmatmul.bf16.gmra.mxu0 %v2283
      %v2370 = vpop.f32.mrf.mxu0
      %v2371 = vadd.f32 0.0, %v2370
      %v2372 = vpop.f32.mrf.mxu0
      %v2373 = vadd.f32 0.0, %v2372
      %2374 = vmatmul.bf16.gmra.mxu0 %v2286
      %v2375 = vpop.f32.mrf.mxu0
      %v2376 = vadd.f32 0.0, %v2375
      %v2377 = vpop.f32.mrf.mxu0
      %v2378 = vadd.f32 0.0, %v2377
      %2379 = vmatmul.bf16.gmra.mxu0 %v2289
      %v2380 = vpop.f32.mrf.mxu0
      %v2381 = vadd.f32 0.0, %v2380
      %v2382 = vpop.f32.mrf.mxu0
      %v2383 = vadd.f32 0.0, %v2382
      %2384 = vmatmul.bf16.gmra.mxu0 %v2292
      %v2385 = vpop.f32.mrf.mxu0
      %v2386 = vadd.f32 0.0, %v2385
      %v2387 = vpop.f32.mrf.mxu0
      %v2388 = vadd.f32 0.0, %v2387
      %2389 = vmatmul.bf16.gmra.mxu0 %v2295
      %v2390 = vpop.f32.mrf.mxu0
      %v2391 = vadd.f32 0.0, %v2390
      %v2392 = vpop.f32.mrf.mxu0
      %v2393 = vadd.f32 0.0, %v2392
      %2394 = vmatmul.bf16.gmra.mxu0 %v2298
      %v2395 = vpop.f32.mrf.mxu0
      %v2396 = vadd.f32 0.0, %v2395
      %v2397 = vpop.f32.mrf.mxu0
      %v2398 = vadd.f32 0.0, %v2397
      %2399 = vmatmul.bf16.gmra.mxu0 %v2301
      %v2400 = vpop.f32.mrf.mxu0
      %v2401 = vadd.f32 0.0, %v2400
      %v2402 = vpop.f32.mrf.mxu0
      %v2403 = vadd.f32 0.0, %v2402
      %2404 = vdwg.mxu0
      %v2405 = vadd.f32 %v2157, %v2316
      %v2406 = vadd.f32 %v2158, %v2318
      %v2407 = vadd.f32 %v2159, %v2321
      %v2408 = vadd.f32 %v2160, %v2323
      %v2409 = vadd.f32 %v2161, %v2326
      %v2410 = vadd.f32 %v2162, %v2328
      %v2411 = vadd.f32 %v2163, %v2331
      %v2412 = vadd.f32 %v2164, %v2333
      %v2413 = vadd.f32 %v2165, %v2336
      %v2414 = vadd.f32 %v2166, %v2338
      %v2415 = vadd.f32 %v2167, %v2341
      %v2416 = vadd.f32 %v2168, %v2343
      %v2417 = vadd.f32 %v2169, %v2346
      %v2418 = vadd.f32 %v2170, %v2348
      %v2419 = vadd.f32 %v2171, %v2351
      %v2420 = vadd.f32 %v2172, %v2353
      %v2421 = vadd.f32 %v2173, %v2356
      %v2422 = vadd.f32 %v2174, %v2358
      %v2423 = vadd.f32 %v2175, %v2361
      %v2424 = vadd.f32 %v2176, %v2363
      %v2425 = vadd.f32 %v2177, %v2366
      %v2426 = vadd.f32 %v2178, %v2368
      %v2427 = vadd.f32 %v2179, %v2371
      %v2428 = vadd.f32 %v2180, %v2373
      %v2429 = vadd.f32 %v2181, %v2376
      %v2430 = vadd.f32 %v2182, %v2378
      %v2431 = vadd.f32 %v2183, %v2381
      %v2432 = vadd.f32 %v2184, %v2383
      %v2433 = vadd.f32 %v2185, %v2386
      %v2434 = vadd.f32 %v2186, %v2388
      %v2435 = vadd.f32 %v2187, %v2391
      %v2436 = vadd.f32 %v2188, %v2393
      %v2437 = vadd.f32 %v2189, %v2396
      %v2438 = vadd.f32 %v2190, %v2398
      %v2439 = vadd.f32 %v2191, %v2401
      %v2440 = vadd.f32 %v2192, %v2403
      %v2441 = vld [vmem:[%s2] sm:$0x1]
      %v2443 = vperm.slane %v2441, 0
      %v2445 = vadd.f32 %v2405, %v2443
      %v2446 = vadd.f32 %v2406, %v2443
      %v2447 = vadd.f32 %v2407, %v2443
      %v2448 = vadd.f32 %v2408, %v2443
      %v2449 = vadd.f32 %v2409, %v2443
      %v2450 = vadd.f32 %v2410, %v2443
      %v2451 = vadd.f32 %v2411, %v2443
      %v2452 = vadd.f32 %v2412, %v2443
      %v2453 = vadd.f32 %v2413, %v2443
      %v2454 = vadd.f32 %v2414, %v2443
      %v2455 = vadd.f32 %v2415, %v2443
      %v2456 = vadd.f32 %v2416, %v2443
      %v2457 = vadd.f32 %v2417, %v2443
      %v2458 = vadd.f32 %v2418, %v2443
      %v2459 = vadd.f32 %v2419, %v2443
      %v2460 = vadd.f32 %v2420, %v2443
      %v2461 = vadd.f32 %v2421, %v2443
      %v2462 = vadd.f32 %v2422, %v2443
      %v2463 = vadd.f32 %v2423, %v2443
      %v2464 = vadd.f32 %v2424, %v2443
      %v2465 = vadd.f32 %v2425, %v2443
      %v2466 = vadd.f32 %v2426, %v2443
      %v2467 = vadd.f32 %v2427, %v2443
      %v2468 = vadd.f32 %v2428, %v2443
      %v2469 = vadd.f32 %v2429, %v2443
      %v2470 = vadd.f32 %v2430, %v2443
      %v2471 = vadd.f32 %v2431, %v2443
      %v2472 = vadd.f32 %v2432, %v2443
      %v2473 = vadd.f32 %v2433, %v2443
      %v2474 = vadd.f32 %v2434, %v2443
      %v2475 = vadd.f32 %v2435, %v2443
      %v2476 = vadd.f32 %v2436, %v2443
      %v2477 = vadd.f32 %v2437, %v2443
      %v2478 = vadd.f32 %v2438, %v2443
      %v2479 = vadd.f32 %v2439, %v2443
      %v2480 = vadd.f32 %v2440, %v2443
      %v2481 = vmax.f32 %v2445, 0.0
      %v2482 = vmax.f32 %v2446, 0.0
      %v2483 = vmax.f32 %v2447, 0.0
      %v2484 = vmax.f32 %v2448, 0.0
      %v2485 = vmax.f32 %v2449, 0.0
      %v2486 = vmax.f32 %v2450, 0.0
      %v2487 = vmax.f32 %v2451, 0.0
      %v2488 = vmax.f32 %v2452, 0.0
      %v2489 = vmax.f32 %v2453, 0.0
      %v2490 = vmax.f32 %v2454, 0.0
      %v2491 = vmax.f32 %v2455, 0.0
      %v2492 = vmax.f32 %v2456, 0.0
      %v2493 = vmax.f32 %v2457, 0.0
      %v2494 = vmax.f32 %v2458, 0.0
      %v2495 = vmax.f32 %v2459, 0.0
      %v2496 = vmax.f32 %v2460, 0.0
      %v2497 = vmax.f32 %v2461, 0.0
      %v2498 = vmax.f32 %v2462, 0.0
      %v2499 = vmax.f32 %v2463, 0.0
      %v2500 = vmax.f32 %v2464, 0.0
      %v2501 = vmax.f32 %v2465, 0.0
      %v2502 = vmax.f32 %v2466, 0.0
      %v2503 = vmax.f32 %v2467, 0.0
      %v2504 = vmax.f32 %v2468, 0.0
      %v2505 = vmax.f32 %v2469, 0.0
      %v2506 = vmax.f32 %v2470, 0.0
      %v2507 = vmax.f32 %v2471, 0.0
      %v2508 = vmax.f32 %v2472, 0.0
      %v2509 = vmax.f32 %v2473, 0.0
      %v2510 = vmax.f32 %v2474, 0.0
      %v2511 = vmax.f32 %v2475, 0.0
      %v2512 = vmax.f32 %v2476, 0.0
      %v2513 = vmax.f32 %v2477, 0.0
      %v2514 = vmax.f32 %v2478, 0.0
      %v2515 = vmax.f32 %v2479, 0.0
      %v2516 = vmax.f32 %v2480, 0.0
      %v2517 = vld [vmem:[%s5] sm:$0xff]
      %v2518 = vld [vmem:[%s5 + $0x8] sm:$0xff]
      %v2519 = vld [vmem:[%s5 + $0x10] sm:$0xff]
      %v2520 = vld [vmem:[%s5 + $0x18] sm:$0xff]
      %v2521 = vld [vmem:[%s5 + $0x20] sm:$0xff]
      %v2522 = vld [vmem:[%s5 + $0x28] sm:$0xff]
      %v2523 = vld [vmem:[%s5 + $0x30] sm:$0xff]
      %v2524 = vld [vmem:[%s5 + $0x38] sm:$0xff]
      %v2525 = vld [vmem:[%s5 + $0x40] sm:$0xff]
      %v2526 = vld [vmem:[%s5 + $0x48] sm:$0xff]
      %v2527 = vld [vmem:[%s5 + $0x50] sm:$0xff]
      %v2528 = vld [vmem:[%s5 + $0x58] sm:$0xff]
      %v2529 = vld [vmem:[%s5 + $0x60] sm:$0xff]
      %v2530 = vld [vmem:[%s5 + $0x68] sm:$0xff]
      %v2531 = vld [vmem:[%s5 + $0x70] sm:$0xff]
      %v2532 = vld [vmem:[%s5 + $0x78] sm:$0xff]
      %v2533 = vld [vmem:[%s5 + $0x80] sm:$0xff]
      %v2534 = vld [vmem:[%s5 + $0x88] sm:$0xff]
      %v2535 = vld [vmem:[%s5 + $0x90] sm:$0xff]
      %v2536 = vld [vmem:[%s5 + $0x98] sm:$0xff]
      %v2537 = vld [vmem:[%s5 + $0xa0] sm:$0xff]
      %v2538 = vld [vmem:[%s5 + $0xa8] sm:$0xff]
      %v2539 = vld [vmem:[%s5 + $0xb0] sm:$0xff]
      %v2540 = vld [vmem:[%s5 + $0xb8] sm:$0xff]
      %v2541 = vld [vmem:[%s5 + $0xc0] sm:$0xff]
      %v2542 = vld [vmem:[%s5 + $0xc8] sm:$0xff]
      %v2543 = vld [vmem:[%s5 + $0xd0] sm:$0xff]
      %v2544 = vld [vmem:[%s5 + $0xd8] sm:$0xff]
      %v2545 = vld [vmem:[%s5 + $0xe0] sm:$0xff]
      %v2546 = vld [vmem:[%s5 + $0xe8] sm:$0xff]
      %v2547 = vld [vmem:[%s5 + $0xf0] sm:$0xff]
      %v2548 = vld [vmem:[%s5 + $0xf8] sm:$0xff]
      %v2549 = vld [vmem:[%s5 + $0x100] sm:$0xff]
      %v2550 = vld [vmem:[%s5 + $0x108] sm:$0xff]
      %v2551 = vld [vmem:[%s5 + $0x110] sm:$0xff]
      %v2552 = vld [vmem:[%s5 + $0x118] sm:$0xff]
      %2554 = vset.pattern.permute.xlu0 0
      %2555 = vperm.xlu0 %2554, %v2517
      %v2556 = vpop.permute.xlu0 %2555
      %2559 = vset.pattern.permute.xlu0 0
      %2560 = vperm.xlu0 %2559, %v2518
      %v2561 = vpop.permute.xlu0 %2560
      %2564 = vset.pattern.permute.xlu0 0
      %2565 = vperm.xlu0 %2564, %v2519
      %v2566 = vpop.permute.xlu0 %2565
      %2569 = vset.pattern.permute.xlu0 0
      %2570 = vperm.xlu0 %2569, %v2520
      %v2571 = vpop.permute.xlu0 %2570
      %2574 = vset.pattern.permute.xlu0 0
      %2575 = vperm.xlu0 %2574, %v2521
      %v2576 = vpop.permute.xlu0 %2575
      %2579 = vset.pattern.permute.xlu0 0
      %2580 = vperm.xlu0 %2579, %v2522
      %v2581 = vpop.permute.xlu0 %2580
      %2584 = vset.pattern.permute.xlu0 0
      %2585 = vperm.xlu0 %2584, %v2523
      %v2586 = vpop.permute.xlu0 %2585
      %2589 = vset.pattern.permute.xlu0 0
      %2590 = vperm.xlu0 %2589, %v2524
      %v2591 = vpop.permute.xlu0 %2590
      %2594 = vset.pattern.permute.xlu0 0
      %2595 = vperm.xlu0 %2594, %v2525
      %v2596 = vpop.permute.xlu0 %2595
      %2599 = vset.pattern.permute.xlu0 0
      %2600 = vperm.xlu0 %2599, %v2526
      %v2601 = vpop.permute.xlu0 %2600
      %2604 = vset.pattern.permute.xlu0 0
      %2605 = vperm.xlu0 %2604, %v2527
      %v2606 = vpop.permute.xlu0 %2605
      %2609 = vset.pattern.permute.xlu0 0
      %2610 = vperm.xlu0 %2609, %v2528
      %v2611 = vpop.permute.xlu0 %2610
      %2614 = vset.pattern.permute.xlu0 0
      %2615 = vperm.xlu0 %2614, %v2529
      %v2616 = vpop.permute.xlu0 %2615
      %2619 = vset.pattern.permute.xlu0 0
      %2620 = vperm.xlu0 %2619, %v2530
      %v2621 = vpop.permute.xlu0 %2620
      %2624 = vset.pattern.permute.xlu0 0
      %2625 = vperm.xlu0 %2624, %v2531
      %v2626 = vpop.permute.xlu0 %2625
      %2629 = vset.pattern.permute.xlu0 0
      %2630 = vperm.xlu0 %2629, %v2532
      %v2631 = vpop.permute.xlu0 %2630
      %2634 = vset.pattern.permute.xlu0 0
      %2635 = vperm.xlu0 %2634, %v2533
      %v2636 = vpop.permute.xlu0 %2635
      %2639 = vset.pattern.permute.xlu0 0
      %2640 = vperm.xlu0 %2639, %v2534
      %v2641 = vpop.permute.xlu0 %2640
      %2644 = vset.pattern.permute.xlu0 0
      %2645 = vperm.xlu0 %2644, %v2535
      %v2646 = vpop.permute.xlu0 %2645
      %2649 = vset.pattern.permute.xlu0 0
      %2650 = vperm.xlu0 %2649, %v2536
      %v2651 = vpop.permute.xlu0 %2650
      %2654 = vset.pattern.permute.xlu0 0
      %2655 = vperm.xlu0 %2654, %v2537
      %v2656 = vpop.permute.xlu0 %2655
      %2659 = vset.pattern.permute.xlu0 0
      %2660 = vperm.xlu0 %2659, %v2538
      %v2661 = vpop.permute.xlu0 %2660
      %2664 = vset.pattern.permute.xlu0 0
      %2665 = vperm.xlu0 %2664, %v2539
      %v2666 = vpop.permute.xlu0 %2665
      %2669 = vset.pattern.permute.xlu0 0
      %2670 = vperm.xlu0 %2669, %v2540
      %v2671 = vpop.permute.xlu0 %2670
      %2674 = vset.pattern.permute.xlu0 0
      %2675 = vperm.xlu0 %2674, %v2541
      %v2676 = vpop.permute.xlu0 %2675
      %2679 = vset.pattern.permute.xlu0 0
      %2680 = vperm.xlu0 %2679, %v2542
      %v2681 = vpop.permute.xlu0 %2680
      %2684 = vset.pattern.permute.xlu0 0
      %2685 = vperm.xlu0 %2684, %v2543
      %v2686 = vpop.permute.xlu0 %2685
      %2689 = vset.pattern.permute.xlu0 0
      %2690 = vperm.xlu0 %2689, %v2544
      %v2691 = vpop.permute.xlu0 %2690
      %2694 = vset.pattern.permute.xlu0 0
      %2695 = vperm.xlu0 %2694, %v2545
      %v2696 = vpop.permute.xlu0 %2695
      %2699 = vset.pattern.permute.xlu0 0
      %2700 = vperm.xlu0 %2699, %v2546
      %v2701 = vpop.permute.xlu0 %2700
      %2704 = vset.pattern.permute.xlu0 0
      %2705 = vperm.xlu0 %2704, %v2547
      %v2706 = vpop.permute.xlu0 %2705
      %2709 = vset.pattern.permute.xlu0 0
      %2710 = vperm.xlu0 %2709, %v2548
      %v2711 = vpop.permute.xlu0 %2710
      %2714 = vset.pattern.permute.xlu0 0
      %2715 = vperm.xlu0 %2714, %v2549
      %v2716 = vpop.permute.xlu0 %2715
      %2719 = vset.pattern.permute.xlu0 0
      %2720 = vperm.xlu0 %2719, %v2550
      %v2721 = vpop.permute.xlu0 %2720
      %2724 = vset.pattern.permute.xlu0 0
      %2725 = vperm.xlu0 %2724, %v2551
      %v2726 = vpop.permute.xlu0 %2725
      %2729 = vset.pattern.permute.xlu0 0
      %2730 = vperm.xlu0 %2729, %v2552
      %v2731 = vpop.permute.xlu0 %2730
      %v2733 = vmul.f32 %v2481, %v2556
      %v2734 = vmul.f32 %v2482, %v2561
      %v2735 = vmul.f32 %v2483, %v2566
      %v2736 = vmul.f32 %v2484, %v2571
      %v2737 = vmul.f32 %v2485, %v2576
      %v2738 = vmul.f32 %v2486, %v2581
      %v2739 = vmul.f32 %v2487, %v2586
      %v2740 = vmul.f32 %v2488, %v2591
      %v2741 = vmul.f32 %v2489, %v2596
      %v2742 = vmul.f32 %v2490, %v2601
      %v2743 = vmul.f32 %v2491, %v2606
      %v2744 = vmul.f32 %v2492, %v2611
      %v2745 = vmul.f32 %v2493, %v2616
      %v2746 = vmul.f32 %v2494, %v2621
      %v2747 = vmul.f32 %v2495, %v2626
      %v2748 = vmul.f32 %v2496, %v2631
      %v2749 = vmul.f32 %v2497, %v2636
      %v2750 = vmul.f32 %v2498, %v2641
      %v2751 = vmul.f32 %v2499, %v2646
      %v2752 = vmul.f32 %v2500, %v2651
      %v2753 = vmul.f32 %v2501, %v2656
      %v2754 = vmul.f32 %v2502, %v2661
      %v2755 = vmul.f32 %v2503, %v2666
      %v2756 = vmul.f32 %v2504, %v2671
      %v2757 = vmul.f32 %v2505, %v2676
      %v2758 = vmul.f32 %v2506, %v2681
      %v2759 = vmul.f32 %v2507, %v2686
      %v2760 = vmul.f32 %v2508, %v2691
      %v2761 = vmul.f32 %v2509, %v2696
      %v2762 = vmul.f32 %v2510, %v2701
      %v2763 = vmul.f32 %v2511, %v2706
      %v2764 = vmul.f32 %v2512, %v2711
      %v2765 = vmul.f32 %v2513, %v2716
      %v2766 = vmul.f32 %v2514, %v2721
      %v2767 = vmul.f32 %v2515, %v2726
      %v2768 = vmul.f32 %v2516, %v2731
      %vm2769 = vcmask 261120
      %2770 = vst.msk [vmem:[#allocation2] sm:$0xff] %vm2769, 0.0
      %2771 = vst.msk [vmem:[#allocation2 + $0x8] sm:$0xff] %vm2769, 0.0
      %2772 = vst.msk [vmem:[#allocation2 + $0x10] sm:$0xff] %vm2769, 0.0
      %2773 = vst.msk [vmem:[#allocation2 + $0x18] sm:$0xff] %vm2769, 0.0
      %2774 = vst.msk [vmem:[#allocation2 + $0x20] sm:$0xff] %vm2769, 0.0
      %2775 = vst.msk [vmem:[#allocation2 + $0x28] sm:$0xff] %vm2769, 0.0
      %2776 = vst.msk [vmem:[#allocation2 + $0x30] sm:$0xff] %vm2769, 0.0
      %2777 = vst.msk [vmem:[#allocation2 + $0x38] sm:$0xff] %vm2769, 0.0
      %2778 = vst.msk [vmem:[#allocation2 + $0x40] sm:$0xff] %vm2769, 0.0
      %2779 = vst.msk [vmem:[#allocation2 + $0x48] sm:$0xff] %vm2769, 0.0
      %2780 = vst.msk [vmem:[#allocation2 + $0x50] sm:$0xff] %vm2769, 0.0
      %2781 = vst.msk [vmem:[#allocation2 + $0x58] sm:$0xff] %vm2769, 0.0
      %2782 = vst.msk [vmem:[#allocation2 + $0x60] sm:$0xff] %vm2769, 0.0
      %2783 = vst.msk [vmem:[#allocation2 + $0x68] sm:$0xff] %vm2769, 0.0
      %2784 = vst.msk [vmem:[#allocation2 + $0x70] sm:$0xff] %vm2769, 0.0
      %2785 = vst.msk [vmem:[#allocation2 + $0x78] sm:$0xff] %vm2769, 0.0
      %2786 = vst.msk [vmem:[#allocation2 + $0x80] sm:$0xff] %vm2769, 0.0
      %2787 = vst.msk [vmem:[#allocation2 + $0x88] sm:$0xff] %vm2769, 0.0
      %2788 = vst.msk [vmem:[#allocation2 + $0x90] sm:$0xff] %vm2769, 0.0
      %2789 = vst.msk [vmem:[#allocation2 + $0x98] sm:$0xff] %vm2769, 0.0
      %2790 = vst.msk [vmem:[#allocation2 + $0xa0] sm:$0xff] %vm2769, 0.0
      %2791 = vst.msk [vmem:[#allocation2 + $0xa8] sm:$0xff] %vm2769, 0.0
      %2792 = vst.msk [vmem:[#allocation2 + $0xb0] sm:$0xff] %vm2769, 0.0
      %2793 = vst.msk [vmem:[#allocation2 + $0xb8] sm:$0xff] %vm2769, 0.0
      %2794 = vst.msk [vmem:[#allocation2 + $0xc0] sm:$0xff] %vm2769, 0.0
      %2795 = vst.msk [vmem:[#allocation2 + $0xc8] sm:$0xff] %vm2769, 0.0
      %2796 = vst.msk [vmem:[#allocation2 + $0xd0] sm:$0xff] %vm2769, 0.0
      %2797 = vst.msk [vmem:[#allocation2 + $0xd8] sm:$0xff] %vm2769, 0.0
      %2798 = vst.msk [vmem:[#allocation2 + $0xe0] sm:$0xff] %vm2769, 0.0
      %2799 = vst.msk [vmem:[#allocation2 + $0xe8] sm:$0xff] %vm2769, 0.0
      %2800 = vst.msk [vmem:[#allocation2 + $0xf0] sm:$0xff] %vm2769, 0.0
      %2801 = vst.msk [vmem:[#allocation2 + $0xf8] sm:$0xff] %vm2769, 0.0
      %2802 = vst.msk [vmem:[#allocation2 + $0x100] sm:$0xff] %vm2769, 0.0
      %2803 = vst.msk [vmem:[#allocation2 + $0x108] sm:$0xff] %vm2769, 0.0
      %2804 = vst.msk [vmem:[#allocation2 + $0x110] sm:$0xff] %vm2769, 0.0
      %2805 = vst.msk [vmem:[#allocation2 + $0x118] sm:$0xff] %vm2769, 0.0
      %2806 = vst.msk [vmem:[#allocation2 + $0x120] sm:$0xff] %vm2769, 0.0
      %2807 = vst.msk [vmem:[#allocation2 + $0x128] sm:$0xff] %vm2769, 0.0
      %2808 = vst.msk [vmem:[#allocation2 + $0x130] sm:$0xff] %vm2769, 0.0
      %2809 = vst.msk [vmem:[#allocation2 + $0x138] sm:$0xff] %vm2769, 0.0
      %vm2810 = vcmask 259072
      %2811 = vst.msk [vmem:[#allocation2 + $0x140] sm:$0x3f] %vm2810, 0.0
      %2812 = vst.msk [vmem:[#allocation2 + $0x13] sm:$0xff] %vm2769, %v2733
      %2813 = vst.msk [vmem:[#allocation2 + $0x1b] sm:$0xff] %vm2769, %v2734
      %2814 = vst.msk [vmem:[#allocation2 + $0x23] sm:$0xff] %vm2769, %v2735
      %2815 = vst.msk [vmem:[#allocation2 + $0x2b] sm:$0xff] %vm2769, %v2736
      %2816 = vst.msk [vmem:[#allocation2 + $0x33] sm:$0xff] %vm2769, %v2737
      %2817 = vst.msk [vmem:[#allocation2 + $0x3b] sm:$0xff] %vm2769, %v2738
      %2818 = vst.msk [vmem:[#allocation2 + $0x43] sm:$0xff] %vm2769, %v2739
      %2819 = vst.msk [vmem:[#allocation2 + $0x4b] sm:$0xff] %vm2769, %v2740
      %2820 = vst.msk [vmem:[#allocation2 + $0x53] sm:$0xff] %vm2769, %v2741
      %2821 = vst.msk [vmem:[#allocation2 + $0x5b] sm:$0xff] %vm2769, %v2742
      %2822 = vst.msk [vmem:[#allocation2 + $0x63] sm:$0xff] %vm2769, %v2743
      %2823 = vst.msk [vmem:[#allocation2 + $0x6b] sm:$0xff] %vm2769, %v2744
      %2824 = vst.msk [vmem:[#allocation2 + $0x73] sm:$0xff] %vm2769, %v2745
      %2825 = vst.msk [vmem:[#allocation2 + $0x7b] sm:$0xff] %vm2769, %v2746
      %2826 = vst.msk [vmem:[#allocation2 + $0x83] sm:$0xff] %vm2769, %v2747
      %2827 = vst.msk [vmem:[#allocation2 + $0x8b] sm:$0xff] %vm2769, %v2748
      %2828 = vst.msk [vmem:[#allocation2 + $0x93] sm:$0xff] %vm2769, %v2749
      %2829 = vst.msk [vmem:[#allocation2 + $0x9b] sm:$0xff] %vm2769, %v2750
      %2830 = vst.msk [vmem:[#allocation2 + $0xa3] sm:$0xff] %vm2769, %v2751
      %2831 = vst.msk [vmem:[#allocation2 + $0xab] sm:$0xff] %vm2769, %v2752
      %2832 = vst.msk [vmem:[#allocation2 + $0xb3] sm:$0xff] %vm2769, %v2753
      %2833 = vst.msk [vmem:[#allocation2 + $0xbb] sm:$0xff] %vm2769, %v2754
      %2834 = vst.msk [vmem:[#allocation2 + $0xc3] sm:$0xff] %vm2769, %v2755
      %2835 = vst.msk [vmem:[#allocation2 + $0xcb] sm:$0xff] %vm2769, %v2756
      %2836 = vst.msk [vmem:[#allocation2 + $0xd3] sm:$0xff] %vm2769, %v2757
      %2837 = vst.msk [vmem:[#allocation2 + $0xdb] sm:$0xff] %vm2769, %v2758
      %2838 = vst.msk [vmem:[#allocation2 + $0xe3] sm:$0xff] %vm2769, %v2759
      %2839 = vst.msk [vmem:[#allocation2 + $0xeb] sm:$0xff] %vm2769, %v2760
      %2840 = vst.msk [vmem:[#allocation2 + $0xf3] sm:$0xff] %vm2769, %v2761
      %2841 = vst.msk [vmem:[#allocation2 + $0xfb] sm:$0xff] %vm2769, %v2762
      %2842 = vst.msk [vmem:[#allocation2 + $0x103] sm:$0xff] %vm2769, %v2763
      %2843 = vst.msk [vmem:[#allocation2 + $0x10b] sm:$0xff] %vm2769, %v2764
      %2844 = vst.msk [vmem:[#allocation2 + $0x113] sm:$0xff] %vm2769, %v2765
      %2845 = vst.msk [vmem:[#allocation2 + $0x11b] sm:$0xff] %vm2769, %v2766
      %2846 = vst.msk [vmem:[#allocation2 + $0x123] sm:$0xff] %vm2769, %v2767
      %2847 = vst.msk [vmem:[#allocation2 + $0x12b] sm:$0xff] %vm2769, %v2768
      %v2848 = vld [vmem:[#allocation2] sm:$0xff]
      %v2849 = vld [vmem:[#allocation2 + $0x8] sm:$0xff]
      %v2850 = vld [vmem:[#allocation2 + $0x10] sm:$0xff]
      %v2851 = vld [vmem:[#allocation2 + $0x18] sm:$0xff]
      %v2852 = vld [vmem:[#allocation2 + $0x20] sm:$0xff]
      %v2853 = vld [vmem:[#allocation2 + $0x28] sm:$0xff]
      %v2854 = vld [vmem:[#allocation2 + $0x30] sm:$0xff]
      %v2855 = vld [vmem:[#allocation2 + $0x38] sm:$0xff]
      %v2856 = vld [vmem:[#allocation2 + $0x40] sm:$0xff]
      %v2857 = vld [vmem:[#allocation2 + $0x48] sm:$0xff]
      %v2858 = vld [vmem:[#allocation2 + $0x50] sm:$0xff]
      %v2859 = vld [vmem:[#allocation2 + $0x58] sm:$0xff]
      %v2860 = vld [vmem:[#allocation2 + $0x60] sm:$0xff]
      %v2861 = vld [vmem:[#allocation2 + $0x68] sm:$0xff]
      %v2862 = vld [vmem:[#allocation2 + $0x70] sm:$0xff]
      %v2863 = vld [vmem:[#allocation2 + $0x78] sm:$0xff]
      %v2864 = vld [vmem:[#allocation2 + $0x80] sm:$0xff]
      %v2865 = vld [vmem:[#allocation2 + $0x88] sm:$0xff]
      %v2866 = vld [vmem:[#allocation2 + $0x90] sm:$0xff]
      %v2867 = vld [vmem:[#allocation2 + $0x98] sm:$0xff]
      %v2868 = vld [vmem:[#allocation2 + $0xa0] sm:$0xff]
      %v2869 = vld [vmem:[#allocation2 + $0xa8] sm:$0xff]
      %v2870 = vld [vmem:[#allocation2 + $0xb0] sm:$0xff]
      %v2871 = vld [vmem:[#allocation2 + $0xb8] sm:$0xff]
      %v2872 = vld [vmem:[#allocation2 + $0xc0] sm:$0xff]
      %v2873 = vld [vmem:[#allocation2 + $0xc8] sm:$0xff]
      %v2874 = vld [vmem:[#allocation2 + $0xd0] sm:$0xff]
      %v2875 = vld [vmem:[#allocation2 + $0xd8] sm:$0xff]
      %v2876 = vld [vmem:[#allocation2 + $0xe0] sm:$0xff]
      %v2877 = vld [vmem:[#allocation2 + $0xe8] sm:$0xff]
      %v2878 = vld [vmem:[#allocation2 + $0xf0] sm:$0xff]
      %v2879 = vld [vmem:[#allocation2 + $0xf8] sm:$0xff]
      %v2880 = vld [vmem:[#allocation2 + $0x100] sm:$0xff]
      %v2881 = vld [vmem:[#allocation2 + $0x108] sm:$0xff]
      %v2882 = vld [vmem:[#allocation2 + $0x110] sm:$0xff]
      %v2883 = vld [vmem:[#allocation2 + $0x118] sm:$0xff]
      %v2884 = vpack.c.bf16 %v2849, %v2848
      %v2885 = vpack.c.bf16 %v2851, %v2850
      %v2886 = vpack.c.bf16 %v2853, %v2852
      %v2887 = vpack.c.bf16 %v2855, %v2854
      %v2888 = vpack.c.bf16 %v2857, %v2856
      %v2889 = vpack.c.bf16 %v2859, %v2858
      %v2890 = vpack.c.bf16 %v2861, %v2860
      %v2891 = vpack.c.bf16 %v2863, %v2862
      %v2892 = vpack.c.bf16 %v2865, %v2864
      %v2893 = vpack.c.bf16 %v2867, %v2866
      %v2894 = vpack.c.bf16 %v2869, %v2868
      %v2895 = vpack.c.bf16 %v2871, %v2870
      %v2896 = vpack.c.bf16 %v2873, %v2872
      %v2897 = vpack.c.bf16 %v2875, %v2874
      %v2898 = vpack.c.bf16 %v2877, %v2876
      %v2899 = vpack.c.bf16 %v2879, %v2878
      %v2900 = vpack.c.bf16 %v2881, %v2880
      %v2901 = vpack.c.bf16 %v2883, %v2882
      %v2902 = vld [vmem:[%s3] sm:$0xf]
      %v2903 = vld [vmem:[%s3 + $0x4] sm:$0xf]
      %v2904 = vld [vmem:[%s3 + $0x8] sm:$0xf]
      %v2905 = vld [vmem:[%s3 + $0xc] sm:$0xf]
      %v2906 = vld [vmem:[#allocation2 + $0x1] sm:$0xff]
      %v2907 = vld [vmem:[#allocation2 + $0x9] sm:$0xff]
      %v2908 = vld [vmem:[#allocation2 + $0x11] sm:$0xff]
      %v2909 = vld [vmem:[#allocation2 + $0x19] sm:$0xff]
      %v2910 = vld [vmem:[#allocation2 + $0x21] sm:$0xff]
      %v2911 = vld [vmem:[#allocation2 + $0x29] sm:$0xff]
      %v2912 = vld [vmem:[#allocation2 + $0x31] sm:$0xff]
      %v2913 = vld [vmem:[#allocation2 + $0x39] sm:$0xff]
      %v2914 = vld [vmem:[#allocation2 + $0x41] sm:$0xff]
      %v2915 = vld [vmem:[#allocation2 + $0x49] sm:$0xff]
      %v2916 = vld [vmem:[#allocation2 + $0x51] sm:$0xff]
      %v2917 = vld [vmem:[#allocation2 + $0x59] sm:$0xff]
      %v2918 = vld [vmem:[#allocation2 + $0x61] sm:$0xff]
      %v2919 = vld [vmem:[#allocation2 + $0x69] sm:$0xff]
      %v2920 = vld [vmem:[#allocation2 + $0x71] sm:$0xff]
      %v2921 = vld [vmem:[#allocation2 + $0x79] sm:$0xff]
      %v2922 = vld [vmem:[#allocation2 + $0x81] sm:$0xff]
      %v2923 = vld [vmem:[#allocation2 + $0x89] sm:$0xff]
      %v2924 = vld [vmem:[#allocation2 + $0x91] sm:$0xff]
      %v2925 = vld [vmem:[#allocation2 + $0x99] sm:$0xff]
      %v2926 = vld [vmem:[#allocation2 + $0xa1] sm:$0xff]
      %v2927 = vld [vmem:[#allocation2 + $0xa9] sm:$0xff]
      %v2928 = vld [vmem:[#allocation2 + $0xb1] sm:$0xff]
      %v2929 = vld [vmem:[#allocation2 + $0xb9] sm:$0xff]
      %v2930 = vld [vmem:[#allocation2 + $0xc1] sm:$0xff]
      %v2931 = vld [vmem:[#allocation2 + $0xc9] sm:$0xff]
      %v2932 = vld [vmem:[#allocation2 + $0xd1] sm:$0xff]
      %v2933 = vld [vmem:[#allocation2 + $0xd9] sm:$0xff]
      %v2934 = vld [vmem:[#allocation2 + $0xe1] sm:$0xff]
      %v2935 = vld [vmem:[#allocation2 + $0xe9] sm:$0xff]
      %v2936 = vld [vmem:[#allocation2 + $0xf1] sm:$0xff]
      %v2937 = vld [vmem:[#allocation2 + $0xf9] sm:$0xff]
      %v2938 = vld [vmem:[#allocation2 + $0x101] sm:$0xff]
      %v2939 = vld [vmem:[#allocation2 + $0x109] sm:$0xff]
      %v2940 = vld [vmem:[#allocation2 + $0x111] sm:$0xff]
      %v2941 = vld [vmem:[#allocation2 + $0x119] sm:$0xff]
      %v2942 = vpack.c.bf16 %v2907, %v2906
      %v2943 = vpack.c.bf16 %v2909, %v2908
      %v2944 = vpack.c.bf16 %v2911, %v2910
      %v2945 = vpack.c.bf16 %v2913, %v2912
      %v2946 = vpack.c.bf16 %v2915, %v2914
      %v2947 = vpack.c.bf16 %v2917, %v2916
      %v2948 = vpack.c.bf16 %v2919, %v2918
      %v2949 = vpack.c.bf16 %v2921, %v2920
      %v2950 = vpack.c.bf16 %v2923, %v2922
      %v2951 = vpack.c.bf16 %v2925, %v2924
      %v2952 = vpack.c.bf16 %v2927, %v2926
      %v2953 = vpack.c.bf16 %v2929, %v2928
      %v2954 = vpack.c.bf16 %v2931, %v2930
      %v2955 = vpack.c.bf16 %v2933, %v2932
      %v2956 = vpack.c.bf16 %v2935, %v2934
      %v2957 = vpack.c.bf16 %v2937, %v2936
      %v2958 = vpack.c.bf16 %v2939, %v2938
      %v2959 = vpack.c.bf16 %v2941, %v2940
      %s2960 = scalar_lea.vmem %s3, 16
      %v2961 = vld [vmem:[%s2960] sm:$0xf]
      %v2962 = vld [vmem:[%s2960 + $0x4] sm:$0xf]
      %v2963 = vld [vmem:[%s2960 + $0x8] sm:$0xf]
      %v2964 = vld [vmem:[%s2960 + $0xc] sm:$0xf]
      %v2969 = vunpack.c.l.b16 %v2961
      %v2970 = vunpack.c.l.b16 %v2962
      %v2971 = vunpack.c.l.b16 %v2963
      %v2972 = vunpack.c.l.b16 %v2964
      %v2973 = vpack.c.b16 %v2970, %v2969
      %v2974 = vpack.c.b16 %v2972, %v2971
      %v2978 = vsel %vm2769, %v2942, 0
      %v2981 = vsel %vm2769, %v2943, 0
      %v2984 = vsel %vm2769, %v2944, 0
      %v2987 = vsel %vm2769, %v2945, 0
      %v2990 = vsel %vm2769, %v2946, 0
      %v2993 = vsel %vm2769, %v2947, 0
      %v2996 = vsel %vm2769, %v2948, 0
      %v2999 = vsel %vm2769, %v2949, 0
      %v3002 = vsel %vm2769, %v2950, 0
      %v3005 = vsel %vm2769, %v2951, 0
      %v3008 = vsel %vm2769, %v2952, 0
      %v3011 = vsel %vm2769, %v2953, 0
      %v3014 = vsel %vm2769, %v2954, 0
      %v3017 = vsel %vm2769, %v2955, 0
      %v3020 = vsel %vm2769, %v2956, 0
      %v3023 = vsel %vm2769, %v2957, 0
      %v3026 = vsel %vm2769, %v2958, 0
      %v3029 = vsel %vm2769, %v2959, 0
      %3031 = vmatpush.bf16.msra.mxu0 0
      %3032 = vmatpush.bf16.msra.mxu0 0
      %3033 = vmatpush.bf16.msra.mxu0 0
      %3034 = vmatpush.bf16.msra.mxu0 0
      %3035 = vmatpush.bf16.msra.mxu0 0
      %3036 = vmatpush.bf16.msra.mxu0 0
      %3037 = vmatpush.bf16.msra.mxu0 %v2974
      %3038 = vmatpush.bf16.msra.mxu0 %v2973
      %3039 = vmatmul.bf16.gmra.mxu0 %v2978
      %v3040 = vpop.f32.mrf.mxu0
      %v3041 = vadd.f32 0.0, %v3040
      %v3042 = vpop.f32.mrf.mxu0
      %v3043 = vadd.f32 0.0, %v3042
      %3044 = vmatmul.bf16.gmra.mxu0 %v2981
      %v3045 = vpop.f32.mrf.mxu0
      %v3046 = vadd.f32 0.0, %v3045
      %v3047 = vpop.f32.mrf.mxu0
      %v3048 = vadd.f32 0.0, %v3047
      %3049 = vmatmul.bf16.gmra.mxu0 %v2984
      %v3050 = vpop.f32.mrf.mxu0
      %v3051 = vadd.f32 0.0, %v3050
      %v3052 = vpop.f32.mrf.mxu0
      %v3053 = vadd.f32 0.0, %v3052
      %3054 = vmatmul.bf16.gmra.mxu0 %v2987
      %v3055 = vpop.f32.mrf.mxu0
      %v3056 = vadd.f32 0.0, %v3055
      %v3057 = vpop.f32.mrf.mxu0
      %v3058 = vadd.f32 0.0, %v3057
      %3059 = vmatmul.bf16.gmra.mxu0 %v2990
      %v3060 = vpop.f32.mrf.mxu0
      %v3061 = vadd.f32 0.0, %v3060
      %v3062 = vpop.f32.mrf.mxu0
      %v3063 = vadd.f32 0.0, %v3062
      %3064 = vmatmul.bf16.gmra.mxu0 %v2993
      %v3065 = vpop.f32.mrf.mxu0
      %v3066 = vadd.f32 0.0, %v3065
      %v3067 = vpop.f32.mrf.mxu0
      %v3068 = vadd.f32 0.0, %v3067
      %3069 = vmatmul.bf16.gmra.mxu0 %v2996
      %v3070 = vpop.f32.mrf.mxu0
      %v3071 = vadd.f32 0.0, %v3070
      %v3072 = vpop.f32.mrf.mxu0
      %v3073 = vadd.f32 0.0, %v3072
      %3074 = vmatmul.bf16.gmra.mxu0 %v2999
      %v3075 = vpop.f32.mrf.mxu0
      %v3076 = vadd.f32 0.0, %v3075
      %v3077 = vpop.f32.mrf.mxu0
      %v3078 = vadd.f32 0.0, %v3077
      %3079 = vmatmul.bf16.gmra.mxu0 %v3002
      %v3080 = vpop.f32.mrf.mxu0
      %v3081 = vadd.f32 0.0, %v3080
      %v3082 = vpop.f32.mrf.mxu0
      %v3083 = vadd.f32 0.0, %v3082
      %3084 = vmatmul.bf16.gmra.mxu0 %v3005
      %v3085 = vpop.f32.mrf.mxu0
      %v3086 = vadd.f32 0.0, %v3085
      %v3087 = vpop.f32.mrf.mxu0
      %v3088 = vadd.f32 0.0, %v3087
      %3089 = vmatmul.bf16.gmra.mxu0 %v3008
      %v3090 = vpop.f32.mrf.mxu0
      %v3091 = vadd.f32 0.0, %v3090
      %v3092 = vpop.f32.mrf.mxu0
      %v3093 = vadd.f32 0.0, %v3092
      %3094 = vmatmul.bf16.gmra.mxu0 %v3011
      %v3095 = vpop.f32.mrf.mxu0
      %v3096 = vadd.f32 0.0, %v3095
      %v3097 = vpop.f32.mrf.mxu0
      %v3098 = vadd.f32 0.0, %v3097
      %3099 = vmatmul.bf16.gmra.mxu0 %v3014
      %v3100 = vpop.f32.mrf.mxu0
      %v3101 = vadd.f32 0.0, %v3100
      %v3102 = vpop.f32.mrf.mxu0
      %v3103 = vadd.f32 0.0, %v3102
      %3104 = vmatmul.bf16.gmra.mxu0 %v3017
      %v3105 = vpop.f32.mrf.mxu0
      %v3106 = vadd.f32 0.0, %v3105
      %v3107 = vpop.f32.mrf.mxu0
      %v3108 = vadd.f32 0.0, %v3107
      %3109 = vmatmul.bf16.gmra.mxu0 %v3020
      %v3110 = vpop.f32.mrf.mxu0
      %v3111 = vadd.f32 0.0, %v3110
      %v3112 = vpop.f32.mrf.mxu0
      %v3113 = vadd.f32 0.0, %v3112
      %3114 = vmatmul.bf16.gmra.mxu0 %v3023
      %v3115 = vpop.f32.mrf.mxu0
      %v3116 = vadd.f32 0.0, %v3115
      %v3117 = vpop.f32.mrf.mxu0
      %v3118 = vadd.f32 0.0, %v3117
      %3119 = vmatmul.bf16.gmra.mxu0 %v3026
      %v3120 = vpop.f32.mrf.mxu0
      %v3121 = vadd.f32 0.0, %v3120
      %v3122 = vpop.f32.mrf.mxu0
      %v3123 = vadd.f32 0.0, %v3122
      %3124 = vmatmul.bf16.gmra.mxu0 %v3029
      %v3125 = vpop.f32.mrf.mxu0
      %v3126 = vadd.f32 0.0, %v3125
      %v3127 = vpop.f32.mrf.mxu0
      %v3128 = vadd.f32 0.0, %v3127
      %3129 = vdwg.mxu0
      %v3134 = vunpack.c.l.b16 %v2902
      %v3135 = vunpack.c.l.b16 %v2903
      %v3136 = vunpack.c.l.b16 %v2904
      %v3137 = vunpack.c.l.b16 %v2905
      %v3138 = vpack.c.b16 %v3135, %v3134
      %v3139 = vpack.c.b16 %v3137, %v3136
      %v3143 = vsel %vm2769, %v2884, 0
      %v3146 = vsel %vm2769, %v2885, 0
      %v3149 = vsel %vm2769, %v2886, 0
      %v3152 = vsel %vm2769, %v2887, 0
      %v3155 = vsel %vm2769, %v2888, 0
      %v3158 = vsel %vm2769, %v2889, 0
      %v3161 = vsel %vm2769, %v2890, 0
      %v3164 = vsel %vm2769, %v2891, 0
      %v3167 = vsel %vm2769, %v2892, 0
      %v3170 = vsel %vm2769, %v2893, 0
      %v3173 = vsel %vm2769, %v2894, 0
      %v3176 = vsel %vm2769, %v2895, 0
      %v3179 = vsel %vm2769, %v2896, 0
      %v3182 = vsel %vm2769, %v2897, 0
      %v3185 = vsel %vm2769, %v2898, 0
      %v3188 = vsel %vm2769, %v2899, 0
      %v3191 = vsel %vm2769, %v2900, 0
      %v3194 = vsel %vm2769, %v2901, 0
      %3196 = vmatpush.bf16.msra.mxu0 0
      %3197 = vmatpush.bf16.msra.mxu0 0
      %3198 = vmatpush.bf16.msra.mxu0 0
      %3199 = vmatpush.bf16.msra.mxu0 0
      %3200 = vmatpush.bf16.msra.mxu0 0
      %3201 = vmatpush.bf16.msra.mxu0 0
      %3202 = vmatpush.bf16.msra.mxu0 %v3139
      %3203 = vmatpush.bf16.msra.mxu0 %v3138
      %3204 = vmatmul.bf16.gmra.mxu0 %v3143
      %v3205 = vpop.f32.mrf.mxu0
      %v3206 = vadd.f32 %v3041, %v3205
      %v3207 = vpop.f32.mrf.mxu0
      %v3208 = vadd.f32 %v3043, %v3207
      %3209 = vmatmul.bf16.gmra.mxu0 %v3146
      %v3210 = vpop.f32.mrf.mxu0
      %v3211 = vadd.f32 %v3046, %v3210
      %v3212 = vpop.f32.mrf.mxu0
      %v3213 = vadd.f32 %v3048, %v3212
      %3214 = vmatmul.bf16.gmra.mxu0 %v3149
      %v3215 = vpop.f32.mrf.mxu0
      %v3216 = vadd.f32 %v3051, %v3215
      %v3217 = vpop.f32.mrf.mxu0
      %v3218 = vadd.f32 %v3053, %v3217
      %3219 = vmatmul.bf16.gmra.mxu0 %v3152
      %v3220 = vpop.f32.mrf.mxu0
      %v3221 = vadd.f32 %v3056, %v3220
      %v3222 = vpop.f32.mrf.mxu0
      %v3223 = vadd.f32 %v3058, %v3222
      %3224 = vmatmul.bf16.gmra.mxu0 %v3155
      %v3225 = vpop.f32.mrf.mxu0
      %v3226 = vadd.f32 %v3061, %v3225
      %v3227 = vpop.f32.mrf.mxu0
      %v3228 = vadd.f32 %v3063, %v3227
      %3229 = vmatmul.bf16.gmra.mxu0 %v3158
      %v3230 = vpop.f32.mrf.mxu0
      %v3231 = vadd.f32 %v3066, %v3230
      %v3232 = vpop.f32.mrf.mxu0
      %v3233 = vadd.f32 %v3068, %v3232
      %3234 = vmatmul.bf16.gmra.mxu0 %v3161
      %v3235 = vpop.f32.mrf.mxu0
      %v3236 = vadd.f32 %v3071, %v3235
      %v3237 = vpop.f32.mrf.mxu0
      %v3238 = vadd.f32 %v3073, %v3237
      %3239 = vmatmul.bf16.gmra.mxu0 %v3164
      %v3240 = vpop.f32.mrf.mxu0
      %v3241 = vadd.f32 %v3076, %v3240
      %v3242 = vpop.f32.mrf.mxu0
      %v3243 = vadd.f32 %v3078, %v3242
      %3244 = vmatmul.bf16.gmra.mxu0 %v3167
      %v3245 = vpop.f32.mrf.mxu0
      %v3246 = vadd.f32 %v3081, %v3245
      %v3247 = vpop.f32.mrf.mxu0
      %v3248 = vadd.f32 %v3083, %v3247
      %3249 = vmatmul.bf16.gmra.mxu0 %v3170
      %v3250 = vpop.f32.mrf.mxu0
      %v3251 = vadd.f32 %v3086, %v3250
      %v3252 = vpop.f32.mrf.mxu0
      %v3253 = vadd.f32 %v3088, %v3252
      %3254 = vmatmul.bf16.gmra.mxu0 %v3173
      %v3255 = vpop.f32.mrf.mxu0
      %v3256 = vadd.f32 %v3091, %v3255
      %v3257 = vpop.f32.mrf.mxu0
      %v3258 = vadd.f32 %v3093, %v3257
      %3259 = vmatmul.bf16.gmra.mxu0 %v3176
      %v3260 = vpop.f32.mrf.mxu0
      %v3261 = vadd.f32 %v3096, %v3260
      %v3262 = vpop.f32.mrf.mxu0
      %v3263 = vadd.f32 %v3098, %v3262
      %3264 = vmatmul.bf16.gmra.mxu0 %v3179
      %v3265 = vpop.f32.mrf.mxu0
      %v3266 = vadd.f32 %v3101, %v3265
      %v3267 = vpop.f32.mrf.mxu0
      %v3268 = vadd.f32 %v3103, %v3267
      %3269 = vmatmul.bf16.gmra.mxu0 %v3182
      %v3270 = vpop.f32.mrf.mxu0
      %v3271 = vadd.f32 %v3106, %v3270
      %v3272 = vpop.f32.mrf.mxu0
      %v3273 = vadd.f32 %v3108, %v3272
      %3274 = vmatmul.bf16.gmra.mxu0 %v3185
      %v3275 = vpop.f32.mrf.mxu0
      %v3276 = vadd.f32 %v3111, %v3275
      %v3277 = vpop.f32.mrf.mxu0
      %v3278 = vadd.f32 %v3113, %v3277
      %3279 = vmatmul.bf16.gmra.mxu0 %v3188
      %v3280 = vpop.f32.mrf.mxu0
      %v3281 = vadd.f32 %v3116, %v3280
      %v3282 = vpop.f32.mrf.mxu0
      %v3283 = vadd.f32 %v3118, %v3282
      %3284 = vmatmul.bf16.gmra.mxu0 %v3191
      %v3285 = vpop.f32.mrf.mxu0
      %v3286 = vadd.f32 %v3121, %v3285
      %v3287 = vpop.f32.mrf.mxu0
      %v3288 = vadd.f32 %v3123, %v3287
      %3289 = vmatmul.bf16.gmra.mxu0 %v3194
      %v3290 = vpop.f32.mrf.mxu0
      %v3291 = vadd.f32 %v3126, %v3290
      %v3292 = vpop.f32.mrf.mxu0
      %v3293 = vadd.f32 %v3128, %v3292
      %3294 = vdwg.mxu0
      %v3295 = vld [vmem:[#allocation2 + $0x2] sm:$0xff]
      %v3296 = vld [vmem:[#allocation2 + $0xa] sm:$0xff]
      %v3297 = vld [vmem:[#allocation2 + $0x12] sm:$0xff]
      %v3298 = vld [vmem:[#allocation2 + $0x1a] sm:$0xff]
      %v3299 = vld [vmem:[#allocation2 + $0x22] sm:$0xff]
      %v3300 = vld [vmem:[#allocation2 + $0x2a] sm:$0xff]
      %v3301 = vld [vmem:[#allocation2 + $0x32] sm:$0xff]
      %v3302 = vld [vmem:[#allocation2 + $0x3a] sm:$0xff]
      %v3303 = vld [vmem:[#allocation2 + $0x42] sm:$0xff]
      %v3304 = vld [vmem:[#allocation2 + $0x4a] sm:$0xff]
      %v3305 = vld [vmem:[#allocation2 + $0x52] sm:$0xff]
      %v3306 = vld [vmem:[#allocation2 + $0x5a] sm:$0xff]
      %v3307 = vld [vmem:[#allocation2 + $0x62] sm:$0xff]
      %v3308 = vld [vmem:[#allocation2 + $0x6a] sm:$0xff]
      %v3309 = vld [vmem:[#allocation2 + $0x72] sm:$0xff]
      %v3310 = vld [vmem:[#allocation2 + $0x7a] sm:$0xff]
      %v3311 = vld [vmem:[#allocation2 + $0x82] sm:$0xff]
      %v3312 = vld [vmem:[#allocation2 + $0x8a] sm:$0xff]
      %v3313 = vld [vmem:[#allocation2 + $0x92] sm:$0xff]
      %v3314 = vld [vmem:[#allocation2 + $0x9a] sm:$0xff]
      %v3315 = vld [vmem:[#allocation2 + $0xa2] sm:$0xff]
      %v3316 = vld [vmem:[#allocation2 + $0xaa] sm:$0xff]
      %v3317 = vld [vmem:[#allocation2 + $0xb2] sm:$0xff]
      %v3318 = vld [vmem:[#allocation2 + $0xba] sm:$0xff]
      %v3319 = vld [vmem:[#allocation2 + $0xc2] sm:$0xff]
      %v3320 = vld [vmem:[#allocation2 + $0xca] sm:$0xff]
      %v3321 = vld [vmem:[#allocation2 + $0xd2] sm:$0xff]
      %v3322 = vld [vmem:[#allocation2 + $0xda] sm:$0xff]
      %v3323 = vld [vmem:[#allocation2 + $0xe2] sm:$0xff]
      %v3324 = vld [vmem:[#allocation2 + $0xea] sm:$0xff]
      %v3325 = vld [vmem:[#allocation2 + $0xf2] sm:$0xff]
      %v3326 = vld [vmem:[#allocation2 + $0xfa] sm:$0xff]
      %v3327 = vld [vmem:[#allocation2 + $0x102] sm:$0xff]
      %v3328 = vld [vmem:[#allocation2 + $0x10a] sm:$0xff]
      %v3329 = vld [vmem:[#allocation2 + $0x112] sm:$0xff]
      %v3330 = vld [vmem:[#allocation2 + $0x11a] sm:$0xff]
      %v3331 = vpack.c.bf16 %v3296, %v3295
      %v3332 = vpack.c.bf16 %v3298, %v3297
      %v3333 = vpack.c.bf16 %v3300, %v3299
      %v3334 = vpack.c.bf16 %v3302, %v3301
      %v3335 = vpack.c.bf16 %v3304, %v3303
      %v3336 = vpack.c.bf16 %v3306, %v3305
      %v3337 = vpack.c.bf16 %v3308, %v3307
      %v3338 = vpack.c.bf16 %v3310, %v3309
      %v3339 = vpack.c.bf16 %v3312, %v3311
      %v3340 = vpack.c.bf16 %v3314, %v3313
      %v3341 = vpack.c.bf16 %v3316, %v3315
      %v3342 = vpack.c.bf16 %v3318, %v3317
      %v3343 = vpack.c.bf16 %v3320, %v3319
      %v3344 = vpack.c.bf16 %v3322, %v3321
      %v3345 = vpack.c.bf16 %v3324, %v3323
      %v3346 = vpack.c.bf16 %v3326, %v3325
      %v3347 = vpack.c.bf16 %v3328, %v3327
      %v3348 = vpack.c.bf16 %v3330, %v3329
      %s3349 = scalar_lea.vmem %s3, 32
      %v3350 = vld [vmem:[%s3349] sm:$0xf]
      %v3351 = vld [vmem:[%s3349 + $0x4] sm:$0xf]
      %v3352 = vld [vmem:[%s3349 + $0x8] sm:$0xf]
      %v3353 = vld [vmem:[%s3349 + $0xc] sm:$0xf]
      %v3358 = vunpack.c.l.b16 %v3350
      %v3359 = vunpack.c.l.b16 %v3351
      %v3360 = vunpack.c.l.b16 %v3352
      %v3361 = vunpack.c.l.b16 %v3353
      %v3362 = vpack.c.b16 %v3359, %v3358
      %v3363 = vpack.c.b16 %v3361, %v3360
      %v3367 = vsel %vm2769, %v3331, 0
      %v3370 = vsel %vm2769, %v3332, 0
      %v3373 = vsel %vm2769, %v3333, 0
      %v3376 = vsel %vm2769, %v3334, 0
      %v3379 = vsel %vm2769, %v3335, 0
      %v3382 = vsel %vm2769, %v3336, 0
      %v3385 = vsel %vm2769, %v3337, 0
      %v3388 = vsel %vm2769, %v3338, 0
      %v3391 = vsel %vm2769, %v3339, 0
      %v3394 = vsel %vm2769, %v3340, 0
      %v3397 = vsel %vm2769, %v3341, 0
      %v3400 = vsel %vm2769, %v3342, 0
      %v3403 = vsel %vm2769, %v3343, 0
      %v3406 = vsel %vm2769, %v3344, 0
      %v3409 = vsel %vm2769, %v3345, 0
      %v3412 = vsel %vm2769, %v3346, 0
      %v3415 = vsel %vm2769, %v3347, 0
      %v3418 = vsel %vm2769, %v3348, 0
      %3420 = vmatpush.bf16.msra.mxu0 0
      %3421 = vmatpush.bf16.msra.mxu0 0
      %3422 = vmatpush.bf16.msra.mxu0 0
      %3423 = vmatpush.bf16.msra.mxu0 0
      %3424 = vmatpush.bf16.msra.mxu0 0
      %3425 = vmatpush.bf16.msra.mxu0 0
      %3426 = vmatpush.bf16.msra.mxu0 %v3363
      %3427 = vmatpush.bf16.msra.mxu0 %v3362
      %3428 = vmatmul.bf16.gmra.mxu0 %v3367
      %v3429 = vpop.f32.mrf.mxu0
      %v3430 = vadd.f32 0.0, %v3429
      %v3431 = vpop.f32.mrf.mxu0
      %v3432 = vadd.f32 0.0, %v3431
      %3433 = vmatmul.bf16.gmra.mxu0 %v3370
      %v3434 = vpop.f32.mrf.mxu0
      %v3435 = vadd.f32 0.0, %v3434
      %v3436 = vpop.f32.mrf.mxu0
      %v3437 = vadd.f32 0.0, %v3436
      %3438 = vmatmul.bf16.gmra.mxu0 %v3373
      %v3439 = vpop.f32.mrf.mxu0
      %v3440 = vadd.f32 0.0, %v3439
      %v3441 = vpop.f32.mrf.mxu0
      %v3442 = vadd.f32 0.0, %v3441
      %3443 = vmatmul.bf16.gmra.mxu0 %v3376
      %v3444 = vpop.f32.mrf.mxu0
      %v3445 = vadd.f32 0.0, %v3444
      %v3446 = vpop.f32.mrf.mxu0
      %v3447 = vadd.f32 0.0, %v3446
      %3448 = vmatmul.bf16.gmra.mxu0 %v3379
      %v3449 = vpop.f32.mrf.mxu0
      %v3450 = vadd.f32 0.0, %v3449
      %v3451 = vpop.f32.mrf.mxu0
      %v3452 = vadd.f32 0.0, %v3451
      %3453 = vmatmul.bf16.gmra.mxu0 %v3382
      %v3454 = vpop.f32.mrf.mxu0
      %v3455 = vadd.f32 0.0, %v3454
      %v3456 = vpop.f32.mrf.mxu0
      %v3457 = vadd.f32 0.0, %v3456
      %3458 = vmatmul.bf16.gmra.mxu0 %v3385
      %v3459 = vpop.f32.mrf.mxu0
      %v3460 = vadd.f32 0.0, %v3459
      %v3461 = vpop.f32.mrf.mxu0
      %v3462 = vadd.f32 0.0, %v3461
      %3463 = vmatmul.bf16.gmra.mxu0 %v3388
      %v3464 = vpop.f32.mrf.mxu0
      %v3465 = vadd.f32 0.0, %v3464
      %v3466 = vpop.f32.mrf.mxu0
      %v3467 = vadd.f32 0.0, %v3466
      %3468 = vmatmul.bf16.gmra.mxu0 %v3391
      %v3469 = vpop.f32.mrf.mxu0
      %v3470 = vadd.f32 0.0, %v3469
      %v3471 = vpop.f32.mrf.mxu0
      %v3472 = vadd.f32 0.0, %v3471
      %3473 = vmatmul.bf16.gmra.mxu0 %v3394
      %v3474 = vpop.f32.mrf.mxu0
      %v3475 = vadd.f32 0.0, %v3474
      %v3476 = vpop.f32.mrf.mxu0
      %v3477 = vadd.f32 0.0, %v3476
      %3478 = vmatmul.bf16.gmra.mxu0 %v3397
      %v3479 = vpop.f32.mrf.mxu0
      %v3480 = vadd.f32 0.0, %v3479
      %v3481 = vpop.f32.mrf.mxu0
      %v3482 = vadd.f32 0.0, %v3481
      %3483 = vmatmul.bf16.gmra.mxu0 %v3400
      %v3484 = vpop.f32.mrf.mxu0
      %v3485 = vadd.f32 0.0, %v3484
      %v3486 = vpop.f32.mrf.mxu0
      %v3487 = vadd.f32 0.0, %v3486
      %3488 = vmatmul.bf16.gmra.mxu0 %v3403
      %v3489 = vpop.f32.mrf.mxu0
      %v3490 = vadd.f32 0.0, %v3489
      %v3491 = vpop.f32.mrf.mxu0
      %v3492 = vadd.f32 0.0, %v3491
      %3493 = vmatmul.bf16.gmra.mxu0 %v3406
      %v3494 = vpop.f32.mrf.mxu0
      %v3495 = vadd.f32 0.0, %v3494
      %v3496 = vpop.f32.mrf.mxu0
      %v3497 = vadd.f32 0.0, %v3496
      %3498 = vmatmul.bf16.gmra.mxu0 %v3409
      %v3499 = vpop.f32.mrf.mxu0
      %v3500 = vadd.f32 0.0, %v3499
      %v3501 = vpop.f32.mrf.mxu0
      %v3502 = vadd.f32 0.0, %v3501
      %3503 = vmatmul.bf16.gmra.mxu0 %v3412
      %v3504 = vpop.f32.mrf.mxu0
      %v3505 = vadd.f32 0.0, %v3504
      %v3506 = vpop.f32.mrf.mxu0
      %v3507 = vadd.f32 0.0, %v3506
      %3508 = vmatmul.bf16.gmra.mxu0 %v3415
      %v3509 = vpop.f32.mrf.mxu0
      %v3510 = vadd.f32 0.0, %v3509
      %v3511 = vpop.f32.mrf.mxu0
      %v3512 = vadd.f32 0.0, %v3511
      %3513 = vmatmul.bf16.gmra.mxu0 %v3418
      %v3514 = vpop.f32.mrf.mxu0
      %v3515 = vadd.f32 0.0, %v3514
      %v3516 = vpop.f32.mrf.mxu0
      %v3517 = vadd.f32 0.0, %v3516
      %3518 = vdwg.mxu0
      %v3519 = vadd.f32 %v3206, %v3430
      %v3520 = vadd.f32 %v3208, %v3432
      %v3521 = vadd.f32 %v3211, %v3435
      %v3522 = vadd.f32 %v3213, %v3437
      %v3523 = vadd.f32 %v3216, %v3440
      %v3524 = vadd.f32 %v3218, %v3442
      %v3525 = vadd.f32 %v3221, %v3445
      %v3526 = vadd.f32 %v3223, %v3447
      %v3527 = vadd.f32 %v3226, %v3450
      %v3528 = vadd.f32 %v3228, %v3452
      %v3529 = vadd.f32 %v3231, %v3455
      %v3530 = vadd.f32 %v3233, %v3457
      %v3531 = vadd.f32 %v3236, %v3460
      %v3532 = vadd.f32 %v3238, %v3462
      %v3533 = vadd.f32 %v3241, %v3465
      %v3534 = vadd.f32 %v3243, %v3467
      %v3535 = vadd.f32 %v3246, %v3470
      %v3536 = vadd.f32 %v3248, %v3472
      %v3537 = vadd.f32 %v3251, %v3475
      %v3538 = vadd.f32 %v3253, %v3477
      %v3539 = vadd.f32 %v3256, %v3480
      %v3540 = vadd.f32 %v3258, %v3482
      %v3541 = vadd.f32 %v3261, %v3485
      %v3542 = vadd.f32 %v3263, %v3487
      %v3543 = vadd.f32 %v3266, %v3490
      %v3544 = vadd.f32 %v3268, %v3492
      %v3545 = vadd.f32 %v3271, %v3495
      %v3546 = vadd.f32 %v3273, %v3497
      %v3547 = vadd.f32 %v3276, %v3500
      %v3548 = vadd.f32 %v3278, %v3502
      %v3549 = vadd.f32 %v3281, %v3505
      %v3550 = vadd.f32 %v3283, %v3507
      %v3551 = vadd.f32 %v3286, %v3510
      %v3552 = vadd.f32 %v3288, %v3512
      %v3553 = vadd.f32 %v3291, %v3515
      %v3554 = vadd.f32 %v3293, %v3517
      %v3555 = vld [vmem:[#allocation2 + $0x12] sm:$0xff]
      %v3556 = vld [vmem:[#allocation2 + $0x1a] sm:$0xff]
      %v3557 = vld [vmem:[#allocation2 + $0x22] sm:$0xff]
      %v3558 = vld [vmem:[#allocation2 + $0x2a] sm:$0xff]
      %v3559 = vld [vmem:[#allocation2 + $0x32] sm:$0xff]
      %v3560 = vld [vmem:[#allocation2 + $0x3a] sm:$0xff]
      %v3561 = vld [vmem:[#allocation2 + $0x42] sm:$0xff]
      %v3562 = vld [vmem:[#allocation2 + $0x4a] sm:$0xff]
      %v3563 = vld [vmem:[#allocation2 + $0x52] sm:$0xff]
      %v3564 = vld [vmem:[#allocation2 + $0x5a] sm:$0xff]
      %v3565 = vld [vmem:[#allocation2 + $0x62] sm:$0xff]
      %v3566 = vld [vmem:[#allocation2 + $0x6a] sm:$0xff]
      %v3567 = vld [vmem:[#allocation2 + $0x72] sm:$0xff]
      %v3568 = vld [vmem:[#allocation2 + $0x7a] sm:$0xff]
      %v3569 = vld [vmem:[#allocation2 + $0x82] sm:$0xff]
      %v3570 = vld [vmem:[#allocation2 + $0x8a] sm:$0xff]
      %v3571 = vld [vmem:[#allocation2 + $0x92] sm:$0xff]
      %v3572 = vld [vmem:[#allocation2 + $0x9a] sm:$0xff]
      %v3573 = vld [vmem:[#allocation2 + $0xa2] sm:$0xff]
      %v3574 = vld [vmem:[#allocation2 + $0xaa] sm:$0xff]
      %v3575 = vld [vmem:[#allocation2 + $0xb2] sm:$0xff]
      %v3576 = vld [vmem:[#allocation2 + $0xba] sm:$0xff]
      %v3577 = vld [vmem:[#allocation2 + $0xc2] sm:$0xff]
      %v3578 = vld [vmem:[#allocation2 + $0xca] sm:$0xff]
      %v3579 = vld [vmem:[#allocation2 + $0xd2] sm:$0xff]
      %v3580 = vld [vmem:[#allocation2 + $0xda] sm:$0xff]
      %v3581 = vld [vmem:[#allocation2 + $0xe2] sm:$0xff]
      %v3582 = vld [vmem:[#allocation2 + $0xea] sm:$0xff]
      %v3583 = vld [vmem:[#allocation2 + $0xf2] sm:$0xff]
      %v3584 = vld [vmem:[#allocation2 + $0xfa] sm:$0xff]
      %v3585 = vld [vmem:[#allocation2 + $0x102] sm:$0xff]
      %v3586 = vld [vmem:[#allocation2 + $0x10a] sm:$0xff]
      %v3587 = vld [vmem:[#allocation2 + $0x112] sm:$0xff]
      %v3588 = vld [vmem:[#allocation2 + $0x11a] sm:$0xff]
      %v3589 = vld [vmem:[#allocation2 + $0x122] sm:$0xff]
      %v3590 = vld [vmem:[#allocation2 + $0x12a] sm:$0xff]
      %v3591 = vpack.c.bf16 %v3556, %v3555
      %v3592 = vpack.c.bf16 %v3558, %v3557
      %v3593 = vpack.c.bf16 %v3560, %v3559
      %v3594 = vpack.c.bf16 %v3562, %v3561
      %v3595 = vpack.c.bf16 %v3564, %v3563
      %v3596 = vpack.c.bf16 %v3566, %v3565
      %v3597 = vpack.c.bf16 %v3568, %v3567
      %v3598 = vpack.c.bf16 %v3570, %v3569
      %v3599 = vpack.c.bf16 %v3572, %v3571
      %v3600 = vpack.c.bf16 %v3574, %v3573
      %v3601 = vpack.c.bf16 %v3576, %v3575
      %v3602 = vpack.c.bf16 %v3578, %v3577
      %v3603 = vpack.c.bf16 %v3580, %v3579
      %v3604 = vpack.c.bf16 %v3582, %v3581
      %v3605 = vpack.c.bf16 %v3584, %v3583
      %v3606 = vpack.c.bf16 %v3586, %v3585
      %v3607 = vpack.c.bf16 %v3588, %v3587
      %v3608 = vpack.c.bf16 %v3590, %v3589
      %s3609 = scalar_lea.vmem %s3, 48
      %v3610 = vld [vmem:[%s3609] sm:$0xf]
      %v3611 = vld [vmem:[%s3609 + $0x4] sm:$0xf]
      %v3612 = vld [vmem:[%s3609 + $0x8] sm:$0xf]
      %v3613 = vld [vmem:[%s3609 + $0xc] sm:$0xf]
      %v3618 = vunpack.c.l.b16 %v3610
      %v3619 = vunpack.c.l.b16 %v3611
      %v3620 = vunpack.c.l.b16 %v3612
      %v3621 = vunpack.c.l.b16 %v3613
      %v3622 = vpack.c.b16 %v3619, %v3618
      %v3623 = vpack.c.b16 %v3621, %v3620
      %v3627 = vsel %vm2769, %v3591, 0
      %v3630 = vsel %vm2769, %v3592, 0
      %v3633 = vsel %vm2769, %v3593, 0
      %v3636 = vsel %vm2769, %v3594, 0
      %v3639 = vsel %vm2769, %v3595, 0
      %v3642 = vsel %vm2769, %v3596, 0
      %v3645 = vsel %vm2769, %v3597, 0
      %v3648 = vsel %vm2769, %v3598, 0
      %v3651 = vsel %vm2769, %v3599, 0
      %v3654 = vsel %vm2769, %v3600, 0
      %v3657 = vsel %vm2769, %v3601, 0
      %v3660 = vsel %vm2769, %v3602, 0
      %v3663 = vsel %vm2769, %v3603, 0
      %v3666 = vsel %vm2769, %v3604, 0
      %v3669 = vsel %vm2769, %v3605, 0
      %v3672 = vsel %vm2769, %v3606, 0
      %v3675 = vsel %vm2769, %v3607, 0
      %v3678 = vsel %vm2769, %v3608, 0
      %3680 = vmatpush.bf16.msra.mxu0 0
      %3681 = vmatpush.bf16.msra.mxu0 0
      %3682 = vmatpush.bf16.msra.mxu0 0
      %3683 = vmatpush.bf16.msra.mxu0 0
      %3684 = vmatpush.bf16.msra.mxu0 0
      %3685 = vmatpush.bf16.msra.mxu0 0
      %3686 = vmatpush.bf16.msra.mxu0 %v3623
      %3687 = vmatpush.bf16.msra.mxu0 %v3622
      %3688 = vmatmul.bf16.gmra.mxu0 %v3627
      %v3689 = vpop.f32.mrf.mxu0
      %v3690 = vadd.f32 0.0, %v3689
      %v3691 = vpop.f32.mrf.mxu0
      %v3692 = vadd.f32 0.0, %v3691
      %3693 = vmatmul.bf16.gmra.mxu0 %v3630
      %v3694 = vpop.f32.mrf.mxu0
      %v3695 = vadd.f32 0.0, %v3694
      %v3696 = vpop.f32.mrf.mxu0
      %v3697 = vadd.f32 0.0, %v3696
      %3698 = vmatmul.bf16.gmra.mxu0 %v3633
      %v3699 = vpop.f32.mrf.mxu0
      %v3700 = vadd.f32 0.0, %v3699
      %v3701 = vpop.f32.mrf.mxu0
      %v3702 = vadd.f32 0.0, %v3701
      %3703 = vmatmul.bf16.gmra.mxu0 %v3636
      %v3704 = vpop.f32.mrf.mxu0
      %v3705 = vadd.f32 0.0, %v3704
      %v3706 = vpop.f32.mrf.mxu0
      %v3707 = vadd.f32 0.0, %v3706
      %3708 = vmatmul.bf16.gmra.mxu0 %v3639
      %v3709 = vpop.f32.mrf.mxu0
      %v3710 = vadd.f32 0.0, %v3709
      %v3711 = vpop.f32.mrf.mxu0
      %v3712 = vadd.f32 0.0, %v3711
      %3713 = vmatmul.bf16.gmra.mxu0 %v3642
      %v3714 = vpop.f32.mrf.mxu0
      %v3715 = vadd.f32 0.0, %v3714
      %v3716 = vpop.f32.mrf.mxu0
      %v3717 = vadd.f32 0.0, %v3716
      %3718 = vmatmul.bf16.gmra.mxu0 %v3645
      %v3719 = vpop.f32.mrf.mxu0
      %v3720 = vadd.f32 0.0, %v3719
      %v3721 = vpop.f32.mrf.mxu0
      %v3722 = vadd.f32 0.0, %v3721
      %3723 = vmatmul.bf16.gmra.mxu0 %v3648
      %v3724 = vpop.f32.mrf.mxu0
      %v3725 = vadd.f32 0.0, %v3724
      %v3726 = vpop.f32.mrf.mxu0
      %v3727 = vadd.f32 0.0, %v3726
      %3728 = vmatmul.bf16.gmra.mxu0 %v3651
      %v3729 = vpop.f32.mrf.mxu0
      %v3730 = vadd.f32 0.0, %v3729
      %v3731 = vpop.f32.mrf.mxu0
      %v3732 = vadd.f32 0.0, %v3731
      %3733 = vmatmul.bf16.gmra.mxu0 %v3654
      %v3734 = vpop.f32.mrf.mxu0
      %v3735 = vadd.f32 0.0, %v3734
      %v3736 = vpop.f32.mrf.mxu0
      %v3737 = vadd.f32 0.0, %v3736
      %3738 = vmatmul.bf16.gmra.mxu0 %v3657
      %v3739 = vpop.f32.mrf.mxu0
      %v3740 = vadd.f32 0.0, %v3739
      %v3741 = vpop.f32.mrf.mxu0
      %v3742 = vadd.f32 0.0, %v3741
      %3743 = vmatmul.bf16.gmra.mxu0 %v3660
      %v3744 = vpop.f32.mrf.mxu0
      %v3745 = vadd.f32 0.0, %v3744
      %v3746 = vpop.f32.mrf.mxu0
      %v3747 = vadd.f32 0.0, %v3746
      %3748 = vmatmul.bf16.gmra.mxu0 %v3663
      %v3749 = vpop.f32.mrf.mxu0
      %v3750 = vadd.f32 0.0, %v3749
      %v3751 = vpop.f32.mrf.mxu0
      %v3752 = vadd.f32 0.0, %v3751
      %3753 = vmatmul.bf16.gmra.mxu0 %v3666
      %v3754 = vpop.f32.mrf.mxu0
      %v3755 = vadd.f32 0.0, %v3754
      %v3756 = vpop.f32.mrf.mxu0
      %v3757 = vadd.f32 0.0, %v3756
      %3758 = vmatmul.bf16.gmra.mxu0 %v3669
      %v3759 = vpop.f32.mrf.mxu0
      %v3760 = vadd.f32 0.0, %v3759
      %v3761 = vpop.f32.mrf.mxu0
      %v3762 = vadd.f32 0.0, %v3761
      %3763 = vmatmul.bf16.gmra.mxu0 %v3672
      %v3764 = vpop.f32.mrf.mxu0
      %v3765 = vadd.f32 0.0, %v3764
      %v3766 = vpop.f32.mrf.mxu0
      %v3767 = vadd.f32 0.0, %v3766
      %3768 = vmatmul.bf16.gmra.mxu0 %v3675
      %v3769 = vpop.f32.mrf.mxu0
      %v3770 = vadd.f32 0.0, %v3769
      %v3771 = vpop.f32.mrf.mxu0
      %v3772 = vadd.f32 0.0, %v3771
      %3773 = vmatmul.bf16.gmra.mxu0 %v3678
      %v3774 = vpop.f32.mrf.mxu0
      %v3775 = vadd.f32 0.0, %v3774
      %v3776 = vpop.f32.mrf.mxu0
      %v3777 = vadd.f32 0.0, %v3776
      %3778 = vdwg.mxu0
      %v3779 = vadd.f32 %v3519, %v3690
      %v3780 = vadd.f32 %v3520, %v3692
      %v3781 = vadd.f32 %v3521, %v3695
      %v3782 = vadd.f32 %v3522, %v3697
      %v3783 = vadd.f32 %v3523, %v3700
      %v3784 = vadd.f32 %v3524, %v3702
      %v3785 = vadd.f32 %v3525, %v3705
      %v3786 = vadd.f32 %v3526, %v3707
      %v3787 = vadd.f32 %v3527, %v3710
      %v3788 = vadd.f32 %v3528, %v3712
      %v3789 = vadd.f32 %v3529, %v3715
      %v3790 = vadd.f32 %v3530, %v3717
      %v3791 = vadd.f32 %v3531, %v3720
      %v3792 = vadd.f32 %v3532, %v3722
      %v3793 = vadd.f32 %v3533, %v3725
      %v3794 = vadd.f32 %v3534, %v3727
      %v3795 = vadd.f32 %v3535, %v3730
      %v3796 = vadd.f32 %v3536, %v3732
      %v3797 = vadd.f32 %v3537, %v3735
      %v3798 = vadd.f32 %v3538, %v3737
      %v3799 = vadd.f32 %v3539, %v3740
      %v3800 = vadd.f32 %v3540, %v3742
      %v3801 = vadd.f32 %v3541, %v3745
      %v3802 = vadd.f32 %v3542, %v3747
      %v3803 = vadd.f32 %v3543, %v3750
      %v3804 = vadd.f32 %v3544, %v3752
      %v3805 = vadd.f32 %v3545, %v3755
      %v3806 = vadd.f32 %v3546, %v3757
      %v3807 = vadd.f32 %v3547, %v3760
      %v3808 = vadd.f32 %v3548, %v3762
      %v3809 = vadd.f32 %v3549, %v3765
      %v3810 = vadd.f32 %v3550, %v3767
      %v3811 = vadd.f32 %v3551, %v3770
      %v3812 = vadd.f32 %v3552, %v3772
      %v3813 = vadd.f32 %v3553, %v3775
      %v3814 = vadd.f32 %v3554, %v3777
      %v3815 = vld [vmem:[#allocation2 + $0x13] sm:$0xff]
      %v3816 = vld [vmem:[#allocation2 + $0x1b] sm:$0xff]
      %v3817 = vld [vmem:[#allocation2 + $0x23] sm:$0xff]
      %v3818 = vld [vmem:[#allocation2 + $0x2b] sm:$0xff]
      %v3819 = vld [vmem:[#allocation2 + $0x33] sm:$0xff]
      %v3820 = vld [vmem:[#allocation2 + $0x3b] sm:$0xff]
      %v3821 = vld [vmem:[#allocation2 + $0x43] sm:$0xff]
      %v3822 = vld [vmem:[#allocation2 + $0x4b] sm:$0xff]
      %v3823 = vld [vmem:[#allocation2 + $0x53] sm:$0xff]
      %v3824 = vld [vmem:[#allocation2 + $0x5b] sm:$0xff]
      %v3825 = vld [vmem:[#allocation2 + $0x63] sm:$0xff]
      %v3826 = vld [vmem:[#allocation2 + $0x6b] sm:$0xff]
      %v3827 = vld [vmem:[#allocation2 + $0x73] sm:$0xff]
      %v3828 = vld [vmem:[#allocation2 + $0x7b] sm:$0xff]
      %v3829 = vld [vmem:[#allocation2 + $0x83] sm:$0xff]
      %v3830 = vld [vmem:[#allocation2 + $0x8b] sm:$0xff]
      %v3831 = vld [vmem:[#allocation2 + $0x93] sm:$0xff]
      %v3832 = vld [vmem:[#allocation2 + $0x9b] sm:$0xff]
      %v3833 = vld [vmem:[#allocation2 + $0xa3] sm:$0xff]
      %v3834 = vld [vmem:[#allocation2 + $0xab] sm:$0xff]
      %v3835 = vld [vmem:[#allocation2 + $0xb3] sm:$0xff]
      %v3836 = vld [vmem:[#allocation2 + $0xbb] sm:$0xff]
      %v3837 = vld [vmem:[#allocation2 + $0xc3] sm:$0xff]
      %v3838 = vld [vmem:[#allocation2 + $0xcb] sm:$0xff]
      %v3839 = vld [vmem:[#allocation2 + $0xd3] sm:$0xff]
      %v3840 = vld [vmem:[#allocation2 + $0xdb] sm:$0xff]
      %v3841 = vld [vmem:[#allocation2 + $0xe3] sm:$0xff]
      %v3842 = vld [vmem:[#allocation2 + $0xeb] sm:$0xff]
      %v3843 = vld [vmem:[#allocation2 + $0xf3] sm:$0xff]
      %v3844 = vld [vmem:[#allocation2 + $0xfb] sm:$0xff]
      %v3845 = vld [vmem:[#allocation2 + $0x103] sm:$0xff]
      %v3846 = vld [vmem:[#allocation2 + $0x10b] sm:$0xff]
      %v3847 = vld [vmem:[#allocation2 + $0x113] sm:$0xff]
      %v3848 = vld [vmem:[#allocation2 + $0x11b] sm:$0xff]
      %v3849 = vld [vmem:[#allocation2 + $0x123] sm:$0xff]
      %v3850 = vld [vmem:[#allocation2 + $0x12b] sm:$0xff]
      %v3851 = vpack.c.bf16 %v3816, %v3815
      %v3852 = vpack.c.bf16 %v3818, %v3817
      %v3853 = vpack.c.bf16 %v3820, %v3819
      %v3854 = vpack.c.bf16 %v3822, %v3821
      %v3855 = vpack.c.bf16 %v3824, %v3823
      %v3856 = vpack.c.bf16 %v3826, %v3825
      %v3857 = vpack.c.bf16 %v3828, %v3827
      %v3858 = vpack.c.bf16 %v3830, %v3829
      %v3859 = vpack.c.bf16 %v3832, %v3831
      %v3860 = vpack.c.bf16 %v3834, %v3833
      %v3861 = vpack.c.bf16 %v3836, %v3835
      %v3862 = vpack.c.bf16 %v3838, %v3837
      %v3863 = vpack.c.bf16 %v3840, %v3839
      %v3864 = vpack.c.bf16 %v3842, %v3841
      %v3865 = vpack.c.bf16 %v3844, %v3843
      %v3866 = vpack.c.bf16 %v3846, %v3845
      %v3867 = vpack.c.bf16 %v3848, %v3847
      %v3868 = vpack.c.bf16 %v3850, %v3849
      %s3869 = scalar_lea.vmem %s3, 64
      %v3870 = vld [vmem:[%s3869] sm:$0xf]
      %v3871 = vld [vmem:[%s3869 + $0x4] sm:$0xf]
      %v3872 = vld [vmem:[%s3869 + $0x8] sm:$0xf]
      %v3873 = vld [vmem:[%s3869 + $0xc] sm:$0xf]
      %v3878 = vunpack.c.l.b16 %v3870
      %v3879 = vunpack.c.l.b16 %v3871
      %v3880 = vunpack.c.l.b16 %v3872
      %v3881 = vunpack.c.l.b16 %v3873
      %v3882 = vpack.c.b16 %v3879, %v3878
      %v3883 = vpack.c.b16 %v3881, %v3880
      %v3887 = vsel %vm2769, %v3851, 0
      %v3890 = vsel %vm2769, %v3852, 0
      %v3893 = vsel %vm2769, %v3853, 0
      %v3896 = vsel %vm2769, %v3854, 0
      %v3899 = vsel %vm2769, %v3855, 0
      %v3902 = vsel %vm2769, %v3856, 0
      %v3905 = vsel %vm2769, %v3857, 0
      %v3908 = vsel %vm2769, %v3858, 0
      %v3911 = vsel %vm2769, %v3859, 0
      %v3914 = vsel %vm2769, %v3860, 0
      %v3917 = vsel %vm2769, %v3861, 0
      %v3920 = vsel %vm2769, %v3862, 0
      %v3923 = vsel %vm2769, %v3863, 0
      %v3926 = vsel %vm2769, %v3864, 0
      %v3929 = vsel %vm2769, %v3865, 0
      %v3932 = vsel %vm2769, %v3866, 0
      %v3935 = vsel %vm2769, %v3867, 0
      %v3938 = vsel %vm2769, %v3868, 0
      %3940 = vmatpush.bf16.msra.mxu0 0
      %3941 = vmatpush.bf16.msra.mxu0 0
      %3942 = vmatpush.bf16.msra.mxu0 0
      %3943 = vmatpush.bf16.msra.mxu0 0
      %3944 = vmatpush.bf16.msra.mxu0 0
      %3945 = vmatpush.bf16.msra.mxu0 0
      %3946 = vmatpush.bf16.msra.mxu0 %v3883
      %3947 = vmatpush.bf16.msra.mxu0 %v3882
      %3948 = vmatmul.bf16.gmra.mxu0 %v3887
      %v3949 = vpop.f32.mrf.mxu0
      %v3950 = vadd.f32 0.0, %v3949
      %v3951 = vpop.f32.mrf.mxu0
      %v3952 = vadd.f32 0.0, %v3951
      %3953 = vmatmul.bf16.gmra.mxu0 %v3890
      %v3954 = vpop.f32.mrf.mxu0
      %v3955 = vadd.f32 0.0, %v3954
      %v3956 = vpop.f32.mrf.mxu0
      %v3957 = vadd.f32 0.0, %v3956
      %3958 = vmatmul.bf16.gmra.mxu0 %v3893
      %v3959 = vpop.f32.mrf.mxu0
      %v3960 = vadd.f32 0.0, %v3959
      %v3961 = vpop.f32.mrf.mxu0
      %v3962 = vadd.f32 0.0, %v3961
      %3963 = vmatmul.bf16.gmra.mxu0 %v3896
      %v3964 = vpop.f32.mrf.mxu0
      %v3965 = vadd.f32 0.0, %v3964
      %v3966 = vpop.f32.mrf.mxu0
      %v3967 = vadd.f32 0.0, %v3966
      %3968 = vmatmul.bf16.gmra.mxu0 %v3899
      %v3969 = vpop.f32.mrf.mxu0
      %v3970 = vadd.f32 0.0, %v3969
      %v3971 = vpop.f32.mrf.mxu0
      %v3972 = vadd.f32 0.0, %v3971
      %3973 = vmatmul.bf16.gmra.mxu0 %v3902
      %v3974 = vpop.f32.mrf.mxu0
      %v3975 = vadd.f32 0.0, %v3974
      %v3976 = vpop.f32.mrf.mxu0
      %v3977 = vadd.f32 0.0, %v3976
      %3978 = vmatmul.bf16.gmra.mxu0 %v3905
      %v3979 = vpop.f32.mrf.mxu0
      %v3980 = vadd.f32 0.0, %v3979
      %v3981 = vpop.f32.mrf.mxu0
      %v3982 = vadd.f32 0.0, %v3981
      %3983 = vmatmul.bf16.gmra.mxu0 %v3908
      %v3984 = vpop.f32.mrf.mxu0
      %v3985 = vadd.f32 0.0, %v3984
      %v3986 = vpop.f32.mrf.mxu0
      %v3987 = vadd.f32 0.0, %v3986
      %3988 = vmatmul.bf16.gmra.mxu0 %v3911
      %v3989 = vpop.f32.mrf.mxu0
      %v3990 = vadd.f32 0.0, %v3989
      %v3991 = vpop.f32.mrf.mxu0
      %v3992 = vadd.f32 0.0, %v3991
      %3993 = vmatmul.bf16.gmra.mxu0 %v3914
      %v3994 = vpop.f32.mrf.mxu0
      %v3995 = vadd.f32 0.0, %v3994
      %v3996 = vpop.f32.mrf.mxu0
      %v3997 = vadd.f32 0.0, %v3996
      %3998 = vmatmul.bf16.gmra.mxu0 %v3917
      %v3999 = vpop.f32.mrf.mxu0
      %v4000 = vadd.f32 0.0, %v3999
      %v4001 = vpop.f32.mrf.mxu0
      %v4002 = vadd.f32 0.0, %v4001
      %4003 = vmatmul.bf16.gmra.mxu0 %v3920
      %v4004 = vpop.f32.mrf.mxu0
      %v4005 = vadd.f32 0.0, %v4004
      %v4006 = vpop.f32.mrf.mxu0
      %v4007 = vadd.f32 0.0, %v4006
      %4008 = vmatmul.bf16.gmra.mxu0 %v3923
      %v4009 = vpop.f32.mrf.mxu0
      %v4010 = vadd.f32 0.0, %v4009
      %v4011 = vpop.f32.mrf.mxu0
      %v4012 = vadd.f32 0.0, %v4011
      %4013 = vmatmul.bf16.gmra.mxu0 %v3926
      %v4014 = vpop.f32.mrf.mxu0
      %v4015 = vadd.f32 0.0, %v4014
      %v4016 = vpop.f32.mrf.mxu0
      %v4017 = vadd.f32 0.0, %v4016
      %4018 = vmatmul.bf16.gmra.mxu0 %v3929
      %v4019 = vpop.f32.mrf.mxu0
      %v4020 = vadd.f32 0.0, %v4019
      %v4021 = vpop.f32.mrf.mxu0
      %v4022 = vadd.f32 0.0, %v4021
      %4023 = vmatmul.bf16.gmra.mxu0 %v3932
      %v4024 = vpop.f32.mrf.mxu0
      %v4025 = vadd.f32 0.0, %v4024
      %v4026 = vpop.f32.mrf.mxu0
      %v4027 = vadd.f32 0.0, %v4026
      %4028 = vmatmul.bf16.gmra.mxu0 %v3935
      %v4029 = vpop.f32.mrf.mxu0
      %v4030 = vadd.f32 0.0, %v4029
      %v4031 = vpop.f32.mrf.mxu0
      %v4032 = vadd.f32 0.0, %v4031
      %4033 = vmatmul.bf16.gmra.mxu0 %v3938
      %v4034 = vpop.f32.mrf.mxu0
      %v4035 = vadd.f32 0.0, %v4034
      %v4036 = vpop.f32.mrf.mxu0
      %v4037 = vadd.f32 0.0, %v4036
      %4038 = vdwg.mxu0
      %v4039 = vadd.f32 %v3779, %v3950
      %v4040 = vadd.f32 %v3780, %v3952
      %v4041 = vadd.f32 %v3781, %v3955
      %v4042 = vadd.f32 %v3782, %v3957
      %v4043 = vadd.f32 %v3783, %v3960
      %v4044 = vadd.f32 %v3784, %v3962
      %v4045 = vadd.f32 %v3785, %v3965
      %v4046 = vadd.f32 %v3786, %v3967
      %v4047 = vadd.f32 %v3787, %v3970
      %v4048 = vadd.f32 %v3788, %v3972
      %v4049 = vadd.f32 %v3789, %v3975
      %v4050 = vadd.f32 %v3790, %v3977
      %v4051 = vadd.f32 %v3791, %v3980
      %v4052 = vadd.f32 %v3792, %v3982
      %v4053 = vadd.f32 %v3793, %v3985
      %v4054 = vadd.f32 %v3794, %v3987
      %v4055 = vadd.f32 %v3795, %v3990
      %v4056 = vadd.f32 %v3796, %v3992
      %v4057 = vadd.f32 %v3797, %v3995
      %v4058 = vadd.f32 %v3798, %v3997
      %v4059 = vadd.f32 %v3799, %v4000
      %v4060 = vadd.f32 %v3800, %v4002
      %v4061 = vadd.f32 %v3801, %v4005
      %v4062 = vadd.f32 %v3802, %v4007
      %v4063 = vadd.f32 %v3803, %v4010
      %v4064 = vadd.f32 %v3804, %v4012
      %v4065 = vadd.f32 %v3805, %v4015
      %v4066 = vadd.f32 %v3806, %v4017
      %v4067 = vadd.f32 %v3807, %v4020
      %v4068 = vadd.f32 %v3808, %v4022
      %v4069 = vadd.f32 %v3809, %v4025
      %v4070 = vadd.f32 %v3810, %v4027
      %v4071 = vadd.f32 %v3811, %v4030
      %v4072 = vadd.f32 %v3812, %v4032
      %v4073 = vadd.f32 %v3813, %v4035
      %v4074 = vadd.f32 %v3814, %v4037
      %v4075 = vld [vmem:[#allocation2 + $0x14] sm:$0xff]
      %v4076 = vld [vmem:[#allocation2 + $0x1c] sm:$0xff]
      %v4077 = vld [vmem:[#allocation2 + $0x24] sm:$0xff]
      %v4078 = vld [vmem:[#allocation2 + $0x2c] sm:$0xff]
      %v4079 = vld [vmem:[#allocation2 + $0x34] sm:$0xff]
      %v4080 = vld [vmem:[#allocation2 + $0x3c] sm:$0xff]
      %v4081 = vld [vmem:[#allocation2 + $0x44] sm:$0xff]
      %v4082 = vld [vmem:[#allocation2 + $0x4c] sm:$0xff]
      %v4083 = vld [vmem:[#allocation2 + $0x54] sm:$0xff]
      %v4084 = vld [vmem:[#allocation2 + $0x5c] sm:$0xff]
      %v4085 = vld [vmem:[#allocation2 + $0x64] sm:$0xff]
      %v4086 = vld [vmem:[#allocation2 + $0x6c] sm:$0xff]
      %v4087 = vld [vmem:[#allocation2 + $0x74] sm:$0xff]
      %v4088 = vld [vmem:[#allocation2 + $0x7c] sm:$0xff]
      %v4089 = vld [vmem:[#allocation2 + $0x84] sm:$0xff]
      %v4090 = vld [vmem:[#allocation2 + $0x8c] sm:$0xff]
      %v4091 = vld [vmem:[#allocation2 + $0x94] sm:$0xff]
      %v4092 = vld [vmem:[#allocation2 + $0x9c] sm:$0xff]
      %v4093 = vld [vmem:[#allocation2 + $0xa4] sm:$0xff]
      %v4094 = vld [vmem:[#allocation2 + $0xac] sm:$0xff]
      %v4095 = vld [vmem:[#allocation2 + $0xb4] sm:$0xff]
      %v4096 = vld [vmem:[#allocation2 + $0xbc] sm:$0xff]
      %v4097 = vld [vmem:[#allocation2 + $0xc4] sm:$0xff]
      %v4098 = vld [vmem:[#allocation2 + $0xcc] sm:$0xff]
      %v4099 = vld [vmem:[#allocation2 + $0xd4] sm:$0xff]
      %v4100 = vld [vmem:[#allocation2 + $0xdc] sm:$0xff]
      %v4101 = vld [vmem:[#allocation2 + $0xe4] sm:$0xff]
      %v4102 = vld [vmem:[#allocation2 + $0xec] sm:$0xff]
      %v4103 = vld [vmem:[#allocation2 + $0xf4] sm:$0xff]
      %v4104 = vld [vmem:[#allocation2 + $0xfc] sm:$0xff]
      %v4105 = vld [vmem:[#allocation2 + $0x104] sm:$0xff]
      %v4106 = vld [vmem:[#allocation2 + $0x10c] sm:$0xff]
      %v4107 = vld [vmem:[#allocation2 + $0x114] sm:$0xff]
      %v4108 = vld [vmem:[#allocation2 + $0x11c] sm:$0xff]
      %v4109 = vld [vmem:[#allocation2 + $0x124] sm:$0xff]
      %v4110 = vld [vmem:[#allocation2 + $0x12c] sm:$0xff]
      %v4111 = vpack.c.bf16 %v4076, %v4075
      %v4112 = vpack.c.bf16 %v4078, %v4077
      %v4113 = vpack.c.bf16 %v4080, %v4079
      %v4114 = vpack.c.bf16 %v4082, %v4081
      %v4115 = vpack.c.bf16 %v4084, %v4083
      %v4116 = vpack.c.bf16 %v4086, %v4085
      %v4117 = vpack.c.bf16 %v4088, %v4087
      %v4118 = vpack.c.bf16 %v4090, %v4089
      %v4119 = vpack.c.bf16 %v4092, %v4091
      %v4120 = vpack.c.bf16 %v4094, %v4093
      %v4121 = vpack.c.bf16 %v4096, %v4095
      %v4122 = vpack.c.bf16 %v4098, %v4097
      %v4123 = vpack.c.bf16 %v4100, %v4099
      %v4124 = vpack.c.bf16 %v4102, %v4101
      %v4125 = vpack.c.bf16 %v4104, %v4103
      %v4126 = vpack.c.bf16 %v4106, %v4105
      %v4127 = vpack.c.bf16 %v4108, %v4107
      %v4128 = vpack.c.bf16 %v4110, %v4109
      %s4129 = scalar_lea.vmem %s3, 80
      %v4130 = vld [vmem:[%s4129] sm:$0xf]
      %v4131 = vld [vmem:[%s4129 + $0x4] sm:$0xf]
      %v4132 = vld [vmem:[%s4129 + $0x8] sm:$0xf]
      %v4133 = vld [vmem:[%s4129 + $0xc] sm:$0xf]
      %v4138 = vunpack.c.l.b16 %v4130
      %v4139 = vunpack.c.l.b16 %v4131
      %v4140 = vunpack.c.l.b16 %v4132
      %v4141 = vunpack.c.l.b16 %v4133
      %v4142 = vpack.c.b16 %v4139, %v4138
      %v4143 = vpack.c.b16 %v4141, %v4140
      %v4147 = vsel %vm2769, %v4111, 0
      %v4150 = vsel %vm2769, %v4112, 0
      %v4153 = vsel %vm2769, %v4113, 0
      %v4156 = vsel %vm2769, %v4114, 0
      %v4159 = vsel %vm2769, %v4115, 0
      %v4162 = vsel %vm2769, %v4116, 0
      %v4165 = vsel %vm2769, %v4117, 0
      %v4168 = vsel %vm2769, %v4118, 0
      %v4171 = vsel %vm2769, %v4119, 0
      %v4174 = vsel %vm2769, %v4120, 0
      %v4177 = vsel %vm2769, %v4121, 0
      %v4180 = vsel %vm2769, %v4122, 0
      %v4183 = vsel %vm2769, %v4123, 0
      %v4186 = vsel %vm2769, %v4124, 0
      %v4189 = vsel %vm2769, %v4125, 0
      %v4192 = vsel %vm2769, %v4126, 0
      %v4195 = vsel %vm2769, %v4127, 0
      %v4198 = vsel %vm2769, %v4128, 0
      %4200 = vmatpush.bf16.msra.mxu0 0
      %4201 = vmatpush.bf16.msra.mxu0 0
      %4202 = vmatpush.bf16.msra.mxu0 0
      %4203 = vmatpush.bf16.msra.mxu0 0
      %4204 = vmatpush.bf16.msra.mxu0 0
      %4205 = vmatpush.bf16.msra.mxu0 0
      %4206 = vmatpush.bf16.msra.mxu0 %v4143
      %4207 = vmatpush.bf16.msra.mxu0 %v4142
      %4208 = vmatmul.bf16.gmra.mxu0 %v4147
      %v4209 = vpop.f32.mrf.mxu0
      %v4210 = vadd.f32 0.0, %v4209
      %v4211 = vpop.f32.mrf.mxu0
      %v4212 = vadd.f32 0.0, %v4211
      %4213 = vmatmul.bf16.gmra.mxu0 %v4150
      %v4214 = vpop.f32.mrf.mxu0
      %v4215 = vadd.f32 0.0, %v4214
      %v4216 = vpop.f32.mrf.mxu0
      %v4217 = vadd.f32 0.0, %v4216
      %4218 = vmatmul.bf16.gmra.mxu0 %v4153
      %v4219 = vpop.f32.mrf.mxu0
      %v4220 = vadd.f32 0.0, %v4219
      %v4221 = vpop.f32.mrf.mxu0
      %v4222 = vadd.f32 0.0, %v4221
      %4223 = vmatmul.bf16.gmra.mxu0 %v4156
      %v4224 = vpop.f32.mrf.mxu0
      %v4225 = vadd.f32 0.0, %v4224
      %v4226 = vpop.f32.mrf.mxu0
      %v4227 = vadd.f32 0.0, %v4226
      %4228 = vmatmul.bf16.gmra.mxu0 %v4159
      %v4229 = vpop.f32.mrf.mxu0
      %v4230 = vadd.f32 0.0, %v4229
      %v4231 = vpop.f32.mrf.mxu0
      %v4232 = vadd.f32 0.0, %v4231
      %4233 = vmatmul.bf16.gmra.mxu0 %v4162
      %v4234 = vpop.f32.mrf.mxu0
      %v4235 = vadd.f32 0.0, %v4234
      %v4236 = vpop.f32.mrf.mxu0
      %v4237 = vadd.f32 0.0, %v4236
      %4238 = vmatmul.bf16.gmra.mxu0 %v4165
      %v4239 = vpop.f32.mrf.mxu0
      %v4240 = vadd.f32 0.0, %v4239
      %v4241 = vpop.f32.mrf.mxu0
      %v4242 = vadd.f32 0.0, %v4241
      %4243 = vmatmul.bf16.gmra.mxu0 %v4168
      %v4244 = vpop.f32.mrf.mxu0
      %v4245 = vadd.f32 0.0, %v4244
      %v4246 = vpop.f32.mrf.mxu0
      %v4247 = vadd.f32 0.0, %v4246
      %4248 = vmatmul.bf16.gmra.mxu0 %v4171
      %v4249 = vpop.f32.mrf.mxu0
      %v4250 = vadd.f32 0.0, %v4249
      %v4251 = vpop.f32.mrf.mxu0
      %v4252 = vadd.f32 0.0, %v4251
      %4253 = vmatmul.bf16.gmra.mxu0 %v4174
      %v4254 = vpop.f32.mrf.mxu0
      %v4255 = vadd.f32 0.0, %v4254
      %v4256 = vpop.f32.mrf.mxu0
      %v4257 = vadd.f32 0.0, %v4256
      %4258 = vmatmul.bf16.gmra.mxu0 %v4177
      %v4259 = vpop.f32.mrf.mxu0
      %v4260 = vadd.f32 0.0, %v4259
      %v4261 = vpop.f32.mrf.mxu0
      %v4262 = vadd.f32 0.0, %v4261
      %4263 = vmatmul.bf16.gmra.mxu0 %v4180
      %v4264 = vpop.f32.mrf.mxu0
      %v4265 = vadd.f32 0.0, %v4264
      %v4266 = vpop.f32.mrf.mxu0
      %v4267 = vadd.f32 0.0, %v4266
      %4268 = vmatmul.bf16.gmra.mxu0 %v4183
      %v4269 = vpop.f32.mrf.mxu0
      %v4270 = vadd.f32 0.0, %v4269
      %v4271 = vpop.f32.mrf.mxu0
      %v4272 = vadd.f32 0.0, %v4271
      %4273 = vmatmul.bf16.gmra.mxu0 %v4186
      %v4274 = vpop.f32.mrf.mxu0
      %v4275 = vadd.f32 0.0, %v4274
      %v4276 = vpop.f32.mrf.mxu0
      %v4277 = vadd.f32 0.0, %v4276
      %4278 = vmatmul.bf16.gmra.mxu0 %v4189
      %v4279 = vpop.f32.mrf.mxu0
      %v4280 = vadd.f32 0.0, %v4279
      %v4281 = vpop.f32.mrf.mxu0
      %v4282 = vadd.f32 0.0, %v4281
      %4283 = vmatmul.bf16.gmra.mxu0 %v4192
      %v4284 = vpop.f32.mrf.mxu0
      %v4285 = vadd.f32 0.0, %v4284
      %v4286 = vpop.f32.mrf.mxu0
      %v4287 = vadd.f32 0.0, %v4286
      %4288 = vmatmul.bf16.gmra.mxu0 %v4195
      %v4289 = vpop.f32.mrf.mxu0
      %v4290 = vadd.f32 0.0, %v4289
      %v4291 = vpop.f32.mrf.mxu0
      %v4292 = vadd.f32 0.0, %v4291
      %4293 = vmatmul.bf16.gmra.mxu0 %v4198
      %v4294 = vpop.f32.mrf.mxu0
      %v4295 = vadd.f32 0.0, %v4294
      %v4296 = vpop.f32.mrf.mxu0
      %v4297 = vadd.f32 0.0, %v4296
      %4298 = vdwg.mxu0
      %v4299 = vadd.f32 %v4039, %v4210
      %v4300 = vadd.f32 %v4040, %v4212
      %v4301 = vadd.f32 %v4041, %v4215
      %v4302 = vadd.f32 %v4042, %v4217
      %v4303 = vadd.f32 %v4043, %v4220
      %v4304 = vadd.f32 %v4044, %v4222
      %v4305 = vadd.f32 %v4045, %v4225
      %v4306 = vadd.f32 %v4046, %v4227
      %v4307 = vadd.f32 %v4047, %v4230
      %v4308 = vadd.f32 %v4048, %v4232
      %v4309 = vadd.f32 %v4049, %v4235
      %v4310 = vadd.f32 %v4050, %v4237
      %v4311 = vadd.f32 %v4051, %v4240
      %v4312 = vadd.f32 %v4052, %v4242
      %v4313 = vadd.f32 %v4053, %v4245
      %v4314 = vadd.f32 %v4054, %v4247
      %v4315 = vadd.f32 %v4055, %v4250
      %v4316 = vadd.f32 %v4056, %v4252
      %v4317 = vadd.f32 %v4057, %v4255
      %v4318 = vadd.f32 %v4058, %v4257
      %v4319 = vadd.f32 %v4059, %v4260
      %v4320 = vadd.f32 %v4060, %v4262
      %v4321 = vadd.f32 %v4061, %v4265
      %v4322 = vadd.f32 %v4062, %v4267
      %v4323 = vadd.f32 %v4063, %v4270
      %v4324 = vadd.f32 %v4064, %v4272
      %v4325 = vadd.f32 %v4065, %v4275
      %v4326 = vadd.f32 %v4066, %v4277
      %v4327 = vadd.f32 %v4067, %v4280
      %v4328 = vadd.f32 %v4068, %v4282
      %v4329 = vadd.f32 %v4069, %v4285
      %v4330 = vadd.f32 %v4070, %v4287
      %v4331 = vadd.f32 %v4071, %v4290
      %v4332 = vadd.f32 %v4072, %v4292
      %v4333 = vadd.f32 %v4073, %v4295
      %v4334 = vadd.f32 %v4074, %v4297
      %v4335 = vld [vmem:[#allocation2 + $0x24] sm:$0xff]
      %v4336 = vld [vmem:[#allocation2 + $0x2c] sm:$0xff]
      %v4337 = vld [vmem:[#allocation2 + $0x34] sm:$0xff]
      %v4338 = vld [vmem:[#allocation2 + $0x3c] sm:$0xff]
      %v4339 = vld [vmem:[#allocation2 + $0x44] sm:$0xff]
      %v4340 = vld [vmem:[#allocation2 + $0x4c] sm:$0xff]
      %v4341 = vld [vmem:[#allocation2 + $0x54] sm:$0xff]
      %v4342 = vld [vmem:[#allocation2 + $0x5c] sm:$0xff]
      %v4343 = vld [vmem:[#allocation2 + $0x64] sm:$0xff]
      %v4344 = vld [vmem:[#allocation2 + $0x6c] sm:$0xff]
      %v4345 = vld [vmem:[#allocation2 + $0x74] sm:$0xff]
      %v4346 = vld [vmem:[#allocation2 + $0x7c] sm:$0xff]
      %v4347 = vld [vmem:[#allocation2 + $0x84] sm:$0xff]
      %v4348 = vld [vmem:[#allocation2 + $0x8c] sm:$0xff]
      %v4349 = vld [vmem:[#allocation2 + $0x94] sm:$0xff]
      %v4350 = vld [vmem:[#allocation2 + $0x9c] sm:$0xff]
      %v4351 = vld [vmem:[#allocation2 + $0xa4] sm:$0xff]
      %v4352 = vld [vmem:[#allocation2 + $0xac] sm:$0xff]
      %v4353 = vld [vmem:[#allocation2 + $0xb4] sm:$0xff]
      %v4354 = vld [vmem:[#allocation2 + $0xbc] sm:$0xff]
      %v4355 = vld [vmem:[#allocation2 + $0xc4] sm:$0xff]
      %v4356 = vld [vmem:[#allocation2 + $0xcc] sm:$0xff]
      %v4357 = vld [vmem:[#allocation2 + $0xd4] sm:$0xff]
      %v4358 = vld [vmem:[#allocation2 + $0xdc] sm:$0xff]
      %v4359 = vld [vmem:[#allocation2 + $0xe4] sm:$0xff]
      %v4360 = vld [vmem:[#allocation2 + $0xec] sm:$0xff]
      %v4361 = vld [vmem:[#allocation2 + $0xf4] sm:$0xff]
      %v4362 = vld [vmem:[#allocation2 + $0xfc] sm:$0xff]
      %v4363 = vld [vmem:[#allocation2 + $0x104] sm:$0xff]
      %v4364 = vld [vmem:[#allocation2 + $0x10c] sm:$0xff]
      %v4365 = vld [vmem:[#allocation2 + $0x114] sm:$0xff]
      %v4366 = vld [vmem:[#allocation2 + $0x11c] sm:$0xff]
      %v4367 = vld [vmem:[#allocation2 + $0x124] sm:$0xff]
      %v4368 = vld [vmem:[#allocation2 + $0x12c] sm:$0xff]
      %v4369 = vld [vmem:[#allocation2 + $0x134] sm:$0xff]
      %v4370 = vld [vmem:[#allocation2 + $0x13c] sm:$0xff]
      %v4371 = vpack.c.bf16 %v4336, %v4335
      %v4372 = vpack.c.bf16 %v4338, %v4337
      %v4373 = vpack.c.bf16 %v4340, %v4339
      %v4374 = vpack.c.bf16 %v4342, %v4341
      %v4375 = vpack.c.bf16 %v4344, %v4343
      %v4376 = vpack.c.bf16 %v4346, %v4345
      %v4377 = vpack.c.bf16 %v4348, %v4347
      %v4378 = vpack.c.bf16 %v4350, %v4349
      %v4379 = vpack.c.bf16 %v4352, %v4351
      %v4380 = vpack.c.bf16 %v4354, %v4353
      %v4381 = vpack.c.bf16 %v4356, %v4355
      %v4382 = vpack.c.bf16 %v4358, %v4357
      %v4383 = vpack.c.bf16 %v4360, %v4359
      %v4384 = vpack.c.bf16 %v4362, %v4361
      %v4385 = vpack.c.bf16 %v4364, %v4363
      %v4386 = vpack.c.bf16 %v4366, %v4365
      %v4387 = vpack.c.bf16 %v4368, %v4367
      %v4388 = vpack.c.bf16 %v4370, %v4369
      %s4389 = scalar_lea.vmem %s3, 96
      %v4390 = vld [vmem:[%s4389] sm:$0xf]
      %v4391 = vld [vmem:[%s4389 + $0x4] sm:$0xf]
      %v4392 = vld [vmem:[%s4389 + $0x8] sm:$0xf]
      %v4393 = vld [vmem:[%s4389 + $0xc] sm:$0xf]
      %v4398 = vunpack.c.l.b16 %v4390
      %v4399 = vunpack.c.l.b16 %v4391
      %v4400 = vunpack.c.l.b16 %v4392
      %v4401 = vunpack.c.l.b16 %v4393
      %v4402 = vpack.c.b16 %v4399, %v4398
      %v4403 = vpack.c.b16 %v4401, %v4400
      %v4407 = vsel %vm2769, %v4371, 0
      %v4410 = vsel %vm2769, %v4372, 0
      %v4413 = vsel %vm2769, %v4373, 0
      %v4416 = vsel %vm2769, %v4374, 0
      %v4419 = vsel %vm2769, %v4375, 0
      %v4422 = vsel %vm2769, %v4376, 0
      %v4425 = vsel %vm2769, %v4377, 0
      %v4428 = vsel %vm2769, %v4378, 0
      %v4431 = vsel %vm2769, %v4379, 0
      %v4434 = vsel %vm2769, %v4380, 0
      %v4437 = vsel %vm2769, %v4381, 0
      %v4440 = vsel %vm2769, %v4382, 0
      %v4443 = vsel %vm2769, %v4383, 0
      %v4446 = vsel %vm2769, %v4384, 0
      %v4449 = vsel %vm2769, %v4385, 0
      %v4452 = vsel %vm2769, %v4386, 0
      %v4455 = vsel %vm2769, %v4387, 0
      %v4458 = vsel %vm2769, %v4388, 0
      %4460 = vmatpush.bf16.msra.mxu0 0
      %4461 = vmatpush.bf16.msra.mxu0 0
      %4462 = vmatpush.bf16.msra.mxu0 0
      %4463 = vmatpush.bf16.msra.mxu0 0
      %4464 = vmatpush.bf16.msra.mxu0 0
      %4465 = vmatpush.bf16.msra.mxu0 0
      %4466 = vmatpush.bf16.msra.mxu0 %v4403
      %4467 = vmatpush.bf16.msra.mxu0 %v4402
      %4468 = vmatmul.bf16.gmra.mxu0 %v4407
      %v4469 = vpop.f32.mrf.mxu0
      %v4470 = vadd.f32 0.0, %v4469
      %v4471 = vpop.f32.mrf.mxu0
      %v4472 = vadd.f32 0.0, %v4471
      %4473 = vmatmul.bf16.gmra.mxu0 %v4410
      %v4474 = vpop.f32.mrf.mxu0
      %v4475 = vadd.f32 0.0, %v4474
      %v4476 = vpop.f32.mrf.mxu0
      %v4477 = vadd.f32 0.0, %v4476
      %4478 = vmatmul.bf16.gmra.mxu0 %v4413
      %v4479 = vpop.f32.mrf.mxu0
      %v4480 = vadd.f32 0.0, %v4479
      %v4481 = vpop.f32.mrf.mxu0
      %v4482 = vadd.f32 0.0, %v4481
      %4483 = vmatmul.bf16.gmra.mxu0 %v4416
      %v4484 = vpop.f32.mrf.mxu0
      %v4485 = vadd.f32 0.0, %v4484
      %v4486 = vpop.f32.mrf.mxu0
      %v4487 = vadd.f32 0.0, %v4486
      %4488 = vmatmul.bf16.gmra.mxu0 %v4419
      %v4489 = vpop.f32.mrf.mxu0
      %v4490 = vadd.f32 0.0, %v4489
      %v4491 = vpop.f32.mrf.mxu0
      %v4492 = vadd.f32 0.0, %v4491
      %4493 = vmatmul.bf16.gmra.mxu0 %v4422
      %v4494 = vpop.f32.mrf.mxu0
      %v4495 = vadd.f32 0.0, %v4494
      %v4496 = vpop.f32.mrf.mxu0
      %v4497 = vadd.f32 0.0, %v4496
      %4498 = vmatmul.bf16.gmra.mxu0 %v4425
      %v4499 = vpop.f32.mrf.mxu0
      %v4500 = vadd.f32 0.0, %v4499
      %v4501 = vpop.f32.mrf.mxu0
      %v4502 = vadd.f32 0.0, %v4501
      %4503 = vmatmul.bf16.gmra.mxu0 %v4428
      %v4504 = vpop.f32.mrf.mxu0
      %v4505 = vadd.f32 0.0, %v4504
      %v4506 = vpop.f32.mrf.mxu0
      %v4507 = vadd.f32 0.0, %v4506
      %4508 = vmatmul.bf16.gmra.mxu0 %v4431
      %v4509 = vpop.f32.mrf.mxu0
      %v4510 = vadd.f32 0.0, %v4509
      %v4511 = vpop.f32.mrf.mxu0
      %v4512 = vadd.f32 0.0, %v4511
      %4513 = vmatmul.bf16.gmra.mxu0 %v4434
      %v4514 = vpop.f32.mrf.mxu0
      %v4515 = vadd.f32 0.0, %v4514
      %v4516 = vpop.f32.mrf.mxu0
      %v4517 = vadd.f32 0.0, %v4516
      %4518 = vmatmul.bf16.gmra.mxu0 %v4437
      %v4519 = vpop.f32.mrf.mxu0
      %v4520 = vadd.f32 0.0, %v4519
      %v4521 = vpop.f32.mrf.mxu0
      %v4522 = vadd.f32 0.0, %v4521
      %4523 = vmatmul.bf16.gmra.mxu0 %v4440
      %v4524 = vpop.f32.mrf.mxu0
      %v4525 = vadd.f32 0.0, %v4524
      %v4526 = vpop.f32.mrf.mxu0
      %v4527 = vadd.f32 0.0, %v4526
      %4528 = vmatmul.bf16.gmra.mxu0 %v4443
      %v4529 = vpop.f32.mrf.mxu0
      %v4530 = vadd.f32 0.0, %v4529
      %v4531 = vpop.f32.mrf.mxu0
      %v4532 = vadd.f32 0.0, %v4531
      %4533 = vmatmul.bf16.gmra.mxu0 %v4446
      %v4534 = vpop.f32.mrf.mxu0
      %v4535 = vadd.f32 0.0, %v4534
      %v4536 = vpop.f32.mrf.mxu0
      %v4537 = vadd.f32 0.0, %v4536
      %4538 = vmatmul.bf16.gmra.mxu0 %v4449
      %v4539 = vpop.f32.mrf.mxu0
      %v4540 = vadd.f32 0.0, %v4539
      %v4541 = vpop.f32.mrf.mxu0
      %v4542 = vadd.f32 0.0, %v4541
      %4543 = vmatmul.bf16.gmra.mxu0 %v4452
      %v4544 = vpop.f32.mrf.mxu0
      %v4545 = vadd.f32 0.0, %v4544
      %v4546 = vpop.f32.mrf.mxu0
      %v4547 = vadd.f32 0.0, %v4546
      %4548 = vmatmul.bf16.gmra.mxu0 %v4455
      %v4549 = vpop.f32.mrf.mxu0
      %v4550 = vadd.f32 0.0, %v4549
      %v4551 = vpop.f32.mrf.mxu0
      %v4552 = vadd.f32 0.0, %v4551
      %4553 = vmatmul.bf16.gmra.mxu0 %v4458
      %v4554 = vpop.f32.mrf.mxu0
      %v4555 = vadd.f32 0.0, %v4554
      %v4556 = vpop.f32.mrf.mxu0
      %v4557 = vadd.f32 0.0, %v4556
      %4558 = vdwg.mxu0
      %v4559 = vadd.f32 %v4299, %v4470
      %v4560 = vadd.f32 %v4300, %v4472
      %v4561 = vadd.f32 %v4301, %v4475
      %v4562 = vadd.f32 %v4302, %v4477
      %v4563 = vadd.f32 %v4303, %v4480
      %v4564 = vadd.f32 %v4304, %v4482
      %v4565 = vadd.f32 %v4305, %v4485
      %v4566 = vadd.f32 %v4306, %v4487
      %v4567 = vadd.f32 %v4307, %v4490
      %v4568 = vadd.f32 %v4308, %v4492
      %v4569 = vadd.f32 %v4309, %v4495
      %v4570 = vadd.f32 %v4310, %v4497
      %v4571 = vadd.f32 %v4311, %v4500
      %v4572 = vadd.f32 %v4312, %v4502
      %v4573 = vadd.f32 %v4313, %v4505
      %v4574 = vadd.f32 %v4314, %v4507
      %v4575 = vadd.f32 %v4315, %v4510
      %v4576 = vadd.f32 %v4316, %v4512
      %v4577 = vadd.f32 %v4317, %v4515
      %v4578 = vadd.f32 %v4318, %v4517
      %v4579 = vadd.f32 %v4319, %v4520
      %v4580 = vadd.f32 %v4320, %v4522
      %v4581 = vadd.f32 %v4321, %v4525
      %v4582 = vadd.f32 %v4322, %v4527
      %v4583 = vadd.f32 %v4323, %v4530
      %v4584 = vadd.f32 %v4324, %v4532
      %v4585 = vadd.f32 %v4325, %v4535
      %v4586 = vadd.f32 %v4326, %v4537
      %v4587 = vadd.f32 %v4327, %v4540
      %v4588 = vadd.f32 %v4328, %v4542
      %v4589 = vadd.f32 %v4329, %v4545
      %v4590 = vadd.f32 %v4330, %v4547
      %v4591 = vadd.f32 %v4331, %v4550
      %v4592 = vadd.f32 %v4332, %v4552
      %v4593 = vadd.f32 %v4333, %v4555
      %v4594 = vadd.f32 %v4334, %v4557
      %v4595 = vld [vmem:[#allocation2 + $0x25] sm:$0xff]
      %v4596 = vld [vmem:[#allocation2 + $0x2d] sm:$0xff]
      %v4597 = vld [vmem:[#allocation2 + $0x35] sm:$0xff]
      %v4598 = vld [vmem:[#allocation2 + $0x3d] sm:$0xff]
      %v4599 = vld [vmem:[#allocation2 + $0x45] sm:$0xff]
      %v4600 = vld [vmem:[#allocation2 + $0x4d] sm:$0xff]
      %v4601 = vld [vmem:[#allocation2 + $0x55] sm:$0xff]
      %v4602 = vld [vmem:[#allocation2 + $0x5d] sm:$0xff]
      %v4603 = vld [vmem:[#allocation2 + $0x65] sm:$0xff]
      %v4604 = vld [vmem:[#allocation2 + $0x6d] sm:$0xff]
      %v4605 = vld [vmem:[#allocation2 + $0x75] sm:$0xff]
      %v4606 = vld [vmem:[#allocation2 + $0x7d] sm:$0xff]
      %v4607 = vld [vmem:[#allocation2 + $0x85] sm:$0xff]
      %v4608 = vld [vmem:[#allocation2 + $0x8d] sm:$0xff]
      %v4609 = vld [vmem:[#allocation2 + $0x95] sm:$0xff]
      %v4610 = vld [vmem:[#allocation2 + $0x9d] sm:$0xff]
      %v4611 = vld [vmem:[#allocation2 + $0xa5] sm:$0xff]
      %v4612 = vld [vmem:[#allocation2 + $0xad] sm:$0xff]
      %v4613 = vld [vmem:[#allocation2 + $0xb5] sm:$0xff]
      %v4614 = vld [vmem:[#allocation2 + $0xbd] sm:$0xff]
      %v4615 = vld [vmem:[#allocation2 + $0xc5] sm:$0xff]
      %v4616 = vld [vmem:[#allocation2 + $0xcd] sm:$0xff]
      %v4617 = vld [vmem:[#allocation2 + $0xd5] sm:$0xff]
      %v4618 = vld [vmem:[#allocation2 + $0xdd] sm:$0xff]
      %v4619 = vld [vmem:[#allocation2 + $0xe5] sm:$0xff]
      %v4620 = vld [vmem:[#allocation2 + $0xed] sm:$0xff]
      %v4621 = vld [vmem:[#allocation2 + $0xf5] sm:$0xff]
      %v4622 = vld [vmem:[#allocation2 + $0xfd] sm:$0xff]
      %v4623 = vld [vmem:[#allocation2 + $0x105] sm:$0xff]
      %v4624 = vld [vmem:[#allocation2 + $0x10d] sm:$0xff]
      %v4625 = vld [vmem:[#allocation2 + $0x115] sm:$0xff]
      %v4626 = vld [vmem:[#allocation2 + $0x11d] sm:$0xff]
      %v4627 = vld [vmem:[#allocation2 + $0x125] sm:$0xff]
      %v4628 = vld [vmem:[#allocation2 + $0x12d] sm:$0xff]
      %v4629 = vld [vmem:[#allocation2 + $0x135] sm:$0xff]
      %v4630 = vld [vmem:[#allocation2 + $0x13d] sm:$0xff]
      %v4631 = vpack.c.bf16 %v4596, %v4595
      %v4632 = vpack.c.bf16 %v4598, %v4597
      %v4633 = vpack.c.bf16 %v4600, %v4599
      %v4634 = vpack.c.bf16 %v4602, %v4601
      %v4635 = vpack.c.bf16 %v4604, %v4603
      %v4636 = vpack.c.bf16 %v4606, %v4605
      %v4637 = vpack.c.bf16 %v4608, %v4607
      %v4638 = vpack.c.bf16 %v4610, %v4609
      %v4639 = vpack.c.bf16 %v4612, %v4611
      %v4640 = vpack.c.bf16 %v4614, %v4613
      %v4641 = vpack.c.bf16 %v4616, %v4615
      %v4642 = vpack.c.bf16 %v4618, %v4617
      %v4643 = vpack.c.bf16 %v4620, %v4619
      %v4644 = vpack.c.bf16 %v4622, %v4621
      %v4645 = vpack.c.bf16 %v4624, %v4623
      %v4646 = vpack.c.bf16 %v4626, %v4625
      %v4647 = vpack.c.bf16 %v4628, %v4627
      %v4648 = vpack.c.bf16 %v4630, %v4629
      %s4649 = scalar_lea.vmem %s3, 112
      %v4650 = vld [vmem:[%s4649] sm:$0xf]
      %v4651 = vld [vmem:[%s4649 + $0x4] sm:$0xf]
      %v4652 = vld [vmem:[%s4649 + $0x8] sm:$0xf]
      %v4653 = vld [vmem:[%s4649 + $0xc] sm:$0xf]
      %v4658 = vunpack.c.l.b16 %v4650
      %v4659 = vunpack.c.l.b16 %v4651
      %v4660 = vunpack.c.l.b16 %v4652
      %v4661 = vunpack.c.l.b16 %v4653
      %v4662 = vpack.c.b16 %v4659, %v4658
      %v4663 = vpack.c.b16 %v4661, %v4660
      %v4667 = vsel %vm2769, %v4631, 0
      %v4670 = vsel %vm2769, %v4632, 0
      %v4673 = vsel %vm2769, %v4633, 0
      %v4676 = vsel %vm2769, %v4634, 0
      %v4679 = vsel %vm2769, %v4635, 0
      %v4682 = vsel %vm2769, %v4636, 0
      %v4685 = vsel %vm2769, %v4637, 0
      %v4688 = vsel %vm2769, %v4638, 0
      %v4691 = vsel %vm2769, %v4639, 0
      %v4694 = vsel %vm2769, %v4640, 0
      %v4697 = vsel %vm2769, %v4641, 0
      %v4700 = vsel %vm2769, %v4642, 0
      %v4703 = vsel %vm2769, %v4643, 0
      %v4706 = vsel %vm2769, %v4644, 0
      %v4709 = vsel %vm2769, %v4645, 0
      %v4712 = vsel %vm2769, %v4646, 0
      %v4715 = vsel %vm2769, %v4647, 0
      %v4718 = vsel %vm2769, %v4648, 0
      %4720 = vmatpush.bf16.msra.mxu0 0
      %4721 = vmatpush.bf16.msra.mxu0 0
      %4722 = vmatpush.bf16.msra.mxu0 0
      %4723 = vmatpush.bf16.msra.mxu0 0
      %4724 = vmatpush.bf16.msra.mxu0 0
      %4725 = vmatpush.bf16.msra.mxu0 0
      %4726 = vmatpush.bf16.msra.mxu0 %v4663
      %4727 = vmatpush.bf16.msra.mxu0 %v4662
      %4728 = vmatmul.bf16.gmra.mxu0 %v4667
      %v4729 = vpop.f32.mrf.mxu0
      %v4730 = vadd.f32 0.0, %v4729
      %v4731 = vpop.f32.mrf.mxu0
      %v4732 = vadd.f32 0.0, %v4731
      %4733 = vmatmul.bf16.gmra.mxu0 %v4670
      %v4734 = vpop.f32.mrf.mxu0
      %v4735 = vadd.f32 0.0, %v4734
      %v4736 = vpop.f32.mrf.mxu0
      %v4737 = vadd.f32 0.0, %v4736
      %4738 = vmatmul.bf16.gmra.mxu0 %v4673
      %v4739 = vpop.f32.mrf.mxu0
      %v4740 = vadd.f32 0.0, %v4739
      %v4741 = vpop.f32.mrf.mxu0
      %v4742 = vadd.f32 0.0, %v4741
      %4743 = vmatmul.bf16.gmra.mxu0 %v4676
      %v4744 = vpop.f32.mrf.mxu0
      %v4745 = vadd.f32 0.0, %v4744
      %v4746 = vpop.f32.mrf.mxu0
      %v4747 = vadd.f32 0.0, %v4746
      %4748 = vmatmul.bf16.gmra.mxu0 %v4679
      %v4749 = vpop.f32.mrf.mxu0
      %v4750 = vadd.f32 0.0, %v4749
      %v4751 = vpop.f32.mrf.mxu0
      %v4752 = vadd.f32 0.0, %v4751
      %4753 = vmatmul.bf16.gmra.mxu0 %v4682
      %v4754 = vpop.f32.mrf.mxu0
      %v4755 = vadd.f32 0.0, %v4754
      %v4756 = vpop.f32.mrf.mxu0
      %v4757 = vadd.f32 0.0, %v4756
      %4758 = vmatmul.bf16.gmra.mxu0 %v4685
      %v4759 = vpop.f32.mrf.mxu0
      %v4760 = vadd.f32 0.0, %v4759
      %v4761 = vpop.f32.mrf.mxu0
      %v4762 = vadd.f32 0.0, %v4761
      %4763 = vmatmul.bf16.gmra.mxu0 %v4688
      %v4764 = vpop.f32.mrf.mxu0
      %v4765 = vadd.f32 0.0, %v4764
      %v4766 = vpop.f32.mrf.mxu0
      %v4767 = vadd.f32 0.0, %v4766
      %4768 = vmatmul.bf16.gmra.mxu0 %v4691
      %v4769 = vpop.f32.mrf.mxu0
      %v4770 = vadd.f32 0.0, %v4769
      %v4771 = vpop.f32.mrf.mxu0
      %v4772 = vadd.f32 0.0, %v4771
      %4773 = vmatmul.bf16.gmra.mxu0 %v4694
      %v4774 = vpop.f32.mrf.mxu0
      %v4775 = vadd.f32 0.0, %v4774
      %v4776 = vpop.f32.mrf.mxu0
      %v4777 = vadd.f32 0.0, %v4776
      %4778 = vmatmul.bf16.gmra.mxu0 %v4697
      %v4779 = vpop.f32.mrf.mxu0
      %v4780 = vadd.f32 0.0, %v4779
      %v4781 = vpop.f32.mrf.mxu0
      %v4782 = vadd.f32 0.0, %v4781
      %4783 = vmatmul.bf16.gmra.mxu0 %v4700
      %v4784 = vpop.f32.mrf.mxu0
      %v4785 = vadd.f32 0.0, %v4784
      %v4786 = vpop.f32.mrf.mxu0
      %v4787 = vadd.f32 0.0, %v4786
      %4788 = vmatmul.bf16.gmra.mxu0 %v4703
      %v4789 = vpop.f32.mrf.mxu0
      %v4790 = vadd.f32 0.0, %v4789
      %v4791 = vpop.f32.mrf.mxu0
      %v4792 = vadd.f32 0.0, %v4791
      %4793 = vmatmul.bf16.gmra.mxu0 %v4706
      %v4794 = vpop.f32.mrf.mxu0
      %v4795 = vadd.f32 0.0, %v4794
      %v4796 = vpop.f32.mrf.mxu0
      %v4797 = vadd.f32 0.0, %v4796
      %4798 = vmatmul.bf16.gmra.mxu0 %v4709
      %v4799 = vpop.f32.mrf.mxu0
      %v4800 = vadd.f32 0.0, %v4799
      %v4801 = vpop.f32.mrf.mxu0
      %v4802 = vadd.f32 0.0, %v4801
      %4803 = vmatmul.bf16.gmra.mxu0 %v4712
      %v4804 = vpop.f32.mrf.mxu0
      %v4805 = vadd.f32 0.0, %v4804
      %v4806 = vpop.f32.mrf.mxu0
      %v4807 = vadd.f32 0.0, %v4806
      %4808 = vmatmul.bf16.gmra.mxu0 %v4715
      %v4809 = vpop.f32.mrf.mxu0
      %v4810 = vadd.f32 0.0, %v4809
      %v4811 = vpop.f32.mrf.mxu0
      %v4812 = vadd.f32 0.0, %v4811
      %4813 = vmatmul.bf16.gmra.mxu0 %v4718
      %v4814 = vpop.f32.mrf.mxu0
      %v4815 = vadd.f32 0.0, %v4814
      %v4816 = vpop.f32.mrf.mxu0
      %v4817 = vadd.f32 0.0, %v4816
      %4818 = vdwg.mxu0
      %v4819 = vadd.f32 %v4559, %v4730
      %v4820 = vadd.f32 %v4560, %v4732
      %v4821 = vadd.f32 %v4561, %v4735
      %v4822 = vadd.f32 %v4562, %v4737
      %v4823 = vadd.f32 %v4563, %v4740
      %v4824 = vadd.f32 %v4564, %v4742
      %v4825 = vadd.f32 %v4565, %v4745
      %v4826 = vadd.f32 %v4566, %v4747
      %v4827 = vadd.f32 %v4567, %v4750
      %v4828 = vadd.f32 %v4568, %v4752
      %v4829 = vadd.f32 %v4569, %v4755
      %v4830 = vadd.f32 %v4570, %v4757
      %v4831 = vadd.f32 %v4571, %v4760
      %v4832 = vadd.f32 %v4572, %v4762
      %v4833 = vadd.f32 %v4573, %v4765
      %v4834 = vadd.f32 %v4574, %v4767
      %v4835 = vadd.f32 %v4575, %v4770
      %v4836 = vadd.f32 %v4576, %v4772
      %v4837 = vadd.f32 %v4577, %v4775
      %v4838 = vadd.f32 %v4578, %v4777
      %v4839 = vadd.f32 %v4579, %v4780
      %v4840 = vadd.f32 %v4580, %v4782
      %v4841 = vadd.f32 %v4581, %v4785
      %v4842 = vadd.f32 %v4582, %v4787
      %v4843 = vadd.f32 %v4583, %v4790
      %v4844 = vadd.f32 %v4584, %v4792
      %v4845 = vadd.f32 %v4585, %v4795
      %v4846 = vadd.f32 %v4586, %v4797
      %v4847 = vadd.f32 %v4587, %v4800
      %v4848 = vadd.f32 %v4588, %v4802
      %v4849 = vadd.f32 %v4589, %v4805
      %v4850 = vadd.f32 %v4590, %v4807
      %v4851 = vadd.f32 %v4591, %v4810
      %v4852 = vadd.f32 %v4592, %v4812
      %v4853 = vadd.f32 %v4593, %v4815
      %v4854 = vadd.f32 %v4594, %v4817
      %v4855 = vld [vmem:[#allocation2 + $0x26] sm:$0xff]
      %v4856 = vld [vmem:[#allocation2 + $0x2e] sm:$0xff]
      %v4857 = vld [vmem:[#allocation2 + $0x36] sm:$0xff]
      %v4858 = vld [vmem:[#allocation2 + $0x3e] sm:$0xff]
      %v4859 = vld [vmem:[#allocation2 + $0x46] sm:$0xff]
      %v4860 = vld [vmem:[#allocation2 + $0x4e] sm:$0xff]
      %v4861 = vld [vmem:[#allocation2 + $0x56] sm:$0xff]
      %v4862 = vld [vmem:[#allocation2 + $0x5e] sm:$0xff]
      %v4863 = vld [vmem:[#allocation2 + $0x66] sm:$0xff]
      %v4864 = vld [vmem:[#allocation2 + $0x6e] sm:$0xff]
      %v4865 = vld [vmem:[#allocation2 + $0x76] sm:$0xff]
      %v4866 = vld [vmem:[#allocation2 + $0x7e] sm:$0xff]
      %v4867 = vld [vmem:[#allocation2 + $0x86] sm:$0xff]
      %v4868 = vld [vmem:[#allocation2 + $0x8e] sm:$0xff]
      %v4869 = vld [vmem:[#allocation2 + $0x96] sm:$0xff]
      %v4870 = vld [vmem:[#allocation2 + $0x9e] sm:$0xff]
      %v4871 = vld [vmem:[#allocation2 + $0xa6] sm:$0xff]
      %v4872 = vld [vmem:[#allocation2 + $0xae] sm:$0xff]
      %v4873 = vld [vmem:[#allocation2 + $0xb6] sm:$0xff]
      %v4874 = vld [vmem:[#allocation2 + $0xbe] sm:$0xff]
      %v4875 = vld [vmem:[#allocation2 + $0xc6] sm:$0xff]
      %v4876 = vld [vmem:[#allocation2 + $0xce] sm:$0xff]
      %v4877 = vld [vmem:[#allocation2 + $0xd6] sm:$0xff]
      %v4878 = vld [vmem:[#allocation2 + $0xde] sm:$0xff]
      %v4879 = vld [vmem:[#allocation2 + $0xe6] sm:$0xff]
      %v4880 = vld [vmem:[#allocation2 + $0xee] sm:$0xff]
      %v4881 = vld [vmem:[#allocation2 + $0xf6] sm:$0xff]
      %v4882 = vld [vmem:[#allocation2 + $0xfe] sm:$0xff]
      %v4883 = vld [vmem:[#allocation2 + $0x106] sm:$0xff]
      %v4884 = vld [vmem:[#allocation2 + $0x10e] sm:$0xff]
      %v4885 = vld [vmem:[#allocation2 + $0x116] sm:$0xff]
      %v4886 = vld [vmem:[#allocation2 + $0x11e] sm:$0xff]
      %v4887 = vld [vmem:[#allocation2 + $0x126] sm:$0xff]
      %v4888 = vld [vmem:[#allocation2 + $0x12e] sm:$0xff]
      %v4889 = vld [vmem:[#allocation2 + $0x136] sm:$0xff]
      %v4890 = vld [vmem:[#allocation2 + $0x13e] sm:$0xff]
      %v4891 = vpack.c.bf16 %v4856, %v4855
      %v4892 = vpack.c.bf16 %v4858, %v4857
      %v4893 = vpack.c.bf16 %v4860, %v4859
      %v4894 = vpack.c.bf16 %v4862, %v4861
      %v4895 = vpack.c.bf16 %v4864, %v4863
      %v4896 = vpack.c.bf16 %v4866, %v4865
      %v4897 = vpack.c.bf16 %v4868, %v4867
      %v4898 = vpack.c.bf16 %v4870, %v4869
      %v4899 = vpack.c.bf16 %v4872, %v4871
      %v4900 = vpack.c.bf16 %v4874, %v4873
      %v4901 = vpack.c.bf16 %v4876, %v4875
      %v4902 = vpack.c.bf16 %v4878, %v4877
      %v4903 = vpack.c.bf16 %v4880, %v4879
      %v4904 = vpack.c.bf16 %v4882, %v4881
      %v4905 = vpack.c.bf16 %v4884, %v4883
      %v4906 = vpack.c.bf16 %v4886, %v4885
      %v4907 = vpack.c.bf16 %v4888, %v4887
      %v4908 = vpack.c.bf16 %v4890, %v4889
      %s4909 = scalar_lea.vmem %s3, 128
      %v4910 = vld [vmem:[%s4909] sm:$0xf]
      %v4911 = vld [vmem:[%s4909 + $0x4] sm:$0xf]
      %v4912 = vld [vmem:[%s4909 + $0x8] sm:$0xf]
      %v4913 = vld [vmem:[%s4909 + $0xc] sm:$0xf]
      %v4918 = vunpack.c.l.b16 %v4910
      %v4919 = vunpack.c.l.b16 %v4911
      %v4920 = vunpack.c.l.b16 %v4912
      %v4921 = vunpack.c.l.b16 %v4913
      %v4922 = vpack.c.b16 %v4919, %v4918
      %v4923 = vpack.c.b16 %v4921, %v4920
      %v4927 = vsel %vm2769, %v4891, 0
      %v4930 = vsel %vm2769, %v4892, 0
      %v4933 = vsel %vm2769, %v4893, 0
      %v4936 = vsel %vm2769, %v4894, 0
      %v4939 = vsel %vm2769, %v4895, 0
      %v4942 = vsel %vm2769, %v4896, 0
      %v4945 = vsel %vm2769, %v4897, 0
      %v4948 = vsel %vm2769, %v4898, 0
      %v4951 = vsel %vm2769, %v4899, 0
      %v4954 = vsel %vm2769, %v4900, 0
      %v4957 = vsel %vm2769, %v4901, 0
      %v4960 = vsel %vm2769, %v4902, 0
      %v4963 = vsel %vm2769, %v4903, 0
      %v4966 = vsel %vm2769, %v4904, 0
      %v4969 = vsel %vm2769, %v4905, 0
      %v4972 = vsel %vm2769, %v4906, 0
      %v4975 = vsel %vm2769, %v4907, 0
      %v4978 = vsel %vm2769, %v4908, 0
      %4980 = vmatpush.bf16.msra.mxu0 0
      %4981 = vmatpush.bf16.msra.mxu0 0
      %4982 = vmatpush.bf16.msra.mxu0 0
      %4983 = vmatpush.bf16.msra.mxu0 0
      %4984 = vmatpush.bf16.msra.mxu0 0
      %4985 = vmatpush.bf16.msra.mxu0 0
      %4986 = vmatpush.bf16.msra.mxu0 %v4923
      %4987 = vmatpush.bf16.msra.mxu0 %v4922
      %4988 = vmatmul.bf16.gmra.mxu0 %v4927
      %v4989 = vpop.f32.mrf.mxu0
      %v4990 = vadd.f32 0.0, %v4989
      %v4991 = vpop.f32.mrf.mxu0
      %v4992 = vadd.f32 0.0, %v4991
      %4993 = vmatmul.bf16.gmra.mxu0 %v4930
      %v4994 = vpop.f32.mrf.mxu0
      %v4995 = vadd.f32 0.0, %v4994
      %v4996 = vpop.f32.mrf.mxu0
      %v4997 = vadd.f32 0.0, %v4996
      %4998 = vmatmul.bf16.gmra.mxu0 %v4933
      %v4999 = vpop.f32.mrf.mxu0
      %v5000 = vadd.f32 0.0, %v4999
      %v5001 = vpop.f32.mrf.mxu0
      %v5002 = vadd.f32 0.0, %v5001
      %5003 = vmatmul.bf16.gmra.mxu0 %v4936
      %v5004 = vpop.f32.mrf.mxu0
      %v5005 = vadd.f32 0.0, %v5004
      %v5006 = vpop.f32.mrf.mxu0
      %v5007 = vadd.f32 0.0, %v5006
      %5008 = vmatmul.bf16.gmra.mxu0 %v4939
      %v5009 = vpop.f32.mrf.mxu0
      %v5010 = vadd.f32 0.0, %v5009
      %v5011 = vpop.f32.mrf.mxu0
      %v5012 = vadd.f32 0.0, %v5011
      %5013 = vmatmul.bf16.gmra.mxu0 %v4942
      %v5014 = vpop.f32.mrf.mxu0
      %v5015 = vadd.f32 0.0, %v5014
      %v5016 = vpop.f32.mrf.mxu0
      %v5017 = vadd.f32 0.0, %v5016
      %5018 = vmatmul.bf16.gmra.mxu0 %v4945
      %v5019 = vpop.f32.mrf.mxu0
      %v5020 = vadd.f32 0.0, %v5019
      %v5021 = vpop.f32.mrf.mxu0
      %v5022 = vadd.f32 0.0, %v5021
      %5023 = vmatmul.bf16.gmra.mxu0 %v4948
      %v5024 = vpop.f32.mrf.mxu0
      %v5025 = vadd.f32 0.0, %v5024
      %v5026 = vpop.f32.mrf.mxu0
      %v5027 = vadd.f32 0.0, %v5026
      %5028 = vmatmul.bf16.gmra.mxu0 %v4951
      %v5029 = vpop.f32.mrf.mxu0
      %v5030 = vadd.f32 0.0, %v5029
      %v5031 = vpop.f32.mrf.mxu0
      %v5032 = vadd.f32 0.0, %v5031
      %5033 = vmatmul.bf16.gmra.mxu0 %v4954
      %v5034 = vpop.f32.mrf.mxu0
      %v5035 = vadd.f32 0.0, %v5034
      %v5036 = vpop.f32.mrf.mxu0
      %v5037 = vadd.f32 0.0, %v5036
      %5038 = vmatmul.bf16.gmra.mxu0 %v4957
      %v5039 = vpop.f32.mrf.mxu0
      %v5040 = vadd.f32 0.0, %v5039
      %v5041 = vpop.f32.mrf.mxu0
      %v5042 = vadd.f32 0.0, %v5041
      %5043 = vmatmul.bf16.gmra.mxu0 %v4960
      %v5044 = vpop.f32.mrf.mxu0
      %v5045 = vadd.f32 0.0, %v5044
      %v5046 = vpop.f32.mrf.mxu0
      %v5047 = vadd.f32 0.0, %v5046
      %5048 = vmatmul.bf16.gmra.mxu0 %v4963
      %v5049 = vpop.f32.mrf.mxu0
      %v5050 = vadd.f32 0.0, %v5049
      %v5051 = vpop.f32.mrf.mxu0
      %v5052 = vadd.f32 0.0, %v5051
      %5053 = vmatmul.bf16.gmra.mxu0 %v4966
      %v5054 = vpop.f32.mrf.mxu0
      %v5055 = vadd.f32 0.0, %v5054
      %v5056 = vpop.f32.mrf.mxu0
      %v5057 = vadd.f32 0.0, %v5056
      %5058 = vmatmul.bf16.gmra.mxu0 %v4969
      %v5059 = vpop.f32.mrf.mxu0
      %v5060 = vadd.f32 0.0, %v5059
      %v5061 = vpop.f32.mrf.mxu0
      %v5062 = vadd.f32 0.0, %v5061
      %5063 = vmatmul.bf16.gmra.mxu0 %v4972
      %v5064 = vpop.f32.mrf.mxu0
      %v5065 = vadd.f32 0.0, %v5064
      %v5066 = vpop.f32.mrf.mxu0
      %v5067 = vadd.f32 0.0, %v5066
      %5068 = vmatmul.bf16.gmra.mxu0 %v4975
      %v5069 = vpop.f32.mrf.mxu0
      %v5070 = vadd.f32 0.0, %v5069
      %v5071 = vpop.f32.mrf.mxu0
      %v5072 = vadd.f32 0.0, %v5071
      %5073 = vmatmul.bf16.gmra.mxu0 %v4978
      %v5074 = vpop.f32.mrf.mxu0
      %v5075 = vadd.f32 0.0, %v5074
      %v5076 = vpop.f32.mrf.mxu0
      %v5077 = vadd.f32 0.0, %v5076
      %5078 = vdwg.mxu0
      %v5079 = vadd.f32 %v4819, %v4990
      %v5080 = vadd.f32 %v4820, %v4992
      %v5081 = vadd.f32 %v4821, %v4995
      %v5082 = vadd.f32 %v4822, %v4997
      %v5083 = vadd.f32 %v4823, %v5000
      %v5084 = vadd.f32 %v4824, %v5002
      %v5085 = vadd.f32 %v4825, %v5005
      %v5086 = vadd.f32 %v4826, %v5007
      %v5087 = vadd.f32 %v4827, %v5010
      %v5088 = vadd.f32 %v4828, %v5012
      %v5089 = vadd.f32 %v4829, %v5015
      %v5090 = vadd.f32 %v4830, %v5017
      %v5091 = vadd.f32 %v4831, %v5020
      %v5092 = vadd.f32 %v4832, %v5022
      %v5093 = vadd.f32 %v4833, %v5025
      %v5094 = vadd.f32 %v4834, %v5027
      %v5095 = vadd.f32 %v4835, %v5030
      %v5096 = vadd.f32 %v4836, %v5032
      %v5097 = vadd.f32 %v4837, %v5035
      %v5098 = vadd.f32 %v4838, %v5037
      %v5099 = vadd.f32 %v4839, %v5040
      %v5100 = vadd.f32 %v4840, %v5042
      %v5101 = vadd.f32 %v4841, %v5045
      %v5102 = vadd.f32 %v4842, %v5047
      %v5103 = vadd.f32 %v4843, %v5050
      %v5104 = vadd.f32 %v4844, %v5052
      %v5105 = vadd.f32 %v4845, %v5055
      %v5106 = vadd.f32 %v4846, %v5057
      %v5107 = vadd.f32 %v4847, %v5060
      %v5108 = vadd.f32 %v4848, %v5062
      %v5109 = vadd.f32 %v4849, %v5065
      %v5110 = vadd.f32 %v4850, %v5067
      %v5111 = vadd.f32 %v4851, %v5070
      %v5112 = vadd.f32 %v4852, %v5072
      %v5113 = vadd.f32 %v4853, %v5075
      %v5114 = vadd.f32 %v4854, %v5077
      %v5115 = vld [vmem:[%s4] sm:$0x1]
      %v5117 = vperm.slane %v5115, 0
      %v5119 = vadd.f32 %v5079, %v5117
      %v5120 = vadd.f32 %v5080, %v5117
      %v5121 = vadd.f32 %v5081, %v5117
      %v5122 = vadd.f32 %v5082, %v5117
      %v5123 = vadd.f32 %v5083, %v5117
      %v5124 = vadd.f32 %v5084, %v5117
      %v5125 = vadd.f32 %v5085, %v5117
      %v5126 = vadd.f32 %v5086, %v5117
      %v5127 = vadd.f32 %v5087, %v5117
      %v5128 = vadd.f32 %v5088, %v5117
      %v5129 = vadd.f32 %v5089, %v5117
      %v5130 = vadd.f32 %v5090, %v5117
      %v5131 = vadd.f32 %v5091, %v5117
      %v5132 = vadd.f32 %v5092, %v5117
      %v5133 = vadd.f32 %v5093, %v5117
      %v5134 = vadd.f32 %v5094, %v5117
      %v5135 = vadd.f32 %v5095, %v5117
      %v5136 = vadd.f32 %v5096, %v5117
      %v5137 = vadd.f32 %v5097, %v5117
      %v5138 = vadd.f32 %v5098, %v5117
      %v5139 = vadd.f32 %v5099, %v5117
      %v5140 = vadd.f32 %v5100, %v5117
      %v5141 = vadd.f32 %v5101, %v5117
      %v5142 = vadd.f32 %v5102, %v5117
      %v5143 = vadd.f32 %v5103, %v5117
      %v5144 = vadd.f32 %v5104, %v5117
      %v5145 = vadd.f32 %v5105, %v5117
      %v5146 = vadd.f32 %v5106, %v5117
      %v5147 = vadd.f32 %v5107, %v5117
      %v5148 = vadd.f32 %v5108, %v5117
      %v5149 = vadd.f32 %v5109, %v5117
      %v5150 = vadd.f32 %v5110, %v5117
      %v5151 = vadd.f32 %v5111, %v5117
      %v5152 = vadd.f32 %v5112, %v5117
      %v5153 = vadd.f32 %v5113, %v5117
      %v5154 = vadd.f32 %v5114, %v5117
      %v5155 = vmax.f32 %v5119, 0.0
      %v5156 = vmax.f32 %v5120, 0.0
      %v5157 = vmax.f32 %v5121, 0.0
      %v5158 = vmax.f32 %v5122, 0.0
      %v5159 = vmax.f32 %v5123, 0.0
      %v5160 = vmax.f32 %v5124, 0.0
      %v5161 = vmax.f32 %v5125, 0.0
      %v5162 = vmax.f32 %v5126, 0.0
      %v5163 = vmax.f32 %v5127, 0.0
      %v5164 = vmax.f32 %v5128, 0.0
      %v5165 = vmax.f32 %v5129, 0.0
      %v5166 = vmax.f32 %v5130, 0.0
      %v5167 = vmax.f32 %v5131, 0.0
      %v5168 = vmax.f32 %v5132, 0.0
      %v5169 = vmax.f32 %v5133, 0.0
      %v5170 = vmax.f32 %v5134, 0.0
      %v5171 = vmax.f32 %v5135, 0.0
      %v5172 = vmax.f32 %v5136, 0.0
      %v5173 = vmax.f32 %v5137, 0.0
      %v5174 = vmax.f32 %v5138, 0.0
      %v5175 = vmax.f32 %v5139, 0.0
      %v5176 = vmax.f32 %v5140, 0.0
      %v5177 = vmax.f32 %v5141, 0.0
      %v5178 = vmax.f32 %v5142, 0.0
      %v5179 = vmax.f32 %v5143, 0.0
      %v5180 = vmax.f32 %v5144, 0.0
      %v5181 = vmax.f32 %v5145, 0.0
      %v5182 = vmax.f32 %v5146, 0.0
      %v5183 = vmax.f32 %v5147, 0.0
      %v5184 = vmax.f32 %v5148, 0.0
      %v5185 = vmax.f32 %v5149, 0.0
      %v5186 = vmax.f32 %v5150, 0.0
      %v5187 = vmax.f32 %v5151, 0.0
      %v5188 = vmax.f32 %v5152, 0.0
      %v5189 = vmax.f32 %v5153, 0.0
      %v5190 = vmax.f32 %v5154, 0.0
      %5191 = vst.msk [vmem:[#allocation3] sm:$0xff] %vm2769, %v5155
      %5192 = vst.msk [vmem:[#allocation3 + $0x8] sm:$0xff] %vm2769, %v5156
      %5193 = vst.msk [vmem:[#allocation3 + $0x10] sm:$0xff] %vm2769, %v5157
      %5194 = vst.msk [vmem:[#allocation3 + $0x18] sm:$0xff] %vm2769, %v5158
      %5195 = vst.msk [vmem:[#allocation3 + $0x20] sm:$0xff] %vm2769, %v5159
      %5196 = vst.msk [vmem:[#allocation3 + $0x28] sm:$0xff] %vm2769, %v5160
      %5197 = vst.msk [vmem:[#allocation3 + $0x30] sm:$0xff] %vm2769, %v5161
      %5198 = vst.msk [vmem:[#allocation3 + $0x38] sm:$0xff] %vm2769, %v5162
      %5199 = vst.msk [vmem:[#allocation3 + $0x40] sm:$0xff] %vm2769, %v5163
      %5200 = vst.msk [vmem:[#allocation3 + $0x48] sm:$0xff] %vm2769, %v5164
      %5201 = vst.msk [vmem:[#allocation3 + $0x50] sm:$0xff] %vm2769, %v5165
      %5202 = vst.msk [vmem:[#allocation3 + $0x58] sm:$0xff] %vm2769, %v5166
      %5203 = vst.msk [vmem:[#allocation3 + $0x60] sm:$0xff] %vm2769, %v5167
      %5204 = vst.msk [vmem:[#allocation3 + $0x68] sm:$0xff] %vm2769, %v5168
      %5205 = vst.msk [vmem:[#allocation3 + $0x70] sm:$0xff] %vm2769, %v5169
      %5206 = vst.msk [vmem:[#allocation3 + $0x78] sm:$0xff] %vm2769, %v5170
      %5207 = vst.msk [vmem:[#allocation3 + $0x80] sm:$0xff] %vm2769, %v5171
      %5208 = vst.msk [vmem:[#allocation3 + $0x88] sm:$0xff] %vm2769, %v5172
      %5209 = vst.msk [vmem:[#allocation3 + $0x90] sm:$0xff] %vm2769, %v5173
      %5210 = vst.msk [vmem:[#allocation3 + $0x98] sm:$0xff] %vm2769, %v5174
      %5211 = vst.msk [vmem:[#allocation3 + $0xa0] sm:$0xff] %vm2769, %v5175
      %5212 = vst.msk [vmem:[#allocation3 + $0xa8] sm:$0xff] %vm2769, %v5176
      %5213 = vst.msk [vmem:[#allocation3 + $0xb0] sm:$0xff] %vm2769, %v5177
      %5214 = vst.msk [vmem:[#allocation3 + $0xb8] sm:$0xff] %vm2769, %v5178
      %5215 = vst.msk [vmem:[#allocation3 + $0xc0] sm:$0xff] %vm2769, %v5179
      %5216 = vst.msk [vmem:[#allocation3 + $0xc8] sm:$0xff] %vm2769, %v5180
      %5217 = vst.msk [vmem:[#allocation3 + $0xd0] sm:$0xff] %vm2769, %v5181
      %5218 = vst.msk [vmem:[#allocation3 + $0xd8] sm:$0xff] %vm2769, %v5182
      %5219 = vst.msk [vmem:[#allocation3 + $0xe0] sm:$0xff] %vm2769, %v5183
      %5220 = vst.msk [vmem:[#allocation3 + $0xe8] sm:$0xff] %vm2769, %v5184
      %5221 = vst.msk [vmem:[#allocation3 + $0xf0] sm:$0xff] %vm2769, %v5185
      %5222 = vst.msk [vmem:[#allocation3 + $0xf8] sm:$0xff] %vm2769, %v5186
      %5223 = vst.msk [vmem:[#allocation3 + $0x100] sm:$0xff] %vm2769, %v5187
      %5224 = vst.msk [vmem:[#allocation3 + $0x108] sm:$0xff] %vm2769, %v5188
      %5225 = vst.msk [vmem:[#allocation3 + $0x110] sm:$0xff] %vm2769, %v5189
      %5226 = vst.msk [vmem:[#allocation3 + $0x118] sm:$0xff] %vm2769, %v5190
      %v5227 = vld [vmem:[#allocation3] sm:$0xff]
      %v5228 = vld [vmem:[#allocation3 + $0x8] sm:$0xff]
      %v5229 = vld [vmem:[#allocation3 + $0x10] sm:$0xff]
      %v5230 = vld [vmem:[#allocation3 + $0x18] sm:$0xff]
      %v5231 = vld [vmem:[#allocation3 + $0x20] sm:$0xff]
      %v5232 = vld [vmem:[#allocation3 + $0x28] sm:$0xff]
      %v5233 = vld [vmem:[#allocation3 + $0x30] sm:$0xff]
      %v5234 = vld [vmem:[#allocation3 + $0x38] sm:$0xff]
      %v5235 = vld [vmem:[#allocation3 + $0x40] sm:$0xff]
      %v5236 = vld [vmem:[#allocation3 + $0x48] sm:$0xff]
      %v5237 = vld [vmem:[#allocation3 + $0x50] sm:$0xff]
      %v5238 = vld [vmem:[#allocation3 + $0x58] sm:$0xff]
      %v5239 = vld [vmem:[#allocation3 + $0x60] sm:$0xff]
      %v5240 = vld [vmem:[#allocation3 + $0x68] sm:$0xff]
      %v5241 = vld [vmem:[#allocation3 + $0x70] sm:$0xff]
      %v5242 = vld [vmem:[#allocation3 + $0x78] sm:$0xff]
      %v5243 = vld [vmem:[#allocation3 + $0x80] sm:$0xff]
      %v5244 = vld [vmem:[#allocation3 + $0x88] sm:$0xff]
      %v5245 = vld [vmem:[#allocation3 + $0x90] sm:$0xff]
      %v5246 = vld [vmem:[#allocation3 + $0x98] sm:$0xff]
      %v5247 = vld [vmem:[#allocation3 + $0xa0] sm:$0xff]
      %v5248 = vld [vmem:[#allocation3 + $0xa8] sm:$0xff]
      %v5249 = vld [vmem:[#allocation3 + $0xb0] sm:$0xff]
      %v5250 = vld [vmem:[#allocation3 + $0xb8] sm:$0xff]
      %v5251 = vld [vmem:[#allocation3 + $0xc0] sm:$0xff]
      %v5252 = vld [vmem:[#allocation3 + $0xc8] sm:$0xff]
      %v5253 = vld [vmem:[#allocation3 + $0xd0] sm:$0xff]
      %v5254 = vld [vmem:[#allocation3 + $0xd8] sm:$0xff]
      %v5255 = vld [vmem:[#allocation3 + $0xe0] sm:$0xff]
      %v5256 = vld [vmem:[#allocation3 + $0xe8] sm:$0xff]
      %v5257 = vld [vmem:[#allocation3 + $0xf0] sm:$0xff]
      %v5258 = vld [vmem:[#allocation3 + $0xf8] sm:$0xff]
      %v5259 = vld [vmem:[#allocation3 + $0x100] sm:$0xff]
      %v5260 = vld [vmem:[#allocation3 + $0x108] sm:$0x1f]
      %v5261 = vld [vmem:[#allocation3 + $0x1] sm:$0xff]
      %v5262 = vld [vmem:[#allocation3 + $0x9] sm:$0xff]
      %v5263 = vld [vmem:[#allocation3 + $0x11] sm:$0xff]
      %v5264 = vld [vmem:[#allocation3 + $0x19] sm:$0xff]
      %v5265 = vld [vmem:[#allocation3 + $0x21] sm:$0xff]
      %v5266 = vld [vmem:[#allocation3 + $0x29] sm:$0xff]
      %v5267 = vld [vmem:[#allocation3 + $0x31] sm:$0xff]
      %v5268 = vld [vmem:[#allocation3 + $0x39] sm:$0xff]
      %v5269 = vld [vmem:[#allocation3 + $0x41] sm:$0xff]
      %v5270 = vld [vmem:[#allocation3 + $0x49] sm:$0xff]
      %v5271 = vld [vmem:[#allocation3 + $0x51] sm:$0xff]
      %v5272 = vld [vmem:[#allocation3 + $0x59] sm:$0xff]
      %v5273 = vld [vmem:[#allocation3 + $0x61] sm:$0xff]
      %v5274 = vld [vmem:[#allocation3 + $0x69] sm:$0xff]
      %v5275 = vld [vmem:[#allocation3 + $0x71] sm:$0xff]
      %v5276 = vld [vmem:[#allocation3 + $0x79] sm:$0xff]
      %v5277 = vld [vmem:[#allocation3 + $0x81] sm:$0xff]
      %v5278 = vld [vmem:[#allocation3 + $0x89] sm:$0xff]
      %v5279 = vld [vmem:[#allocation3 + $0x91] sm:$0xff]
      %v5280 = vld [vmem:[#allocation3 + $0x99] sm:$0xff]
      %v5281 = vld [vmem:[#allocation3 + $0xa1] sm:$0xff]
      %v5282 = vld [vmem:[#allocation3 + $0xa9] sm:$0xff]
      %v5283 = vld [vmem:[#allocation3 + $0xb1] sm:$0xff]
      %v5284 = vld [vmem:[#allocation3 + $0xb9] sm:$0xff]
      %v5285 = vld [vmem:[#allocation3 + $0xc1] sm:$0xff]
      %v5286 = vld [vmem:[#allocation3 + $0xc9] sm:$0xff]
      %v5287 = vld [vmem:[#allocation3 + $0xd1] sm:$0xff]
      %v5288 = vld [vmem:[#allocation3 + $0xd9] sm:$0xff]
      %v5289 = vld [vmem:[#allocation3 + $0xe1] sm:$0xff]
      %v5290 = vld [vmem:[#allocation3 + $0xe9] sm:$0xff]
      %v5291 = vld [vmem:[#allocation3 + $0xf1] sm:$0xff]
      %v5292 = vld [vmem:[#allocation3 + $0xf9] sm:$0xff]
      %v5293 = vld [vmem:[#allocation3 + $0x101] sm:$0xff]
      %v5294 = vld [vmem:[#allocation3 + $0x109] sm:$0x1f]
      %v5295 = vmax.f32 %v5227, %v5261
      %v5296 = vmax.f32 %v5228, %v5262
      %v5297 = vmax.f32 %v5229, %v5263
      %v5298 = vmax.f32 %v5230, %v5264
      %v5299 = vmax.f32 %v5231, %v5265
      %v5300 = vmax.f32 %v5232, %v5266
      %v5301 = vmax.f32 %v5233, %v5267
      %v5302 = vmax.f32 %v5234, %v5268
      %v5303 = vmax.f32 %v5235, %v5269
      %v5304 = vmax.f32 %v5236, %v5270
      %v5305 = vmax.f32 %v5237, %v5271
      %v5306 = vmax.f32 %v5238, %v5272
      %v5307 = vmax.f32 %v5239, %v5273
      %v5308 = vmax.f32 %v5240, %v5274
      %v5309 = vmax.f32 %v5241, %v5275
      %v5310 = vmax.f32 %v5242, %v5276
      %v5311 = vmax.f32 %v5243, %v5277
      %v5312 = vmax.f32 %v5244, %v5278
      %v5313 = vmax.f32 %v5245, %v5279
      %v5314 = vmax.f32 %v5246, %v5280
      %v5315 = vmax.f32 %v5247, %v5281
      %v5316 = vmax.f32 %v5248, %v5282
      %v5317 = vmax.f32 %v5249, %v5283
      %v5318 = vmax.f32 %v5250, %v5284
      %v5319 = vmax.f32 %v5251, %v5285
      %v5320 = vmax.f32 %v5252, %v5286
      %v5321 = vmax.f32 %v5253, %v5287
      %v5322 = vmax.f32 %v5254, %v5288
      %v5323 = vmax.f32 %v5255, %v5289
      %v5324 = vmax.f32 %v5256, %v5290
      %v5325 = vmax.f32 %v5257, %v5291
      %v5326 = vmax.f32 %v5258, %v5292
      %v5327 = vmax.f32 %v5259, %v5293
      %v5328 = vmax.f32 %v5260, %v5294
      %v5329 = vld [vmem:[#allocation3 + $0x12] sm:$0xff]
      %v5330 = vld [vmem:[#allocation3 + $0x1a] sm:$0xff]
      %v5331 = vld [vmem:[#allocation3 + $0x22] sm:$0xff]
      %v5332 = vld [vmem:[#allocation3 + $0x2a] sm:$0xff]
      %v5333 = vld [vmem:[#allocation3 + $0x32] sm:$0xff]
      %v5334 = vld [vmem:[#allocation3 + $0x3a] sm:$0xff]
      %v5335 = vld [vmem:[#allocation3 + $0x42] sm:$0xff]
      %v5336 = vld [vmem:[#allocation3 + $0x4a] sm:$0xff]
      %v5337 = vld [vmem:[#allocation3 + $0x52] sm:$0xff]
      %v5338 = vld [vmem:[#allocation3 + $0x5a] sm:$0xff]
      %v5339 = vld [vmem:[#allocation3 + $0x62] sm:$0xff]
      %v5340 = vld [vmem:[#allocation3 + $0x6a] sm:$0xff]
      %v5341 = vld [vmem:[#allocation3 + $0x72] sm:$0xff]
      %v5342 = vld [vmem:[#allocation3 + $0x7a] sm:$0xff]
      %v5343 = vld [vmem:[#allocation3 + $0x82] sm:$0xff]
      %v5344 = vld [vmem:[#allocation3 + $0x8a] sm:$0xff]
      %v5345 = vld [vmem:[#allocation3 + $0x92] sm:$0xff]
      %v5346 = vld [vmem:[#allocation3 + $0x9a] sm:$0xff]
      %v5347 = vld [vmem:[#allocation3 + $0xa2] sm:$0xff]
      %v5348 = vld [vmem:[#allocation3 + $0xaa] sm:$0xff]
      %v5349 = vld [vmem:[#allocation3 + $0xb2] sm:$0xff]
      %v5350 = vld [vmem:[#allocation3 + $0xba] sm:$0xff]
      %v5351 = vld [vmem:[#allocation3 + $0xc2] sm:$0xff]
      %v5352 = vld [vmem:[#allocation3 + $0xca] sm:$0xff]
      %v5353 = vld [vmem:[#allocation3 + $0xd2] sm:$0xff]
      %v5354 = vld [vmem:[#allocation3 + $0xda] sm:$0xff]
      %v5355 = vld [vmem:[#allocation3 + $0xe2] sm:$0xff]
      %v5356 = vld [vmem:[#allocation3 + $0xea] sm:$0xff]
      %v5357 = vld [vmem:[#allocation3 + $0xf2] sm:$0xff]
      %v5358 = vld [vmem:[#allocation3 + $0xfa] sm:$0xff]
      %v5359 = vld [vmem:[#allocation3 + $0x102] sm:$0xff]
      %v5360 = vld [vmem:[#allocation3 + $0x10a] sm:$0xff]
      %v5361 = vld [vmem:[#allocation3 + $0x112] sm:$0xff]
      %v5362 = vld [vmem:[#allocation3 + $0x11a] sm:$0x1f]
      %v5363 = vld [vmem:[#allocation3 + $0x13] sm:$0xff]
      %v5364 = vld [vmem:[#allocation3 + $0x1b] sm:$0xff]
      %v5365 = vld [vmem:[#allocation3 + $0x23] sm:$0xff]
      %v5366 = vld [vmem:[#allocation3 + $0x2b] sm:$0xff]
      %v5367 = vld [vmem:[#allocation3 + $0x33] sm:$0xff]
      %v5368 = vld [vmem:[#allocation3 + $0x3b] sm:$0xff]
      %v5369 = vld [vmem:[#allocation3 + $0x43] sm:$0xff]
      %v5370 = vld [vmem:[#allocation3 + $0x4b] sm:$0xff]
      %v5371 = vld [vmem:[#allocation3 + $0x53] sm:$0xff]
      %v5372 = vld [vmem:[#allocation3 + $0x5b] sm:$0xff]
      %v5373 = vld [vmem:[#allocation3 + $0x63] sm:$0xff]
      %v5374 = vld [vmem:[#allocation3 + $0x6b] sm:$0xff]
      %v5375 = vld [vmem:[#allocation3 + $0x73] sm:$0xff]
      %v5376 = vld [vmem:[#allocation3 + $0x7b] sm:$0xff]
      %v5377 = vld [vmem:[#allocation3 + $0x83] sm:$0xff]
      %v5378 = vld [vmem:[#allocation3 + $0x8b] sm:$0xff]
      %v5379 = vld [vmem:[#allocation3 + $0x93] sm:$0xff]
      %v5380 = vld [vmem:[#allocation3 + $0x9b] sm:$0xff]
      %v5381 = vld [vmem:[#allocation3 + $0xa3] sm:$0xff]
      %v5382 = vld [vmem:[#allocation3 + $0xab] sm:$0xff]
      %v5383 = vld [vmem:[#allocation3 + $0xb3] sm:$0xff]
      %v5384 = vld [vmem:[#allocation3 + $0xbb] sm:$0xff]
      %v5385 = vld [vmem:[#allocation3 + $0xc3] sm:$0xff]
      %v5386 = vld [vmem:[#allocation3 + $0xcb] sm:$0xff]
      %v5387 = vld [vmem:[#allocation3 + $0xd3] sm:$0xff]
      %v5388 = vld [vmem:[#allocation3 + $0xdb] sm:$0xff]
      %v5389 = vld [vmem:[#allocation3 + $0xe3] sm:$0xff]
      %v5390 = vld [vmem:[#allocation3 + $0xeb] sm:$0xff]
      %v5391 = vld [vmem:[#allocation3 + $0xf3] sm:$0xff]
      %v5392 = vld [vmem:[#allocation3 + $0xfb] sm:$0xff]
      %v5393 = vld [vmem:[#allocation3 + $0x103] sm:$0xff]
      %v5394 = vld [vmem:[#allocation3 + $0x10b] sm:$0xff]
      %v5395 = vld [vmem:[#allocation3 + $0x113] sm:$0xff]
      %v5396 = vld [vmem:[#allocation3 + $0x11b] sm:$0x1f]
      %v5397 = vmax.f32 %v5329, %v5363
      %v5398 = vmax.f32 %v5330, %v5364
      %v5399 = vmax.f32 %v5331, %v5365
      %v5400 = vmax.f32 %v5332, %v5366
      %v5401 = vmax.f32 %v5333, %v5367
      %v5402 = vmax.f32 %v5334, %v5368
      %v5403 = vmax.f32 %v5335, %v5369
      %v5404 = vmax.f32 %v5336, %v5370
      %v5405 = vmax.f32 %v5337, %v5371
      %v5406 = vmax.f32 %v5338, %v5372
      %v5407 = vmax.f32 %v5339, %v5373
      %v5408 = vmax.f32 %v5340, %v5374
      %v5409 = vmax.f32 %v5341, %v5375
      %v5410 = vmax.f32 %v5342, %v5376
      %v5411 = vmax.f32 %v5343, %v5377
      %v5412 = vmax.f32 %v5344, %v5378
      %v5413 = vmax.f32 %v5345, %v5379
      %v5414 = vmax.f32 %v5346, %v5380
      %v5415 = vmax.f32 %v5347, %v5381
      %v5416 = vmax.f32 %v5348, %v5382
      %v5417 = vmax.f32 %v5349, %v5383
      %v5418 = vmax.f32 %v5350, %v5384
      %v5419 = vmax.f32 %v5351, %v5385
      %v5420 = vmax.f32 %v5352, %v5386
      %v5421 = vmax.f32 %v5353, %v5387
      %v5422 = vmax.f32 %v5354, %v5388
      %v5423 = vmax.f32 %v5355, %v5389
      %v5424 = vmax.f32 %v5356, %v5390
      %v5425 = vmax.f32 %v5357, %v5391
      %v5426 = vmax.f32 %v5358, %v5392
      %v5427 = vmax.f32 %v5359, %v5393
      %v5428 = vmax.f32 %v5360, %v5394
      %v5429 = vmax.f32 %v5361, %v5395
      %v5430 = vmax.f32 %v5362, %v5396
      %v5431 = vmax.f32 %v5295, %v5397
      %v5432 = vmax.f32 %v5296, %v5398
      %v5433 = vmax.f32 %v5297, %v5399
      %v5434 = vmax.f32 %v5298, %v5400
      %v5435 = vmax.f32 %v5299, %v5401
      %v5436 = vmax.f32 %v5300, %v5402
      %v5437 = vmax.f32 %v5301, %v5403
      %v5438 = vmax.f32 %v5302, %v5404
      %v5439 = vmax.f32 %v5303, %v5405
      %v5440 = vmax.f32 %v5304, %v5406
      %v5441 = vmax.f32 %v5305, %v5407
      %v5442 = vmax.f32 %v5306, %v5408
      %v5443 = vmax.f32 %v5307, %v5409
      %v5444 = vmax.f32 %v5308, %v5410
      %v5445 = vmax.f32 %v5309, %v5411
      %v5446 = vmax.f32 %v5310, %v5412
      %v5447 = vmax.f32 %v5311, %v5413
      %v5448 = vmax.f32 %v5312, %v5414
      %v5449 = vmax.f32 %v5313, %v5415
      %v5450 = vmax.f32 %v5314, %v5416
      %v5451 = vmax.f32 %v5315, %v5417
      %v5452 = vmax.f32 %v5316, %v5418
      %v5453 = vmax.f32 %v5317, %v5419
      %v5454 = vmax.f32 %v5318, %v5420
      %v5455 = vmax.f32 %v5319, %v5421
      %v5456 = vmax.f32 %v5320, %v5422
      %v5457 = vmax.f32 %v5321, %v5423
      %v5458 = vmax.f32 %v5322, %v5424
      %v5459 = vmax.f32 %v5323, %v5425
      %v5460 = vmax.f32 %v5324, %v5426
      %v5461 = vmax.f32 %v5325, %v5427
      %v5462 = vmax.f32 %v5326, %v5428
      %v5463 = vmax.f32 %v5327, %v5429
      %v5464 = vmax.f32 %v5328, %v5430
      %v5465 = vld [vmem:[%s6] sm:$0xff]
      %v5466 = vld [vmem:[%s6 + $0x8] sm:$0xff]
      %v5467 = vld [vmem:[%s6 + $0x10] sm:$0xff]
      %v5468 = vld [vmem:[%s6 + $0x18] sm:$0xff]
      %v5469 = vld [vmem:[%s6 + $0x20] sm:$0xff]
      %v5470 = vld [vmem:[%s6 + $0x28] sm:$0xff]
      %v5471 = vld [vmem:[%s6 + $0x30] sm:$0xff]
      %v5472 = vld [vmem:[%s6 + $0x38] sm:$0xff]
      %v5473 = vld [vmem:[%s6 + $0x40] sm:$0xff]
      %v5474 = vld [vmem:[%s6 + $0x48] sm:$0xff]
      %v5475 = vld [vmem:[%s6 + $0x50] sm:$0xff]
      %v5476 = vld [vmem:[%s6 + $0x58] sm:$0xff]
      %v5477 = vld [vmem:[%s6 + $0x60] sm:$0xff]
      %v5478 = vld [vmem:[%s6 + $0x68] sm:$0xff]
      %v5479 = vld [vmem:[%s6 + $0x70] sm:$0xff]
      %v5480 = vld [vmem:[%s6 + $0x78] sm:$0xff]
      %v5481 = vld [vmem:[%s6 + $0x80] sm:$0xff]
      %v5482 = vld [vmem:[%s6 + $0x88] sm:$0xff]
      %v5483 = vld [vmem:[%s6 + $0x90] sm:$0xff]
      %v5484 = vld [vmem:[%s6 + $0x98] sm:$0xff]
      %v5485 = vld [vmem:[%s6 + $0xa0] sm:$0xff]
      %v5486 = vld [vmem:[%s6 + $0xa8] sm:$0xff]
      %v5487 = vld [vmem:[%s6 + $0xb0] sm:$0xff]
      %v5488 = vld [vmem:[%s6 + $0xb8] sm:$0xff]
      %v5489 = vld [vmem:[%s6 + $0xc0] sm:$0xff]
      %v5490 = vld [vmem:[%s6 + $0xc8] sm:$0xff]
      %v5491 = vld [vmem:[%s6 + $0xd0] sm:$0xff]
      %v5492 = vld [vmem:[%s6 + $0xd8] sm:$0xff]
      %v5493 = vld [vmem:[%s6 + $0xe0] sm:$0xff]
      %v5494 = vld [vmem:[%s6 + $0xe8] sm:$0xff]
      %v5495 = vld [vmem:[%s6 + $0xf0] sm:$0xff]
      %v5496 = vld [vmem:[%s6 + $0xf8] sm:$0xff]
      %v5497 = vld [vmem:[%s6 + $0x100] sm:$0xff]
      %v5498 = vld [vmem:[%s6 + $0x108] sm:$0xff]
      %v5499 = vld [vmem:[%s6 + $0x110] sm:$0xff]
      %v5500 = vld [vmem:[%s6 + $0x118] sm:$0xff]
      %v5501 = vld [vmem:[%s6 + $0x120] sm:$0x3f]
      %v5502 = vld [vmem:[%s6 + $0x128] sm:$0x3f]
      %v5503 = vld [vmem:[%s6 + $0x130] sm:$0x3f]
      %vm5504 = vcmask 105472
      %v5506 = vsel %vm5504, %v5467, 0
      %v5509 = vsel %vm5504, %v5470, 0
      %v5512 = vsel %vm5504, %v5473, 0
      %v5515 = vsel %vm5504, %v5476, 0
      %v5518 = vsel %vm5504, %v5479, 0
      %v5521 = vsel %vm5504, %v5482, 0
      %v5524 = vsel %vm5504, %v5485, 0
      %v5527 = vsel %vm5504, %v5488, 0
      %v5530 = vsel %vm5504, %v5491, 0
      %v5533 = vsel %vm5504, %v5494, 0
      %v5536 = vsel %vm5504, %v5497, 0
      %v5539 = vsel %vm5504, %v5500, 0
      %v5542 = vsel %vm5504, %v5503, 0
      %vm5544 = vcmask 1044480
      %v5546 = vsel %vm5544, %v5464, 0
      %5548 = vmatpush.msra.mxu0 %v5446
      %5549 = vmatpush.msra.mxu0 %v5445
      %5550 = vmatpush.msra.mxu0 %v5444
      %5551 = vmatpush.msra.mxu0 %v5443
      %5552 = vmatpush.msra.mxu0 %v5442
      %5553 = vmatpush.msra.mxu0 %v5441
      %5554 = vmatpush.msra.mxu0 %v5440
      %5555 = vmatpush.msra.mxu0 %v5439
      %5556 = vmatpush.msra.mxu0 %v5438
      %5557 = vmatpush.msra.mxu0 %v5437
      %5558 = vmatpush.msra.mxu0 %v5436
      %5559 = vmatpush.msra.mxu0 %v5435
      %5560 = vmatpush.msra.mxu0 %v5434
      %5561 = vmatpush.msra.mxu0 %v5433
      %5562 = vmatpush.msra.mxu0 %v5432
      %5563 = vmatpush.msra.mxu0 %v5431
      %5564 = vmatmul.f32.gmra.mxu0 %v5465
      %v5565 = vpop.f32.mrf.mxu0
      %v5566 = vadd.f32 0.0, %v5565
      %5567 = vmatmul.f32.gmra.mxu0 %v5468
      %v5568 = vpop.f32.mrf.mxu0
      %v5569 = vadd.f32 0.0, %v5568
      %5570 = vmatmul.f32.gmra.mxu0 %v5471
      %v5571 = vpop.f32.mrf.mxu0
      %v5572 = vadd.f32 0.0, %v5571
      %5573 = vmatmul.f32.gmra.mxu0 %v5474
      %v5574 = vpop.f32.mrf.mxu0
      %v5575 = vadd.f32 0.0, %v5574
      %5576 = vmatmul.f32.gmra.mxu0 %v5477
      %v5577 = vpop.f32.mrf.mxu0
      %v5578 = vadd.f32 0.0, %v5577
      %5579 = vmatmul.f32.gmra.mxu0 %v5480
      %v5580 = vpop.f32.mrf.mxu0
      %v5581 = vadd.f32 0.0, %v5580
      %5582 = vmatmul.f32.gmra.mxu0 %v5483
      %v5583 = vpop.f32.mrf.mxu0
      %v5584 = vadd.f32 0.0, %v5583
      %5585 = vmatmul.f32.gmra.mxu0 %v5486
      %v5586 = vpop.f32.mrf.mxu0
      %v5587 = vadd.f32 0.0, %v5586
      %5588 = vmatmul.f32.gmra.mxu0 %v5489
      %v5589 = vpop.f32.mrf.mxu0
      %v5590 = vadd.f32 0.0, %v5589
      %5591 = vmatmul.f32.gmra.mxu0 %v5492
      %v5592 = vpop.f32.mrf.mxu0
      %v5593 = vadd.f32 0.0, %v5592
      %5594 = vmatmul.f32.gmra.mxu0 %v5495
      %v5595 = vpop.f32.mrf.mxu0
      %v5596 = vadd.f32 0.0, %v5595
      %5597 = vmatmul.f32.gmra.mxu0 %v5498
      %v5598 = vpop.f32.mrf.mxu0
      %v5599 = vadd.f32 0.0, %v5598
      %5600 = vmatmul.f32.gmra.mxu0 %v5501
      %v5601 = vpop.f32.mrf.mxu0
      %v5602 = vadd.f32 0.0, %v5601
      %5603 = vdwg.mxu0
      %5604 = vmatpush.msra.mxu0 %v5462
      %5605 = vmatpush.msra.mxu0 %v5461
      %5606 = vmatpush.msra.mxu0 %v5460
      %5607 = vmatpush.msra.mxu0 %v5459
      %5608 = vmatpush.msra.mxu0 %v5458
      %5609 = vmatpush.msra.mxu0 %v5457
      %5610 = vmatpush.msra.mxu0 %v5456
      %5611 = vmatpush.msra.mxu0 %v5455
      %5612 = vmatpush.msra.mxu0 %v5454
      %5613 = vmatpush.msra.mxu0 %v5453
      %5614 = vmatpush.msra.mxu0 %v5452
      %5615 = vmatpush.msra.mxu0 %v5451
      %5616 = vmatpush.msra.mxu0 %v5450
      %5617 = vmatpush.msra.mxu0 %v5449
      %5618 = vmatpush.msra.mxu0 %v5448
      %5619 = vmatpush.msra.mxu0 %v5447
      %5620 = vmatmul.f32.gmra.mxu0 %v5466
      %v5621 = vpop.f32.mrf.mxu0
      %v5622 = vadd.f32 %v5566, %v5621
      %5623 = vmatmul.f32.gmra.mxu0 %v5469
      %v5624 = vpop.f32.mrf.mxu0
      %v5625 = vadd.f32 %v5569, %v5624
      %5626 = vmatmul.f32.gmra.mxu0 %v5472
      %v5627 = vpop.f32.mrf.mxu0
      %v5628 = vadd.f32 %v5572, %v5627
      %5629 = vmatmul.f32.gmra.mxu0 %v5475
      %v5630 = vpop.f32.mrf.mxu0
      %v5631 = vadd.f32 %v5575, %v5630
      %5632 = vmatmul.f32.gmra.mxu0 %v5478
      %v5633 = vpop.f32.mrf.mxu0
      %v5634 = vadd.f32 %v5578, %v5633
      %5635 = vmatmul.f32.gmra.mxu0 %v5481
      %v5636 = vpop.f32.mrf.mxu0
      %v5637 = vadd.f32 %v5581, %v5636
      %5638 = vmatmul.f32.gmra.mxu0 %v5484
      %v5639 = vpop.f32.mrf.mxu0
      %v5640 = vadd.f32 %v5584, %v5639
      %5641 = vmatmul.f32.gmra.mxu0 %v5487
      %v5642 = vpop.f32.mrf.mxu0
      %v5643 = vadd.f32 %v5587, %v5642
      %5644 = vmatmul.f32.gmra.mxu0 %v5490
      %v5645 = vpop.f32.mrf.mxu0
      %v5646 = vadd.f32 %v5590, %v5645
      %5647 = vmatmul.f32.gmra.mxu0 %v5493
      %v5648 = vpop.f32.mrf.mxu0
      %v5649 = vadd.f32 %v5593, %v5648
      %5650 = vmatmul.f32.gmra.mxu0 %v5496
      %v5651 = vpop.f32.mrf.mxu0
      %v5652 = vadd.f32 %v5596, %v5651
      %5653 = vmatmul.f32.gmra.mxu0 %v5499
      %v5654 = vpop.f32.mrf.mxu0
      %v5655 = vadd.f32 %v5599, %v5654
      %5656 = vmatmul.f32.gmra.mxu0 %v5502
      %v5657 = vpop.f32.mrf.mxu0
      %v5658 = vadd.f32 %v5602, %v5657
      %5659 = vdwg.mxu0
      %5660 = vmatpush.msra.mxu0 0.0
      %5661 = vmatpush.msra.mxu0 0.0
      %5662 = vmatpush.msra.mxu0 0.0
      %5663 = vmatpush.msra.mxu0 0.0
      %5664 = vmatpush.msra.mxu0 0.0
      %5665 = vmatpush.msra.mxu0 0.0
      %5666 = vmatpush.msra.mxu0 0.0
      %5667 = vmatpush.msra.mxu0 0.0
      %5668 = vmatpush.msra.mxu0 0.0
      %5669 = vmatpush.msra.mxu0 0.0
      %5670 = vmatpush.msra.mxu0 0.0
      %5671 = vmatpush.msra.mxu0 0.0
      %5672 = vmatpush.msra.mxu0 0.0
      %5673 = vmatpush.msra.mxu0 0.0
      %5674 = vmatpush.msra.mxu0 %v5546
      %5675 = vmatpush.msra.mxu0 %v5463
      %5676 = vmatmul.f32.gmra.mxu0 %v5506
      %v5677 = vpop.f32.mrf.mxu0
      %v5678 = vadd.f32 %v5622, %v5677
      %5679 = vmatmul.f32.gmra.mxu0 %v5509
      %v5680 = vpop.f32.mrf.mxu0
      %v5681 = vadd.f32 %v5625, %v5680
      %5682 = vmatmul.f32.gmra.mxu0 %v5512
      %v5683 = vpop.f32.mrf.mxu0
      %v5684 = vadd.f32 %v5628, %v5683
      %5685 = vmatmul.f32.gmra.mxu0 %v5515
      %v5686 = vpop.f32.mrf.mxu0
      %v5687 = vadd.f32 %v5631, %v5686
      %5688 = vmatmul.f32.gmra.mxu0 %v5518
      %v5689 = vpop.f32.mrf.mxu0
      %v5690 = vadd.f32 %v5634, %v5689
      %5691 = vmatmul.f32.gmra.mxu0 %v5521
      %v5692 = vpop.f32.mrf.mxu0
      %v5693 = vadd.f32 %v5637, %v5692
      %5694 = vmatmul.f32.gmra.mxu0 %v5524
      %v5695 = vpop.f32.mrf.mxu0
      %v5696 = vadd.f32 %v5640, %v5695
      %5697 = vmatmul.f32.gmra.mxu0 %v5527
      %v5698 = vpop.f32.mrf.mxu0
      %v5699 = vadd.f32 %v5643, %v5698
      %5700 = vmatmul.f32.gmra.mxu0 %v5530
      %v5701 = vpop.f32.mrf.mxu0
      %v5702 = vadd.f32 %v5646, %v5701
      %5703 = vmatmul.f32.gmra.mxu0 %v5533
      %v5704 = vpop.f32.mrf.mxu0
      %v5705 = vadd.f32 %v5649, %v5704
      %5706 = vmatmul.f32.gmra.mxu0 %v5536
      %v5707 = vpop.f32.mrf.mxu0
      %v5708 = vadd.f32 %v5652, %v5707
      %5709 = vmatmul.f32.gmra.mxu0 %v5539
      %v5710 = vpop.f32.mrf.mxu0
      %v5711 = vadd.f32 %v5655, %v5710
      %5712 = vmatmul.f32.gmra.mxu0 %v5542
      %v5713 = vpop.f32.mrf.mxu0
      %v5714 = vadd.f32 %v5658, %v5713
      %5715 = vdwg.mxu0
      %5716 = vst.msk [vmem:[%s278] sm:$0xff] %vm2769, %v5678
      %5717 = vst.msk [vmem:[%s278 + $0x8] sm:$0xff] %vm2769, %v5681
      %5718 = vst.msk [vmem:[%s278 + $0x10] sm:$0xff] %vm2769, %v5684
      %5719 = vst.msk [vmem:[%s278 + $0x18] sm:$0xff] %vm2769, %v5687
      %5720 = vst.msk [vmem:[%s278 + $0x20] sm:$0xff] %vm2769, %v5690
      %5721 = vst.msk [vmem:[%s278 + $0x28] sm:$0xff] %vm2769, %v5693
      %5722 = vst.msk [vmem:[%s278 + $0x30] sm:$0xff] %vm2769, %v5696
      %5723 = vst.msk [vmem:[%s278 + $0x38] sm:$0xff] %vm2769, %v5699
      %5724 = vst.msk [vmem:[%s278 + $0x40] sm:$0xff] %vm2769, %v5702
      %5725 = vst.msk [vmem:[%s278 + $0x48] sm:$0xff] %vm2769, %v5705
      %5726 = vst.msk [vmem:[%s278 + $0x50] sm:$0xff] %vm2769, %v5708
      %5727 = vst.msk [vmem:[%s278 + $0x58] sm:$0xff] %vm2769, %v5711
      %5728 = vst.msk [vmem:[%s278 + $0x60] sm:$0x3f] %vm2810, %v5714
      %p5729 = scmp.lt.s32.totalorder %s18, 1
      %s5730 = scalar_select %p5729, %s18, 1
      %s5731 = smul.addr %s5730, 13
      %s5732 = smul.addr %s5731, 8
      %s5733 = scalar_lea.vmem %s7, %s5732
      // Predicated region
      $region49: #{forward.4} parent=47 // pred_check
        %p5734 = pneg %p188
      $region50: #{forward.4} parent=47 // pred_check_branch
        %5736 = sbr.rel (%p5734) target = $region52
      $region51: #{forward.4} parent=47 // pred_region
        _
      $region52: #{forward.4} parent=47 // pred_fallthru
        _
    $region48: #{forward.4} parent=5 // pred_fallthru
      _
    %p5737 = scmp.le.s32.totalorder 2, %s13
    // Predicated region
    $region53: #{forward.4} parent=5 // pred_check
      %p5738 = pneg %p5737
    $region54: #{forward.4} parent=5 // pred_check_branch
      %5740 = sbr.rel (%p5738) target = $region56
    $region55: #{forward.4} parent=5 // pred_region
      %s5741 = ssub.s32 %s13, 2
      // Predicated region
      $region57: #{forward.4} parent=55 // pred_check
        %p5742 = pneg %p194
      $region58: #{forward.4} parent=55 // pred_check_branch
        %5744 = sbr.rel (%p5742) target = $region60
      $region59: #{forward.4} parent=55 // pred_region
        %p5745 = scmp.lt.s32.totalorder %s19, 1
        %s5746 = scalar_select %p5745, %s19, 1
        %s5747 = smul.addr %s5746, 13
        %s5748 = smul.addr %s5747, 8
        %s5749 = scalar_lea.vmem %s7, %s5748
      $region60: #{forward.4} parent=55 // pred_fallthru
        _
    $region56: #{forward.4} parent=5 // pred_fallthru
      _
  $region6: #{forward.4} parent=0 // loop_footer
    %s17 = sadd.s32 1, %s13
  $region7: #{forward.4} parent=0 // loop_footer_branch
    %12 = sbr.rel target = $region3
  $region8: #{forward.4} parent=0 // loop_exit
    _

</llo_original>
